<compile_context>
chip_gen: v7x
topology: tpu7x:2x2x1
jax: 0.10.0
libtpu: 0.0.40
codegen_flags: <defaults>
</compile_context>

<pallas_src>
import jax
import jax.numpy as jnp
from jax import lax
from jax.experimental import pallas as pl
from jax.experimental.pallas import tpu as pltpu


# ----------------------------------------------------------------------------
# Static network geometry
# ----------------------------------------------------------------------------
H_IN, W_IN = 122, 250
C1, H1, W1 = 8, 120, 248          # conv1 output
H1P, W1P = 60, 124                # after pool1
C2, H2, W2 = 16, 58, 122          # conv2 output
H2P, W2P = 29, 61                 # after pool2
HW2P = H2P * W2P                  # 1769
FLAT = C2 * HW2P                  # 28304
HIDDEN = 64


# ----------------------------------------------------------------------------
# In-kernel helpers: 2x2 max-pool via pairwise max + 0/1 selection matmuls
# ----------------------------------------------------------------------------
def _pool_selectors(h, w):
    """0/1 matrices selecting even/odd rows (P*) and even/odd cols (S*)."""
    ho, wo = h // 2, w // 2
    ri = lax.broadcasted_iota(jnp.int32, (ho, h), 0)
    rj = lax.broadcasted_iota(jnp.int32, (ho, h), 1)
    p0 = (rj == 2 * ri).astype(jnp.float32)          # picks row 2i
    p1 = (rj == 2 * ri + 1).astype(jnp.float32)      # picks row 2i+1
    ci = lax.broadcasted_iota(jnp.int32, (w, wo), 0)
    cj = lax.broadcasted_iota(jnp.int32, (w, wo), 1)
    s0 = (ci == 2 * cj).astype(jnp.float32)          # picks col 2j
    s1 = (ci == 2 * cj + 1).astype(jnp.float32)      # picks col 2j+1
    return p0, p1, s0, s1


def _maxpool2x2(y, sel):
    """2x2/stride-2 max pool of a (H, W) value (H, W even)."""
    p0, p1, s0, s1 = sel
    r = jnp.maximum(jnp.dot(p0, y, preferred_element_type=jnp.float32),
                    jnp.dot(p1, y, preferred_element_type=jnp.float32))
    return jnp.maximum(jnp.dot(r, s0, preferred_element_type=jnp.float32),
                       jnp.dot(r, s1, preferred_element_type=jnp.float32))


# ----------------------------------------------------------------------------
# Kernel A: conv1 + ReLU + pool -> conv2 + ReLU + pool  (one sample per step)
# ----------------------------------------------------------------------------
def _conv_block_kernel(x_ref, w1_ref, b1_ref, w2_ref, b2_ref, o_ref, p1_ref):
    # x_ref : (122, 250) VMEM            w1_ref: (72,)   SMEM  (8,1,3,3) flat
    # b1_ref: (8,) SMEM                  w2_ref: (1152,) SMEM  (16,8,3,3) flat
    # b2_ref: (16,) SMEM                 o_ref : (16, 29, 61) VMEM
    # p1_ref: (8, 60, 124) VMEM scratch  (pooled conv1 output, stays on-chip)
    sel1 = _pool_selectors(H1, W1)
    sel2 = _pool_selectors(H2, W2)

    def conv1_channel(co, carry):
        acc = jnp.zeros((H1, W1), jnp.float32)
        for kh in range(3):
            for kw in range(3):
                wv = w1_ref[co * 9 + kh * 3 + kw]
                acc = acc + wv * x_ref[kh:kh + H1, kw:kw + W1]
        y = jnp.maximum(acc + b1_ref[co], 0.0)
        p1_ref[co] = _maxpool2x2(y, sel1)
        return carry

    lax.fori_loop(0, C1, conv1_channel, 0)

    def conv2_channel(co, carry):
        acc = jnp.zeros((H2, W2), jnp.float32)
        for ci in range(C1):
            for kh in range(3):
                for kw in range(3):
                    wv = w2_ref[co * 72 + ci * 9 + kh * 3 + kw]
                    acc = acc + wv * p1_ref[ci, kh:kh + H2, kw:kw + W2]
        y = jnp.maximum(acc + b2_ref[co], 0.0)
        o_ref[co] = _maxpool2x2(y, sel2)
        return carry

    lax.fori_loop(0, C2, conv2_channel, 0)


def conv_block(x, conv1_w, conv1_b, conv2_w, conv2_b):
    n = x.shape[0]
    return pl.pallas_call(
        _conv_block_kernel,
        out_shape=jax.ShapeDtypeStruct((n, C2, H2P, W2P), jnp.float32),
        grid=(n,),
        in_specs=[
            pl.BlockSpec((None, None, H_IN, W_IN), lambda i: (i, 0, 0, 0)),
            pl.BlockSpec(memory_space=pltpu.MemorySpace.SMEM),
            pl.BlockSpec(memory_space=pltpu.MemorySpace.SMEM),
            pl.BlockSpec(memory_space=pltpu.MemorySpace.SMEM),
            pl.BlockSpec(memory_space=pltpu.MemorySpace.SMEM),
        ],
        out_specs=pl.BlockSpec((None, C2, H2P, W2P), lambda i: (i, 0, 0, 0)),
        scratch_shapes=[pltpu.VMEM((C1, H1P, W1P), jnp.float32)],
        compiler_params=pltpu.CompilerParams(
            dimension_semantics=("parallel",)),
    )(x, conv1_w.reshape(-1), conv1_b, conv2_w.reshape(-1), conv2_b)


# ----------------------------------------------------------------------------
# Kernel B: fused fc1 + ReLU + fc2  (one sample per step, f32 accumulation)
# ----------------------------------------------------------------------------
def _mlp_kernel(x_ref, w1_ref, b1_ref, w2_ref, b2_ref, o_ref):
    # x_ref : (16, 1769)       flattened activations (channel-chunked)
    # w1_ref: (16, 64, 1769)   fc1 weight, 1769 spatial axis kept lane-dense
    # b1_ref: (64, 1)   w2_ref: (64, nc)   b2_ref/o_ref: (1, nc)
    def chunk(c, acc):
        xc = x_ref[pl.ds(c, 1), :]            # (1, 1769)
        wc = w1_ref[c]                        # (64, 1769)
        return acc + jnp.sum(wc * xc, axis=1, keepdims=True)

    acc = lax.fori_loop(0, C2, chunk, jnp.zeros((HIDDEN, 1), jnp.float32))
    h = jnp.maximum(acc + b1_ref[...], 0.0)                    # (64, 1)
    o_ref[...] = (jnp.sum(w2_ref[...] * h, axis=0, keepdims=True)
                  + b2_ref[...])                               # (1, nc)


def mlp_head(x_flat, fc1_wr, fc1_bc, fc2_wt, fc2_br):
    n = x_flat.shape[0]
    nc = fc2_wt.shape[1]
    out = pl.pallas_call(
        _mlp_kernel,
        out_shape=jax.ShapeDtypeStruct((n, 1, nc), jnp.float32),
        grid=(n,),
        in_specs=[
            pl.BlockSpec((None, C2, HW2P), lambda i: (i, 0, 0)),
            pl.BlockSpec((C2, HIDDEN, HW2P), lambda i: (0, 0, 0)),
            pl.BlockSpec((HIDDEN, 1), lambda i: (0, 0)),
            pl.BlockSpec((HIDDEN, nc), lambda i: (0, 0)),
            pl.BlockSpec((1, nc), lambda i: (0, 0)),
        ],
        out_specs=pl.BlockSpec((None, 1, nc), lambda i: (i, 0, 0)),
        compiler_params=pltpu.CompilerParams(
            dimension_semantics=("parallel",),
            vmem_limit_bytes=24 * 1024 * 1024),
    )(x_flat, fc1_wr, fc1_bc, fc2_wt, fc2_br)
    return out.reshape(n, nc)


# ----------------------------------------------------------------------------
# Full forward pass (matches nn.Sequential in AccentCNN)
# ----------------------------------------------------------------------------
def accent_cnn_forward(x, params):
    y = conv_block(x, params["conv1_w"], params["conv1_b"],
                   params["conv2_w"], params["conv2_b"])       # (N, 16, 29, 61)
    n = y.shape[0]
    x_flat = y.reshape(n, C2, HW2P)     # PyTorch (C,H,W) flatten order; free reshape
    return mlp_head(x_flat, params["fc1_wr"], params["fc1_bc"],
                    params["fc2_wt"], params["fc2_br"])        # (N, num_classes)


# ----------------------------------------------------------------------------
# Parameters: PyTorch-shaped init, converted ONCE to kernel-friendly layouts
# ----------------------------------------------------------------------------
def prepare_params(tp):
    return {
        "conv1_w": tp["conv1_w"], "conv1_b": tp["conv1_b"],
        "conv2_w": tp["conv2_w"], "conv2_b": tp["conv2_b"],
        # fc1 (64, 28304) -> (16, 64, 1769): per-channel chunks, spatial axis
        # lane-dense; done once at init (no per-forward 7.2 MB transpose).
        "fc1_wr": tp["fc1_w"].reshape(HIDDEN, C2, HW2P).transpose(1, 0, 2),
        "fc1_bc": tp["fc1_b"].reshape(HIDDEN, 1),
        "fc2_wt": tp["fc2_w"].T,                     # (64, num_classes)
        "fc2_br": tp["fc2_b"].reshape(1, -1),
    }


def init_params(key, num_classes=5):
    ks = jax.random.split(key, 8)

    def u(k, shape, fan_in):
        bound = float(fan_in) ** -0.5
        return jax.random.uniform(k, shape, jnp.float32, -bound, bound)

    torch_shaped = {
        "conv1_w": u(ks[0], (C1, 1, 3, 3), 1 * 9),
        "conv1_b": u(ks[1], (C1,), 1 * 9),
        "conv2_w": u(ks[2], (C2, C1, 3, 3), C1 * 9),
        "conv2_b": u(ks[3], (C2,), C1 * 9),
        "fc1_w": u(ks[4], (HIDDEN, FLAT), FLAT),
        "fc1_b": u(ks[5], (HIDDEN,), FLAT),
        "fc2_w": u(ks[6], (num_classes, HIDDEN), HIDDEN),
        "fc2_b": u(ks[7], (num_classes,), HIDDEN),
    }
    return prepare_params(torch_shaped)


if __name__ == "__main__":
    key = jax.random.PRNGKey(0)
    kx, kp = jax.random.split(key)
    # Smallest input consistent with Linear(16*29*61, 64): (N, 1, 122, 250)
    x = jax.random.normal(kx, (2, 1, H_IN, W_IN), jnp.float32)
    params = init_params(kp, num_classes=5)

    fwd = jax.jit(accent_cnn_forward)
    out = jax.block_until_ready(fwd(x, params))
    assert out.shape == (2, 5) and out.dtype == jnp.float32
    print("KERNEL_OK")
</pallas_src>

<mosaic_0001>
module attributes {stable_mosaic.version = 11 : i64} {
  func.func @_conv_block_kernel(%arg0: i32, %arg1: memref<1x1x122x250xf32, #tpu.memory_space<vmem>>, %arg2: memref<72xf32, #tpu.memory_space<smem>>, %arg3: memref<8xf32, #tpu.memory_space<smem>>, %arg4: memref<1152xf32, #tpu.memory_space<smem>>, %arg5: memref<16xf32, #tpu.memory_space<smem>>, %arg6: memref<1x16x29x61xf32, #tpu.memory_space<vmem>>, %arg7: memref<8x60x124xf32, #tpu.memory_space<vmem>>) attributes {dimension_semantics = [#tpu.dimension_semantics<parallel>], iteration_bounds = array<i64: 2>, scalar_prefetch = 0 : i64, scratch_operands = 1 : i64, tpu.core_type = #tpu.core_type<tc>, window_params = [{transform_indices = @transform_0, window_bounds = array<i64: 1, 1, 122, 250>}, {transform_indices = @transform_1, window_bounds = array<i64: 72>}, {transform_indices = @transform_2, window_bounds = array<i64: 8>}, {transform_indices = @transform_3, window_bounds = array<i64: 1152>}, {transform_indices = @transform_4, window_bounds = array<i64: 16>}, {transform_indices = @transform_5, window_bounds = array<i64: 1, 16, 29, 61>}]} {
    %0 = tpu.iota {dimensions = array<i32: 0>} : vector<60x120xi32>
    %1 = tpu.iota {dimensions = array<i32: 1>} : vector<60x120xi32>
    %c2_i32 = arith.constant 2 : i32
    %2 = vector.broadcast %c2_i32 : i32 to vector<60x120xi32>
    %3 = arith.muli %2, %0 : vector<60x120xi32>
    %4 = arith.cmpi eq, %1, %3 : vector<60x120xi32>
    %5 = arith.extui %4 : vector<60x120xi1> to vector<60x120xi32>
    %6 = arith.sitofp %5 : vector<60x120xi32> to vector<60x120xf32>
    %c2_i32_0 = arith.constant 2 : i32
    %7 = vector.broadcast %c2_i32_0 : i32 to vector<60x120xi32>
    %8 = arith.muli %7, %0 : vector<60x120xi32>
    %c1_i32 = arith.constant 1 : i32
    %9 = vector.broadcast %c1_i32 : i32 to vector<60x120xi32>
    %10 = arith.addi %8, %9 : vector<60x120xi32>
    %11 = arith.cmpi eq, %1, %10 : vector<60x120xi32>
    %12 = arith.extui %11 : vector<60x120xi1> to vector<60x120xi32>
    %13 = arith.sitofp %12 : vector<60x120xi32> to vector<60x120xf32>
    %14 = tpu.iota {dimensions = array<i32: 0>} : vector<248x124xi32>
    %15 = tpu.iota {dimensions = array<i32: 1>} : vector<248x124xi32>
    %c2_i32_1 = arith.constant 2 : i32
    %16 = vector.broadcast %c2_i32_1 : i32 to vector<248x124xi32>
    %17 = arith.muli %16, %15 : vector<248x124xi32>
    %18 = arith.cmpi eq, %14, %17 : vector<248x124xi32>
    %19 = arith.extui %18 : vector<248x124xi1> to vector<248x124xi32>
    %20 = arith.sitofp %19 : vector<248x124xi32> to vector<248x124xf32>
    %c2_i32_2 = arith.constant 2 : i32
    %21 = vector.broadcast %c2_i32_2 : i32 to vector<248x124xi32>
    %22 = arith.muli %21, %15 : vector<248x124xi32>
    %c1_i32_3 = arith.constant 1 : i32
    %23 = vector.broadcast %c1_i32_3 : i32 to vector<248x124xi32>
    %24 = arith.addi %22, %23 : vector<248x124xi32>
    %25 = arith.cmpi eq, %14, %24 : vector<248x124xi32>
    %26 = arith.extui %25 : vector<248x124xi1> to vector<248x124xi32>
    %27 = arith.sitofp %26 : vector<248x124xi32> to vector<248x124xf32>
    %28 = tpu.iota {dimensions = array<i32: 0>} : vector<29x58xi32>
    %29 = tpu.iota {dimensions = array<i32: 1>} : vector<29x58xi32>
    %c2_i32_4 = arith.constant 2 : i32
    %30 = vector.broadcast %c2_i32_4 : i32 to vector<29x58xi32>
    %31 = arith.muli %30, %28 : vector<29x58xi32>
    %32 = arith.cmpi eq, %29, %31 : vector<29x58xi32>
    %33 = arith.extui %32 : vector<29x58xi1> to vector<29x58xi32>
    %34 = arith.sitofp %33 : vector<29x58xi32> to vector<29x58xf32>
    %c2_i32_5 = arith.constant 2 : i32
    %35 = vector.broadcast %c2_i32_5 : i32 to vector<29x58xi32>
    %36 = arith.muli %35, %28 : vector<29x58xi32>
    %c1_i32_6 = arith.constant 1 : i32
    %37 = vector.broadcast %c1_i32_6 : i32 to vector<29x58xi32>
    %38 = arith.addi %36, %37 : vector<29x58xi32>
    %39 = arith.cmpi eq, %29, %38 : vector<29x58xi32>
    %40 = arith.extui %39 : vector<29x58xi1> to vector<29x58xi32>
    %41 = arith.sitofp %40 : vector<29x58xi32> to vector<29x58xf32>
    %42 = tpu.iota {dimensions = array<i32: 0>} : vector<122x61xi32>
    %43 = tpu.iota {dimensions = array<i32: 1>} : vector<122x61xi32>
    %c2_i32_7 = arith.constant 2 : i32
    %44 = vector.broadcast %c2_i32_7 : i32 to vector<122x61xi32>
    %45 = arith.muli %44, %43 : vector<122x61xi32>
    %46 = arith.cmpi eq, %42, %45 : vector<122x61xi32>
    %47 = arith.extui %46 : vector<122x61xi1> to vector<122x61xi32>
    %48 = arith.sitofp %47 : vector<122x61xi32> to vector<122x61xf32>
    %c2_i32_8 = arith.constant 2 : i32
    %49 = vector.broadcast %c2_i32_8 : i32 to vector<122x61xi32>
    %50 = arith.muli %49, %43 : vector<122x61xi32>
    %c1_i32_9 = arith.constant 1 : i32
    %51 = vector.broadcast %c1_i32_9 : i32 to vector<122x61xi32>
    %52 = arith.addi %50, %51 : vector<122x61xi32>
    %53 = arith.cmpi eq, %42, %52 : vector<122x61xi32>
    %54 = arith.extui %53 : vector<122x61xi1> to vector<122x61xi32>
    %55 = arith.sitofp %54 : vector<122x61xi32> to vector<122x61xf32>
    %c0_i32 = arith.constant 0 : i32
    %c8_i32 = arith.constant 8 : i32
    %56 = arith.addi %c0_i32, %c8_i32 : i32
    %c1_i32_10 = arith.constant 1 : i32
    scf.for %arg8 = %c0_i32 to %56 step %c1_i32_10  : i32 {
      %cst = arith.constant 0.000000e+00 : f32
      %58 = vector.broadcast %cst : f32 to vector<120x248xf32>
      %c9_i32 = arith.constant 9 : i32
      %59 = arith.muli %arg8, %c9_i32 : i32
      %c0_i32_15 = arith.constant 0 : i32
      %60 = arith.addi %59, %c0_i32_15 : i32
      %c0_i32_16 = arith.constant 0 : i32
      %61 = arith.addi %60, %c0_i32_16 : i32
      %62 = arith.index_cast %61 : i32 to index
      %63 = memref.load %arg2[%62] : memref<72xf32, #tpu.memory_space<smem>>
      %c0 = arith.constant 0 : index
      %c0_17 = arith.constant 0 : index
      %c0_18 = arith.constant 0 : index
      %c0_19 = arith.constant 0 : index
      %64 = vector.load %arg1[%c0, %c0_17, %c0_18, %c0_19] : memref<1x1x122x250xf32, #tpu.memory_space<vmem>>, vector<1x1x120x248xf32>
      %65 = vector.shape_cast %64 : vector<1x1x120x248xf32> to vector<120x248xf32>
      %66 = vector.broadcast %63 : f32 to vector<120x248xf32>
      %67 = arith.mulf %66, %65 : vector<120x248xf32>
      %68 = arith.addf %58, %67 : vector<120x248xf32>
      %c9_i32_20 = arith.constant 9 : i32
      %69 = arith.muli %arg8, %c9_i32_20 : i32
      %c0_i32_21 = arith.constant 0 : i32
      %70 = arith.addi %69, %c0_i32_21 : i32
      %c1_i32_22 = arith.constant 1 : i32
      %71 = arith.addi %70, %c1_i32_22 : i32
      %72 = arith.index_cast %71 : i32 to index
      %73 = memref.load %arg2[%72] : memref<72xf32, #tpu.memory_space<smem>>
      %c0_23 = arith.constant 0 : index
      %c0_24 = arith.constant 0 : index
      %c0_25 = arith.constant 0 : index
      %c1 = arith.constant 1 : index
      %74 = vector.load %arg1[%c0_23, %c0_24, %c0_25, %c1] : memref<1x1x122x250xf32, #tpu.memory_space<vmem>>, vector<1x1x120x248xf32>
      %75 = vector.shape_cast %74 : vector<1x1x120x248xf32> to vector<120x248xf32>
      %76 = vector.broadcast %73 : f32 to vector<120x248xf32>
      %77 = arith.mulf %76, %75 : vector<120x248xf32>
      %78 = arith.addf %68, %77 : vector<120x248xf32>
      %c9_i32_26 = arith.constant 9 : i32
      %79 = arith.muli %arg8, %c9_i32_26 : i32
      %c0_i32_27 = arith.constant 0 : i32
      %80 = arith.addi %79, %c0_i32_27 : i32
      %c2_i32_28 = arith.constant 2 : i32
      %81 = arith.addi %80, %c2_i32_28 : i32
      %82 = arith.index_cast %81 : i32 to index
      %83 = memref.load %arg2[%82] : memref<72xf32, #tpu.memory_space<smem>>
      %c0_29 = arith.constant 0 : index
      %c0_30 = arith.constant 0 : index
      %c0_31 = arith.constant 0 : index
      %c2 = arith.constant 2 : index
      %84 = vector.load %arg1[%c0_29, %c0_30, %c0_31, %c2] : memref<1x1x122x250xf32, #tpu.memory_space<vmem>>, vector<1x1x120x248xf32>
      %85 = vector.shape_cast %84 : vector<1x1x120x248xf32> to vector<120x248xf32>
      %86 = vector.broadcast %83 : f32 to vector<120x248xf32>
      %87 = arith.mulf %86, %85 : vector<120x248xf32>
      %88 = arith.addf %78, %87 : vector<120x248xf32>
      %c9_i32_32 = arith.constant 9 : i32
      %89 = arith.muli %arg8, %c9_i32_32 : i32
      %c3_i32 = arith.constant 3 : i32
      %90 = arith.addi %89, %c3_i32 : i32
      %c0_i32_33 = arith.constant 0 : i32
      %91 = arith.addi %90, %c0_i32_33 : i32
      %92 = arith.index_cast %91 : i32 to index
      %93 = memref.load %arg2[%92] : memref<72xf32, #tpu.memory_space<smem>>
      %c0_34 = arith.constant 0 : index
      %c0_35 = arith.constant 0 : index
      %c1_36 = arith.constant 1 : index
      %c0_37 = arith.constant 0 : index
      %94 = vector.load %arg1[%c0_34, %c0_35, %c1_36, %c0_37] : memref<1x1x122x250xf32, #tpu.memory_space<vmem>>, vector<1x1x120x248xf32>
      %95 = vector.shape_cast %94 : vector<1x1x120x248xf32> to vector<120x248xf32>
      %96 = vector.broadcast %93 : f32 to vector<120x248xf32>
      %97 = arith.mulf %96, %95 : vector<120x248xf32>
      %98 = arith.addf %88, %97 : vector<120x248xf32>
      %c9_i32_38 = arith.constant 9 : i32
      %99 = arith.muli %arg8, %c9_i32_38 : i32
      %c3_i32_39 = arith.constant 3 : i32
      %100 = arith.addi %99, %c3_i32_39 : i32
      %c1_i32_40 = arith.constant 1 : i32
      %101 = arith.addi %100, %c1_i32_40 : i32
      %102 = arith.index_cast %101 : i32 to index
      %103 = memref.load %arg2[%102] : memref<72xf32, #tpu.memory_space<smem>>
      %c0_41 = arith.constant 0 : index
      %c0_42 = arith.constant 0 : index
      %c1_43 = arith.constant 1 : index
      %c1_44 = arith.constant 1 : index
      %104 = vector.load %arg1[%c0_41, %c0_42, %c1_43, %c1_44] : memref<1x1x122x250xf32, #tpu.memory_space<vmem>>, vector<1x1x120x248xf32>
      %105 = vector.shape_cast %104 : vector<1x1x120x248xf32> to vector<120x248xf32>
      %106 = vector.broadcast %103 : f32 to vector<120x248xf32>
      %107 = arith.mulf %106, %105 : vector<120x248xf32>
      %108 = arith.addf %98, %107 : vector<120x248xf32>
      %c9_i32_45 = arith.constant 9 : i32
      %109 = arith.muli %arg8, %c9_i32_45 : i32
      %c3_i32_46 = arith.constant 3 : i32
      %110 = arith.addi %109, %c3_i32_46 : i32
      %c2_i32_47 = arith.constant 2 : i32
      %111 = arith.addi %110, %c2_i32_47 : i32
      %112 = arith.index_cast %111 : i32 to index
      %113 = memref.load %arg2[%112] : memref<72xf32, #tpu.memory_space<smem>>
      %c0_48 = arith.constant 0 : index
      %c0_49 = arith.constant 0 : index
      %c1_50 = arith.constant 1 : index
      %c2_51 = arith.constant 2 : index
      %114 = vector.load %arg1[%c0_48, %c0_49, %c1_50, %c2_51] : memref<1x1x122x250xf32, #tpu.memory_space<vmem>>, vector<1x1x120x248xf32>
      %115 = vector.shape_cast %114 : vector<1x1x120x248xf32> to vector<120x248xf32>
      %116 = vector.broadcast %113 : f32 to vector<120x248xf32>
      %117 = arith.mulf %116, %115 : vector<120x248xf32>
      %118 = arith.addf %108, %117 : vector<120x248xf32>
      %c9_i32_52 = arith.constant 9 : i32
      %119 = arith.muli %arg8, %c9_i32_52 : i32
      %c6_i32 = arith.constant 6 : i32
      %120 = arith.addi %119, %c6_i32 : i32
      %c0_i32_53 = arith.constant 0 : i32
      %121 = arith.addi %120, %c0_i32_53 : i32
      %122 = arith.index_cast %121 : i32 to index
      %123 = memref.load %arg2[%122] : memref<72xf32, #tpu.memory_space<smem>>
      %c0_54 = arith.constant 0 : index
      %c0_55 = arith.constant 0 : index
      %c2_56 = arith.constant 2 : index
      %c0_57 = arith.constant 0 : index
      %124 = vector.load %arg1[%c0_54, %c0_55, %c2_56, %c0_57] : memref<1x1x122x250xf32, #tpu.memory_space<vmem>>, vector<1x1x120x248xf32>
      %125 = vector.shape_cast %124 : vector<1x1x120x248xf32> to vector<120x248xf32>
      %126 = vector.broadcast %123 : f32 to vector<120x248xf32>
      %127 = arith.mulf %126, %125 : vector<120x248xf32>
      %128 = arith.addf %118, %127 : vector<120x248xf32>
      %c9_i32_58 = arith.constant 9 : i32
      %129 = arith.muli %arg8, %c9_i32_58 : i32
      %c6_i32_59 = arith.constant 6 : i32
      %130 = arith.addi %129, %c6_i32_59 : i32
      %c1_i32_60 = arith.constant 1 : i32
      %131 = arith.addi %130, %c1_i32_60 : i32
      %132 = arith.index_cast %131 : i32 to index
      %133 = memref.load %arg2[%132] : memref<72xf32, #tpu.memory_space<smem>>
      %c0_61 = arith.constant 0 : index
      %c0_62 = arith.constant 0 : index
      %c2_63 = arith.constant 2 : index
      %c1_64 = arith.constant 1 : index
      %134 = vector.load %arg1[%c0_61, %c0_62, %c2_63, %c1_64] : memref<1x1x122x250xf32, #tpu.memory_space<vmem>>, vector<1x1x120x248xf32>
      %135 = vector.shape_cast %134 : vector<1x1x120x248xf32> to vector<120x248xf32>
      %136 = vector.broadcast %133 : f32 to vector<120x248xf32>
      %137 = arith.mulf %136, %135 : vector<120x248xf32>
      %138 = arith.addf %128, %137 : vector<120x248xf32>
      %c9_i32_65 = arith.constant 9 : i32
      %139 = arith.muli %arg8, %c9_i32_65 : i32
      %c6_i32_66 = arith.constant 6 : i32
      %140 = arith.addi %139, %c6_i32_66 : i32
      %c2_i32_67 = arith.constant 2 : i32
      %141 = arith.addi %140, %c2_i32_67 : i32
      %142 = arith.index_cast %141 : i32 to index
      %143 = memref.load %arg2[%142] : memref<72xf32, #tpu.memory_space<smem>>
      %c0_68 = arith.constant 0 : index
      %c0_69 = arith.constant 0 : index
      %c2_70 = arith.constant 2 : index
      %c2_71 = arith.constant 2 : index
      %144 = vector.load %arg1[%c0_68, %c0_69, %c2_70, %c2_71] : memref<1x1x122x250xf32, #tpu.memory_space<vmem>>, vector<1x1x120x248xf32>
      %145 = vector.shape_cast %144 : vector<1x1x120x248xf32> to vector<120x248xf32>
      %146 = vector.broadcast %143 : f32 to vector<120x248xf32>
      %147 = arith.mulf %146, %145 : vector<120x248xf32>
      %148 = arith.addf %138, %147 : vector<120x248xf32>
      %149 = arith.index_cast %arg8 : i32 to index
      %150 = memref.load %arg3[%149] : memref<8xf32, #tpu.memory_space<smem>>
      %151 = vector.broadcast %150 : f32 to vector<120x248xf32>
      %152 = arith.addf %148, %151 : vector<120x248xf32>
      %cst_72 = arith.constant 0.000000e+00 : f32
      %153 = vector.broadcast %cst_72 : f32 to vector<120x248xf32>
      %154 = arith.maximumf %152, %153 : vector<120x248xf32>
      %cst_73 = arith.constant dense<0.000000e+00> : vector<60x248xf32>
      %155 = tpu.matmul %6, %154, %cst_73 {dimension_numbers = #tpu.dot_dimension_numbers<[1], [0], [0], [1], [0, 0, 1, 1], [], []>} : vector<60x120xf32>, vector<120x248xf32>, vector<60x248xf32> -> vector<60x248xf32>
      %cst_74 = arith.constant dense<0.000000e+00> : vector<60x248xf32>
      %156 = tpu.matmul %13, %154, %cst_74 {dimension_numbers = #tpu.dot_dimension_numbers<[1], [0], [0], [1], [0, 0, 1, 1], [], []>} : vector<60x120xf32>, vector<120x248xf32>, vector<60x248xf32> -> vector<60x248xf32>
      %157 = arith.maximumf %155, %156 : vector<60x248xf32>
      %cst_75 = arith.constant dense<0.000000e+00> : vector<60x124xf32>
      %158 = tpu.matmul %157, %20, %cst_75 {dimension_numbers = #tpu.dot_dimension_numbers<[1], [0], [0], [1], [0, 0, 1, 1], [], []>} : vector<60x248xf32>, vector<248x124xf32>, vector<60x124xf32> -> vector<60x124xf32>
      %cst_76 = arith.constant dense<0.000000e+00> : vector<60x124xf32>
      %159 = tpu.matmul %157, %27, %cst_76 {dimension_numbers = #tpu.dot_dimension_numbers<[1], [0], [0], [1], [0, 0, 1, 1], [], []>} : vector<60x248xf32>, vector<248x124xf32>, vector<60x124xf32> -> vector<60x124xf32>
      %160 = arith.maximumf %158, %159 : vector<60x124xf32>
      %161 = arith.index_cast %arg8 : i32 to index
      %c0_77 = arith.constant 0 : index
      %c0_78 = arith.constant 0 : index
      %162 = vector.load %arg7[%161, %c0_77, %c0_78] : memref<8x60x124xf32, #tpu.memory_space<vmem>>, vector<1x60x124xf32>
      %163 = vector.shape_cast %162 : vector<1x60x124xf32> to vector<60x124xf32>
      %164 = vector.shape_cast %160 : vector<60x124xf32> to vector<1x60x124xf32>
      tpu.vector_store %arg7[%161, %c0_77, %c0_78], %164 {strides = array<i32>} : memref<8x60x124xf32, #tpu.memory_space<vmem>>, vector<1x60x124xf32>,
    }
    %c8_i32_11 = arith.constant 8 : i32
    %c0_i32_12 = arith.constant 0 : i32
    %c16_i32 = arith.constant 16 : i32
    %57 = arith.addi %c0_i32_12, %c16_i32 : i32
    %c1_i32_13 = arith.constant 1 : i32
    scf.for %arg8 = %c0_i32_12 to %57 step %c1_i32_13  : i32 {
      %cst = arith.constant 0.000000e+00 : f32
      %58 = vector.broadcast %cst : f32 to vector<58x122xf32>
      %c72_i32 = arith.constant 72 : i32
      %59 = arith.muli %arg8, %c72_i32 : i32
      %c0_i32_15 = arith.constant 0 : i32
      %60 = arith.addi %59, %c0_i32_15 : i32
      %c0_i32_16 = arith.constant 0 : i32
      %61 = arith.addi %60, %c0_i32_16 : i32
      %c0_i32_17 = arith.constant 0 : i32
      %62 = arith.addi %61, %c0_i32_17 : i32
      %63 = arith.index_cast %62 : i32 to index
      %64 = memref.load %arg4[%63] : memref<1152xf32, #tpu.memory_space<smem>>
      %c0 = arith.constant 0 : index
      %c0_18 = arith.constant 0 : index
      %c0_19 = arith.constant 0 : index
      %65 = vector.load %arg7[%c0, %c0_18, %c0_19] : memref<8x60x124xf32, #tpu.memory_space<vmem>>, vector<1x58x122xf32>
      %66 = vector.shape_cast %65 : vector<1x58x122xf32> to vector<58x122xf32>
      %67 = vector.broadcast %64 : f32 to vector<58x122xf32>
      %68 = arith.mulf %67, %66 : vector<58x122xf32>
      %69 = arith.addf %58, %68 : vector<58x122xf32>
      %c72_i32_20 = arith.constant 72 : i32
      %70 = arith.muli %arg8, %c72_i32_20 : i32
      %c0_i32_21 = arith.constant 0 : i32
      %71 = arith.addi %70, %c0_i32_21 : i32
      %c0_i32_22 = arith.constant 0 : i32
      %72 = arith.addi %71, %c0_i32_22 : i32
      %c1_i32_23 = arith.constant 1 : i32
      %73 = arith.addi %72, %c1_i32_23 : i32
      %74 = arith.index_cast %73 : i32 to index
      %75 = memref.load %arg4[%74] : memref<1152xf32, #tpu.memory_space<smem>>
      %c0_24 = arith.constant 0 : index
      %c0_25 = arith.constant 0 : index
      %c1 = arith.constant 1 : index
      %76 = vector.load %arg7[%c0_24, %c0_25, %c1] : memref<8x60x124xf32, #tpu.memory_space<vmem>>, vector<1x58x122xf32>
      %77 = vector.shape_cast %76 : vector<1x58x122xf32> to vector<58x122xf32>
      %78 = vector.broadcast %75 : f32 to vector<58x122xf32>
      %79 = arith.mulf %78, %77 : vector<58x122xf32>
      %80 = arith.addf %69, %79 : vector<58x122xf32>
      %c72_i32_26 = arith.constant 72 : i32
      %81 = arith.muli %arg8, %c72_i32_26 : i32
      %c0_i32_27 = arith.constant 0 : i32
      %82 = arith.addi %81, %c0_i32_27 : i32
      %c0_i32_28 = arith.constant 0 : i32
      %83 = arith.addi %82, %c0_i32_28 : i32
      %c2_i32_29 = arith.constant 2 : i32
      %84 = arith.addi %83, %c2_i32_29 : i32
      %85 = arith.index_cast %84 : i32 to index
      %86 = memref.load %arg4[%85] : memref<1152xf32, #tpu.memory_space<smem>>
      %c0_30 = arith.constant 0 : index
      %c0_31 = arith.constant 0 : index
      %c2 = arith.constant 2 : index
      %87 = vector.load %arg7[%c0_30, %c0_31, %c2] : memref<8x60x124xf32, #tpu.memory_space<vmem>>, vector<1x58x122xf32>
      %88 = vector.shape_cast %87 : vector<1x58x122xf32> to vector<58x122xf32>
      %89 = vector.broadcast %86 : f32 to vector<58x122xf32>
      %90 = arith.mulf %89, %88 : vector<58x122xf32>
      %91 = arith.addf %80, %90 : vector<58x122xf32>
      %c72_i32_32 = arith.constant 72 : i32
      %92 = arith.muli %arg8, %c72_i32_32 : i32
      %c0_i32_33 = arith.constant 0 : i32
      %93 = arith.addi %92, %c0_i32_33 : i32
      %c3_i32 = arith.constant 3 : i32
      %94 = arith.addi %93, %c3_i32 : i32
      %c0_i32_34 = arith.constant 0 : i32
      %95 = arith.addi %94, %c0_i32_34 : i32
      %96 = arith.index_cast %95 : i32 to index
      %97 = memref.load %arg4[%96] : memref<1152xf32, #tpu.memory_space<smem>>
      %c0_35 = arith.constant 0 : index
      %c1_36 = arith.constant 1 : index
      %c0_37 = arith.constant 0 : index
      %98 = vector.load %arg7[%c0_35, %c1_36, %c0_37] : memref<8x60x124xf32, #tpu.memory_space<vmem>>, vector<1x58x122xf32>
      %99 = vector.shape_cast %98 : vector<1x58x122xf32> to vector<58x122xf32>
      %100 = vector.broadcast %97 : f32 to vector<58x122xf32>
      %101 = arith.mulf %100, %99 : vector<58x122xf32>
      %102 = arith.addf %91, %101 : vector<58x122xf32>
      %c72_i32_38 = arith.constant 72 : i32
      %103 = arith.muli %arg8, %c72_i32_38 : i32
      %c0_i32_39 = arith.constant 0 : i32
      %104 = arith.addi %103, %c0_i32_39 : i32
      %c3_i32_40 = arith.constant 3 : i32
      %105 = arith.addi %104, %c3_i32_40 : i32
      %c1_i32_41 = arith.constant 1 : i32
      %106 = arith.addi %105, %c1_i32_41 : i32
      %107 = arith.index_cast %106 : i32 to index
      %108 = memref.load %arg4[%107] : memref<1152xf32, #tpu.memory_space<smem>>
      %c0_42 = arith.constant 0 : index
      %c1_43 = arith.constant 1 : index
      %c1_44 = arith.constant 1 : index
      %109 = vector.load %arg7[%c0_42, %c1_43, %c1_44] : memref<8x60x124xf32, #tpu.memory_space<vmem>>, vector<1x58x122xf32>
      %110 = vector.shape_cast %109 : vector<1x58x122xf32> to vector<58x122xf32>
      %111 = vector.broadcast %108 : f32 to vector<58x122xf32>
      %112 = arith.mulf %111, %110 : vector<58x122xf32>
      %113 = arith.addf %102, %112 : vector<58x122xf32>
      %c72_i32_45 = arith.constant 72 : i32
      %114 = arith.muli %arg8, %c72_i32_45 : i32
      %c0_i32_46 = arith.constant 0 : i32
      %115 = arith.addi %114, %c0_i32_46 : i32
      %c3_i32_47 = arith.constant 3 : i32
      %116 = arith.addi %115, %c3_i32_47 : i32
      %c2_i32_48 = arith.constant 2 : i32
      %117 = arith.addi %116, %c2_i32_48 : i32
      %118 = arith.index_cast %117 : i32 to index
      %119 = memref.load %arg4[%118] : memref<1152xf32, #tpu.memory_space<smem>>
      %c0_49 = arith.constant 0 : index
      %c1_50 = arith.constant 1 : index
      %c2_51 = arith.constant 2 : index
      %120 = vector.load %arg7[%c0_49, %c1_50, %c2_51] : memref<8x60x124xf32, #tpu.memory_space<vmem>>, vector<1x58x122xf32>
      %121 = vector.shape_cast %120 : vector<1x58x122xf32> to vector<58x122xf32>
      %122 = vector.broadcast %119 : f32 to vector<58x122xf32>
      %123 = arith.mulf %122, %121 : vector<58x122xf32>
      %124 = arith.addf %113, %123 : vector<58x122xf32>
      %c72_i32_52 = arith.constant 72 : i32
      %125 = arith.muli %arg8, %c72_i32_52 : i32
      %c0_i32_53 = arith.constant 0 : i32
      %126 = arith.addi %125, %c0_i32_53 : i32
      %c6_i32 = arith.constant 6 : i32
      %127 = arith.addi %126, %c6_i32 : i32
      %c0_i32_54 = arith.constant 0 : i32
      %128 = arith.addi %127, %c0_i32_54 : i32
      %129 = arith.index_cast %128 : i32 to index
      %130 = memref.load %arg4[%129] : memref<1152xf32, #tpu.memory_space<smem>>
      %c0_55 = arith.constant 0 : index
      %c2_56 = arith.constant 2 : index
      %c0_57 = arith.constant 0 : index
      %131 = vector.load %arg7[%c0_55, %c2_56, %c0_57] : memref<8x60x124xf32, #tpu.memory_space<vmem>>, vector<1x58x122xf32>
      %132 = vector.shape_cast %131 : vector<1x58x122xf32> to vector<58x122xf32>
      %133 = vector.broadcast %130 : f32 to vector<58x122xf32>
      %134 = arith.mulf %133, %132 : vector<58x122xf32>
      %135 = arith.addf %124, %134 : vector<58x122xf32>
      %c72_i32_58 = arith.constant 72 : i32
      %136 = arith.muli %arg8, %c72_i32_58 : i32
      %c0_i32_59 = arith.constant 0 : i32
      %137 = arith.addi %136, %c0_i32_59 : i32
      %c6_i32_60 = arith.constant 6 : i32
      %138 = arith.addi %137, %c6_i32_60 : i32
      %c1_i32_61 = arith.constant 1 : i32
      %139 = arith.addi %138, %c1_i32_61 : i32
      %140 = arith.index_cast %139 : i32 to index
      %141 = memref.load %arg4[%140] : memref<1152xf32, #tpu.memory_space<smem>>
      %c0_62 = arith.constant 0 : index
      %c2_63 = arith.constant 2 : index
      %c1_64 = arith.constant 1 : index
      %142 = vector.load %arg7[%c0_62, %c2_63, %c1_64] : memref<8x60x124xf32, #tpu.memory_space<vmem>>, vector<1x58x122xf32>
      %143 = vector.shape_cast %142 : vector<1x58x122xf32> to vector<58x122xf32>
      %144 = vector.broadcast %141 : f32 to vector<58x122xf32>
      %145 = arith.mulf %144, %143 : vector<58x122xf32>
      %146 = arith.addf %135, %145 : vector<58x122xf32>
      %c72_i32_65 = arith.constant 72 : i32
      %147 = arith.muli %arg8, %c72_i32_65 : i32
      %c0_i32_66 = arith.constant 0 : i32
      %148 = arith.addi %147, %c0_i32_66 : i32
      %c6_i32_67 = arith.constant 6 : i32
      %149 = arith.addi %148, %c6_i32_67 : i32
      %c2_i32_68 = arith.constant 2 : i32
      %150 = arith.addi %149, %c2_i32_68 : i32
      %151 = arith.index_cast %150 : i32 to index
      %152 = memref.load %arg4[%151] : memref<1152xf32, #tpu.memory_space<smem>>
      %c0_69 = arith.constant 0 : index
      %c2_70 = arith.constant 2 : index
      %c2_71 = arith.constant 2 : index
      %153 = vector.load %arg7[%c0_69, %c2_70, %c2_71] : memref<8x60x124xf32, #tpu.memory_space<vmem>>, vector<1x58x122xf32>
      %154 = vector.shape_cast %153 : vector<1x58x122xf32> to vector<58x122xf32>
      %155 = vector.broadcast %152 : f32 to vector<58x122xf32>
      %156 = arith.mulf %155, %154 : vector<58x122xf32>
      %157 = arith.addf %146, %156 : vector<58x122xf32>
      %c72_i32_72 = arith.constant 72 : i32
      %158 = arith.muli %arg8, %c72_i32_72 : i32
      %c9_i32 = arith.constant 9 : i32
      %159 = arith.addi %158, %c9_i32 : i32
      %c0_i32_73 = arith.constant 0 : i32
      %160 = arith.addi %159, %c0_i32_73 : i32
      %c0_i32_74 = arith.constant 0 : i32
      %161 = arith.addi %160, %c0_i32_74 : i32
      %162 = arith.index_cast %161 : i32 to index
      %163 = memref.load %arg4[%162] : memref<1152xf32, #tpu.memory_space<smem>>
      %c1_75 = arith.constant 1 : index
      %c0_76 = arith.constant 0 : index
      %c0_77 = arith.constant 0 : index
      %164 = vector.load %arg7[%c1_75, %c0_76, %c0_77] : memref<8x60x124xf32, #tpu.memory_space<vmem>>, vector<1x58x122xf32>
      %165 = vector.shape_cast %164 : vector<1x58x122xf32> to vector<58x122xf32>
      %166 = vector.broadcast %163 : f32 to vector<58x122xf32>
      %167 = arith.mulf %166, %165 : vector<58x122xf32>
      %168 = arith.addf %157, %167 : vector<58x122xf32>
      %c72_i32_78 = arith.constant 72 : i32
      %169 = arith.muli %arg8, %c72_i32_78 : i32
      %c9_i32_79 = arith.constant 9 : i32
      %170 = arith.addi %169, %c9_i32_79 : i32
      %c0_i32_80 = arith.constant 0 : i32
      %171 = arith.addi %170, %c0_i32_80 : i32
      %c1_i32_81 = arith.constant 1 : i32
      %172 = arith.addi %171, %c1_i32_81 : i32
      %173 = arith.index_cast %172 : i32 to index
      %174 = memref.load %arg4[%173] : memref<1152xf32, #tpu.memory_space<smem>>
      %c1_82 = arith.constant 1 : index
      %c0_83 = arith.constant 0 : index
      %c1_84 = arith.constant 1 : index
      %175 = vector.load %arg7[%c1_82, %c0_83, %c1_84] : memref<8x60x124xf32, #tpu.memory_space<vmem>>, vector<1x58x122xf32>
      %176 = vector.shape_cast %175 : vector<1x58x122xf32> to vector<58x122xf32>
      %177 = vector.broadcast %174 : f32 to vector<58x122xf32>
      %178 = arith.mulf %177, %176 : vector<58x122xf32>
      %179 = arith.addf %168, %178 : vector<58x122xf32>
      %c72_i32_85 = arith.constant 72 : i32
      %180 = arith.muli %arg8, %c72_i32_85 : i32
      %c9_i32_86 = arith.constant 9 : i32
      %181 = arith.addi %180, %c9_i32_86 : i32
      %c0_i32_87 = arith.constant 0 : i32
      %182 = arith.addi %181, %c0_i32_87 : i32
      %c2_i32_88 = arith.constant 2 : i32
      %183 = arith.addi %182, %c2_i32_88 : i32
      %184 = arith.index_cast %183 : i32 to index
      %185 = memref.load %arg4[%184] : memref<1152xf32, #tpu.memory_space<smem>>
      %c1_89 = arith.constant 1 : index
      %c0_90 = arith.constant 0 : index
      %c2_91 = arith.constant 2 : index
      %186 = vector.load %arg7[%c1_89, %c0_90, %c2_91] : memref<8x60x124xf32, #tpu.memory_space<vmem>>, vector<1x58x122xf32>
      %187 = vector.shape_cast %186 : vector<1x58x122xf32> to vector<58x122xf32>
      %188 = vector.broadcast %185 : f32 to vector<58x122xf32>
      %189 = arith.mulf %188, %187 : vector<58x122xf32>
      %190 = arith.addf %179, %189 : vector<58x122xf32>
      %c72_i32_92 = arith.constant 72 : i32
      %191 = arith.muli %arg8, %c72_i32_92 : i32
      %c9_i32_93 = arith.constant 9 : i32
      %192 = arith.addi %191, %c9_i32_93 : i32
      %c3_i32_94 = arith.constant 3 : i32
      %193 = arith.addi %192, %c3_i32_94 : i32
      %c0_i32_95 = arith.constant 0 : i32
      %194 = arith.addi %193, %c0_i32_95 : i32
      %195 = arith.index_cast %194 : i32 to index
      %196 = memref.load %arg4[%195] : memref<1152xf32, #tpu.memory_space<smem>>
      %c1_96 = arith.constant 1 : index
      %c1_97 = arith.constant 1 : index
      %c0_98 = arith.constant 0 : index
      %197 = vector.load %arg7[%c1_96, %c1_97, %c0_98] : memref<8x60x124xf32, #tpu.memory_space<vmem>>, vector<1x58x122xf32>
      %198 = vector.shape_cast %197 : vector<1x58x122xf32> to vector<58x122xf32>
      %199 = vector.broadcast %196 : f32 to vector<58x122xf32>
      %200 = arith.mulf %199, %198 : vector<58x122xf32>
      %201 = arith.addf %190, %200 : vector<58x122xf32>
      %c72_i32_99 = arith.constant 72 : i32
      %202 = arith.muli %arg8, %c72_i32_99 : i32
      %c9_i32_100 = arith.constant 9 : i32
      %203 = arith.addi %202, %c9_i32_100 : i32
      %c3_i32_101 = arith.constant 3 : i32
      %204 = arith.addi %203, %c3_i32_101 : i32
      %c1_i32_102 = arith.constant 1 : i32
      %205 = arith.addi %204, %c1_i32_102 : i32
      %206 = arith.index_cast %205 : i32 to index
      %207 = memref.load %arg4[%206] : memref<1152xf32, #tpu.memory_space<smem>>
      %c1_103 = arith.constant 1 : index
      %c1_104 = arith.constant 1 : index
      %c1_105 = arith.constant 1 : index
      %208 = vector.load %arg7[%c1_103, %c1_104, %c1_105] : memref<8x60x124xf32, #tpu.memory_space<vmem>>, vector<1x58x122xf32>
      %209 = vector.shape_cast %208 : vector<1x58x122xf32> to vector<58x122xf32>
      %210 = vector.broadcast %207 : f32 to vector<58x122xf32>
      %211 = arith.mulf %210, %209 : vector<58x122xf32>
      %212 = arith.addf %201, %211 : vector<58x122xf32>
      %c72_i32_106 = arith.constant 72 : i32
      %213 = arith.muli %arg8, %c72_i32_106 : i32
      %c9_i32_107 = arith.constant 9 : i32
      %214 = arith.addi %213, %c9_i32_107 : i32
      %c3_i32_108 = arith.constant 3 : i32
      %215 = arith.addi %214, %c3_i32_108 : i32
      %c2_i32_109 = arith.constant 2 : i32
      %216 = arith.addi %215, %c2_i32_109 : i32
      %217 = arith.index_cast %216 : i32 to index
      %218 = memref.load %arg4[%217] : memref<1152xf32, #tpu.memory_space<smem>>
      %c1_110 = arith.constant 1 : index
      %c1_111 = arith.constant 1 : index
      %c2_112 = arith.constant 2 : index
      %219 = vector.load %arg7[%c1_110, %c1_111, %c2_112] : memref<8x60x124xf32, #tpu.memory_space<vmem>>, vector<1x58x122xf32>
      %220 = vector.shape_cast %219 : vector<1x58x122xf32> to vector<58x122xf32>
      %221 = vector.broadcast %218 : f32 to vector<58x122xf32>
      %222 = arith.mulf %221, %220 : vector<58x122xf32>
      %223 = arith.addf %212, %222 : vector<58x122xf32>
      %c72_i32_113 = arith.constant 72 : i32
      %224 = arith.muli %arg8, %c72_i32_113 : i32
      %c9_i32_114 = arith.constant 9 : i32
      %225 = arith.addi %224, %c9_i32_114 : i32
      %c6_i32_115 = arith.constant 6 : i32
      %226 = arith.addi %225, %c6_i32_115 : i32
      %c0_i32_116 = arith.constant 0 : i32
      %227 = arith.addi %226, %c0_i32_116 : i32
      %228 = arith.index_cast %227 : i32 to index
      %229 = memref.load %arg4[%228] : memref<1152xf32, #tpu.memory_space<smem>>
      %c1_117 = arith.constant 1 : index
      %c2_118 = arith.constant 2 : index
      %c0_119 = arith.constant 0 : index
      %230 = vector.load %arg7[%c1_117, %c2_118, %c0_119] : memref<8x60x124xf32, #tpu.memory_space<vmem>>, vector<1x58x122xf32>
      %231 = vector.shape_cast %230 : vector<1x58x122xf32> to vector<58x122xf32>
      %232 = vector.broadcast %229 : f32 to vector<58x122xf32>
      %233 = arith.mulf %232, %231 : vector<58x122xf32>
      %234 = arith.addf %223, %233 : vector<58x122xf32>
      %c72_i32_120 = arith.constant 72 : i32
      %235 = arith.muli %arg8, %c72_i32_120 : i32
      %c9_i32_121 = arith.constant 9 : i32
      %236 = arith.addi %235, %c9_i32_121 : i32
      %c6_i32_122 = arith.constant 6 : i32
      %237 = arith.addi %236, %c6_i32_122 : i32
      %c1_i32_123 = arith.constant 1 : i32
      %238 = arith.addi %237, %c1_i32_123 : i32
      %239 = arith.index_cast %238 : i32 to index
      %240 = memref.load %arg4[%239] : memref<1152xf32, #tpu.memory_space<smem>>
      %c1_124 = arith.constant 1 : index
      %c2_125 = arith.constant 2 : index
      %c1_126 = arith.constant 1 : index
      %241 = vector.load %arg7[%c1_124, %c2_125, %c1_126] : memref<8x60x124xf32, #tpu.memory_space<vmem>>, vector<1x58x122xf32>
      %242 = vector.shape_cast %241 : vector<1x58x122xf32> to vector<58x122xf32>
      %243 = vector.broadcast %240 : f32 to vector<58x122xf32>
      %244 = arith.mulf %243, %242 : vector<58x122xf32>
      %245 = arith.addf %234, %244 : vector<58x122xf32>
      %c72_i32_127 = arith.constant 72 : i32
      %246 = arith.muli %arg8, %c72_i32_127 : i32
      %c9_i32_128 = arith.constant 9 : i32
      %247 = arith.addi %246, %c9_i32_128 : i32
      %c6_i32_129 = arith.constant 6 : i32
      %248 = arith.addi %247, %c6_i32_129 : i32
      %c2_i32_130 = arith.constant 2 : i32
      %249 = arith.addi %248, %c2_i32_130 : i32
      %250 = arith.index_cast %249 : i32 to index
      %251 = memref.load %arg4[%250] : memref<1152xf32, #tpu.memory_space<smem>>
      %c1_131 = arith.constant 1 : index
      %c2_132 = arith.constant 2 : index
      %c2_133 = arith.constant 2 : index
      %252 = vector.load %arg7[%c1_131, %c2_132, %c2_133] : memref<8x60x124xf32, #tpu.memory_space<vmem>>, vector<1x58x122xf32>
      %253 = vector.shape_cast %252 : vector<1x58x122xf32> to vector<58x122xf32>
      %254 = vector.broadcast %251 : f32 to vector<58x122xf32>
      %255 = arith.mulf %254, %253 : vector<58x122xf32>
      %256 = arith.addf %245, %255 : vector<58x122xf32>
      %c72_i32_134 = arith.constant 72 : i32
      %257 = arith.muli %arg8, %c72_i32_134 : i32
      %c18_i32 = arith.constant 18 : i32
      %258 = arith.addi %257, %c18_i32 : i32
      %c0_i32_135 = arith.constant 0 : i32
      %259 = arith.addi %258, %c0_i32_135 : i32
      %c0_i32_136 = arith.constant 0 : i32
      %260 = arith.addi %259, %c0_i32_136 : i32
      %261 = arith.index_cast %260 : i32 to index
      %262 = memref.load %arg4[%261] : memref<1152xf32, #tpu.memory_space<smem>>
      %c2_137 = arith.constant 2 : index
      %c0_138 = arith.constant 0 : index
      %c0_139 = arith.constant 0 : index
      %263 = vector.load %arg7[%c2_137, %c0_138, %c0_139] : memref<8x60x124xf32, #tpu.memory_space<vmem>>, vector<1x58x122xf32>
      %264 = vector.shape_cast %263 : vector<1x58x122xf32> to vector<58x122xf32>
      %265 = vector.broadcast %262 : f32 to vector<58x122xf32>
      %266 = arith.mulf %265, %264 : vector<58x122xf32>
      %267 = arith.addf %256, %266 : vector<58x122xf32>
      %c72_i32_140 = arith.constant 72 : i32
      %268 = arith.muli %arg8, %c72_i32_140 : i32
      %c18_i32_141 = arith.constant 18 : i32
      %269 = arith.addi %268, %c18_i32_141 : i32
      %c0_i32_142 = arith.constant 0 : i32
      %270 = arith.addi %269, %c0_i32_142 : i32
      %c1_i32_143 = arith.constant 1 : i32
      %271 = arith.addi %270, %c1_i32_143 : i32
      %272 = arith.index_cast %271 : i32 to index
      %273 = memref.load %arg4[%272] : memref<1152xf32, #tpu.memory_space<smem>>
      %c2_144 = arith.constant 2 : index
      %c0_145 = arith.constant 0 : index
      %c1_146 = arith.constant 1 : index
      %274 = vector.load %arg7[%c2_144, %c0_145, %c1_146] : memref<8x60x124xf32, #tpu.memory_space<vmem>>, vector<1x58x122xf32>
      %275 = vector.shape_cast %274 : vector<1x58x122xf32> to vector<58x122xf32>
      %276 = vector.broadcast %273 : f32 to vector<58x122xf32>
      %277 = arith.mulf %276, %275 : vector<58x122xf32>
      %278 = arith.addf %267, %277 : vector<58x122xf32>
      %c72_i32_147 = arith.constant 72 : i32
      %279 = arith.muli %arg8, %c72_i32_147 : i32
      %c18_i32_148 = arith.constant 18 : i32
      %280 = arith.addi %279, %c18_i32_148 : i32
      %c0_i32_149 = arith.constant 0 : i32
      %281 = arith.addi %280, %c0_i32_149 : i32
      %c2_i32_150 = arith.constant 2 : i32
      %282 = arith.addi %281, %c2_i32_150 : i32
      %283 = arith.index_cast %282 : i32 to index
      %284 = memref.load %arg4[%283] : memref<1152xf32, #tpu.memory_space<smem>>
      %c2_151 = arith.constant 2 : index
      %c0_152 = arith.constant 0 : index
      %c2_153 = arith.constant 2 : index
      %285 = vector.load %arg7[%c2_151, %c0_152, %c2_153] : memref<8x60x124xf32, #tpu.memory_space<vmem>>, vector<1x58x122xf32>
      %286 = vector.shape_cast %285 : vector<1x58x122xf32> to vector<58x122xf32>
      %287 = vector.broadcast %284 : f32 to vector<58x122xf32>
      %288 = arith.mulf %287, %286 : vector<58x122xf32>
      %289 = arith.addf %278, %288 : vector<58x122xf32>
      %c72_i32_154 = arith.constant 72 : i32
      %290 = arith.muli %arg8, %c72_i32_154 : i32
      %c18_i32_155 = arith.constant 18 : i32
      %291 = arith.addi %290, %c18_i32_155 : i32
      %c3_i32_156 = arith.constant 3 : i32
      %292 = arith.addi %291, %c3_i32_156 : i32
      %c0_i32_157 = arith.constant 0 : i32
      %293 = arith.addi %292, %c0_i32_157 : i32
      %294 = arith.index_cast %293 : i32 to index
      %295 = memref.load %arg4[%294] : memref<1152xf32, #tpu.memory_space<smem>>
      %c2_158 = arith.constant 2 : index
      %c1_159 = arith.constant 1 : index
      %c0_160 = arith.constant 0 : index
      %296 = vector.load %arg7[%c2_158, %c1_159, %c0_160] : memref<8x60x124xf32, #tpu.memory_space<vmem>>, vector<1x58x122xf32>
      %297 = vector.shape_cast %296 : vector<1x58x122xf32> to vector<58x122xf32>
      %298 = vector.broadcast %295 : f32 to vector<58x122xf32>
      %299 = arith.mulf %298, %297 : vector<58x122xf32>
      %300 = arith.addf %289, %299 : vector<58x122xf32>
      %c72_i32_161 = arith.constant 72 : i32
      %301 = arith.muli %arg8, %c72_i32_161 : i32
      %c18_i32_162 = arith.constant 18 : i32
      %302 = arith.addi %301, %c18_i32_162 : i32
      %c3_i32_163 = arith.constant 3 : i32
      %303 = arith.addi %302, %c3_i32_163 : i32
      %c1_i32_164 = arith.constant 1 : i32
      %304 = arith.addi %303, %c1_i32_164 : i32
      %305 = arith.index_cast %304 : i32 to index
      %306 = memref.load %arg4[%305] : memref<1152xf32, #tpu.memory_space<smem>>
      %c2_165 = arith.constant 2 : index
      %c1_166 = arith.constant 1 : index
      %c1_167 = arith.constant 1 : index
      %307 = vector.load %arg7[%c2_165, %c1_166, %c1_167] : memref<8x60x124xf32, #tpu.memory_space<vmem>>, vector<1x58x122xf32>
      %308 = vector.shape_cast %307 : vector<1x58x122xf32> to vector<58x122xf32>
      %309 = vector.broadcast %306 : f32 to vector<58x122xf32>
      %310 = arith.mulf %309, %308 : vector<58x122xf32>
      %311 = arith.addf %300, %310 : vector<58x122xf32>
      %c72_i32_168 = arith.constant 72 : i32
      %312 = arith.muli %arg8, %c72_i32_168 : i32
      %c18_i32_169 = arith.constant 18 : i32
      %313 = arith.addi %312, %c18_i32_169 : i32
      %c3_i32_170 = arith.constant 3 : i32
      %314 = arith.addi %313, %c3_i32_170 : i32
      %c2_i32_171 = arith.constant 2 : i32
      %315 = arith.addi %314, %c2_i32_171 : i32
      %316 = arith.index_cast %315 : i32 to index
      %317 = memref.load %arg4[%316] : memref<1152xf32, #tpu.memory_space<smem>>
      %c2_172 = arith.constant 2 : index
      %c1_173 = arith.constant 1 : index
      %c2_174 = arith.constant 2 : index
      %318 = vector.load %arg7[%c2_172, %c1_173, %c2_174] : memref<8x60x124xf32, #tpu.memory_space<vmem>>, vector<1x58x122xf32>
      %319 = vector.shape_cast %318 : vector<1x58x122xf32> to vector<58x122xf32>
      %320 = vector.broadcast %317 : f32 to vector<58x122xf32>
      %321 = arith.mulf %320, %319 : vector<58x122xf32>
      %322 = arith.addf %311, %321 : vector<58x122xf32>
      %c72_i32_175 = arith.constant 72 : i32
      %323 = arith.muli %arg8, %c72_i32_175 : i32
      %c18_i32_176 = arith.constant 18 : i32
      %324 = arith.addi %323, %c18_i32_176 : i32
      %c6_i32_177 = arith.constant 6 : i32
      %325 = arith.addi %324, %c6_i32_177 : i32
      %c0_i32_178 = arith.constant 0 : i32
      %326 = arith.addi %325, %c0_i32_178 : i32
      %327 = arith.index_cast %326 : i32 to index
      %328 = memref.load %arg4[%327] : memref<1152xf32, #tpu.memory_space<smem>>
      %c2_179 = arith.constant 2 : index
      %c2_180 = arith.constant 2 : index
      %c0_181 = arith.constant 0 : index
      %329 = vector.load %arg7[%c2_179, %c2_180, %c0_181] : memref<8x60x124xf32, #tpu.memory_space<vmem>>, vector<1x58x122xf32>
      %330 = vector.shape_cast %329 : vector<1x58x122xf32> to vector<58x122xf32>
      %331 = vector.broadcast %328 : f32 to vector<58x122xf32>
      %332 = arith.mulf %331, %330 : vector<58x122xf32>
      %333 = arith.addf %322, %332 : vector<58x122xf32>
      %c72_i32_182 = arith.constant 72 : i32
      %334 = arith.muli %arg8, %c72_i32_182 : i32
      %c18_i32_183 = arith.constant 18 : i32
      %335 = arith.addi %334, %c18_i32_183 : i32
      %c6_i32_184 = arith.constant 6 : i32
      %336 = arith.addi %335, %c6_i32_184 : i32
      %c1_i32_185 = arith.constant 1 : i32
      %337 = arith.addi %336, %c1_i32_185 : i32
      %338 = arith.index_cast %337 : i32 to index
      %339 = memref.load %arg4[%338] : memref<1152xf32, #tpu.memory_space<smem>>
      %c2_186 = arith.constant 2 : index
      %c2_187 = arith.constant 2 : index
      %c1_188 = arith.constant 1 : index
      %340 = vector.load %arg7[%c2_186, %c2_187, %c1_188] : memref<8x60x124xf32, #tpu.memory_space<vmem>>, vector<1x58x122xf32>
      %341 = vector.shape_cast %340 : vector<1x58x122xf32> to vector<58x122xf32>
      %342 = vector.broadcast %339 : f32 to vector<58x122xf32>
      %343 = arith.mulf %342, %341 : vector<58x122xf32>
      %344 = arith.addf %333, %343 : vector<58x122xf32>
      %c72_i32_189 = arith.constant 72 : i32
      %345 = arith.muli %arg8, %c72_i32_189 : i32
      %c18_i32_190 = arith.constant 18 : i32
      %346 = arith.addi %345, %c18_i32_190 : i32
      %c6_i32_191 = arith.constant 6 : i32
      %347 = arith.addi %346, %c6_i32_191 : i32
      %c2_i32_192 = arith.constant 2 : i32
      %348 = arith.addi %347, %c2_i32_192 : i32
      %349 = arith.index_cast %348 : i32 to index
      %350 = memref.load %arg4[%349] : memref<1152xf32, #tpu.memory_space<smem>>
      %c2_193 = arith.constant 2 : index
      %c2_194 = arith.constant 2 : index
      %c2_195 = arith.constant 2 : index
      %351 = vector.load %arg7[%c2_193, %c2_194, %c2_195] : memref<8x60x124xf32, #tpu.memory_space<vmem>>, vector<1x58x122xf32>
      %352 = vector.shape_cast %351 : vector<1x58x122xf32> to vector<58x122xf32>
      %353 = vector.broadcast %350 : f32 to vector<58x122xf32>
      %354 = arith.mulf %353, %352 : vector<58x122xf32>
      %355 = arith.addf %344, %354 : vector<58x122xf32>
      %c72_i32_196 = arith.constant 72 : i32
      %356 = arith.muli %arg8, %c72_i32_196 : i32
      %c27_i32 = arith.constant 27 : i32
      %357 = arith.addi %356, %c27_i32 : i32
      %c0_i32_197 = arith.constant 0 : i32
      %358 = arith.addi %357, %c0_i32_197 : i32
      %c0_i32_198 = arith.constant 0 : i32
      %359 = arith.addi %358, %c0_i32_198 : i32
      %360 = arith.index_cast %359 : i32 to index
      %361 = memref.load %arg4[%360] : memref<1152xf32, #tpu.memory_space<smem>>
      %c3 = arith.constant 3 : index
      %c0_199 = arith.constant 0 : index
      %c0_200 = arith.constant 0 : index
      %362 = vector.load %arg7[%c3, %c0_199, %c0_200] : memref<8x60x124xf32, #tpu.memory_space<vmem>>, vector<1x58x122xf32>
      %363 = vector.shape_cast %362 : vector<1x58x122xf32> to vector<58x122xf32>
      %364 = vector.broadcast %361 : f32 to vector<58x122xf32>
      %365 = arith.mulf %364, %363 : vector<58x122xf32>
      %366 = arith.addf %355, %365 : vector<58x122xf32>
      %c72_i32_201 = arith.constant 72 : i32
      %367 = arith.muli %arg8, %c72_i32_201 : i32
      %c27_i32_202 = arith.constant 27 : i32
      %368 = arith.addi %367, %c27_i32_202 : i32
      %c0_i32_203 = arith.constant 0 : i32
      %369 = arith.addi %368, %c0_i32_203 : i32
      %c1_i32_204 = arith.constant 1 : i32
      %370 = arith.addi %369, %c1_i32_204 : i32
      %371 = arith.index_cast %370 : i32 to index
      %372 = memref.load %arg4[%371] : memref<1152xf32, #tpu.memory_space<smem>>
      %c3_205 = arith.constant 3 : index
      %c0_206 = arith.constant 0 : index
      %c1_207 = arith.constant 1 : index
      %373 = vector.load %arg7[%c3_205, %c0_206, %c1_207] : memref<8x60x124xf32, #tpu.memory_space<vmem>>, vector<1x58x122xf32>
      %374 = vector.shape_cast %373 : vector<1x58x122xf32> to vector<58x122xf32>
      %375 = vector.broadcast %372 : f32 to vector<58x122xf32>
      %376 = arith.mulf %375, %374 : vector<58x122xf32>
      %377 = arith.addf %366, %376 : vector<58x122xf32>
      %c72_i32_208 = arith.constant 72 : i32
      %378 = arith.muli %arg8, %c72_i32_208 : i32
      %c27_i32_209 = arith.constant 27 : i32
      %379 = arith.addi %378, %c27_i32_209 : i32
      %c0_i32_210 = arith.constant 0 : i32
      %380 = arith.addi %379, %c0_i32_210 : i32
      %c2_i32_211 = arith.constant 2 : i32
      %381 = arith.addi %380, %c2_i32_211 : i32
      %382 = arith.index_cast %381 : i32 to index
      %383 = memref.load %arg4[%382] : memref<1152xf32, #tpu.memory_space<smem>>
      %c3_212 = arith.constant 3 : index
      %c0_213 = arith.constant 0 : index
      %c2_214 = arith.constant 2 : index
      %384 = vector.load %arg7[%c3_212, %c0_213, %c2_214] : memref<8x60x124xf32, #tpu.memory_space<vmem>>, vector<1x58x122xf32>
      %385 = vector.shape_cast %384 : vector<1x58x122xf32> to vector<58x122xf32>
      %386 = vector.broadcast %383 : f32 to vector<58x122xf32>
      %387 = arith.mulf %386, %385 : vector<58x122xf32>
      %388 = arith.addf %377, %387 : vector<58x122xf32>
      %c72_i32_215 = arith.constant 72 : i32
      %389 = arith.muli %arg8, %c72_i32_215 : i32
      %c27_i32_216 = arith.constant 27 : i32
      %390 = arith.addi %389, %c27_i32_216 : i32
      %c3_i32_217 = arith.constant 3 : i32
      %391 = arith.addi %390, %c3_i32_217 : i32
      %c0_i32_218 = arith.constant 0 : i32
      %392 = arith.addi %391, %c0_i32_218 : i32
      %393 = arith.index_cast %392 : i32 to index
      %394 = memref.load %arg4[%393] : memref<1152xf32, #tpu.memory_space<smem>>
      %c3_219 = arith.constant 3 : index
      %c1_220 = arith.constant 1 : index
      %c0_221 = arith.constant 0 : index
      %395 = vector.load %arg7[%c3_219, %c1_220, %c0_221] : memref<8x60x124xf32, #tpu.memory_space<vmem>>, vector<1x58x122xf32>
      %396 = vector.shape_cast %395 : vector<1x58x122xf32> to vector<58x122xf32>
      %397 = vector.broadcast %394 : f32 to vector<58x122xf32>
      %398 = arith.mulf %397, %396 : vector<58x122xf32>
      %399 = arith.addf %388, %398 : vector<58x122xf32>
      %c72_i32_222 = arith.constant 72 : i32
      %400 = arith.muli %arg8, %c72_i32_222 : i32
      %c27_i32_223 = arith.constant 27 : i32
      %401 = arith.addi %400, %c27_i32_223 : i32
      %c3_i32_224 = arith.constant 3 : i32
      %402 = arith.addi %401, %c3_i32_224 : i32
      %c1_i32_225 = arith.constant 1 : i32
      %403 = arith.addi %402, %c1_i32_225 : i32
      %404 = arith.index_cast %403 : i32 to index
      %405 = memref.load %arg4[%404] : memref<1152xf32, #tpu.memory_space<smem>>
      %c3_226 = arith.constant 3 : index
      %c1_227 = arith.constant 1 : index
      %c1_228 = arith.constant 1 : index
      %406 = vector.load %arg7[%c3_226, %c1_227, %c1_228] : memref<8x60x124xf32, #tpu.memory_space<vmem>>, vector<1x58x122xf32>
      %407 = vector.shape_cast %406 : vector<1x58x122xf32> to vector<58x122xf32>
      %408 = vector.broadcast %405 : f32 to vector<58x122xf32>
      %409 = arith.mulf %408, %407 : vector<58x122xf32>
      %410 = arith.addf %399, %409 : vector<58x122xf32>
      %c72_i32_229 = arith.constant 72 : i32
      %411 = arith.muli %arg8, %c72_i32_229 : i32
      %c27_i32_230 = arith.constant 27 : i32
      %412 = arith.addi %411, %c27_i32_230 : i32
      %c3_i32_231 = arith.constant 3 : i32
      %413 = arith.addi %412, %c3_i32_231 : i32
      %c2_i32_232 = arith.constant 2 : i32
      %414 = arith.addi %413, %c2_i32_232 : i32
      %415 = arith.index_cast %414 : i32 to index
      %416 = memref.load %arg4[%415] : memref<1152xf32, #tpu.memory_space<smem>>
      %c3_233 = arith.constant 3 : index
      %c1_234 = arith.constant 1 : index
      %c2_235 = arith.constant 2 : index
      %417 = vector.load %arg7[%c3_233, %c1_234, %c2_235] : memref<8x60x124xf32, #tpu.memory_space<vmem>>, vector<1x58x122xf32>
      %418 = vector.shape_cast %417 : vector<1x58x122xf32> to vector<58x122xf32>
      %419 = vector.broadcast %416 : f32 to vector<58x122xf32>
      %420 = arith.mulf %419, %418 : vector<58x122xf32>
      %421 = arith.addf %410, %420 : vector<58x122xf32>
      %c72_i32_236 = arith.constant 72 : i32
      %422 = arith.muli %arg8, %c72_i32_236 : i32
      %c27_i32_237 = arith.constant 27 : i32
      %423 = arith.addi %422, %c27_i32_237 : i32
      %c6_i32_238 = arith.constant 6 : i32
      %424 = arith.addi %423, %c6_i32_238 : i32
      %c0_i32_239 = arith.constant 0 : i32
      %425 = arith.addi %424, %c0_i32_239 : i32
      %426 = arith.index_cast %425 : i32 to index
      %427 = memref.load %arg4[%426] : memref<1152xf32, #tpu.memory_space<smem>>
      %c3_240 = arith.constant 3 : index
      %c2_241 = arith.constant 2 : index
      %c0_242 = arith.constant 0 : index
      %428 = vector.load %arg7[%c3_240, %c2_241, %c0_242] : memref<8x60x124xf32, #tpu.memory_space<vmem>>, vector<1x58x122xf32>
      %429 = vector.shape_cast %428 : vector<1x58x122xf32> to vector<58x122xf32>
      %430 = vector.broadcast %427 : f32 to vector<58x122xf32>
      %431 = arith.mulf %430, %429 : vector<58x122xf32>
      %432 = arith.addf %421, %431 : vector<58x122xf32>
      %c72_i32_243 = arith.constant 72 : i32
      %433 = arith.muli %arg8, %c72_i32_243 : i32
      %c27_i32_244 = arith.constant 27 : i32
      %434 = arith.addi %433, %c27_i32_244 : i32
      %c6_i32_245 = arith.constant 6 : i32
      %435 = arith.addi %434, %c6_i32_245 : i32
      %c1_i32_246 = arith.constant 1 : i32
      %436 = arith.addi %435, %c1_i32_246 : i32
      %437 = arith.index_cast %436 : i32 to index
      %438 = memref.load %arg4[%437] : memref<1152xf32, #tpu.memory_space<smem>>
      %c3_247 = arith.constant 3 : index
      %c2_248 = arith.constant 2 : index
      %c1_249 = arith.constant 1 : index
      %439 = vector.load %arg7[%c3_247, %c2_248, %c1_249] : memref<8x60x124xf32, #tpu.memory_space<vmem>>, vector<1x58x122xf32>
      %440 = vector.shape_cast %439 : vector<1x58x122xf32> to vector<58x122xf32>
      %441 = vector.broadcast %438 : f32 to vector<58x122xf32>
      %442 = arith.mulf %441, %440 : vector<58x122xf32>
      %443 = arith.addf %432, %442 : vector<58x122xf32>
      %c72_i32_250 = arith.constant 72 : i32
      %444 = arith.muli %arg8, %c72_i32_250 : i32
      %c27_i32_251 = arith.constant 27 : i32
      %445 = arith.addi %444, %c27_i32_251 : i32
      %c6_i32_252 = arith.constant 6 : i32
      %446 = arith.addi %445, %c6_i32_252 : i32
      %c2_i32_253 = arith.constant 2 : i32
      %447 = arith.addi %446, %c2_i32_253 : i32
      %448 = arith.index_cast %447 : i32 to index
      %449 = memref.load %arg4[%448] : memref<1152xf32, #tpu.memory_space<smem>>
      %c3_254 = arith.constant 3 : index
      %c2_255 = arith.constant 2 : index
      %c2_256 = arith.constant 2 : index
      %450 = vector.load %arg7[%c3_254, %c2_255, %c2_256] : memref<8x60x124xf32, #tpu.memory_space<vmem>>, vector<1x58x122xf32>
      %451 = vector.shape_cast %450 : vector<1x58x122xf32> to vector<58x122xf32>
      %452 = vector.broadcast %449 : f32 to vector<58x122xf32>
      %453 = arith.mulf %452, %451 : vector<58x122xf32>
      %454 = arith.addf %443, %453 : vector<58x122xf32>
      %c72_i32_257 = arith.constant 72 : i32
      %455 = arith.muli %arg8, %c72_i32_257 : i32
      %c36_i32 = arith.constant 36 : i32
      %456 = arith.addi %455, %c36_i32 : i32
      %c0_i32_258 = arith.constant 0 : i32
      %457 = arith.addi %456, %c0_i32_258 : i32
      %c0_i32_259 = arith.constant 0 : i32
      %458 = arith.addi %457, %c0_i32_259 : i32
      %459 = arith.index_cast %458 : i32 to index
      %460 = memref.load %arg4[%459] : memref<1152xf32, #tpu.memory_space<smem>>
      %c4 = arith.constant 4 : index
      %c0_260 = arith.constant 0 : index
      %c0_261 = arith.constant 0 : index
      %461 = vector.load %arg7[%c4, %c0_260, %c0_261] : memref<8x60x124xf32, #tpu.memory_space<vmem>>, vector<1x58x122xf32>
      %462 = vector.shape_cast %461 : vector<1x58x122xf32> to vector<58x122xf32>
      %463 = vector.broadcast %460 : f32 to vector<58x122xf32>
      %464 = arith.mulf %463, %462 : vector<58x122xf32>
      %465 = arith.addf %454, %464 : vector<58x122xf32>
      %c72_i32_262 = arith.constant 72 : i32
      %466 = arith.muli %arg8, %c72_i32_262 : i32
      %c36_i32_263 = arith.constant 36 : i32
      %467 = arith.addi %466, %c36_i32_263 : i32
      %c0_i32_264 = arith.constant 0 : i32
      %468 = arith.addi %467, %c0_i32_264 : i32
      %c1_i32_265 = arith.constant 1 : i32
      %469 = arith.addi %468, %c1_i32_265 : i32
      %470 = arith.index_cast %469 : i32 to index
      %471 = memref.load %arg4[%470] : memref<1152xf32, #tpu.memory_space<smem>>
      %c4_266 = arith.constant 4 : index
      %c0_267 = arith.constant 0 : index
      %c1_268 = arith.constant 1 : index
      %472 = vector.load %arg7[%c4_266, %c0_267, %c1_268] : memref<8x60x124xf32, #tpu.memory_space<vmem>>, vector<1x58x122xf32>
      %473 = vector.shape_cast %472 : vector<1x58x122xf32> to vector<58x122xf32>
      %474 = vector.broadcast %471 : f32 to vector<58x122xf32>
      %475 = arith.mulf %474, %473 : vector<58x122xf32>
      %476 = arith.addf %465, %475 : vector<58x122xf32>
      %c72_i32_269 = arith.constant 72 : i32
      %477 = arith.muli %arg8, %c72_i32_269 : i32
      %c36_i32_270 = arith.constant 36 : i32
      %478 = arith.addi %477, %c36_i32_270 : i32
      %c0_i32_271 = arith.constant 0 : i32
      %479 = arith.addi %478, %c0_i32_271 : i32
      %c2_i32_272 = arith.constant 2 : i32
      %480 = arith.addi %479, %c2_i32_272 : i32
      %481 = arith.index_cast %480 : i32 to index
      %482 = memref.load %arg4[%481] : memref<1152xf32, #tpu.memory_space<smem>>
      %c4_273 = arith.constant 4 : index
      %c0_274 = arith.constant 0 : index
      %c2_275 = arith.constant 2 : index
      %483 = vector.load %arg7[%c4_273, %c0_274, %c2_275] : memref<8x60x124xf32, #tpu.memory_space<vmem>>, vector<1x58x122xf32>
      %484 = vector.shape_cast %483 : vector<1x58x122xf32> to vector<58x122xf32>
      %485 = vector.broadcast %482 : f32 to vector<58x122xf32>
      %486 = arith.mulf %485, %484 : vector<58x122xf32>
      %487 = arith.addf %476, %486 : vector<58x122xf32>
      %c72_i32_276 = arith.constant 72 : i32
      %488 = arith.muli %arg8, %c72_i32_276 : i32
      %c36_i32_277 = arith.constant 36 : i32
      %489 = arith.addi %488, %c36_i32_277 : i32
      %c3_i32_278 = arith.constant 3 : i32
      %490 = arith.addi %489, %c3_i32_278 : i32
      %c0_i32_279 = arith.constant 0 : i32
      %491 = arith.addi %490, %c0_i32_279 : i32
      %492 = arith.index_cast %491 : i32 to index
      %493 = memref.load %arg4[%492] : memref<1152xf32, #tpu.memory_space<smem>>
      %c4_280 = arith.constant 4 : index
      %c1_281 = arith.constant 1 : index
      %c0_282 = arith.constant 0 : index
      %494 = vector.load %arg7[%c4_280, %c1_281, %c0_282] : memref<8x60x124xf32, #tpu.memory_space<vmem>>, vector<1x58x122xf32>
      %495 = vector.shape_cast %494 : vector<1x58x122xf32> to vector<58x122xf32>
      %496 = vector.broadcast %493 : f32 to vector<58x122xf32>
      %497 = arith.mulf %496, %495 : vector<58x122xf32>
      %498 = arith.addf %487, %497 : vector<58x122xf32>
      %c72_i32_283 = arith.constant 72 : i32
      %499 = arith.muli %arg8, %c72_i32_283 : i32
      %c36_i32_284 = arith.constant 36 : i32
      %500 = arith.addi %499, %c36_i32_284 : i32
      %c3_i32_285 = arith.constant 3 : i32
      %501 = arith.addi %500, %c3_i32_285 : i32
      %c1_i32_286 = arith.constant 1 : i32
      %502 = arith.addi %501, %c1_i32_286 : i32
      %503 = arith.index_cast %502 : i32 to index
      %504 = memref.load %arg4[%503] : memref<1152xf32, #tpu.memory_space<smem>>
      %c4_287 = arith.constant 4 : index
      %c1_288 = arith.constant 1 : index
      %c1_289 = arith.constant 1 : index
      %505 = vector.load %arg7[%c4_287, %c1_288, %c1_289] : memref<8x60x124xf32, #tpu.memory_space<vmem>>, vector<1x58x122xf32>
      %506 = vector.shape_cast %505 : vector<1x58x122xf32> to vector<58x122xf32>
      %507 = vector.broadcast %504 : f32 to vector<58x122xf32>
      %508 = arith.mulf %507, %506 : vector<58x122xf32>
      %509 = arith.addf %498, %508 : vector<58x122xf32>
      %c72_i32_290 = arith.constant 72 : i32
      %510 = arith.muli %arg8, %c72_i32_290 : i32
      %c36_i32_291 = arith.constant 36 : i32
      %511 = arith.addi %510, %c36_i32_291 : i32
      %c3_i32_292 = arith.constant 3 : i32
      %512 = arith.addi %511, %c3_i32_292 : i32
      %c2_i32_293 = arith.constant 2 : i32
      %513 = arith.addi %512, %c2_i32_293 : i32
      %514 = arith.index_cast %513 : i32 to index
      %515 = memref.load %arg4[%514] : memref<1152xf32, #tpu.memory_space<smem>>
      %c4_294 = arith.constant 4 : index
      %c1_295 = arith.constant 1 : index
      %c2_296 = arith.constant 2 : index
      %516 = vector.load %arg7[%c4_294, %c1_295, %c2_296] : memref<8x60x124xf32, #tpu.memory_space<vmem>>, vector<1x58x122xf32>
      %517 = vector.shape_cast %516 : vector<1x58x122xf32> to vector<58x122xf32>
      %518 = vector.broadcast %515 : f32 to vector<58x122xf32>
      %519 = arith.mulf %518, %517 : vector<58x122xf32>
      %520 = arith.addf %509, %519 : vector<58x122xf32>
      %c72_i32_297 = arith.constant 72 : i32
      %521 = arith.muli %arg8, %c72_i32_297 : i32
      %c36_i32_298 = arith.constant 36 : i32
      %522 = arith.addi %521, %c36_i32_298 : i32
      %c6_i32_299 = arith.constant 6 : i32
      %523 = arith.addi %522, %c6_i32_299 : i32
      %c0_i32_300 = arith.constant 0 : i32
      %524 = arith.addi %523, %c0_i32_300 : i32
      %525 = arith.index_cast %524 : i32 to index
      %526 = memref.load %arg4[%525] : memref<1152xf32, #tpu.memory_space<smem>>
      %c4_301 = arith.constant 4 : index
      %c2_302 = arith.constant 2 : index
      %c0_303 = arith.constant 0 : index
      %527 = vector.load %arg7[%c4_301, %c2_302, %c0_303] : memref<8x60x124xf32, #tpu.memory_space<vmem>>, vector<1x58x122xf32>
      %528 = vector.shape_cast %527 : vector<1x58x122xf32> to vector<58x122xf32>
      %529 = vector.broadcast %526 : f32 to vector<58x122xf32>
      %530 = arith.mulf %529, %528 : vector<58x122xf32>
      %531 = arith.addf %520, %530 : vector<58x122xf32>
      %c72_i32_304 = arith.constant 72 : i32
      %532 = arith.muli %arg8, %c72_i32_304 : i32
      %c36_i32_305 = arith.constant 36 : i32
      %533 = arith.addi %532, %c36_i32_305 : i32
      %c6_i32_306 = arith.constant 6 : i32
      %534 = arith.addi %533, %c6_i32_306 : i32
      %c1_i32_307 = arith.constant 1 : i32
      %535 = arith.addi %534, %c1_i32_307 : i32
      %536 = arith.index_cast %535 : i32 to index
      %537 = memref.load %arg4[%536] : memref<1152xf32, #tpu.memory_space<smem>>
      %c4_308 = arith.constant 4 : index
      %c2_309 = arith.constant 2 : index
      %c1_310 = arith.constant 1 : index
      %538 = vector.load %arg7[%c4_308, %c2_309, %c1_310] : memref<8x60x124xf32, #tpu.memory_space<vmem>>, vector<1x58x122xf32>
      %539 = vector.shape_cast %538 : vector<1x58x122xf32> to vector<58x122xf32>
      %540 = vector.broadcast %537 : f32 to vector<58x122xf32>
      %541 = arith.mulf %540, %539 : vector<58x122xf32>
      %542 = arith.addf %531, %541 : vector<58x122xf32>
      %c72_i32_311 = arith.constant 72 : i32
      %543 = arith.muli %arg8, %c72_i32_311 : i32
      %c36_i32_312 = arith.constant 36 : i32
      %544 = arith.addi %543, %c36_i32_312 : i32
      %c6_i32_313 = arith.constant 6 : i32
      %545 = arith.addi %544, %c6_i32_313 : i32
      %c2_i32_314 = arith.constant 2 : i32
      %546 = arith.addi %545, %c2_i32_314 : i32
      %547 = arith.index_cast %546 : i32 to index
      %548 = memref.load %arg4[%547] : memref<1152xf32, #tpu.memory_space<smem>>
      %c4_315 = arith.constant 4 : index
      %c2_316 = arith.constant 2 : index
      %c2_317 = arith.constant 2 : index
      %549 = vector.load %arg7[%c4_315, %c2_316, %c2_317] : memref<8x60x124xf32, #tpu.memory_space<vmem>>, vector<1x58x122xf32>
      %550 = vector.shape_cast %549 : vector<1x58x122xf32> to vector<58x122xf32>
      %551 = vector.broadcast %548 : f32 to vector<58x122xf32>
      %552 = arith.mulf %551, %550 : vector<58x122xf32>
      %553 = arith.addf %542, %552 : vector<58x122xf32>
      %c72_i32_318 = arith.constant 72 : i32
      %554 = arith.muli %arg8, %c72_i32_318 : i32
      %c45_i32 = arith.constant 45 : i32
      %555 = arith.addi %554, %c45_i32 : i32
      %c0_i32_319 = arith.constant 0 : i32
      %556 = arith.addi %555, %c0_i32_319 : i32
      %c0_i32_320 = arith.constant 0 : i32
      %557 = arith.addi %556, %c0_i32_320 : i32
      %558 = arith.index_cast %557 : i32 to index
      %559 = memref.load %arg4[%558] : memref<1152xf32, #tpu.memory_space<smem>>
      %c5 = arith.constant 5 : index
      %c0_321 = arith.constant 0 : index
      %c0_322 = arith.constant 0 : index
      %560 = vector.load %arg7[%c5, %c0_321, %c0_322] : memref<8x60x124xf32, #tpu.memory_space<vmem>>, vector<1x58x122xf32>
      %561 = vector.shape_cast %560 : vector<1x58x122xf32> to vector<58x122xf32>
      %562 = vector.broadcast %559 : f32 to vector<58x122xf32>
      %563 = arith.mulf %562, %561 : vector<58x122xf32>
      %564 = arith.addf %553, %563 : vector<58x122xf32>
      %c72_i32_323 = arith.constant 72 : i32
      %565 = arith.muli %arg8, %c72_i32_323 : i32
      %c45_i32_324 = arith.constant 45 : i32
      %566 = arith.addi %565, %c45_i32_324 : i32
      %c0_i32_325 = arith.constant 0 : i32
      %567 = arith.addi %566, %c0_i32_325 : i32
      %c1_i32_326 = arith.constant 1 : i32
      %568 = arith.addi %567, %c1_i32_326 : i32
      %569 = arith.index_cast %568 : i32 to index
      %570 = memref.load %arg4[%569] : memref<1152xf32, #tpu.memory_space<smem>>
      %c5_327 = arith.constant 5 : index
      %c0_328 = arith.constant 0 : index
      %c1_329 = arith.constant 1 : index
      %571 = vector.load %arg7[%c5_327, %c0_328, %c1_329] : memref<8x60x124xf32, #tpu.memory_space<vmem>>, vector<1x58x122xf32>
      %572 = vector.shape_cast %571 : vector<1x58x122xf32> to vector<58x122xf32>
      %573 = vector.broadcast %570 : f32 to vector<58x122xf32>
      %574 = arith.mulf %573, %572 : vector<58x122xf32>
      %575 = arith.addf %564, %574 : vector<58x122xf32>
      %c72_i32_330 = arith.constant 72 : i32
      %576 = arith.muli %arg8, %c72_i32_330 : i32
      %c45_i32_331 = arith.constant 45 : i32
      %577 = arith.addi %576, %c45_i32_331 : i32
      %c0_i32_332 = arith.constant 0 : i32
      %578 = arith.addi %577, %c0_i32_332 : i32
      %c2_i32_333 = arith.constant 2 : i32
      %579 = arith.addi %578, %c2_i32_333 : i32
      %580 = arith.index_cast %579 : i32 to index
      %581 = memref.load %arg4[%580] : memref<1152xf32, #tpu.memory_space<smem>>
      %c5_334 = arith.constant 5 : index
      %c0_335 = arith.constant 0 : index
      %c2_336 = arith.constant 2 : index
      %582 = vector.load %arg7[%c5_334, %c0_335, %c2_336] : memref<8x60x124xf32, #tpu.memory_space<vmem>>, vector<1x58x122xf32>
      %583 = vector.shape_cast %582 : vector<1x58x122xf32> to vector<58x122xf32>
      %584 = vector.broadcast %581 : f32 to vector<58x122xf32>
      %585 = arith.mulf %584, %583 : vector<58x122xf32>
      %586 = arith.addf %575, %585 : vector<58x122xf32>
      %c72_i32_337 = arith.constant 72 : i32
      %587 = arith.muli %arg8, %c72_i32_337 : i32
      %c45_i32_338 = arith.constant 45 : i32
      %588 = arith.addi %587, %c45_i32_338 : i32
      %c3_i32_339 = arith.constant 3 : i32
      %589 = arith.addi %588, %c3_i32_339 : i32
      %c0_i32_340 = arith.constant 0 : i32
      %590 = arith.addi %589, %c0_i32_340 : i32
      %591 = arith.index_cast %590 : i32 to index
      %592 = memref.load %arg4[%591] : memref<1152xf32, #tpu.memory_space<smem>>
      %c5_341 = arith.constant 5 : index
      %c1_342 = arith.constant 1 : index
      %c0_343 = arith.constant 0 : index
      %593 = vector.load %arg7[%c5_341, %c1_342, %c0_343] : memref<8x60x124xf32, #tpu.memory_space<vmem>>, vector<1x58x122xf32>
      %594 = vector.shape_cast %593 : vector<1x58x122xf32> to vector<58x122xf32>
      %595 = vector.broadcast %592 : f32 to vector<58x122xf32>
      %596 = arith.mulf %595, %594 : vector<58x122xf32>
      %597 = arith.addf %586, %596 : vector<58x122xf32>
      %c72_i32_344 = arith.constant 72 : i32
      %598 = arith.muli %arg8, %c72_i32_344 : i32
      %c45_i32_345 = arith.constant 45 : i32
      %599 = arith.addi %598, %c45_i32_345 : i32
      %c3_i32_346 = arith.constant 3 : i32
      %600 = arith.addi %599, %c3_i32_346 : i32
      %c1_i32_347 = arith.constant 1 : i32
      %601 = arith.addi %600, %c1_i32_347 : i32
      %602 = arith.index_cast %601 : i32 to index
      %603 = memref.load %arg4[%602] : memref<1152xf32, #tpu.memory_space<smem>>
      %c5_348 = arith.constant 5 : index
      %c1_349 = arith.constant 1 : index
      %c1_350 = arith.constant 1 : index
      %604 = vector.load %arg7[%c5_348, %c1_349, %c1_350] : memref<8x60x124xf32, #tpu.memory_space<vmem>>, vector<1x58x122xf32>
      %605 = vector.shape_cast %604 : vector<1x58x122xf32> to vector<58x122xf32>
      %606 = vector.broadcast %603 : f32 to vector<58x122xf32>
      %607 = arith.mulf %606, %605 : vector<58x122xf32>
      %608 = arith.addf %597, %607 : vector<58x122xf32>
      %c72_i32_351 = arith.constant 72 : i32
      %609 = arith.muli %arg8, %c72_i32_351 : i32
      %c45_i32_352 = arith.constant 45 : i32
      %610 = arith.addi %609, %c45_i32_352 : i32
      %c3_i32_353 = arith.constant 3 : i32
      %611 = arith.addi %610, %c3_i32_353 : i32
      %c2_i32_354 = arith.constant 2 : i32
      %612 = arith.addi %611, %c2_i32_354 : i32
      %613 = arith.index_cast %612 : i32 to index
      %614 = memref.load %arg4[%613] : memref<1152xf32, #tpu.memory_space<smem>>
      %c5_355 = arith.constant 5 : index
      %c1_356 = arith.constant 1 : index
      %c2_357 = arith.constant 2 : index
      %615 = vector.load %arg7[%c5_355, %c1_356, %c2_357] : memref<8x60x124xf32, #tpu.memory_space<vmem>>, vector<1x58x122xf32>
      %616 = vector.shape_cast %615 : vector<1x58x122xf32> to vector<58x122xf32>
      %617 = vector.broadcast %614 : f32 to vector<58x122xf32>
      %618 = arith.mulf %617, %616 : vector<58x122xf32>
      %619 = arith.addf %608, %618 : vector<58x122xf32>
      %c72_i32_358 = arith.constant 72 : i32
      %620 = arith.muli %arg8, %c72_i32_358 : i32
      %c45_i32_359 = arith.constant 45 : i32
      %621 = arith.addi %620, %c45_i32_359 : i32
      %c6_i32_360 = arith.constant 6 : i32
      %622 = arith.addi %621, %c6_i32_360 : i32
      %c0_i32_361 = arith.constant 0 : i32
      %623 = arith.addi %622, %c0_i32_361 : i32
      %624 = arith.index_cast %623 : i32 to index
      %625 = memref.load %arg4[%624] : memref<1152xf32, #tpu.memory_space<smem>>
      %c5_362 = arith.constant 5 : index
      %c2_363 = arith.constant 2 : index
      %c0_364 = arith.constant 0 : index
      %626 = vector.load %arg7[%c5_362, %c2_363, %c0_364] : memref<8x60x124xf32, #tpu.memory_space<vmem>>, vector<1x58x122xf32>
      %627 = vector.shape_cast %626 : vector<1x58x122xf32> to vector<58x122xf32>
      %628 = vector.broadcast %625 : f32 to vector<58x122xf32>
      %629 = arith.mulf %628, %627 : vector<58x122xf32>
      %630 = arith.addf %619, %629 : vector<58x122xf32>
      %c72_i32_365 = arith.constant 72 : i32
      %631 = arith.muli %arg8, %c72_i32_365 : i32
      %c45_i32_366 = arith.constant 45 : i32
      %632 = arith.addi %631, %c45_i32_366 : i32
      %c6_i32_367 = arith.constant 6 : i32
      %633 = arith.addi %632, %c6_i32_367 : i32
      %c1_i32_368 = arith.constant 1 : i32
      %634 = arith.addi %633, %c1_i32_368 : i32
      %635 = arith.index_cast %634 : i32 to index
      %636 = memref.load %arg4[%635] : memref<1152xf32, #tpu.memory_space<smem>>
      %c5_369 = arith.constant 5 : index
      %c2_370 = arith.constant 2 : index
      %c1_371 = arith.constant 1 : index
      %637 = vector.load %arg7[%c5_369, %c2_370, %c1_371] : memref<8x60x124xf32, #tpu.memory_space<vmem>>, vector<1x58x122xf32>
      %638 = vector.shape_cast %637 : vector<1x58x122xf32> to vector<58x122xf32>
      %639 = vector.broadcast %636 : f32 to vector<58x122xf32>
      %640 = arith.mulf %639, %638 : vector<58x122xf32>
      %641 = arith.addf %630, %640 : vector<58x122xf32>
      %c72_i32_372 = arith.constant 72 : i32
      %642 = arith.muli %arg8, %c72_i32_372 : i32
      %c45_i32_373 = arith.constant 45 : i32
      %643 = arith.addi %642, %c45_i32_373 : i32
      %c6_i32_374 = arith.constant 6 : i32
      %644 = arith.addi %643, %c6_i32_374 : i32
      %c2_i32_375 = arith.constant 2 : i32
      %645 = arith.addi %644, %c2_i32_375 : i32
      %646 = arith.index_cast %645 : i32 to index
      %647 = memref.load %arg4[%646] : memref<1152xf32, #tpu.memory_space<smem>>
      %c5_376 = arith.constant 5 : index
      %c2_377 = arith.constant 2 : index
      %c2_378 = arith.constant 2 : index
      %648 = vector.load %arg7[%c5_376, %c2_377, %c2_378] : memref<8x60x124xf32, #tpu.memory_space<vmem>>, vector<1x58x122xf32>
      %649 = vector.shape_cast %648 : vector<1x58x122xf32> to vector<58x122xf32>
      %650 = vector.broadcast %647 : f32 to vector<58x122xf32>
      %651 = arith.mulf %650, %649 : vector<58x122xf32>
      %652 = arith.addf %641, %651 : vector<58x122xf32>
      %c72_i32_379 = arith.constant 72 : i32
      %653 = arith.muli %arg8, %c72_i32_379 : i32
      %c54_i32 = arith.constant 54 : i32
      %654 = arith.addi %653, %c54_i32 : i32
      %c0_i32_380 = arith.constant 0 : i32
      %655 = arith.addi %654, %c0_i32_380 : i32
      %c0_i32_381 = arith.constant 0 : i32
      %656 = arith.addi %655, %c0_i32_381 : i32
      %657 = arith.index_cast %656 : i32 to index
      %658 = memref.load %arg4[%657] : memref<1152xf32, #tpu.memory_space<smem>>
      %c6 = arith.constant 6 : index
      %c0_382 = arith.constant 0 : index
      %c0_383 = arith.constant 0 : index
      %659 = vector.load %arg7[%c6, %c0_382, %c0_383] : memref<8x60x124xf32, #tpu.memory_space<vmem>>, vector<1x58x122xf32>
      %660 = vector.shape_cast %659 : vector<1x58x122xf32> to vector<58x122xf32>
      %661 = vector.broadcast %658 : f32 to vector<58x122xf32>
      %662 = arith.mulf %661, %660 : vector<58x122xf32>
      %663 = arith.addf %652, %662 : vector<58x122xf32>
      %c72_i32_384 = arith.constant 72 : i32
      %664 = arith.muli %arg8, %c72_i32_384 : i32
      %c54_i32_385 = arith.constant 54 : i32
      %665 = arith.addi %664, %c54_i32_385 : i32
      %c0_i32_386 = arith.constant 0 : i32
      %666 = arith.addi %665, %c0_i32_386 : i32
      %c1_i32_387 = arith.constant 1 : i32
      %667 = arith.addi %666, %c1_i32_387 : i32
      %668 = arith.index_cast %667 : i32 to index
      %669 = memref.load %arg4[%668] : memref<1152xf32, #tpu.memory_space<smem>>
      %c6_388 = arith.constant 6 : index
      %c0_389 = arith.constant 0 : index
      %c1_390 = arith.constant 1 : index
      %670 = vector.load %arg7[%c6_388, %c0_389, %c1_390] : memref<8x60x124xf32, #tpu.memory_space<vmem>>, vector<1x58x122xf32>
      %671 = vector.shape_cast %670 : vector<1x58x122xf32> to vector<58x122xf32>
      %672 = vector.broadcast %669 : f32 to vector<58x122xf32>
      %673 = arith.mulf %672, %671 : vector<58x122xf32>
      %674 = arith.addf %663, %673 : vector<58x122xf32>
      %c72_i32_391 = arith.constant 72 : i32
      %675 = arith.muli %arg8, %c72_i32_391 : i32
      %c54_i32_392 = arith.constant 54 : i32
      %676 = arith.addi %675, %c54_i32_392 : i32
      %c0_i32_393 = arith.constant 0 : i32
      %677 = arith.addi %676, %c0_i32_393 : i32
      %c2_i32_394 = arith.constant 2 : i32
      %678 = arith.addi %677, %c2_i32_394 : i32
      %679 = arith.index_cast %678 : i32 to index
      %680 = memref.load %arg4[%679] : memref<1152xf32, #tpu.memory_space<smem>>
      %c6_395 = arith.constant 6 : index
      %c0_396 = arith.constant 0 : index
      %c2_397 = arith.constant 2 : index
      %681 = vector.load %arg7[%c6_395, %c0_396, %c2_397] : memref<8x60x124xf32, #tpu.memory_space<vmem>>, vector<1x58x122xf32>
      %682 = vector.shape_cast %681 : vector<1x58x122xf32> to vector<58x122xf32>
      %683 = vector.broadcast %680 : f32 to vector<58x122xf32>
      %684 = arith.mulf %683, %682 : vector<58x122xf32>
      %685 = arith.addf %674, %684 : vector<58x122xf32>
      %c72_i32_398 = arith.constant 72 : i32
      %686 = arith.muli %arg8, %c72_i32_398 : i32
      %c54_i32_399 = arith.constant 54 : i32
      %687 = arith.addi %686, %c54_i32_399 : i32
      %c3_i32_400 = arith.constant 3 : i32
      %688 = arith.addi %687, %c3_i32_400 : i32
      %c0_i32_401 = arith.constant 0 : i32
      %689 = arith.addi %688, %c0_i32_401 : i32
      %690 = arith.index_cast %689 : i32 to index
      %691 = memref.load %arg4[%690] : memref<1152xf32, #tpu.memory_space<smem>>
      %c6_402 = arith.constant 6 : index
      %c1_403 = arith.constant 1 : index
      %c0_404 = arith.constant 0 : index
      %692 = vector.load %arg7[%c6_402, %c1_403, %c0_404] : memref<8x60x124xf32, #tpu.memory_space<vmem>>, vector<1x58x122xf32>
      %693 = vector.shape_cast %692 : vector<1x58x122xf32> to vector<58x122xf32>
      %694 = vector.broadcast %691 : f32 to vector<58x122xf32>
      %695 = arith.mulf %694, %693 : vector<58x122xf32>
      %696 = arith.addf %685, %695 : vector<58x122xf32>
      %c72_i32_405 = arith.constant 72 : i32
      %697 = arith.muli %arg8, %c72_i32_405 : i32
      %c54_i32_406 = arith.constant 54 : i32
      %698 = arith.addi %697, %c54_i32_406 : i32
      %c3_i32_407 = arith.constant 3 : i32
      %699 = arith.addi %698, %c3_i32_407 : i32
      %c1_i32_408 = arith.constant 1 : i32
      %700 = arith.addi %699, %c1_i32_408 : i32
      %701 = arith.index_cast %700 : i32 to index
      %702 = memref.load %arg4[%701] : memref<1152xf32, #tpu.memory_space<smem>>
      %c6_409 = arith.constant 6 : index
      %c1_410 = arith.constant 1 : index
      %c1_411 = arith.constant 1 : index
      %703 = vector.load %arg7[%c6_409, %c1_410, %c1_411] : memref<8x60x124xf32, #tpu.memory_space<vmem>>, vector<1x58x122xf32>
      %704 = vector.shape_cast %703 : vector<1x58x122xf32> to vector<58x122xf32>
      %705 = vector.broadcast %702 : f32 to vector<58x122xf32>
      %706 = arith.mulf %705, %704 : vector<58x122xf32>
      %707 = arith.addf %696, %706 : vector<58x122xf32>
      %c72_i32_412 = arith.constant 72 : i32
      %708 = arith.muli %arg8, %c72_i32_412 : i32
      %c54_i32_413 = arith.constant 54 : i32
      %709 = arith.addi %708, %c54_i32_413 : i32
      %c3_i32_414 = arith.constant 3 : i32
      %710 = arith.addi %709, %c3_i32_414 : i32
      %c2_i32_415 = arith.constant 2 : i32
      %711 = arith.addi %710, %c2_i32_415 : i32
      %712 = arith.index_cast %711 : i32 to index
      %713 = memref.load %arg4[%712] : memref<1152xf32, #tpu.memory_space<smem>>
      %c6_416 = arith.constant 6 : index
      %c1_417 = arith.constant 1 : index
      %c2_418 = arith.constant 2 : index
      %714 = vector.load %arg7[%c6_416, %c1_417, %c2_418] : memref<8x60x124xf32, #tpu.memory_space<vmem>>, vector<1x58x122xf32>
      %715 = vector.shape_cast %714 : vector<1x58x122xf32> to vector<58x122xf32>
      %716 = vector.broadcast %713 : f32 to vector<58x122xf32>
      %717 = arith.mulf %716, %715 : vector<58x122xf32>
      %718 = arith.addf %707, %717 : vector<58x122xf32>
      %c72_i32_419 = arith.constant 72 : i32
      %719 = arith.muli %arg8, %c72_i32_419 : i32
      %c54_i32_420 = arith.constant 54 : i32
      %720 = arith.addi %719, %c54_i32_420 : i32
      %c6_i32_421 = arith.constant 6 : i32
      %721 = arith.addi %720, %c6_i32_421 : i32
      %c0_i32_422 = arith.constant 0 : i32
      %722 = arith.addi %721, %c0_i32_422 : i32
      %723 = arith.index_cast %722 : i32 to index
      %724 = memref.load %arg4[%723] : memref<1152xf32, #tpu.memory_space<smem>>
      %c6_423 = arith.constant 6 : index
      %c2_424 = arith.constant 2 : index
      %c0_425 = arith.constant 0 : index
      %725 = vector.load %arg7[%c6_423, %c2_424, %c0_425] : memref<8x60x124xf32, #tpu.memory_space<vmem>>, vector<1x58x122xf32>
      %726 = vector.shape_cast %725 : vector<1x58x122xf32> to vector<58x122xf32>
      %727 = vector.broadcast %724 : f32 to vector<58x122xf32>
      %728 = arith.mulf %727, %726 : vector<58x122xf32>
      %729 = arith.addf %718, %728 : vector<58x122xf32>
      %c72_i32_426 = arith.constant 72 : i32
      %730 = arith.muli %arg8, %c72_i32_426 : i32
      %c54_i32_427 = arith.constant 54 : i32
      %731 = arith.addi %730, %c54_i32_427 : i32
      %c6_i32_428 = arith.constant 6 : i32
      %732 = arith.addi %731, %c6_i32_428 : i32
      %c1_i32_429 = arith.constant 1 : i32
      %733 = arith.addi %732, %c1_i32_429 : i32
      %734 = arith.index_cast %733 : i32 to index
      %735 = memref.load %arg4[%734] : memref<1152xf32, #tpu.memory_space<smem>>
      %c6_430 = arith.constant 6 : index
      %c2_431 = arith.constant 2 : index
      %c1_432 = arith.constant 1 : index
      %736 = vector.load %arg7[%c6_430, %c2_431, %c1_432] : memref<8x60x124xf32, #tpu.memory_space<vmem>>, vector<1x58x122xf32>
      %737 = vector.shape_cast %736 : vector<1x58x122xf32> to vector<58x122xf32>
      %738 = vector.broadcast %735 : f32 to vector<58x122xf32>
      %739 = arith.mulf %738, %737 : vector<58x122xf32>
      %740 = arith.addf %729, %739 : vector<58x122xf32>
      %c72_i32_433 = arith.constant 72 : i32
      %741 = arith.muli %arg8, %c72_i32_433 : i32
      %c54_i32_434 = arith.constant 54 : i32
      %742 = arith.addi %741, %c54_i32_434 : i32
      %c6_i32_435 = arith.constant 6 : i32
      %743 = arith.addi %742, %c6_i32_435 : i32
      %c2_i32_436 = arith.constant 2 : i32
      %744 = arith.addi %743, %c2_i32_436 : i32
      %745 = arith.index_cast %744 : i32 to index
      %746 = memref.load %arg4[%745] : memref<1152xf32, #tpu.memory_space<smem>>
      %c6_437 = arith.constant 6 : index
      %c2_438 = arith.constant 2 : index
      %c2_439 = arith.constant 2 : index
      %747 = vector.load %arg7[%c6_437, %c2_438, %c2_439] : memref<8x60x124xf32, #tpu.memory_space<vmem>>, vector<1x58x122xf32>
      %748 = vector.shape_cast %747 : vector<1x58x122xf32> to vector<58x122xf32>
      %749 = vector.broadcast %746 : f32 to vector<58x122xf32>
      %750 = arith.mulf %749, %748 : vector<58x122xf32>
      %751 = arith.addf %740, %750 : vector<58x122xf32>
      %c72_i32_440 = arith.constant 72 : i32
      %752 = arith.muli %arg8, %c72_i32_440 : i32
      %c63_i32 = arith.constant 63 : i32
      %753 = arith.addi %752, %c63_i32 : i32
      %c0_i32_441 = arith.constant 0 : i32
      %754 = arith.addi %753, %c0_i32_441 : i32
      %c0_i32_442 = arith.constant 0 : i32
      %755 = arith.addi %754, %c0_i32_442 : i32
      %756 = arith.index_cast %755 : i32 to index
      %757 = memref.load %arg4[%756] : memref<1152xf32, #tpu.memory_space<smem>>
      %c7 = arith.constant 7 : index
      %c0_443 = arith.constant 0 : index
      %c0_444 = arith.constant 0 : index
      %758 = vector.load %arg7[%c7, %c0_443, %c0_444] : memref<8x60x124xf32, #tpu.memory_space<vmem>>, vector<1x58x122xf32>
      %759 = vector.shape_cast %758 : vector<1x58x122xf32> to vector<58x122xf32>
      %760 = vector.broadcast %757 : f32 to vector<58x122xf32>
      %761 = arith.mulf %760, %759 : vector<58x122xf32>
      %762 = arith.addf %751, %761 : vector<58x122xf32>
      %c72_i32_445 = arith.constant 72 : i32
      %763 = arith.muli %arg8, %c72_i32_445 : i32
      %c63_i32_446 = arith.constant 63 : i32
      %764 = arith.addi %763, %c63_i32_446 : i32
      %c0_i32_447 = arith.constant 0 : i32
      %765 = arith.addi %764, %c0_i32_447 : i32
      %c1_i32_448 = arith.constant 1 : i32
      %766 = arith.addi %765, %c1_i32_448 : i32
      %767 = arith.index_cast %766 : i32 to index
      %768 = memref.load %arg4[%767] : memref<1152xf32, #tpu.memory_space<smem>>
      %c7_449 = arith.constant 7 : index
      %c0_450 = arith.constant 0 : index
      %c1_451 = arith.constant 1 : index
      %769 = vector.load %arg7[%c7_449, %c0_450, %c1_451] : memref<8x60x124xf32, #tpu.memory_space<vmem>>, vector<1x58x122xf32>
      %770 = vector.shape_cast %769 : vector<1x58x122xf32> to vector<58x122xf32>
      %771 = vector.broadcast %768 : f32 to vector<58x122xf32>
      %772 = arith.mulf %771, %770 : vector<58x122xf32>
      %773 = arith.addf %762, %772 : vector<58x122xf32>
      %c72_i32_452 = arith.constant 72 : i32
      %774 = arith.muli %arg8, %c72_i32_452 : i32
      %c63_i32_453 = arith.constant 63 : i32
      %775 = arith.addi %774, %c63_i32_453 : i32
      %c0_i32_454 = arith.constant 0 : i32
      %776 = arith.addi %775, %c0_i32_454 : i32
      %c2_i32_455 = arith.constant 2 : i32
      %777 = arith.addi %776, %c2_i32_455 : i32
      %778 = arith.index_cast %777 : i32 to index
      %779 = memref.load %arg4[%778] : memref<1152xf32, #tpu.memory_space<smem>>
      %c7_456 = arith.constant 7 : index
      %c0_457 = arith.constant 0 : index
      %c2_458 = arith.constant 2 : index
      %780 = vector.load %arg7[%c7_456, %c0_457, %c2_458] : memref<8x60x124xf32, #tpu.memory_space<vmem>>, vector<1x58x122xf32>
      %781 = vector.shape_cast %780 : vector<1x58x122xf32> to vector<58x122xf32>
      %782 = vector.broadcast %779 : f32 to vector<58x122xf32>
      %783 = arith.mulf %782, %781 : vector<58x122xf32>
      %784 = arith.addf %773, %783 : vector<58x122xf32>
      %c72_i32_459 = arith.constant 72 : i32
      %785 = arith.muli %arg8, %c72_i32_459 : i32
      %c63_i32_460 = arith.constant 63 : i32
      %786 = arith.addi %785, %c63_i32_460 : i32
      %c3_i32_461 = arith.constant 3 : i32
      %787 = arith.addi %786, %c3_i32_461 : i32
      %c0_i32_462 = arith.constant 0 : i32
      %788 = arith.addi %787, %c0_i32_462 : i32
      %789 = arith.index_cast %788 : i32 to index
      %790 = memref.load %arg4[%789] : memref<1152xf32, #tpu.memory_space<smem>>
      %c7_463 = arith.constant 7 : index
      %c1_464 = arith.constant 1 : index
      %c0_465 = arith.constant 0 : index
      %791 = vector.load %arg7[%c7_463, %c1_464, %c0_465] : memref<8x60x124xf32, #tpu.memory_space<vmem>>, vector<1x58x122xf32>
      %792 = vector.shape_cast %791 : vector<1x58x122xf32> to vector<58x122xf32>
      %793 = vector.broadcast %790 : f32 to vector<58x122xf32>
      %794 = arith.mulf %793, %792 : vector<58x122xf32>
      %795 = arith.addf %784, %794 : vector<58x122xf32>
      %c72_i32_466 = arith.constant 72 : i32
      %796 = arith.muli %arg8, %c72_i32_466 : i32
      %c63_i32_467 = arith.constant 63 : i32
      %797 = arith.addi %796, %c63_i32_467 : i32
      %c3_i32_468 = arith.constant 3 : i32
      %798 = arith.addi %797, %c3_i32_468 : i32
      %c1_i32_469 = arith.constant 1 : i32
      %799 = arith.addi %798, %c1_i32_469 : i32
      %800 = arith.index_cast %799 : i32 to index
      %801 = memref.load %arg4[%800] : memref<1152xf32, #tpu.memory_space<smem>>
      %c7_470 = arith.constant 7 : index
      %c1_471 = arith.constant 1 : index
      %c1_472 = arith.constant 1 : index
      %802 = vector.load %arg7[%c7_470, %c1_471, %c1_472] : memref<8x60x124xf32, #tpu.memory_space<vmem>>, vector<1x58x122xf32>
      %803 = vector.shape_cast %802 : vector<1x58x122xf32> to vector<58x122xf32>
      %804 = vector.broadcast %801 : f32 to vector<58x122xf32>
      %805 = arith.mulf %804, %803 : vector<58x122xf32>
      %806 = arith.addf %795, %805 : vector<58x122xf32>
      %c72_i32_473 = arith.constant 72 : i32
      %807 = arith.muli %arg8, %c72_i32_473 : i32
      %c63_i32_474 = arith.constant 63 : i32
      %808 = arith.addi %807, %c63_i32_474 : i32
      %c3_i32_475 = arith.constant 3 : i32
      %809 = arith.addi %808, %c3_i32_475 : i32
      %c2_i32_476 = arith.constant 2 : i32
      %810 = arith.addi %809, %c2_i32_476 : i32
      %811 = arith.index_cast %810 : i32 to index
      %812 = memref.load %arg4[%811] : memref<1152xf32, #tpu.memory_space<smem>>
      %c7_477 = arith.constant 7 : index
      %c1_478 = arith.constant 1 : index
      %c2_479 = arith.constant 2 : index
      %813 = vector.load %arg7[%c7_477, %c1_478, %c2_479] : memref<8x60x124xf32, #tpu.memory_space<vmem>>, vector<1x58x122xf32>
      %814 = vector.shape_cast %813 : vector<1x58x122xf32> to vector<58x122xf32>
      %815 = vector.broadcast %812 : f32 to vector<58x122xf32>
      %816 = arith.mulf %815, %814 : vector<58x122xf32>
      %817 = arith.addf %806, %816 : vector<58x122xf32>
      %c72_i32_480 = arith.constant 72 : i32
      %818 = arith.muli %arg8, %c72_i32_480 : i32
      %c63_i32_481 = arith.constant 63 : i32
      %819 = arith.addi %818, %c63_i32_481 : i32
      %c6_i32_482 = arith.constant 6 : i32
      %820 = arith.addi %819, %c6_i32_482 : i32
      %c0_i32_483 = arith.constant 0 : i32
      %821 = arith.addi %820, %c0_i32_483 : i32
      %822 = arith.index_cast %821 : i32 to index
      %823 = memref.load %arg4[%822] : memref<1152xf32, #tpu.memory_space<smem>>
      %c7_484 = arith.constant 7 : index
      %c2_485 = arith.constant 2 : index
      %c0_486 = arith.constant 0 : index
      %824 = vector.load %arg7[%c7_484, %c2_485, %c0_486] : memref<8x60x124xf32, #tpu.memory_space<vmem>>, vector<1x58x122xf32>
      %825 = vector.shape_cast %824 : vector<1x58x122xf32> to vector<58x122xf32>
      %826 = vector.broadcast %823 : f32 to vector<58x122xf32>
      %827 = arith.mulf %826, %825 : vector<58x122xf32>
      %828 = arith.addf %817, %827 : vector<58x122xf32>
      %c72_i32_487 = arith.constant 72 : i32
      %829 = arith.muli %arg8, %c72_i32_487 : i32
      %c63_i32_488 = arith.constant 63 : i32
      %830 = arith.addi %829, %c63_i32_488 : i32
      %c6_i32_489 = arith.constant 6 : i32
      %831 = arith.addi %830, %c6_i32_489 : i32
      %c1_i32_490 = arith.constant 1 : i32
      %832 = arith.addi %831, %c1_i32_490 : i32
      %833 = arith.index_cast %832 : i32 to index
      %834 = memref.load %arg4[%833] : memref<1152xf32, #tpu.memory_space<smem>>
      %c7_491 = arith.constant 7 : index
      %c2_492 = arith.constant 2 : index
      %c1_493 = arith.constant 1 : index
      %835 = vector.load %arg7[%c7_491, %c2_492, %c1_493] : memref<8x60x124xf32, #tpu.memory_space<vmem>>, vector<1x58x122xf32>
      %836 = vector.shape_cast %835 : vector<1x58x122xf32> to vector<58x122xf32>
      %837 = vector.broadcast %834 : f32 to vector<58x122xf32>
      %838 = arith.mulf %837, %836 : vector<58x122xf32>
      %839 = arith.addf %828, %838 : vector<58x122xf32>
      %c72_i32_494 = arith.constant 72 : i32
      %840 = arith.muli %arg8, %c72_i32_494 : i32
      %c63_i32_495 = arith.constant 63 : i32
      %841 = arith.addi %840, %c63_i32_495 : i32
      %c6_i32_496 = arith.constant 6 : i32
      %842 = arith.addi %841, %c6_i32_496 : i32
      %c2_i32_497 = arith.constant 2 : i32
      %843 = arith.addi %842, %c2_i32_497 : i32
      %844 = arith.index_cast %843 : i32 to index
      %845 = memref.load %arg4[%844] : memref<1152xf32, #tpu.memory_space<smem>>
      %c7_498 = arith.constant 7 : index
      %c2_499 = arith.constant 2 : index
      %c2_500 = arith.constant 2 : index
      %846 = vector.load %arg7[%c7_498, %c2_499, %c2_500] : memref<8x60x124xf32, #tpu.memory_space<vmem>>, vector<1x58x122xf32>
      %847 = vector.shape_cast %846 : vector<1x58x122xf32> to vector<58x122xf32>
      %848 = vector.broadcast %845 : f32 to vector<58x122xf32>
      %849 = arith.mulf %848, %847 : vector<58x122xf32>
      %850 = arith.addf %839, %849 : vector<58x122xf32>
      %851 = arith.index_cast %arg8 : i32 to index
      %852 = memref.load %arg5[%851] : memref<16xf32, #tpu.memory_space<smem>>
      %853 = vector.broadcast %852 : f32 to vector<58x122xf32>
      %854 = arith.addf %850, %853 : vector<58x122xf32>
      %cst_501 = arith.constant 0.000000e+00 : f32
      %855 = vector.broadcast %cst_501 : f32 to vector<58x122xf32>
      %856 = arith.maximumf %854, %855 : vector<58x122xf32>
      %cst_502 = arith.constant dense<0.000000e+00> : vector<29x122xf32>
      %857 = tpu.matmul %34, %856, %cst_502 {dimension_numbers = #tpu.dot_dimension_numbers<[1], [0], [0], [1], [0, 0, 1, 1], [], []>} : vector<29x58xf32>, vector<58x122xf32>, vector<29x122xf32> -> vector<29x122xf32>
      %cst_503 = arith.constant dense<0.000000e+00> : vector<29x122xf32>
      %858 = tpu.matmul %41, %856, %cst_503 {dimension_numbers = #tpu.dot_dimension_numbers<[1], [0], [0], [1], [0, 0, 1, 1], [], []>} : vector<29x58xf32>, vector<58x122xf32>, vector<29x122xf32> -> vector<29x122xf32>
      %859 = arith.maximumf %857, %858 : vector<29x122xf32>
      %cst_504 = arith.constant dense<0.000000e+00> : vector<29x61xf32>
      %860 = tpu.matmul %859, %48, %cst_504 {dimension_numbers = #tpu.dot_dimension_numbers<[1], [0], [0], [1], [0, 0, 1, 1], [], []>} : vector<29x122xf32>, vector<122x61xf32>, vector<29x61xf32> -> vector<29x61xf32>
      %cst_505 = arith.constant dense<0.000000e+00> : vector<29x61xf32>
      %861 = tpu.matmul %859, %55, %cst_505 {dimension_numbers = #tpu.dot_dimension_numbers<[1], [0], [0], [1], [0, 0, 1, 1], [], []>} : vector<29x122xf32>, vector<122x61xf32>, vector<29x61xf32> -> vector<29x61xf32>
      %862 = arith.maximumf %860, %861 : vector<29x61xf32>
      %c0_506 = arith.constant 0 : index
      %863 = arith.index_cast %arg8 : i32 to index
      %c0_507 = arith.constant 0 : index
      %c0_508 = arith.constant 0 : index
      %864 = vector.load %arg6[%c0_506, %863, %c0_507, %c0_508] : memref<1x16x29x61xf32, #tpu.memory_space<vmem>>, vector<1x1x29x61xf32>
      %865 = vector.shape_cast %864 : vector<1x1x29x61xf32> to vector<29x61xf32>
      %866 = vector.shape_cast %862 : vector<29x61xf32> to vector<1x1x29x61xf32>
      tpu.vector_store %arg6[%c0_506, %863, %c0_507, %c0_508], %866 {strides = array<i32>} : memref<1x16x29x61xf32, #tpu.memory_space<vmem>>, vector<1x1x29x61xf32>,
    }
    %c16_i32_14 = arith.constant 16 : i32
    return
  }
  func.func @transform_0(%arg0: i32) -> (i32, i32, i32, i32) {
    %c0_i32 = arith.constant 0 : i32
    %c0_i32_0 = arith.constant 0 : i32
    %c0_i32_1 = arith.constant 0 : i32
    %c0_i32_2 = arith.constant 0 : i32
    return %arg0, %c0_i32, %c0_i32_0, %c0_i32_1 : i32, i32, i32, i32
  }
  func.func @transform_1(%arg0: i32) -> i32 {
    %c0_i32 = arith.constant 0 : i32
    %c0_i32_0 = arith.constant 0 : i32
    return %c0_i32 : i32
  }
  func.func @transform_2(%arg0: i32) -> i32 {
    %c0_i32 = arith.constant 0 : i32
    %c0_i32_0 = arith.constant 0 : i32
    return %c0_i32 : i32
  }
  func.func @transform_3(%arg0: i32) -> i32 {
    %c0_i32 = arith.constant 0 : i32
    %c0_i32_0 = arith.constant 0 : i32
    return %c0_i32 : i32
  }
  func.func @transform_4(%arg0: i32) -> i32 {
    %c0_i32 = arith.constant 0 : i32
    %c0_i32_0 = arith.constant 0 : i32
    return %c0_i32 : i32
  }
  func.func @transform_5(%arg0: i32) -> (i32, i32, i32, i32) {
    %c0_i32 = arith.constant 0 : i32
    %c0_i32_0 = arith.constant 0 : i32
    %c0_i32_1 = arith.constant 0 : i32
    %c0_i32_2 = arith.constant 0 : i32
    return %arg0, %c0_i32, %c0_i32_0, %c0_i32_1 : i32, i32, i32, i32
  }
}

module attributes {stable_mosaic.version = 11 : i64} {
  func.func @_mlp_kernel(%arg0: i32, %arg1: memref<1x16x1769xf32, #tpu.memory_space<vmem>>, %arg2: memref<16x64x1769xf32, #tpu.memory_space<vmem>>, %arg3: memref<64x1xf32, #tpu.memory_space<vmem>>, %arg4: memref<64x5xf32, #tpu.memory_space<vmem>>, %arg5: memref<1x5xf32, #tpu.memory_space<vmem>>, %arg6: memref<1x1x5xf32, #tpu.memory_space<vmem>>) attributes {dimension_semantics = [#tpu.dimension_semantics<parallel>], iteration_bounds = array<i64: 2>, scalar_prefetch = 0 : i64, scratch_operands = 0 : i64, tpu.core_type = #tpu.core_type<tc>, window_params = [{transform_indices = @transform_0, window_bounds = array<i64: 1, 16, 1769>}, {pipeline_mode = #tpu.pipeline_mode<synchronous>, transform_indices = @transform_1, window_bounds = array<i64: 16, 64, 1769>}, {pipeline_mode = #tpu.pipeline_mode<synchronous>, transform_indices = @transform_2, window_bounds = array<i64: 64, 1>}, {pipeline_mode = #tpu.pipeline_mode<synchronous>, transform_indices = @transform_3, window_bounds = array<i64: 64, 5>}, {pipeline_mode = #tpu.pipeline_mode<synchronous>, transform_indices = @transform_4, window_bounds = array<i64: 1, 5>}, {transform_indices = @transform_5, window_bounds = array<i64: 1, 1, 5>}]} {
    %cst = arith.constant 0.000000e+00 : f32
    %0 = vector.broadcast %cst : f32 to vector<64x1xf32>
    %c0_i32 = arith.constant 0 : i32
    %c16_i32 = arith.constant 16 : i32
    %1 = arith.addi %c0_i32, %c16_i32 : i32
    %c1_i32 = arith.constant 1 : i32
    %2 = scf.for %arg7 = %c0_i32 to %1 step %c1_i32 iter_args(%arg8 = %0) -> (vector<64x1xf32>)  : i32 {
      %c0_11 = arith.constant 0 : index
      %17 = arith.index_cast %arg7 : i32 to index
      %c0_12 = arith.constant 0 : index
      %18 = vector.load %arg1[%c0_11, %17, %c0_12] : memref<1x16x1769xf32, #tpu.memory_space<vmem>>, vector<1x1x1769xf32>
      %19 = vector.shape_cast %18 : vector<1x1x1769xf32> to vector<1x1769xf32>
      %20 = arith.index_cast %arg7 : i32 to index
      %c0_13 = arith.constant 0 : index
      %c0_14 = arith.constant 0 : index
      %21 = vector.load %arg2[%20, %c0_13, %c0_14] : memref<16x64x1769xf32, #tpu.memory_space<vmem>>, vector<1x64x1769xf32>
      %22 = vector.shape_cast %21 : vector<1x64x1769xf32> to vector<64x1769xf32>
      %23 = vector.broadcast %19 : vector<1x1769xf32> to vector<64x1769xf32>
      %24 = arith.mulf %22, %23 : vector<64x1769xf32>
      %cst_15 = arith.constant dense<0.000000e+00> : vector<64xf32>
      %25 = vector.multi_reduction <add>, %24, %cst_15 [1] : vector<64x1769xf32> to vector<64xf32>
      %26 = vector.shape_cast %25 : vector<64xf32> to vector<64x1xf32>
      %27 = arith.addf %arg8, %26 : vector<64x1xf32>
      scf.yield %27 : vector<64x1xf32>
    }
    %c16_i32_0 = arith.constant 16 : i32
    %c0 = arith.constant 0 : index
    %c0_1 = arith.constant 0 : index
    %3 = vector.load %arg3[%c0, %c0_1] : memref<64x1xf32, #tpu.memory_space<vmem>>, vector<64x1xf32>
    %4 = arith.addf %2, %3 : vector<64x1xf32>
    %cst_2 = arith.constant 0.000000e+00 : f32
    %5 = vector.broadcast %cst_2 : f32 to vector<64x1xf32>
    %6 = arith.maximumf %4, %5 : vector<64x1xf32>
    %c0_3 = arith.constant 0 : index
    %c0_4 = arith.constant 0 : index
    %7 = vector.load %arg4[%c0_3, %c0_4] : memref<64x5xf32, #tpu.memory_space<vmem>>, vector<64x5xf32>
    %8 = vector.broadcast %6 : vector<64x1xf32> to vector<64x5xf32>
    %9 = arith.mulf %7, %8 : vector<64x5xf32>
    %cst_5 = arith.constant dense<0.000000e+00> : vector<5xf32>
    %10 = vector.multi_reduction <add>, %9, %cst_5 [0] : vector<64x5xf32> to vector<5xf32>
    %11 = vector.shape_cast %10 : vector<5xf32> to vector<1x5xf32>
    %c0_6 = arith.constant 0 : index
    %c0_7 = arith.constant 0 : index
    %12 = vector.load %arg5[%c0_6, %c0_7] : memref<1x5xf32, #tpu.memory_space<vmem>>, vector<1x5xf32>
    %13 = arith.addf %11, %12 : vector<1x5xf32>
    %c0_8 = arith.constant 0 : index
    %c0_9 = arith.constant 0 : index
    %c0_10 = arith.constant 0 : index
    %14 = vector.load %arg6[%c0_8, %c0_9, %c0_10] : memref<1x1x5xf32, #tpu.memory_space<vmem>>, vector<1x1x5xf32>
    %15 = vector.shape_cast %14 : vector<1x1x5xf32> to vector<1x5xf32>
    %16 = vector.shape_cast %13 : vector<1x5xf32> to vector<1x1x5xf32>
    tpu.vector_store %arg6[%c0_8, %c0_9, %c0_10], %16 {strides = array<i32>} : memref<1x1x5xf32, #tpu.memory_space<vmem>>, vector<1x1x5xf32>,
    return
  }
  func.func @transform_0(%arg0: i32) -> (i32, i32, i32) {
    %c0_i32 = arith.constant 0 : i32
    %c0_i32_0 = arith.constant 0 : i32
    %c0_i32_1 = arith.constant 0 : i32
    return %arg0, %c0_i32, %c0_i32_0 : i32, i32, i32
  }
  func.func @transform_1(%arg0: i32) -> (i32, i32, i32) {
    %c0_i32 = arith.constant 0 : i32
    %c0_i32_0 = arith.constant 0 : i32
    %c0_i32_1 = arith.constant 0 : i32
    %c0_i32_2 = arith.constant 0 : i32
    return %c0_i32, %c0_i32_0, %c0_i32_1 : i32, i32, i32
  }
  func.func @transform_2(%arg0: i32) -> (i32, i32) {
    %c0_i32 = arith.constant 0 : i32
    %c0_i32_0 = arith.constant 0 : i32
    %c0_i32_1 = arith.constant 0 : i32
    return %c0_i32, %c0_i32_0 : i32, i32
  }
  func.func @transform_3(%arg0: i32) -> (i32, i32) {
    %c0_i32 = arith.constant 0 : i32
    %c0_i32_0 = arith.constant 0 : i32
    %c0_i32_1 = arith.constant 0 : i32
    return %c0_i32, %c0_i32_0 : i32, i32
  }
  func.func @transform_4(%arg0: i32) -> (i32, i32) {
    %c0_i32 = arith.constant 0 : i32
    %c0_i32_0 = arith.constant 0 : i32
    %c0_i32_1 = arith.constant 0 : i32
    return %c0_i32, %c0_i32_0 : i32, i32
  }
  func.func @transform_5(%arg0: i32) -> (i32, i32, i32) {
    %c0_i32 = arith.constant 0 : i32
    %c0_i32_0 = arith.constant 0 : i32
    %c0_i32_1 = arith.constant 0 : i32
    return %arg0, %c0_i32, %c0_i32_0 : i32, i32, i32
  }
}

</mosaic_0001>

<llo_original>
// kernel: accent_cnn_forward.3
$region0: #{accent_cnn_forward.3}
  #allocation0 [shape = 'u32[]', space=smem, size = 0x4, offset = 0x4, fixed_abs, tag = 'smem constant byte address 0x4 - core index']
  #allocation1 [shape = 'u32[144,128]{1,0:T(1,128)}', space=vmem, size = 0x12000, scoped, tag = 'internal scratch']
  %s0 = inlined_call_operand.vmem [shape: f32[2,16,1769], index: 0, kind: input, shape index: {}]
  %s1 = inlined_call_operand.hbm [shape: f32[16,64,1769], index: 1, kind: input, shape index: {}]
  %s2 = inlined_call_operand.vmem [shape: f32[64,1], index: 2, kind: input, shape index: {}]
  %s3 = inlined_call_operand.vmem [shape: f32[64,5], index: 3, kind: input, shape index: {}]
  %s4 = inlined_call_operand.hbm [shape: f32[1,5], index: 4, kind: input, shape index: {}]
  %s5 = inlined_call_operand.hbm [shape: f32[2,1,5], index: 5, kind: output, shape index: {}]
  %s6 = sld [smem:[#allocation0]]
  $region68: #{accent_cnn_forward.3} parent=0
    _
  %s8 = ssub.s32 1, %s6
  %s9 = scalar_select 0, %s8, %s6
  $region1: #{accent_cnn_forward.3} parent=0
    #allocation2 [shape = 'u8[7340032]{0}', space=vmem, size = 0x700000, scoped, tag = 'input window, operand 1, single buffered']
    #allocation3 [shape = 's32[2]{0}', space=sflag, size = 0x8, scoped, tag = 'scoped memory for accent_cnn_forward.3']
    #allocation4 [shape = 's32[2]{0}', space=sflag, size = 0x8, scoped, tag = 'scoped memory for accent_cnn_forward.3']
    #allocation5 [shape = 'u8[512]{0}', space=vmem, size = 0x400, scoped, tag = 'input window, operand 4, single buffered']
    #allocation6 [shape = 's32[1]{0}', space=sflag, size = 0x4, scoped, tag = 'scoped memory for accent_cnn_forward.3']
    #allocation7 [shape = 'u8[1024]{0}', space=vmem, size = 0x400, scoped, tag = 'output window, operand 0']
    %10 = vsyncpa [#allocation3], 0
    %11 = vsyncpa [#allocation6], 0
    %12 = vsyncpa [#allocation4], 0
    %s13 = scalar_lea.sflag [#allocation4], 1
    %14 = vsyncpa %s13, 0
    loop: start=0, step=1, limit=4
    $region2: #{accent_cnn_forward.3} parent=1 // loop_pre_header
      _
    $region3: #{accent_cnn_forward.3} parent=1 // loop_header
      %s16 = sphi 0, %s20
      %p17 = scmp.ge.s32.totalorder %s16, 4
      %s26 = sphi 0, %s28
      %s29 = sphi 0, %s26
      %s30 = sphi 0, %s29
      %s46 = sphi 0, %s30
      %s50 = sphi 0, %s50
      %s52 = sphi 0, %s50
      %s53 = sphi 0, %s52
      %s67 = sphi 0, %s53
      %s71 = sphi 0, %s71
      %s73 = sphi 0, %s71
      %s74 = sphi 0, %s73
      %s88 = sphi 0, %s74
      %s92 = sphi 0, %s92
      %s94 = sphi 0, %s92
      %s95 = sphi 0, %s94
      %s109 = sphi 0, %s95
      %s113 = sphi 0, %s113
      %s115 = sphi 0, %s113
      %s116 = sphi 0, %s115
      %s130 = sphi 0, %s116
      %s136 = sphi 0, %s138
      %s139 = sphi 0, %s136
      %s140 = sphi 0, %s139
      %s156 = sphi 0, %s140
    $region4: #{accent_cnn_forward.3} parent=1 // loop_header_branch
      %19 = sbr.rel (%p17) target = $region8
    $region5: #{accent_cnn_forward.3} parent=1 // loop_body
      %s21 = ssub.s32 %s16, 1
      %s22 = ssub.s32 %s16, 2
      %s23 = sadd.s32 %s16, 1
      %s24 = ssub.s32 %s16, %s23
      %p25 = scmp.eq.s32.totalorder %s24, 0
      %s27 = sadd.s32 %s26, 1
      %s28 = scalar_select %p25, %s26, %s27
      %p31 = pneg %p25
      %p32 = scmp.eq.s32.totalorder %s16, 1
      %p33 = por %p31, %p32
      %p34 = scmp.ne.s32.totalorder %s26, %s29
      %p35 = scmp.eq.s32.totalorder %s16, 0
      %p36 = por %p34, %p35
      %p37 = scmp.ne.s32.totalorder %s26, %s29
      %p38 = scmp.eq.s32.totalorder %s21, 1
      %p39 = por %p37, %p38
      %p40 = scmp.ne.s32.totalorder %s29, %s30
      %p41 = scmp.eq.s32.totalorder %s21, 0
      %p42 = por %p40, %p41
      %p43 = scmp.ne.s32.totalorder %s29, %s30
      %p44 = scmp.eq.s32.totalorder %s22, 1
      %p45 = por %p43, %p44
      %p47 = scmp.ne.s32.totalorder %s30, %s46
      %p48 = scmp.eq.s32.totalorder %s22, 0
      %p49 = por %p47, %p48
      %s51 = sadd.s32 %s50, 1
      %p54 = scmp.eq.s32.totalorder %s16, 1
      %p55 = scmp.ne.s32.totalorder %s50, %s52
      %p56 = scmp.eq.s32.totalorder %s16, 0
      %p57 = por %p55, %p56
      %p58 = scmp.ne.s32.totalorder %s50, %s52
      %p59 = scmp.eq.s32.totalorder %s21, 1
      %p60 = por %p58, %p59
      %p61 = scmp.ne.s32.totalorder %s52, %s53
      %p62 = scmp.eq.s32.totalorder %s21, 0
      %p63 = por %p61, %p62
      %p64 = scmp.ne.s32.totalorder %s52, %s53
      %p65 = scmp.eq.s32.totalorder %s22, 1
      %p66 = por %p64, %p65
      %p68 = scmp.ne.s32.totalorder %s53, %s67
      %p69 = scmp.eq.s32.totalorder %s22, 0
      %p70 = por %p68, %p69
      %s72 = sadd.s32 %s71, 1
      %p75 = scmp.eq.s32.totalorder %s16, 1
      %p76 = scmp.ne.s32.totalorder %s71, %s73
      %p77 = scmp.eq.s32.totalorder %s16, 0
      %p78 = por %p76, %p77
      %p79 = scmp.ne.s32.totalorder %s71, %s73
      %p80 = scmp.eq.s32.totalorder %s21, 1
      %p81 = por %p79, %p80
      %p82 = scmp.ne.s32.totalorder %s73, %s74
      %p83 = scmp.eq.s32.totalorder %s21, 0
      %p84 = por %p82, %p83
      %p85 = scmp.ne.s32.totalorder %s73, %s74
      %p86 = scmp.eq.s32.totalorder %s22, 1
      %p87 = por %p85, %p86
      %p89 = scmp.ne.s32.totalorder %s74, %s88
      %p90 = scmp.eq.s32.totalorder %s22, 0
      %p91 = por %p89, %p90
      %s93 = sadd.s32 %s92, 1
      %p96 = scmp.eq.s32.totalorder %s16, 1
      %p97 = scmp.ne.s32.totalorder %s92, %s94
      %p98 = scmp.eq.s32.totalorder %s16, 0
      %p99 = por %p97, %p98
      %p100 = scmp.ne.s32.totalorder %s92, %s94
      %p101 = scmp.eq.s32.totalorder %s21, 1
      %p102 = por %p100, %p101
      %p103 = scmp.ne.s32.totalorder %s94, %s95
      %p104 = scmp.eq.s32.totalorder %s21, 0
      %p105 = por %p103, %p104
      %p106 = scmp.ne.s32.totalorder %s94, %s95
      %p107 = scmp.eq.s32.totalorder %s22, 1
      %p108 = por %p106, %p107
      %p110 = scmp.ne.s32.totalorder %s95, %s109
      %p111 = scmp.eq.s32.totalorder %s22, 0
      %p112 = por %p110, %p111
      %s114 = sadd.s32 %s113, 1
      %p117 = scmp.eq.s32.totalorder %s16, 1
      %p118 = scmp.ne.s32.totalorder %s113, %s115
      %p119 = scmp.eq.s32.totalorder %s16, 0
      %p120 = por %p118, %p119
      %p121 = scmp.ne.s32.totalorder %s113, %s115
      %p122 = scmp.eq.s32.totalorder %s21, 1
      %p123 = por %p121, %p122
      %p124 = scmp.ne.s32.totalorder %s115, %s116
      %p125 = scmp.eq.s32.totalorder %s21, 0
      %p126 = por %p124, %p125
      %p127 = scmp.ne.s32.totalorder %s115, %s116
      %p128 = scmp.eq.s32.totalorder %s22, 1
      %p129 = por %p127, %p128
      %p131 = scmp.ne.s32.totalorder %s116, %s130
      %p132 = scmp.eq.s32.totalorder %s22, 0
      %p133 = por %p131, %p132
      %s134 = ssub.s32 %s16, %s23
      %p135 = scmp.eq.s32.totalorder %s134, 0
      %s137 = sadd.s32 %s136, 1
      %s138 = scalar_select %p135, %s136, %s137
      %p141 = pneg %p135
      %p142 = scmp.eq.s32.totalorder %s16, 1
      %p143 = por %p141, %p142
      %p144 = scmp.ne.s32.totalorder %s136, %s139
      %p145 = scmp.eq.s32.totalorder %s16, 0
      %p146 = por %p144, %p145
      %p147 = scmp.ne.s32.totalorder %s136, %s139
      %p148 = scmp.eq.s32.totalorder %s21, 1
      %p149 = por %p147, %p148
      %p150 = scmp.ne.s32.totalorder %s139, %s140
      %p151 = scmp.eq.s32.totalorder %s21, 0
      %p152 = por %p150, %p151
      %p153 = scmp.ne.s32.totalorder %s139, %s140
      %p154 = scmp.eq.s32.totalorder %s22, 1
      %p155 = por %p153, %p154
      %p157 = scmp.ne.s32.totalorder %s140, %s156
      %p158 = scmp.eq.s32.totalorder %s22, 0
      %p159 = por %p157, %p158
      %p160 = scmp.le.s32.totalorder 1, %s16
      %p161 = scmp.lt.s32.totalorder %s16, 3
      %p162 = pnand %p160, %p161
      %p163 = pneg %p162
      // Predicated region
      $region9: #{accent_cnn_forward.3} parent=5 // pred_check
        _
      $region10: #{accent_cnn_forward.3} parent=5 // pred_check_branch
        %165 = sbr.rel (%p162) target = $region12
      $region11: #{accent_cnn_forward.3} parent=5 // pred_region
        %s166 = ssub.s32 %s16, 1
        // Predicated region
        $region13: #{accent_cnn_forward.3} parent=11 // pred_check
          %p167 = pneg %p63
        $region14: #{accent_cnn_forward.3} parent=11 // pred_check_branch
          %169 = sbr.rel (%p167) target = $region16
        $region15: #{accent_cnn_forward.3} parent=11 // pred_region
          %s171 = ssub.s32 229376, 229376
          %172 = vsyncadd [#allocation3], %s171
          %s173 = sshll.u32 [#allocation2], 4
          %s174 = int_to_ptr.vmem [resolvable:$true] %s173
          %179 = dma.hbm_to_vmem [thread:$0]  %s1, 229376, %s174, [#allocation3], 1792, 1792, 112
        $region16: #{accent_cnn_forward.3} parent=11 // pred_fallthru
          _
        // Predicated region
        $region17: #{accent_cnn_forward.3} parent=11 // pred_check
          %p180 = pneg %p84
        $region18: #{accent_cnn_forward.3} parent=11 // pred_check_branch
          %182 = sbr.rel (%p180) target = $region20
        $region19: #{accent_cnn_forward.3} parent=11 // pred_region
          _
        $region20: #{accent_cnn_forward.3} parent=11 // pred_fallthru
          _
        // Predicated region
        $region21: #{accent_cnn_forward.3} parent=11 // pred_check
          %p183 = pneg %p105
        $region22: #{accent_cnn_forward.3} parent=11 // pred_check_branch
          %185 = sbr.rel (%p183) target = $region24
        $region23: #{accent_cnn_forward.3} parent=11 // pred_region
          _
        $region24: #{accent_cnn_forward.3} parent=11 // pred_fallthru
          _
        // Predicated region
        $region25: #{accent_cnn_forward.3} parent=11 // pred_check
          %p186 = pneg %p126
        $region26: #{accent_cnn_forward.3} parent=11 // pred_check_branch
          %188 = sbr.rel (%p186) target = $region28
        $region27: #{accent_cnn_forward.3} parent=11 // pred_region
          %s190 = ssub.s32 16, 16
          %191 = vsyncadd [#allocation6], %s190
          %s193 = sshll.u32 [#allocation5], 4
          %s194 = int_to_ptr.vmem [resolvable:$true] %s193
          %196 = dma.hbm_to_vmem [thread:$0]  %s4, 16, %s194, [#allocation6]
        $region28: #{accent_cnn_forward.3} parent=11 // pred_fallthru
          _
      $region12: #{accent_cnn_forward.3} parent=5 // pred_fallthru
        _
      %p197 = scmp.lt.s32.totalorder %s16, 2
      // Predicated region
      $region29: #{accent_cnn_forward.3} parent=5 // pred_check
        %p198 = pneg %p197
      $region30: #{accent_cnn_forward.3} parent=5 // pred_check_branch
        %200 = sbr.rel (%p198) target = $region32
      $region31: #{accent_cnn_forward.3} parent=5 // pred_region
        // Predicated region
        $region33: #{accent_cnn_forward.3} parent=31 // pred_check
          %p201 = pneg %p36
        $region34: #{accent_cnn_forward.3} parent=31 // pred_check_branch
          %203 = sbr.rel (%p201) target = $region36
        $region35: #{accent_cnn_forward.3} parent=31 // pred_region
          %p204 = scmp.lt.s32.totalorder %s16, 1
          %s205 = scalar_select %p204, %s16, 1
          %s206 = smul.addr %s205, 28
          %s207 = smul.addr %s206, 8
          %s208 = scalar_lea.vmem %s0, %s207
        $region36: #{accent_cnn_forward.3} parent=31 // pred_fallthru
          _
      $region32: #{accent_cnn_forward.3} parent=5 // pred_fallthru
        _
      %p209 = scmp.le.s32.totalorder 1, %s16
      %p210 = scmp.lt.s32.totalorder %s16, 3
      %p211 = pnand %p209, %p210
      %p212 = pneg %p211
      // Predicated region
      $region37: #{accent_cnn_forward.3} parent=5 // pred_check
        _
      $region38: #{accent_cnn_forward.3} parent=5 // pred_check_branch
        %214 = sbr.rel (%p211) target = $region40
      $region39: #{accent_cnn_forward.3} parent=5 // pred_region
        %s215 = ssub.s32 %s16, 1
        // Predicated region
        $region41: #{accent_cnn_forward.3} parent=39 // pred_check
          %p216 = pneg %p63
        $region42: #{accent_cnn_forward.3} parent=39 // pred_check_branch
          %218 = sbr.rel (%p216) target = $region44
        $region43: #{accent_cnn_forward.3} parent=39 // pred_region
          %219 = dma.done [#allocation3], 229376
        $region44: #{accent_cnn_forward.3} parent=39 // pred_fallthru
          _
        // Predicated region
        $region45: #{accent_cnn_forward.3} parent=39 // pred_check
          %p220 = pneg %p126
        $region46: #{accent_cnn_forward.3} parent=39 // pred_check_branch
          %222 = sbr.rel (%p220) target = $region48
        $region47: #{accent_cnn_forward.3} parent=39 // pred_region
          %223 = dma.done [#allocation6], 16
        $region48: #{accent_cnn_forward.3} parent=39 // pred_fallthru
          _
        %p224 = scmp.lt.s32.totalorder %s21, 1
        %s225 = scalar_select %p224, %s21, 1
        %s226 = smul.addr %s225, 28
        %s227 = smul.addr %s226, 8
        %s228 = scalar_lea.vmem %s0, %s227
        %p229 = pneg %p42
        %p230 = pneg %p39
        %p231 = pneg %p63
        %p232 = pneg %p60
        %p233 = pneg %p84
        %p234 = pneg %p81
        %p235 = pneg %p105
        %p236 = pneg %p102
        %p237 = pneg %p126
        %p238 = pneg %p123
        %p239 = pneg %p152
        %p240 = pneg %p149
        %s241 = sand.u32 %s139, 1
        %s242 = scalar_lea.sflag [#allocation4], %s241
        %s243 = sand.u32 %s139, 1
        %s244 = scalar_lea.vmem [#allocation7], %s243
        %p245 = scmp.lt.s32.totalorder %s21, 1
        %s246 = scalar_select %p245, %s21, 1
        %s247 = smul.addr %s246, 28
        %s248 = smul.addr %s247, 8
        %s249 = scalar_lea.vmem %s0, %s248
        loop: start=0, step=1, limit=16
        $region49: #{accent_cnn_forward.3} parent=39 // loop_pre_header
          _
        $region50: #{accent_cnn_forward.3} parent=39 // loop_header
          %s251 = sphi 0, %s255
          %p252 = scmp.ge.s32.totalorder %s251, 16
          %v256 = vphi 0.0, %v710
          %v257 = vphi 0.0, %v711
          %v258 = vphi 0.0, %v712
          %v259 = vphi 0.0, %v713
          %v260 = vphi 0.0, %v714
          %v261 = vphi 0.0, %v715
          %v262 = vphi 0.0, %v716
          %v263 = vphi 0.0, %v717
        $region51: #{accent_cnn_forward.3} parent=39 // loop_header_branch
          %254 = sbr.rel (%p252) target = $region55
        $region52: #{accent_cnn_forward.3} parent=39 // loop_body
          %s264 = sshra.s32 %s251, 3
          %s265 = sand.u32 %s251, 7
          %s266 = sshra.s32 %s251, 3
          %s267 = sand.u32 %s251, 7
          %s268 = smul.u32 %s264, 14
          %s269 = smul.u32 %s268, 8
          %s270 = sadd.s32 %s269, %s267
          %s271 = scalar_lea.vmem %s249, %s270
          %v272 = vld [vmem:[%s271] ss:$8 sm:$0xf]
          %v273 = vld [vmem:[%s271] ss:$8 sm:$0xf0]
          %v274 = vor.u32 %v272, %v273
          %s275 = sadd.s32 %s268, 8
          %s276 = smul.u32 %s275, 8
          %s277 = sadd.s32 %s276, %s267
          %s278 = scalar_lea.vmem %s249, %s277
          %v279 = vld [vmem:[%s278] ss:$8 sm:$0xf]
          %v280 = vld [vmem:[%s278] ss:$8 sm:$0x30]
          %v281 = vor.u32 %v279, %v280
          %s282 = smul.u32 %s251, 112
          %s283 = smul.addr %s282, 8
          %s284 = scalar_lea.vmem [#allocation2], %s283
          %v285 = vld [vmem:[%s284] sm:$0xff]
          %v286 = vld [vmem:[%s284 + $0x8] sm:$0xff]
          %v287 = vld [vmem:[%s284 + $0x10] sm:$0xff]
          %v288 = vld [vmem:[%s284 + $0x18] sm:$0xff]
          %v289 = vld [vmem:[%s284 + $0x20] sm:$0xff]
          %v290 = vld [vmem:[%s284 + $0x28] sm:$0xff]
          %v291 = vld [vmem:[%s284 + $0x30] sm:$0xff]
          %v292 = vld [vmem:[%s284 + $0x38] sm:$0xff]
          %v293 = vld [vmem:[%s284 + $0x40] sm:$0xff]
          %v294 = vld [vmem:[%s284 + $0x48] sm:$0xff]
          %v295 = vld [vmem:[%s284 + $0x50] sm:$0xff]
          %v296 = vld [vmem:[%s284 + $0x58] sm:$0xff]
          %v297 = vld [vmem:[%s284 + $0x60] sm:$0xff]
          %v298 = vld [vmem:[%s284 + $0x68] sm:$0xff]
          %v299 = vld [vmem:[%s284 + $0x70] sm:$0xff]
          %v300 = vld [vmem:[%s284 + $0x78] sm:$0xff]
          %v301 = vld [vmem:[%s284 + $0x80] sm:$0xff]
          %v302 = vld [vmem:[%s284 + $0x88] sm:$0xff]
          %v303 = vld [vmem:[%s284 + $0x90] sm:$0xff]
          %v304 = vld [vmem:[%s284 + $0x98] sm:$0xff]
          %v305 = vld [vmem:[%s284 + $0xa0] sm:$0xff]
          %v306 = vld [vmem:[%s284 + $0xa8] sm:$0xff]
          %v307 = vld [vmem:[%s284 + $0xb0] sm:$0xff]
          %v308 = vld [vmem:[%s284 + $0xb8] sm:$0xff]
          %v309 = vld [vmem:[%s284 + $0xc0] sm:$0xff]
          %v310 = vld [vmem:[%s284 + $0xc8] sm:$0xff]
          %v311 = vld [vmem:[%s284 + $0xd0] sm:$0xff]
          %v312 = vld [vmem:[%s284 + $0xd8] sm:$0xff]
          %v313 = vld [vmem:[%s284 + $0xe0] sm:$0xff]
          %v314 = vld [vmem:[%s284 + $0xe8] sm:$0xff]
          %v315 = vld [vmem:[%s284 + $0xf0] sm:$0xff]
          %v316 = vld [vmem:[%s284 + $0xf8] sm:$0xff]
          %v317 = vld [vmem:[%s284 + $0x100] sm:$0xff]
          %v318 = vld [vmem:[%s284 + $0x108] sm:$0xff]
          %v319 = vld [vmem:[%s284 + $0x110] sm:$0xff]
          %v320 = vld [vmem:[%s284 + $0x118] sm:$0xff]
          %v321 = vld [vmem:[%s284 + $0x120] sm:$0xff]
          %v322 = vld [vmem:[%s284 + $0x128] sm:$0xff]
          %v323 = vld [vmem:[%s284 + $0x130] sm:$0xff]
          %v324 = vld [vmem:[%s284 + $0x138] sm:$0xff]
          %v325 = vld [vmem:[%s284 + $0x140] sm:$0xff]
          %v326 = vld [vmem:[%s284 + $0x148] sm:$0xff]
          %v327 = vld [vmem:[%s284 + $0x150] sm:$0xff]
          %v328 = vld [vmem:[%s284 + $0x158] sm:$0xff]
          %v329 = vld [vmem:[%s284 + $0x160] sm:$0xff]
          %v330 = vld [vmem:[%s284 + $0x168] sm:$0xff]
          %v331 = vld [vmem:[%s284 + $0x170] sm:$0xff]
          %v332 = vld [vmem:[%s284 + $0x178] sm:$0xff]
          %v333 = vld [vmem:[%s284 + $0x180] sm:$0xff]
          %v334 = vld [vmem:[%s284 + $0x188] sm:$0xff]
          %v335 = vld [vmem:[%s284 + $0x190] sm:$0xff]
          %v336 = vld [vmem:[%s284 + $0x198] sm:$0xff]
          %v337 = vld [vmem:[%s284 + $0x1a0] sm:$0xff]
          %v338 = vld [vmem:[%s284 + $0x1a8] sm:$0xff]
          %v339 = vld [vmem:[%s284 + $0x1b0] sm:$0xff]
          %v340 = vld [vmem:[%s284 + $0x1b8] sm:$0xff]
          %v341 = vld [vmem:[%s284 + $0x1c0] sm:$0xff]
          %v342 = vld [vmem:[%s284 + $0x1c8] sm:$0xff]
          %v343 = vld [vmem:[%s284 + $0x1d0] sm:$0xff]
          %v344 = vld [vmem:[%s284 + $0x1d8] sm:$0xff]
          %v345 = vld [vmem:[%s284 + $0x1e0] sm:$0xff]
          %v346 = vld [vmem:[%s284 + $0x1e8] sm:$0xff]
          %v347 = vld [vmem:[%s284 + $0x1f0] sm:$0xff]
          %v348 = vld [vmem:[%s284 + $0x1f8] sm:$0xff]
          %v349 = vld [vmem:[%s284 + $0x200] sm:$0xff]
          %v350 = vld [vmem:[%s284 + $0x208] sm:$0xff]
          %v351 = vld [vmem:[%s284 + $0x210] sm:$0xff]
          %v352 = vld [vmem:[%s284 + $0x218] sm:$0xff]
          %v353 = vld [vmem:[%s284 + $0x220] sm:$0xff]
          %v354 = vld [vmem:[%s284 + $0x228] sm:$0xff]
          %v355 = vld [vmem:[%s284 + $0x230] sm:$0xff]
          %v356 = vld [vmem:[%s284 + $0x238] sm:$0xff]
          %v357 = vld [vmem:[%s284 + $0x240] sm:$0xff]
          %v358 = vld [vmem:[%s284 + $0x248] sm:$0xff]
          %v359 = vld [vmem:[%s284 + $0x250] sm:$0xff]
          %v360 = vld [vmem:[%s284 + $0x258] sm:$0xff]
          %v361 = vld [vmem:[%s284 + $0x260] sm:$0xff]
          %v362 = vld [vmem:[%s284 + $0x268] sm:$0xff]
          %v363 = vld [vmem:[%s284 + $0x270] sm:$0xff]
          %v364 = vld [vmem:[%s284 + $0x278] sm:$0xff]
          %v365 = vld [vmem:[%s284 + $0x280] sm:$0xff]
          %v366 = vld [vmem:[%s284 + $0x288] sm:$0xff]
          %v367 = vld [vmem:[%s284 + $0x290] sm:$0xff]
          %v368 = vld [vmem:[%s284 + $0x298] sm:$0xff]
          %v369 = vld [vmem:[%s284 + $0x2a0] sm:$0xff]
          %v370 = vld [vmem:[%s284 + $0x2a8] sm:$0xff]
          %v371 = vld [vmem:[%s284 + $0x2b0] sm:$0xff]
          %v372 = vld [vmem:[%s284 + $0x2b8] sm:$0xff]
          %v373 = vld [vmem:[%s284 + $0x2c0] sm:$0xff]
          %v374 = vld [vmem:[%s284 + $0x2c8] sm:$0xff]
          %v375 = vld [vmem:[%s284 + $0x2d0] sm:$0xff]
          %v376 = vld [vmem:[%s284 + $0x2d8] sm:$0xff]
          %v377 = vld [vmem:[%s284 + $0x2e0] sm:$0xff]
          %v378 = vld [vmem:[%s284 + $0x2e8] sm:$0xff]
          %v379 = vld [vmem:[%s284 + $0x2f0] sm:$0xff]
          %v380 = vld [vmem:[%s284 + $0x2f8] sm:$0xff]
          %v381 = vld [vmem:[%s284 + $0x300] sm:$0xff]
          %v382 = vld [vmem:[%s284 + $0x308] sm:$0xff]
          %v383 = vld [vmem:[%s284 + $0x310] sm:$0xff]
          %v384 = vld [vmem:[%s284 + $0x318] sm:$0xff]
          %v385 = vld [vmem:[%s284 + $0x320] sm:$0xff]
          %v386 = vld [vmem:[%s284 + $0x328] sm:$0xff]
          %v387 = vld [vmem:[%s284 + $0x330] sm:$0xff]
          %v388 = vld [vmem:[%s284 + $0x338] sm:$0xff]
          %v389 = vld [vmem:[%s284 + $0x340] sm:$0xff]
          %v390 = vld [vmem:[%s284 + $0x348] sm:$0xff]
          %v391 = vld [vmem:[%s284 + $0x350] sm:$0xff]
          %v392 = vld [vmem:[%s284 + $0x358] sm:$0xff]
          %v393 = vld [vmem:[%s284 + $0x360] sm:$0xff]
          %v394 = vld [vmem:[%s284 + $0x368] sm:$0xff]
          %v395 = vld [vmem:[%s284 + $0x370] sm:$0xff]
          %v396 = vld [vmem:[%s284 + $0x378] sm:$0xff]
          %v399 = vlaneseq
          %v400 = vshrl.u32 %v399, 7
          %v401 = vsub.s32 0, %v400
          %v402 = vrot.slane %v274, %v401
          %v403 = vlaneseq
          %v404 = vshrl.u32 %v403, 7
          %v405 = vsub.s32 1, %v404
          %v406 = vrot.slane %v274, %v405
          %v407 = vlaneseq
          %v408 = vshrl.u32 %v407, 7
          %v409 = vsub.s32 2, %v408
          %v410 = vrot.slane %v274, %v409
          %v411 = vlaneseq
          %v412 = vshrl.u32 %v411, 7
          %v413 = vsub.s32 3, %v412
          %v414 = vrot.slane %v274, %v413
          %v415 = vlaneseq
          %v416 = vshrl.u32 %v415, 7
          %v417 = vsub.s32 4, %v416
          %v418 = vrot.slane %v274, %v417
          %v419 = vlaneseq
          %v420 = vshrl.u32 %v419, 7
          %v421 = vsub.s32 5, %v420
          %v422 = vrot.slane %v274, %v421
          %v423 = vlaneseq
          %v424 = vshrl.u32 %v423, 7
          %v425 = vsub.s32 6, %v424
          %v426 = vrot.slane %v274, %v425
          %v427 = vlaneseq
          %v428 = vshrl.u32 %v427, 7
          %v429 = vsub.s32 7, %v428
          %v430 = vrot.slane %v274, %v429
          %v431 = vlaneseq
          %v432 = vshrl.u32 %v431, 7
          %v433 = vsub.s32 0, %v432
          %v434 = vrot.slane %v281, %v433
          %v435 = vlaneseq
          %v436 = vshrl.u32 %v435, 7
          %v437 = vsub.s32 1, %v436
          %v438 = vrot.slane %v281, %v437
          %v439 = vlaneseq
          %v440 = vshrl.u32 %v439, 7
          %v441 = vsub.s32 2, %v440
          %v442 = vrot.slane %v281, %v441
          %v443 = vlaneseq
          %v444 = vshrl.u32 %v443, 7
          %v445 = vsub.s32 3, %v444
          %v446 = vrot.slane %v281, %v445
          %v447 = vlaneseq
          %v448 = vshrl.u32 %v447, 7
          %v449 = vsub.s32 4, %v448
          %v450 = vrot.slane %v281, %v449
          %v451 = vlaneseq
          %v452 = vshrl.u32 %v451, 7
          %v453 = vsub.s32 5, %v452
          %v454 = vrot.slane %v281, %v453
          %v469 = vmul.f32 %v285, %v402
          %v470 = vmul.f32 %v286, %v406
          %v471 = vmul.f32 %v287, %v410
          %v472 = vmul.f32 %v288, %v414
          %v473 = vmul.f32 %v289, %v418
          %v474 = vmul.f32 %v290, %v422
          %v475 = vmul.f32 %v291, %v426
          %v476 = vmul.f32 %v292, %v430
          %v477 = vmul.f32 %v293, %v434
          %v478 = vmul.f32 %v294, %v438
          %v479 = vmul.f32 %v295, %v442
          %v480 = vmul.f32 %v296, %v446
          %v481 = vmul.f32 %v297, %v450
          %v482 = vmul.f32 %v298, %v454
          %v483 = vmul.f32 %v299, %v402
          %v484 = vmul.f32 %v300, %v406
          %v485 = vmul.f32 %v301, %v410
          %v486 = vmul.f32 %v302, %v414
          %v487 = vmul.f32 %v303, %v418
          %v488 = vmul.f32 %v304, %v422
          %v489 = vmul.f32 %v305, %v426
          %v490 = vmul.f32 %v306, %v430
          %v491 = vmul.f32 %v307, %v434
          %v492 = vmul.f32 %v308, %v438
          %v493 = vmul.f32 %v309, %v442
          %v494 = vmul.f32 %v310, %v446
          %v495 = vmul.f32 %v311, %v450
          %v496 = vmul.f32 %v312, %v454
          %v497 = vmul.f32 %v313, %v402
          %v498 = vmul.f32 %v314, %v406
          %v499 = vmul.f32 %v315, %v410
          %v500 = vmul.f32 %v316, %v414
          %v501 = vmul.f32 %v317, %v418
          %v502 = vmul.f32 %v318, %v422
          %v503 = vmul.f32 %v319, %v426
          %v504 = vmul.f32 %v320, %v430
          %v505 = vmul.f32 %v321, %v434
          %v506 = vmul.f32 %v322, %v438
          %v507 = vmul.f32 %v323, %v442
          %v508 = vmul.f32 %v324, %v446
          %v509 = vmul.f32 %v325, %v450
          %v510 = vmul.f32 %v326, %v454
          %v511 = vmul.f32 %v327, %v402
          %v512 = vmul.f32 %v328, %v406
          %v513 = vmul.f32 %v329, %v410
          %v514 = vmul.f32 %v330, %v414
          %v515 = vmul.f32 %v331, %v418
          %v516 = vmul.f32 %v332, %v422
          %v517 = vmul.f32 %v333, %v426
          %v518 = vmul.f32 %v334, %v430
          %v519 = vmul.f32 %v335, %v434
          %v520 = vmul.f32 %v336, %v438
          %v521 = vmul.f32 %v337, %v442
          %v522 = vmul.f32 %v338, %v446
          %v523 = vmul.f32 %v339, %v450
          %v524 = vmul.f32 %v340, %v454
          %v525 = vmul.f32 %v341, %v402
          %v526 = vmul.f32 %v342, %v406
          %v527 = vmul.f32 %v343, %v410
          %v528 = vmul.f32 %v344, %v414
          %v529 = vmul.f32 %v345, %v418
          %v530 = vmul.f32 %v346, %v422
          %v531 = vmul.f32 %v347, %v426
          %v532 = vmul.f32 %v348, %v430
          %v533 = vmul.f32 %v349, %v434
          %v534 = vmul.f32 %v350, %v438
          %v535 = vmul.f32 %v351, %v442
          %v536 = vmul.f32 %v352, %v446
          %v537 = vmul.f32 %v353, %v450
          %v538 = vmul.f32 %v354, %v454
          %v539 = vmul.f32 %v355, %v402
          %v540 = vmul.f32 %v356, %v406
          %v541 = vmul.f32 %v357, %v410
          %v542 = vmul.f32 %v358, %v414
          %v543 = vmul.f32 %v359, %v418
          %v544 = vmul.f32 %v360, %v422
          %v545 = vmul.f32 %v361, %v426
          %v546 = vmul.f32 %v362, %v430
          %v547 = vmul.f32 %v363, %v434
          %v548 = vmul.f32 %v364, %v438
          %v549 = vmul.f32 %v365, %v442
          %v550 = vmul.f32 %v366, %v446
          %v551 = vmul.f32 %v367, %v450
          %v552 = vmul.f32 %v368, %v454
          %v553 = vmul.f32 %v369, %v402
          %v554 = vmul.f32 %v370, %v406
          %v555 = vmul.f32 %v371, %v410
          %v556 = vmul.f32 %v372, %v414
          %v557 = vmul.f32 %v373, %v418
          %v558 = vmul.f32 %v374, %v422
          %v559 = vmul.f32 %v375, %v426
          %v560 = vmul.f32 %v376, %v430
          %v561 = vmul.f32 %v377, %v434
          %v562 = vmul.f32 %v378, %v438
          %v563 = vmul.f32 %v379, %v442
          %v564 = vmul.f32 %v380, %v446
          %v565 = vmul.f32 %v381, %v450
          %v566 = vmul.f32 %v382, %v454
          %v567 = vmul.f32 %v383, %v402
          %v568 = vmul.f32 %v384, %v406
          %v569 = vmul.f32 %v385, %v410
          %v570 = vmul.f32 %v386, %v414
          %v571 = vmul.f32 %v387, %v418
          %v572 = vmul.f32 %v388, %v422
          %v573 = vmul.f32 %v389, %v426
          %v574 = vmul.f32 %v390, %v430
          %v575 = vmul.f32 %v391, %v434
          %v576 = vmul.f32 %v392, %v438
          %v577 = vmul.f32 %v393, %v442
          %v578 = vmul.f32 %v394, %v446
          %v579 = vmul.f32 %v395, %v450
          %v580 = vmul.f32 %v396, %v454
          %v581 = vadd.f32 %v469, %v470
          %v582 = vadd.f32 %v581, %v471
          %v583 = vadd.f32 %v582, %v472
          %v584 = vadd.f32 %v583, %v473
          %v585 = vadd.f32 %v584, %v474
          %v586 = vadd.f32 %v585, %v475
          %v587 = vadd.f32 %v586, %v476
          %v588 = vadd.f32 %v587, %v477
          %v589 = vadd.f32 %v588, %v478
          %v590 = vadd.f32 %v589, %v479
          %v591 = vadd.f32 %v590, %v480
          %v592 = vadd.f32 %v591, %v481
          %vm593 = vcmask 859136
          %v594 = vsel %vm593, %v482, 0.0
          %v595 = vadd.f32 %v592, %v594
          %596 = vadd.xlane.f32.xlu0 %v595
          %v597 = vpop.xlane.xlu0 %596
          %v598 = vadd.f32 %v483, %v484
          %v599 = vadd.f32 %v598, %v485
          %v600 = vadd.f32 %v599, %v486
          %v601 = vadd.f32 %v600, %v487
          %v602 = vadd.f32 %v601, %v488
          %v603 = vadd.f32 %v602, %v489
          %v604 = vadd.f32 %v603, %v490
          %v605 = vadd.f32 %v604, %v491
          %v606 = vadd.f32 %v605, %v492
          %v607 = vadd.f32 %v606, %v493
          %v608 = vadd.f32 %v607, %v494
          %v609 = vadd.f32 %v608, %v495
          %v610 = vsel %vm593, %v496, 0.0
          %v611 = vadd.f32 %v609, %v610
          %612 = vadd.xlane.f32.xlu0 %v611
          %v613 = vpop.xlane.xlu0 %612
          %v614 = vadd.f32 %v497, %v498
          %v615 = vadd.f32 %v614, %v499
          %v616 = vadd.f32 %v615, %v500
          %v617 = vadd.f32 %v616, %v501
          %v618 = vadd.f32 %v617, %v502
          %v619 = vadd.f32 %v618, %v503
          %v620 = vadd.f32 %v619, %v504
          %v621 = vadd.f32 %v620, %v505
          %v622 = vadd.f32 %v621, %v506
          %v623 = vadd.f32 %v622, %v507
          %v624 = vadd.f32 %v623, %v508
          %v625 = vadd.f32 %v624, %v509
          %v626 = vsel %vm593, %v510, 0.0
          %v627 = vadd.f32 %v625, %v626
          %628 = vadd.xlane.f32.xlu0 %v627
          %v629 = vpop.xlane.xlu0 %628
          %v630 = vadd.f32 %v511, %v512
          %v631 = vadd.f32 %v630, %v513
          %v632 = vadd.f32 %v631, %v514
          %v633 = vadd.f32 %v632, %v515
          %v634 = vadd.f32 %v633, %v516
          %v635 = vadd.f32 %v634, %v517
          %v636 = vadd.f32 %v635, %v518
          %v637 = vadd.f32 %v636, %v519
          %v638 = vadd.f32 %v637, %v520
          %v639 = vadd.f32 %v638, %v521
          %v640 = vadd.f32 %v639, %v522
          %v641 = vadd.f32 %v640, %v523
          %v642 = vsel %vm593, %v524, 0.0
          %v643 = vadd.f32 %v641, %v642
          %644 = vadd.xlane.f32.xlu0 %v643
          %v645 = vpop.xlane.xlu0 %644
          %v646 = vadd.f32 %v525, %v526
          %v647 = vadd.f32 %v646, %v527
          %v648 = vadd.f32 %v647, %v528
          %v649 = vadd.f32 %v648, %v529
          %v650 = vadd.f32 %v649, %v530
          %v651 = vadd.f32 %v650, %v531
          %v652 = vadd.f32 %v651, %v532
          %v653 = vadd.f32 %v652, %v533
          %v654 = vadd.f32 %v653, %v534
          %v655 = vadd.f32 %v654, %v535
          %v656 = vadd.f32 %v655, %v536
          %v657 = vadd.f32 %v656, %v537
          %v658 = vsel %vm593, %v538, 0.0
          %v659 = vadd.f32 %v657, %v658
          %660 = vadd.xlane.f32.xlu0 %v659
          %v661 = vpop.xlane.xlu0 %660
          %v662 = vadd.f32 %v539, %v540
          %v663 = vadd.f32 %v662, %v541
          %v664 = vadd.f32 %v663, %v542
          %v665 = vadd.f32 %v664, %v543
          %v666 = vadd.f32 %v665, %v544
          %v667 = vadd.f32 %v666, %v545
          %v668 = vadd.f32 %v667, %v546
          %v669 = vadd.f32 %v668, %v547
          %v670 = vadd.f32 %v669, %v548
          %v671 = vadd.f32 %v670, %v549
          %v672 = vadd.f32 %v671, %v550
          %v673 = vadd.f32 %v672, %v551
          %v674 = vsel %vm593, %v552, 0.0
          %v675 = vadd.f32 %v673, %v674
          %676 = vadd.xlane.f32.xlu0 %v675
          %v677 = vpop.xlane.xlu0 %676
          %v678 = vadd.f32 %v553, %v554
          %v679 = vadd.f32 %v678, %v555
          %v680 = vadd.f32 %v679, %v556
          %v681 = vadd.f32 %v680, %v557
          %v682 = vadd.f32 %v681, %v558
          %v683 = vadd.f32 %v682, %v559
          %v684 = vadd.f32 %v683, %v560
          %v685 = vadd.f32 %v684, %v561
          %v686 = vadd.f32 %v685, %v562
          %v687 = vadd.f32 %v686, %v563
          %v688 = vadd.f32 %v687, %v564
          %v689 = vadd.f32 %v688, %v565
          %v690 = vsel %vm593, %v566, 0.0
          %v691 = vadd.f32 %v689, %v690
          %692 = vadd.xlane.f32.xlu0 %v691
          %v693 = vpop.xlane.xlu0 %692
          %v694 = vadd.f32 %v567, %v568
          %v695 = vadd.f32 %v694, %v569
          %v696 = vadd.f32 %v695, %v570
          %v697 = vadd.f32 %v696, %v571
          %v698 = vadd.f32 %v697, %v572
          %v699 = vadd.f32 %v698, %v573
          %v700 = vadd.f32 %v699, %v574
          %v701 = vadd.f32 %v700, %v575
          %v702 = vadd.f32 %v701, %v576
          %v703 = vadd.f32 %v702, %v577
          %v704 = vadd.f32 %v703, %v578
          %v705 = vadd.f32 %v704, %v579
          %v706 = vsel %vm593, %v580, 0.0
          %v707 = vadd.f32 %v705, %v706
          %708 = vadd.xlane.f32.xlu0 %v707
          %v709 = vpop.xlane.xlu0 %708
          %v710 = vadd.f32 %v256, %v597
          %v711 = vadd.f32 %v257, %v613
          %v712 = vadd.f32 %v258, %v629
          %v713 = vadd.f32 %v259, %v645
          %v714 = vadd.f32 %v260, %v661
          %v715 = vadd.f32 %v261, %v677
          %v716 = vadd.f32 %v262, %v693
          %v717 = vadd.f32 %v263, %v709
        $region53: #{accent_cnn_forward.3} parent=39 // loop_footer
          %s255 = sadd.s32 1, %s251
        $region54: #{accent_cnn_forward.3} parent=39 // loop_footer_branch
          %250 = sbr.rel target = $region50
        $region55: #{accent_cnn_forward.3} parent=39 // loop_exit
          _
        %v718 = vld [vmem:[%s2] sm:$0xff]
        %v719 = vld [vmem:[%s2 + $0x8] sm:$0xff]
        %v720 = vld [vmem:[%s2 + $0x10] sm:$0xff]
        %v721 = vld [vmem:[%s2 + $0x18] sm:$0xff]
        %v722 = vld [vmem:[%s2 + $0x20] sm:$0xff]
        %v723 = vld [vmem:[%s2 + $0x28] sm:$0xff]
        %v724 = vld [vmem:[%s2 + $0x30] sm:$0xff]
        %v725 = vld [vmem:[%s2 + $0x38] sm:$0xff]
        %v726 = vadd.f32 %v256, %v718
        %v727 = vadd.f32 %v257, %v719
        %v728 = vadd.f32 %v258, %v720
        %v729 = vadd.f32 %v259, %v721
        %v730 = vadd.f32 %v260, %v722
        %v731 = vadd.f32 %v261, %v723
        %v732 = vadd.f32 %v262, %v724
        %v733 = vadd.f32 %v263, %v725
        %v734 = vmax.f32 %v726, 0.0
        %v735 = vmax.f32 %v727, 0.0
        %v736 = vmax.f32 %v728, 0.0
        %v737 = vmax.f32 %v729, 0.0
        %v738 = vmax.f32 %v730, 0.0
        %v739 = vmax.f32 %v731, 0.0
        %v740 = vmax.f32 %v732, 0.0
        %v741 = vmax.f32 %v733, 0.0
        %v742 = vld [vmem:[%s3] sm:$0xff]
        %v743 = vld [vmem:[%s3 + $0x8] sm:$0xff]
        %v744 = vld [vmem:[%s3 + $0x10] sm:$0xff]
        %v745 = vld [vmem:[%s3 + $0x18] sm:$0xff]
        %v746 = vld [vmem:[%s3 + $0x20] sm:$0xff]
        %v747 = vld [vmem:[%s3 + $0x28] sm:$0xff]
        %v748 = vld [vmem:[%s3 + $0x30] sm:$0xff]
        %v749 = vld [vmem:[%s3 + $0x38] sm:$0xff]
        %751 = vset.pattern.permute.xlu0 0
        %752 = vperm.xlu0 %751, %v734
        %v753 = vpop.permute.xlu0 %752
        %756 = vset.pattern.permute.xlu0 0
        %757 = vperm.xlu0 %756, %v735
        %v758 = vpop.permute.xlu0 %757
        %761 = vset.pattern.permute.xlu0 0
        %762 = vperm.xlu0 %761, %v736
        %v763 = vpop.permute.xlu0 %762
        %766 = vset.pattern.permute.xlu0 0
        %767 = vperm.xlu0 %766, %v737
        %v768 = vpop.permute.xlu0 %767
        %771 = vset.pattern.permute.xlu0 0
        %772 = vperm.xlu0 %771, %v738
        %v773 = vpop.permute.xlu0 %772
        %776 = vset.pattern.permute.xlu0 0
        %777 = vperm.xlu0 %776, %v739
        %v778 = vpop.permute.xlu0 %777
        %781 = vset.pattern.permute.xlu0 0
        %782 = vperm.xlu0 %781, %v740
        %v783 = vpop.permute.xlu0 %782
        %786 = vset.pattern.permute.xlu0 0
        %787 = vperm.xlu0 %786, %v741
        %v788 = vpop.permute.xlu0 %787
        %v790 = vmul.f32 %v742, %v753
        %v791 = vmul.f32 %v743, %v758
        %v792 = vmul.f32 %v744, %v763
        %v793 = vmul.f32 %v745, %v768
        %v794 = vmul.f32 %v746, %v773
        %v795 = vmul.f32 %v747, %v778
        %v796 = vmul.f32 %v748, %v783
        %v797 = vmul.f32 %v749, %v788
        %vm798 = vcmask 39936
        %v799 = vsel %vm798, %v790, 0.0
        %v800 = vsel %vm798, %v791, 0.0
        %v801 = vadd.f32 %v799, %v800
        %v802 = vsel %vm798, %v792, 0.0
        %v803 = vadd.f32 %v801, %v802
        %v804 = vsel %vm798, %v793, 0.0
        %v805 = vadd.f32 %v803, %v804
        %v806 = vsel %vm798, %v794, 0.0
        %v807 = vadd.f32 %v805, %v806
        %v808 = vsel %vm798, %v795, 0.0
        %v809 = vadd.f32 %v807, %v808
        %v810 = vsel %vm798, %v796, 0.0
        %v811 = vadd.f32 %v809, %v810
        %v812 = vsel %vm798, %v797, 0.0
        %v813 = vadd.f32 %v811, %v812
        %v814 = vrot.slane %v813, 4
        %v815 = vadd.f32 %v813, %v814
        %v816 = vrot.slane %v815, 2
        %v817 = vadd.f32 %v815, %v816
        %v818 = vrot.slane %v817, 1
        %v819 = vadd.f32 %v817, %v818
        %v820 = vld [vmem:[#allocation5] sm:$0x1]
        %v821 = vadd.f32 %v819, %v820
        %vm822 = vcmask 32768
        %823 = vst.msk [vmem:[%s244] sm:$0x1] %vm822, %v821
        %s824 = sand.u32 %s139, 1
        %s825 = scalar_lea.sflag [#allocation4], %s824
        %s826 = sand.u32 %s139, 1
        %s827 = scalar_lea.vmem [#allocation7], %s826
        // Predicated region
        $region56: #{accent_cnn_forward.3} parent=39 // pred_check
          %p828 = pneg %p149
        $region57: #{accent_cnn_forward.3} parent=39 // pred_check_branch
          %830 = sbr.rel (%p828) target = $region59
        $region58: #{accent_cnn_forward.3} parent=39 // pred_region
          %s832 = ssub.s32 16, 16
          %833 = vsyncadd %s825, %s832
          %s834 = smul.addr %s21, 16
          %s835 = scalar_lea.hbm %s5, %s834
          %s837 = sshll.u32 %s827, 4
          %s838 = int_to_ptr.vmem [resolvable:$true] %s837
          %840 = dma.vmem_to_hbm [thread:$0]  %s838, 16, %s835, %s825
        $region59: #{accent_cnn_forward.3} parent=39 // pred_fallthru
          _
      $region40: #{accent_cnn_forward.3} parent=5 // pred_fallthru
        _
      %p841 = scmp.le.s32.totalorder 2, %s16
      // Predicated region
      $region60: #{accent_cnn_forward.3} parent=5 // pred_check
        %p842 = pneg %p841
      $region61: #{accent_cnn_forward.3} parent=5 // pred_check_branch
        %844 = sbr.rel (%p842) target = $region63
      $region62: #{accent_cnn_forward.3} parent=5 // pred_region
        %s845 = ssub.s32 %s16, 2
        // Predicated region
        $region64: #{accent_cnn_forward.3} parent=62 // pred_check
          %p846 = pneg %p155
        $region65: #{accent_cnn_forward.3} parent=62 // pred_check_branch
          %848 = sbr.rel (%p846) target = $region67
        $region66: #{accent_cnn_forward.3} parent=62 // pred_region
          %s849 = sand.u32 %s140, 1
          %s850 = scalar_lea.sflag [#allocation4], %s849
          %s851 = sand.u32 %s140, 1
          %s852 = scalar_lea.vmem [#allocation7], %s851
          %853 = dma.done %s850, 16
        $region67: #{accent_cnn_forward.3} parent=62 // pred_fallthru
          _
      $region63: #{accent_cnn_forward.3} parent=5 // pred_fallthru
        _
    $region6: #{accent_cnn_forward.3} parent=1 // loop_footer
      %s20 = sadd.s32 1, %s16
    $region7: #{accent_cnn_forward.3} parent=1 // loop_footer_branch
      %15 = sbr.rel target = $region3
    $region8: #{accent_cnn_forward.3} parent=1 // loop_exit
      _
    %854 = vsyncpa [#allocation3], 1
    %s855 = scalar_lea.sflag [#allocation3], 1
    %856 = vsyncpa %s855, 1
    %857 = vsyncpa [#allocation6], 1
    %858 = vsyncpa [#allocation4], 1
    %s859 = scalar_lea.sflag [#allocation4], 1
    %860 = vsyncpa %s859, 1

// kernel: accent_cnn_forward.2
$region0: #{accent_cnn_forward.2}
  #allocation0 [shape = 'u32[]', space=smem, size = 0x4, offset = 0x4, fixed_abs, tag = 'smem constant byte address 0x4 - core index']
  #allocation1 [shape = 'u32[144,128]{1,0:T(1,128)}', space=vmem, size = 0x12000, scoped, tag = 'internal scratch']
  #allocation2 [shape = 'f32[8,60,124]{2,1,0:T(8,128)}', space=vmem, size = 0x40000, scoped, tag = 'scratch operand']
  %s0 = inlined_call_operand.vmem [shape: f32[2,1,122,250], index: 0, kind: input, shape index: {}]
  %s1 = inlined_call_operand.vmem [shape: f32[72], index: 1, kind: input, shape index: {}]
  %s2 = inlined_call_operand.hbm [shape: f32[8], index: 2, kind: input, shape index: {}]
  %s3 = inlined_call_operand.vmem [shape: f32[1152], index: 3, kind: input, shape index: {}]
  %s4 = inlined_call_operand.hbm [shape: f32[16], index: 4, kind: input, shape index: {}]
  %s5 = inlined_call_operand.vmem [shape: f32[2,16,29,61], index: 5, kind: output, shape index: {}]
  %s6 = sld [smem:[#allocation0]]
  $region83: #{accent_cnn_forward.2} parent=0
    _
  %s8 = ssub.s32 1, %s6
  %s9 = scalar_select 0, %s8, %s6
  $region1: #{accent_cnn_forward.2} parent=0
    #allocation3 [shape = 'u8[512]{0}', space=smem, size = 0x200, scoped, tag = 'input window, operand 1, single buffered']
    #allocation4 [shape = 's32[2]{0}', space=sflag, size = 0x8, scoped, tag = 'scoped memory for accent_cnn_forward.2']
    #allocation5 [shape = 's32[2]{0}', space=sflag, size = 0x8, scoped, tag = 'scoped memory for accent_cnn_forward.2']
    #allocation6 [shape = 'u8[512]{0}', space=smem, size = 0x200, scoped, tag = 'input window, operand 2, single buffered']
    #allocation7 [shape = 'u8[4608]{0}', space=smem, size = 0x1200, scoped, tag = 'input window, operand 3, single buffered']
    #allocation8 [shape = 's32[1]{0}', space=sflag, size = 0x4, scoped, tag = 'scoped memory for accent_cnn_forward.2']
    #allocation9 [shape = 'u8[512]{0}', space=smem, size = 0x200, scoped, tag = 'input window, operand 4, single buffered']
    #allocation10 [shape = 's32[1]{0}', space=sflag, size = 0x4, scoped, tag = 'scoped memory for accent_cnn_forward.2']
    %10 = vsyncpa [#allocation5], 0
    %11 = vsyncpa [#allocation4], 0
    %12 = vsyncpa [#allocation8], 0
    %13 = vsyncpa [#allocation10], 0
    loop: start=0, step=1, limit=4
    $region2: #{accent_cnn_forward.2} parent=1 // loop_pre_header
      _
    $region3: #{accent_cnn_forward.2} parent=1 // loop_header
      %s15 = sphi 0, %s19
      %p16 = scmp.ge.s32.totalorder %s15, 4
      %s25 = sphi 0, %s27
      %s28 = sphi 0, %s25
      %s29 = sphi 0, %s28
      %s45 = sphi 0, %s29
      %s49 = sphi 0, %s49
      %s51 = sphi 0, %s49
      %s52 = sphi 0, %s51
      %s66 = sphi 0, %s52
      %s70 = sphi 0, %s70
      %s72 = sphi 0, %s70
      %s73 = sphi 0, %s72
      %s87 = sphi 0, %s73
      %s91 = sphi 0, %s91
      %s93 = sphi 0, %s91
      %s94 = sphi 0, %s93
      %s108 = sphi 0, %s94
      %s112 = sphi 0, %s112
      %s114 = sphi 0, %s112
      %s115 = sphi 0, %s114
      %s129 = sphi 0, %s115
      %s135 = sphi 0, %s137
      %s138 = sphi 0, %s135
      %s139 = sphi 0, %s138
      %s155 = sphi 0, %s139
    $region4: #{accent_cnn_forward.2} parent=1 // loop_header_branch
      %18 = sbr.rel (%p16) target = $region8
    $region5: #{accent_cnn_forward.2} parent=1 // loop_body
      %s20 = ssub.s32 %s15, 1
      %s21 = ssub.s32 %s15, 2
      %s22 = sadd.s32 %s15, 1
      %s23 = ssub.s32 %s15, %s22
      %p24 = scmp.eq.s32.totalorder %s23, 0
      %s26 = sadd.s32 %s25, 1
      %s27 = scalar_select %p24, %s25, %s26
      %p30 = pneg %p24
      %p31 = scmp.eq.s32.totalorder %s15, 1
      %p32 = por %p30, %p31
      %p33 = scmp.ne.s32.totalorder %s25, %s28
      %p34 = scmp.eq.s32.totalorder %s15, 0
      %p35 = por %p33, %p34
      %p36 = scmp.ne.s32.totalorder %s25, %s28
      %p37 = scmp.eq.s32.totalorder %s20, 1
      %p38 = por %p36, %p37
      %p39 = scmp.ne.s32.totalorder %s28, %s29
      %p40 = scmp.eq.s32.totalorder %s20, 0
      %p41 = por %p39, %p40
      %p42 = scmp.ne.s32.totalorder %s28, %s29
      %p43 = scmp.eq.s32.totalorder %s21, 1
      %p44 = por %p42, %p43
      %p46 = scmp.ne.s32.totalorder %s29, %s45
      %p47 = scmp.eq.s32.totalorder %s21, 0
      %p48 = por %p46, %p47
      %s50 = sadd.s32 %s49, 1
      %p53 = scmp.eq.s32.totalorder %s15, 1
      %p54 = scmp.ne.s32.totalorder %s49, %s51
      %p55 = scmp.eq.s32.totalorder %s15, 0
      %p56 = por %p54, %p55
      %p57 = scmp.ne.s32.totalorder %s49, %s51
      %p58 = scmp.eq.s32.totalorder %s20, 1
      %p59 = por %p57, %p58
      %p60 = scmp.ne.s32.totalorder %s51, %s52
      %p61 = scmp.eq.s32.totalorder %s20, 0
      %p62 = por %p60, %p61
      %p63 = scmp.ne.s32.totalorder %s51, %s52
      %p64 = scmp.eq.s32.totalorder %s21, 1
      %p65 = por %p63, %p64
      %p67 = scmp.ne.s32.totalorder %s52, %s66
      %p68 = scmp.eq.s32.totalorder %s21, 0
      %p69 = por %p67, %p68
      %s71 = sadd.s32 %s70, 1
      %p74 = scmp.eq.s32.totalorder %s15, 1
      %p75 = scmp.ne.s32.totalorder %s70, %s72
      %p76 = scmp.eq.s32.totalorder %s15, 0
      %p77 = por %p75, %p76
      %p78 = scmp.ne.s32.totalorder %s70, %s72
      %p79 = scmp.eq.s32.totalorder %s20, 1
      %p80 = por %p78, %p79
      %p81 = scmp.ne.s32.totalorder %s72, %s73
      %p82 = scmp.eq.s32.totalorder %s20, 0
      %p83 = por %p81, %p82
      %p84 = scmp.ne.s32.totalorder %s72, %s73
      %p85 = scmp.eq.s32.totalorder %s21, 1
      %p86 = por %p84, %p85
      %p88 = scmp.ne.s32.totalorder %s73, %s87
      %p89 = scmp.eq.s32.totalorder %s21, 0
      %p90 = por %p88, %p89
      %s92 = sadd.s32 %s91, 1
      %p95 = scmp.eq.s32.totalorder %s15, 1
      %p96 = scmp.ne.s32.totalorder %s91, %s93
      %p97 = scmp.eq.s32.totalorder %s15, 0
      %p98 = por %p96, %p97
      %p99 = scmp.ne.s32.totalorder %s91, %s93
      %p100 = scmp.eq.s32.totalorder %s20, 1
      %p101 = por %p99, %p100
      %p102 = scmp.ne.s32.totalorder %s93, %s94
      %p103 = scmp.eq.s32.totalorder %s20, 0
      %p104 = por %p102, %p103
      %p105 = scmp.ne.s32.totalorder %s93, %s94
      %p106 = scmp.eq.s32.totalorder %s21, 1
      %p107 = por %p105, %p106
      %p109 = scmp.ne.s32.totalorder %s94, %s108
      %p110 = scmp.eq.s32.totalorder %s21, 0
      %p111 = por %p109, %p110
      %s113 = sadd.s32 %s112, 1
      %p116 = scmp.eq.s32.totalorder %s15, 1
      %p117 = scmp.ne.s32.totalorder %s112, %s114
      %p118 = scmp.eq.s32.totalorder %s15, 0
      %p119 = por %p117, %p118
      %p120 = scmp.ne.s32.totalorder %s112, %s114
      %p121 = scmp.eq.s32.totalorder %s20, 1
      %p122 = por %p120, %p121
      %p123 = scmp.ne.s32.totalorder %s114, %s115
      %p124 = scmp.eq.s32.totalorder %s20, 0
      %p125 = por %p123, %p124
      %p126 = scmp.ne.s32.totalorder %s114, %s115
      %p127 = scmp.eq.s32.totalorder %s21, 1
      %p128 = por %p126, %p127
      %p130 = scmp.ne.s32.totalorder %s115, %s129
      %p131 = scmp.eq.s32.totalorder %s21, 0
      %p132 = por %p130, %p131
      %s133 = ssub.s32 %s15, %s22
      %p134 = scmp.eq.s32.totalorder %s133, 0
      %s136 = sadd.s32 %s135, 1
      %s137 = scalar_select %p134, %s135, %s136
      %p140 = pneg %p134
      %p141 = scmp.eq.s32.totalorder %s15, 1
      %p142 = por %p140, %p141
      %p143 = scmp.ne.s32.totalorder %s135, %s138
      %p144 = scmp.eq.s32.totalorder %s15, 0
      %p145 = por %p143, %p144
      %p146 = scmp.ne.s32.totalorder %s135, %s138
      %p147 = scmp.eq.s32.totalorder %s20, 1
      %p148 = por %p146, %p147
      %p149 = scmp.ne.s32.totalorder %s138, %s139
      %p150 = scmp.eq.s32.totalorder %s20, 0
      %p151 = por %p149, %p150
      %p152 = scmp.ne.s32.totalorder %s138, %s139
      %p153 = scmp.eq.s32.totalorder %s21, 1
      %p154 = por %p152, %p153
      %p156 = scmp.ne.s32.totalorder %s139, %s155
      %p157 = scmp.eq.s32.totalorder %s21, 0
      %p158 = por %p156, %p157
      %p159 = scmp.le.s32.totalorder 1, %s15
      %p160 = scmp.lt.s32.totalorder %s15, 3
      %p161 = pnand %p159, %p160
      %p162 = pneg %p161
      // Predicated region
      $region9: #{accent_cnn_forward.2} parent=5 // pred_check
        _
      $region10: #{accent_cnn_forward.2} parent=5 // pred_check_branch
        %164 = sbr.rel (%p161) target = $region12
      $region11: #{accent_cnn_forward.2} parent=5 // pred_region
        %s165 = ssub.s32 %s15, 1
        // Predicated region
        $region13: #{accent_cnn_forward.2} parent=11 // pred_check
          %p166 = pneg %p62
        $region14: #{accent_cnn_forward.2} parent=11 // pred_check_branch
          %168 = sbr.rel (%p166) target = $region16
        $region15: #{accent_cnn_forward.2} parent=11 // pred_region
          %s170 = ssub.s32 16, 16
          %171 = vsyncadd [#allocation5], %s170
          %s173 = sshll.u32 %s1, 4
          %s174 = int_to_ptr.vmem [resolvable:$true] %s173
          %176 = dma.vmem_to_smem %s174, 16, [#allocation3], [#allocation5]
        $region16: #{accent_cnn_forward.2} parent=11 // pred_fallthru
          _
        // Predicated region
        $region17: #{accent_cnn_forward.2} parent=11 // pred_check
          %p177 = pneg %p83
        $region18: #{accent_cnn_forward.2} parent=11 // pred_check_branch
          %179 = sbr.rel (%p177) target = $region20
        $region19: #{accent_cnn_forward.2} parent=11 // pred_region
          %s181 = ssub.s32 16, 16
          %182 = vsyncadd [#allocation4], %s181
          %185 = dma.hbm_to_smem %s2, 16, [#allocation6], [#allocation4]
        $region20: #{accent_cnn_forward.2} parent=11 // pred_fallthru
          _
        // Predicated region
        $region21: #{accent_cnn_forward.2} parent=11 // pred_check
          %p186 = pneg %p104
        $region22: #{accent_cnn_forward.2} parent=11 // pred_check_branch
          %188 = sbr.rel (%p186) target = $region24
        $region23: #{accent_cnn_forward.2} parent=11 // pred_region
          %s190 = ssub.s32 144, 144
          %191 = vsyncadd [#allocation8], %s190
          %s193 = sshll.u32 %s3, 4
          %s194 = int_to_ptr.vmem [resolvable:$true] %s193
          %196 = dma.vmem_to_smem %s194, 144, [#allocation7], [#allocation8]
        $region24: #{accent_cnn_forward.2} parent=11 // pred_fallthru
          _
        // Predicated region
        $region25: #{accent_cnn_forward.2} parent=11 // pred_check
          %p197 = pneg %p125
        $region26: #{accent_cnn_forward.2} parent=11 // pred_check_branch
          %199 = sbr.rel (%p197) target = $region28
        $region27: #{accent_cnn_forward.2} parent=11 // pred_region
          %s201 = ssub.s32 16, 16
          %202 = vsyncadd [#allocation10], %s201
          %205 = dma.hbm_to_smem %s4, 16, [#allocation9], [#allocation10]
        $region28: #{accent_cnn_forward.2} parent=11 // pred_fallthru
          _
      $region12: #{accent_cnn_forward.2} parent=5 // pred_fallthru
        _
      %p206 = scmp.lt.s32.totalorder %s15, 2
      // Predicated region
      $region29: #{accent_cnn_forward.2} parent=5 // pred_check
        %p207 = pneg %p206
      $region30: #{accent_cnn_forward.2} parent=5 // pred_check_branch
        %209 = sbr.rel (%p207) target = $region32
      $region31: #{accent_cnn_forward.2} parent=5 // pred_region
        // Predicated region
        $region33: #{accent_cnn_forward.2} parent=31 // pred_check
          %p210 = pneg %p35
        $region34: #{accent_cnn_forward.2} parent=31 // pred_check_branch
          %212 = sbr.rel (%p210) target = $region36
        $region35: #{accent_cnn_forward.2} parent=31 // pred_region
          %p213 = scmp.lt.s32.totalorder %s15, 1
          %s214 = scalar_select %p213, %s15, 1
          %s215 = smul.addr %s214, 32
          %s216 = smul.addr %s215, 8
          %s217 = scalar_lea.vmem %s0, %s216
        $region36: #{accent_cnn_forward.2} parent=31 // pred_fallthru
          _
      $region32: #{accent_cnn_forward.2} parent=5 // pred_fallthru
        _
      %p218 = scmp.le.s32.totalorder 1, %s15
      %p219 = scmp.lt.s32.totalorder %s15, 3
      %p220 = pnand %p218, %p219
      %p221 = pneg %p220
      // Predicated region
      $region37: #{accent_cnn_forward.2} parent=5 // pred_check
        _
      $region38: #{accent_cnn_forward.2} parent=5 // pred_check_branch
        %223 = sbr.rel (%p220) target = $region40
      $region39: #{accent_cnn_forward.2} parent=5 // pred_region
        %s224 = ssub.s32 %s15, 1
        // Predicated region
        $region41: #{accent_cnn_forward.2} parent=39 // pred_check
          %p225 = pneg %p62
        $region42: #{accent_cnn_forward.2} parent=39 // pred_check_branch
          %227 = sbr.rel (%p225) target = $region44
        $region43: #{accent_cnn_forward.2} parent=39 // pred_region
          %228 = dma.done [#allocation5], 16
        $region44: #{accent_cnn_forward.2} parent=39 // pred_fallthru
          _
        // Predicated region
        $region45: #{accent_cnn_forward.2} parent=39 // pred_check
          %p229 = pneg %p83
        $region46: #{accent_cnn_forward.2} parent=39 // pred_check_branch
          %231 = sbr.rel (%p229) target = $region48
        $region47: #{accent_cnn_forward.2} parent=39 // pred_region
          %232 = dma.done [#allocation4], 16
        $region48: #{accent_cnn_forward.2} parent=39 // pred_fallthru
          _
        // Predicated region
        $region49: #{accent_cnn_forward.2} parent=39 // pred_check
          %p233 = pneg %p104
        $region50: #{accent_cnn_forward.2} parent=39 // pred_check_branch
          %235 = sbr.rel (%p233) target = $region52
        $region51: #{accent_cnn_forward.2} parent=39 // pred_region
          %236 = dma.done [#allocation8], 144
        $region52: #{accent_cnn_forward.2} parent=39 // pred_fallthru
          _
        // Predicated region
        $region53: #{accent_cnn_forward.2} parent=39 // pred_check
          %p237 = pneg %p125
        $region54: #{accent_cnn_forward.2} parent=39 // pred_check_branch
          %239 = sbr.rel (%p237) target = $region56
        $region55: #{accent_cnn_forward.2} parent=39 // pred_region
          %240 = dma.done [#allocation10], 16
        $region56: #{accent_cnn_forward.2} parent=39 // pred_fallthru
          _
        %241 = sfence
        %p242 = scmp.lt.s32.totalorder %s20, 1
        %s243 = scalar_select %p242, %s20, 1
        %s244 = smul.addr %s243, 32
        %s245 = smul.addr %s244, 8
        %s246 = scalar_lea.vmem %s0, %s245
        %p247 = pneg %p41
        %p248 = pneg %p38
        %p249 = pneg %p62
        %p250 = pneg %p59
        %p251 = pneg %p83
        %p252 = pneg %p80
        %p253 = pneg %p104
        %p254 = pneg %p101
        %p255 = pneg %p125
        %p256 = pneg %p122
        %p257 = pneg %p151
        %p258 = pneg %p148
        %p259 = scmp.lt.s32.totalorder %s20, 1
        %s260 = scalar_select %p259, %s20, 1
        %s261 = smul.addr %s260, 64
        %s262 = smul.addr %s261, 8
        %s263 = scalar_lea.vmem %s5, %s262
        %p264 = scmp.lt.s32.totalorder %s20, 1
        %s265 = scalar_select %p264, %s20, 1
        %s266 = smul.addr %s265, 32
        %s267 = smul.addr %s266, 8
        %s268 = scalar_lea.vmem %s0, %s267
        %p269 = scmp.lt.s32.totalorder %s20, 1
        %s270 = scalar_select %p269, %s20, 1
        %s271 = smul.addr %s270, 64
        %s272 = smul.addr %s271, 8
        %s273 = scalar_lea.vmem %s5, %s272
        %v274 = vlaneseq
        %v275 = vshrl.u32 %v274, 7
        %v276 = vadd.s32 %v275, 8
        %v277 = vadd.s32 %v275, 16
        %v278 = vadd.s32 %v275, 24
        %v279 = vadd.s32 %v275, 32
        %v280 = vadd.s32 %v275, 40
        %v281 = vadd.s32 %v275, 48
        %v282 = vadd.s32 %v275, 56
        %v283 = vlaneseq
        %v284 = vand.u32 %v283, 127
        %v285 = vmul.u32 %v275, 2
        %v286 = vmul.u32 %v276, 2
        %v287 = vmul.u32 %v277, 2
        %v288 = vmul.u32 %v278, 2
        %v289 = vmul.u32 %v279, 2
        %v290 = vmul.u32 %v280, 2
        %v291 = vmul.u32 %v281, 2
        %v292 = vmul.u32 %v282, 2
        %vm293 = vcmp.eq.s32.totalorder %v284, %v285
        %vm294 = vcmp.eq.s32.totalorder %v284, %v286
        %vm295 = vcmp.eq.s32.totalorder %v284, %v287
        %vm296 = vcmp.eq.s32.totalorder %v284, %v288
        %vm297 = vcmp.eq.s32.totalorder %v284, %v289
        %vm298 = vcmp.eq.s32.totalorder %v284, %v290
        %vm299 = vcmp.eq.s32.totalorder %v284, %v291
        %vm300 = vcmp.eq.s32.totalorder %v284, %v292
        %v301 = vsel %vm293, 1, 0
        %v302 = vsel %vm294, 1, 0
        %v303 = vsel %vm295, 1, 0
        %v304 = vsel %vm296, 1, 0
        %v305 = vsel %vm297, 1, 0
        %v306 = vsel %vm298, 1, 0
        %v307 = vsel %vm299, 1, 0
        %v308 = vsel %vm300, 1, 0
        %v309 = vcvt.s32.f32 %v301
        %v310 = vcvt.s32.f32 %v302
        %v311 = vcvt.s32.f32 %v303
        %v312 = vcvt.s32.f32 %v304
        %v313 = vcvt.s32.f32 %v305
        %v314 = vcvt.s32.f32 %v306
        %v315 = vcvt.s32.f32 %v307
        %v316 = vcvt.s32.f32 %v308
        %v317 = vadd.s32 %v285, 1
        %v318 = vadd.s32 %v286, 1
        %v319 = vadd.s32 %v287, 1
        %v320 = vadd.s32 %v288, 1
        %v321 = vadd.s32 %v289, 1
        %v322 = vadd.s32 %v290, 1
        %v323 = vadd.s32 %v291, 1
        %v324 = vadd.s32 %v292, 1
        %vm325 = vcmp.eq.s32.totalorder %v284, %v317
        %vm326 = vcmp.eq.s32.totalorder %v284, %v318
        %vm327 = vcmp.eq.s32.totalorder %v284, %v319
        %vm328 = vcmp.eq.s32.totalorder %v284, %v320
        %vm329 = vcmp.eq.s32.totalorder %v284, %v321
        %vm330 = vcmp.eq.s32.totalorder %v284, %v322
        %vm331 = vcmp.eq.s32.totalorder %v284, %v323
        %vm332 = vcmp.eq.s32.totalorder %v284, %v324
        %v333 = vsel %vm325, 1, 0
        %v334 = vsel %vm326, 1, 0
        %v335 = vsel %vm327, 1, 0
        %v336 = vsel %vm328, 1, 0
        %v337 = vsel %vm329, 1, 0
        %v338 = vsel %vm330, 1, 0
        %v339 = vsel %vm331, 1, 0
        %v340 = vsel %vm332, 1, 0
        %v341 = vcvt.s32.f32 %v333
        %v342 = vcvt.s32.f32 %v334
        %v343 = vcvt.s32.f32 %v335
        %v344 = vcvt.s32.f32 %v336
        %v345 = vcvt.s32.f32 %v337
        %v346 = vcvt.s32.f32 %v338
        %v347 = vcvt.s32.f32 %v339
        %v348 = vcvt.s32.f32 %v340
        %v349 = vadd.s32 %v275, 64
        %v350 = vadd.s32 %v275, 72
        %v351 = vadd.s32 %v275, 80
        %v352 = vadd.s32 %v275, 88
        %v353 = vadd.s32 %v275, 96
        %v354 = vadd.s32 %v275, 104
        %v355 = vadd.s32 %v275, 112
        %v356 = vadd.s32 %v275, 120
        %v357 = vadd.s32 %v275, 128
        %v358 = vadd.s32 %v275, 136
        %v359 = vadd.s32 %v275, 144
        %v360 = vadd.s32 %v275, 152
        %v361 = vadd.s32 %v275, 160
        %v362 = vadd.s32 %v275, 168
        %v363 = vadd.s32 %v275, 176
        %v364 = vadd.s32 %v275, 184
        %v365 = vadd.s32 %v275, 192
        %v366 = vadd.s32 %v275, 200
        %v367 = vadd.s32 %v275, 208
        %v368 = vadd.s32 %v275, 216
        %v369 = vadd.s32 %v275, 224
        %v370 = vadd.s32 %v275, 232
        %v371 = vadd.s32 %v275, 240
        %v372 = vmul.u32 %v284, 2
        %vm373 = vcmp.eq.s32.totalorder %v275, %v372
        %vm374 = vcmp.eq.s32.totalorder %v276, %v372
        %vm375 = vcmp.eq.s32.totalorder %v277, %v372
        %vm376 = vcmp.eq.s32.totalorder %v278, %v372
        %vm377 = vcmp.eq.s32.totalorder %v279, %v372
        %vm378 = vcmp.eq.s32.totalorder %v280, %v372
        %vm379 = vcmp.eq.s32.totalorder %v281, %v372
        %vm380 = vcmp.eq.s32.totalorder %v282, %v372
        %vm381 = vcmp.eq.s32.totalorder %v349, %v372
        %vm382 = vcmp.eq.s32.totalorder %v350, %v372
        %vm383 = vcmp.eq.s32.totalorder %v351, %v372
        %vm384 = vcmp.eq.s32.totalorder %v352, %v372
        %vm385 = vcmp.eq.s32.totalorder %v353, %v372
        %vm386 = vcmp.eq.s32.totalorder %v354, %v372
        %vm387 = vcmp.eq.s32.totalorder %v355, %v372
        %vm388 = vcmp.eq.s32.totalorder %v356, %v372
        %vm389 = vcmp.eq.s32.totalorder %v357, %v372
        %vm390 = vcmp.eq.s32.totalorder %v358, %v372
        %vm391 = vcmp.eq.s32.totalorder %v359, %v372
        %vm392 = vcmp.eq.s32.totalorder %v360, %v372
        %vm393 = vcmp.eq.s32.totalorder %v361, %v372
        %vm394 = vcmp.eq.s32.totalorder %v362, %v372
        %vm395 = vcmp.eq.s32.totalorder %v363, %v372
        %vm396 = vcmp.eq.s32.totalorder %v364, %v372
        %vm397 = vcmp.eq.s32.totalorder %v365, %v372
        %vm398 = vcmp.eq.s32.totalorder %v366, %v372
        %vm399 = vcmp.eq.s32.totalorder %v367, %v372
        %vm400 = vcmp.eq.s32.totalorder %v368, %v372
        %vm401 = vcmp.eq.s32.totalorder %v369, %v372
        %vm402 = vcmp.eq.s32.totalorder %v370, %v372
        %vm403 = vcmp.eq.s32.totalorder %v371, %v372
        %v404 = vsel %vm373, 1, 0
        %v405 = vsel %vm374, 1, 0
        %v406 = vsel %vm375, 1, 0
        %v407 = vsel %vm376, 1, 0
        %v408 = vsel %vm377, 1, 0
        %v409 = vsel %vm378, 1, 0
        %v410 = vsel %vm379, 1, 0
        %v411 = vsel %vm380, 1, 0
        %v412 = vsel %vm381, 1, 0
        %v413 = vsel %vm382, 1, 0
        %v414 = vsel %vm383, 1, 0
        %v415 = vsel %vm384, 1, 0
        %v416 = vsel %vm385, 1, 0
        %v417 = vsel %vm386, 1, 0
        %v418 = vsel %vm387, 1, 0
        %v419 = vsel %vm388, 1, 0
        %v420 = vsel %vm389, 1, 0
        %v421 = vsel %vm390, 1, 0
        %v422 = vsel %vm391, 1, 0
        %v423 = vsel %vm392, 1, 0
        %v424 = vsel %vm393, 1, 0
        %v425 = vsel %vm394, 1, 0
        %v426 = vsel %vm395, 1, 0
        %v427 = vsel %vm396, 1, 0
        %v428 = vsel %vm397, 1, 0
        %v429 = vsel %vm398, 1, 0
        %v430 = vsel %vm399, 1, 0
        %v431 = vsel %vm400, 1, 0
        %v432 = vsel %vm401, 1, 0
        %v433 = vsel %vm402, 1, 0
        %v434 = vsel %vm403, 1, 0
        %v435 = vcvt.s32.f32 %v404
        %v436 = vcvt.s32.f32 %v405
        %v437 = vcvt.s32.f32 %v406
        %v438 = vcvt.s32.f32 %v407
        %v439 = vcvt.s32.f32 %v408
        %v440 = vcvt.s32.f32 %v409
        %v441 = vcvt.s32.f32 %v410
        %v442 = vcvt.s32.f32 %v411
        %v443 = vcvt.s32.f32 %v412
        %v444 = vcvt.s32.f32 %v413
        %v445 = vcvt.s32.f32 %v414
        %v446 = vcvt.s32.f32 %v415
        %v447 = vcvt.s32.f32 %v416
        %v448 = vcvt.s32.f32 %v417
        %v449 = vcvt.s32.f32 %v418
        %v450 = vcvt.s32.f32 %v419
        %v451 = vcvt.s32.f32 %v420
        %v452 = vcvt.s32.f32 %v421
        %v453 = vcvt.s32.f32 %v422
        %v454 = vcvt.s32.f32 %v423
        %v455 = vcvt.s32.f32 %v424
        %v456 = vcvt.s32.f32 %v425
        %v457 = vcvt.s32.f32 %v426
        %v458 = vcvt.s32.f32 %v427
        %v459 = vcvt.s32.f32 %v428
        %v460 = vcvt.s32.f32 %v429
        %v461 = vcvt.s32.f32 %v430
        %v462 = vcvt.s32.f32 %v431
        %v463 = vcvt.s32.f32 %v432
        %v464 = vcvt.s32.f32 %v433
        %v465 = vcvt.s32.f32 %v434
        %v466 = vadd.s32 %v372, 1
        %vm467 = vcmp.eq.s32.totalorder %v275, %v466
        %vm468 = vcmp.eq.s32.totalorder %v276, %v466
        %vm469 = vcmp.eq.s32.totalorder %v277, %v466
        %vm470 = vcmp.eq.s32.totalorder %v278, %v466
        %vm471 = vcmp.eq.s32.totalorder %v279, %v466
        %vm472 = vcmp.eq.s32.totalorder %v280, %v466
        %vm473 = vcmp.eq.s32.totalorder %v281, %v466
        %vm474 = vcmp.eq.s32.totalorder %v282, %v466
        %vm475 = vcmp.eq.s32.totalorder %v349, %v466
        %vm476 = vcmp.eq.s32.totalorder %v350, %v466
        %vm477 = vcmp.eq.s32.totalorder %v351, %v466
        %vm478 = vcmp.eq.s32.totalorder %v352, %v466
        %vm479 = vcmp.eq.s32.totalorder %v353, %v466
        %vm480 = vcmp.eq.s32.totalorder %v354, %v466
        %vm481 = vcmp.eq.s32.totalorder %v355, %v466
        %vm482 = vcmp.eq.s32.totalorder %v356, %v466
        %vm483 = vcmp.eq.s32.totalorder %v357, %v466
        %vm484 = vcmp.eq.s32.totalorder %v358, %v466
        %vm485 = vcmp.eq.s32.totalorder %v359, %v466
        %vm486 = vcmp.eq.s32.totalorder %v360, %v466
        %vm487 = vcmp.eq.s32.totalorder %v361, %v466
        %vm488 = vcmp.eq.s32.totalorder %v362, %v466
        %vm489 = vcmp.eq.s32.totalorder %v363, %v466
        %vm490 = vcmp.eq.s32.totalorder %v364, %v466
        %vm491 = vcmp.eq.s32.totalorder %v365, %v466
        %vm492 = vcmp.eq.s32.totalorder %v366, %v466
        %vm493 = vcmp.eq.s32.totalorder %v367, %v466
        %vm494 = vcmp.eq.s32.totalorder %v368, %v466
        %vm495 = vcmp.eq.s32.totalorder %v369, %v466
        %vm496 = vcmp.eq.s32.totalorder %v370, %v466
        %vm497 = vcmp.eq.s32.totalorder %v371, %v466
        %v498 = vsel %vm467, 1, 0
        %v499 = vsel %vm468, 1, 0
        %v500 = vsel %vm469, 1, 0
        %v501 = vsel %vm470, 1, 0
        %v502 = vsel %vm471, 1, 0
        %v503 = vsel %vm472, 1, 0
        %v504 = vsel %vm473, 1, 0
        %v505 = vsel %vm474, 1, 0
        %v506 = vsel %vm475, 1, 0
        %v507 = vsel %vm476, 1, 0
        %v508 = vsel %vm477, 1, 0
        %v509 = vsel %vm478, 1, 0
        %v510 = vsel %vm479, 1, 0
        %v511 = vsel %vm480, 1, 0
        %v512 = vsel %vm481, 1, 0
        %v513 = vsel %vm482, 1, 0
        %v514 = vsel %vm483, 1, 0
        %v515 = vsel %vm484, 1, 0
        %v516 = vsel %vm485, 1, 0
        %v517 = vsel %vm486, 1, 0
        %v518 = vsel %vm487, 1, 0
        %v519 = vsel %vm488, 1, 0
        %v520 = vsel %vm489, 1, 0
        %v521 = vsel %vm490, 1, 0
        %v522 = vsel %vm491, 1, 0
        %v523 = vsel %vm492, 1, 0
        %v524 = vsel %vm493, 1, 0
        %v525 = vsel %vm494, 1, 0
        %v526 = vsel %vm495, 1, 0
        %v527 = vsel %vm496, 1, 0
        %v528 = vsel %vm497, 1, 0
        %v529 = vcvt.s32.f32 %v498
        %v530 = vcvt.s32.f32 %v499
        %v531 = vcvt.s32.f32 %v500
        %v532 = vcvt.s32.f32 %v501
        %v533 = vcvt.s32.f32 %v502
        %v534 = vcvt.s32.f32 %v503
        %v535 = vcvt.s32.f32 %v504
        %v536 = vcvt.s32.f32 %v505
        %v537 = vcvt.s32.f32 %v506
        %v538 = vcvt.s32.f32 %v507
        %v539 = vcvt.s32.f32 %v508
        %v540 = vcvt.s32.f32 %v509
        %v541 = vcvt.s32.f32 %v510
        %v542 = vcvt.s32.f32 %v511
        %v543 = vcvt.s32.f32 %v512
        %v544 = vcvt.s32.f32 %v513
        %v545 = vcvt.s32.f32 %v514
        %v546 = vcvt.s32.f32 %v515
        %v547 = vcvt.s32.f32 %v516
        %v548 = vcvt.s32.f32 %v517
        %v549 = vcvt.s32.f32 %v518
        %v550 = vcvt.s32.f32 %v519
        %v551 = vcvt.s32.f32 %v520
        %v552 = vcvt.s32.f32 %v521
        %v553 = vcvt.s32.f32 %v522
        %v554 = vcvt.s32.f32 %v523
        %v555 = vcvt.s32.f32 %v524
        %v556 = vcvt.s32.f32 %v525
        %v557 = vcvt.s32.f32 %v526
        %v558 = vcvt.s32.f32 %v527
        %v559 = vcvt.s32.f32 %v528
        loop: start=0, step=1, limit=8
        $region57: #{accent_cnn_forward.2} parent=39 // loop_pre_header
          _
        $region58: #{accent_cnn_forward.2} parent=39 // loop_header
          %s561 = sphi 0, %s565
          %p562 = scmp.ge.s32.totalorder %s561, 8
        $region59: #{accent_cnn_forward.2} parent=39 // loop_header_branch
          %564 = sbr.rel (%p562) target = $region63
        $region60: #{accent_cnn_forward.2} parent=39 // loop_body
          %s566 = smul.u32 %s561, 9
          %s567 = sld [smem:[#allocation3 + %s566]]
          %v568 = vld [vmem:[%s268] sm:$0xff]
          %v569 = vld [vmem:[%s268 + $0x8] sm:$0xff]
          %v570 = vld [vmem:[%s268 + $0x10] sm:$0xff]
          %v571 = vld [vmem:[%s268 + $0x18] sm:$0xff]
          %v572 = vld [vmem:[%s268 + $0x20] sm:$0xff]
          %v573 = vld [vmem:[%s268 + $0x28] sm:$0xff]
          %v574 = vld [vmem:[%s268 + $0x30] sm:$0xff]
          %v575 = vld [vmem:[%s268 + $0x38] sm:$0xff]
          %v576 = vld [vmem:[%s268 + $0x40] sm:$0xff]
          %v577 = vld [vmem:[%s268 + $0x48] sm:$0xff]
          %v578 = vld [vmem:[%s268 + $0x50] sm:$0xff]
          %v579 = vld [vmem:[%s268 + $0x58] sm:$0xff]
          %v580 = vld [vmem:[%s268 + $0x60] sm:$0xff]
          %v581 = vld [vmem:[%s268 + $0x68] sm:$0xff]
          %v582 = vld [vmem:[%s268 + $0x70] sm:$0xff]
          %v583 = vld [vmem:[%s268 + $0x78] sm:$0xff]
          %v584 = vld [vmem:[%s268 + $0x80] sm:$0xff]
          %v585 = vld [vmem:[%s268 + $0x88] sm:$0xff]
          %v586 = vld [vmem:[%s268 + $0x90] sm:$0xff]
          %v587 = vld [vmem:[%s268 + $0x98] sm:$0xff]
          %v588 = vld [vmem:[%s268 + $0xa0] sm:$0xff]
          %v589 = vld [vmem:[%s268 + $0xa8] sm:$0xff]
          %v590 = vld [vmem:[%s268 + $0xb0] sm:$0xff]
          %v591 = vld [vmem:[%s268 + $0xb8] sm:$0xff]
          %v592 = vld [vmem:[%s268 + $0xc0] sm:$0xff]
          %v593 = vld [vmem:[%s268 + $0xc8] sm:$0xff]
          %v594 = vld [vmem:[%s268 + $0xd0] sm:$0xff]
          %v595 = vld [vmem:[%s268 + $0xd8] sm:$0xff]
          %v596 = vld [vmem:[%s268 + $0xe0] sm:$0xff]
          %v597 = vld [vmem:[%s268 + $0xe8] sm:$0xff]
          %v598 = vstv %s567
          %v599 = vmul.f32 %v598, %v568
          %v600 = vmul.f32 %v598, %v569
          %v601 = vmul.f32 %v598, %v570
          %v602 = vmul.f32 %v598, %v571
          %v603 = vmul.f32 %v598, %v572
          %v604 = vmul.f32 %v598, %v573
          %v605 = vmul.f32 %v598, %v574
          %v606 = vmul.f32 %v598, %v575
          %v607 = vmul.f32 %v598, %v576
          %v608 = vmul.f32 %v598, %v577
          %v609 = vmul.f32 %v598, %v578
          %v610 = vmul.f32 %v598, %v579
          %v611 = vmul.f32 %v598, %v580
          %v612 = vmul.f32 %v598, %v581
          %v613 = vmul.f32 %v598, %v582
          %v614 = vmul.f32 %v598, %v583
          %v615 = vmul.f32 %v598, %v584
          %v616 = vmul.f32 %v598, %v585
          %v617 = vmul.f32 %v598, %v586
          %v618 = vmul.f32 %v598, %v587
          %v619 = vmul.f32 %v598, %v588
          %v620 = vmul.f32 %v598, %v589
          %v621 = vmul.f32 %v598, %v590
          %v622 = vmul.f32 %v598, %v591
          %v623 = vmul.f32 %v598, %v592
          %v624 = vmul.f32 %v598, %v593
          %v625 = vmul.f32 %v598, %v594
          %v626 = vmul.f32 %v598, %v595
          %v627 = vmul.f32 %v598, %v596
          %v628 = vmul.f32 %v598, %v597
          %v629 = vadd.f32 %v599, 0.0
          %v630 = vadd.f32 %v600, 0.0
          %v631 = vadd.f32 %v601, 0.0
          %v632 = vadd.f32 %v602, 0.0
          %v633 = vadd.f32 %v603, 0.0
          %v634 = vadd.f32 %v604, 0.0
          %v635 = vadd.f32 %v605, 0.0
          %v636 = vadd.f32 %v606, 0.0
          %v637 = vadd.f32 %v607, 0.0
          %v638 = vadd.f32 %v608, 0.0
          %v639 = vadd.f32 %v609, 0.0
          %v640 = vadd.f32 %v610, 0.0
          %v641 = vadd.f32 %v611, 0.0
          %v642 = vadd.f32 %v612, 0.0
          %v643 = vadd.f32 %v613, 0.0
          %v644 = vadd.f32 %v614, 0.0
          %v645 = vadd.f32 %v615, 0.0
          %v646 = vadd.f32 %v616, 0.0
          %v647 = vadd.f32 %v617, 0.0
          %v648 = vadd.f32 %v618, 0.0
          %v649 = vadd.f32 %v619, 0.0
          %v650 = vadd.f32 %v620, 0.0
          %v651 = vadd.f32 %v621, 0.0
          %v652 = vadd.f32 %v622, 0.0
          %v653 = vadd.f32 %v623, 0.0
          %v654 = vadd.f32 %v624, 0.0
          %v655 = vadd.f32 %v625, 0.0
          %v656 = vadd.f32 %v626, 0.0
          %v657 = vadd.f32 %v627, 0.0
          %v658 = vadd.f32 %v628, 0.0
          %s659 = sadd.s32 %s566, 1
          %s660 = sld [smem:[#allocation3 + %s659]]
          %v661 = vstv %s660
          %v662 = vmul.f32 %v661, %v568
          %v663 = vmul.f32 %v661, %v569
          %v664 = vmul.f32 %v661, %v570
          %v665 = vmul.f32 %v661, %v571
          %v666 = vmul.f32 %v661, %v572
          %v667 = vmul.f32 %v661, %v573
          %v668 = vmul.f32 %v661, %v574
          %v669 = vmul.f32 %v661, %v575
          %v670 = vmul.f32 %v661, %v576
          %v671 = vmul.f32 %v661, %v577
          %v672 = vmul.f32 %v661, %v578
          %v673 = vmul.f32 %v661, %v579
          %v674 = vmul.f32 %v661, %v580
          %v675 = vmul.f32 %v661, %v581
          %v676 = vmul.f32 %v661, %v582
          %v677 = vmul.f32 %v661, %v583
          %v678 = vmul.f32 %v661, %v584
          %v679 = vmul.f32 %v661, %v585
          %v680 = vmul.f32 %v661, %v586
          %v681 = vmul.f32 %v661, %v587
          %v682 = vmul.f32 %v661, %v588
          %v683 = vmul.f32 %v661, %v589
          %v684 = vmul.f32 %v661, %v590
          %v685 = vmul.f32 %v661, %v591
          %v686 = vmul.f32 %v661, %v592
          %v687 = vmul.f32 %v661, %v593
          %v688 = vmul.f32 %v661, %v594
          %v689 = vmul.f32 %v661, %v595
          %v690 = vmul.f32 %v661, %v596
          %v691 = vmul.f32 %v661, %v597
          %722 = vrot.lane.b32.xlu0 %v662, 127
          %v723 = vpop.permute.xlu0 %722
          %724 = vrot.lane.b32.xlu0 %v663, 127
          %v725 = vpop.permute.xlu0 %724
          %726 = vrot.lane.b32.xlu0 %v664, 127
          %v727 = vpop.permute.xlu0 %726
          %728 = vrot.lane.b32.xlu0 %v665, 127
          %v729 = vpop.permute.xlu0 %728
          %730 = vrot.lane.b32.xlu0 %v666, 127
          %v731 = vpop.permute.xlu0 %730
          %732 = vrot.lane.b32.xlu0 %v667, 127
          %v733 = vpop.permute.xlu0 %732
          %734 = vrot.lane.b32.xlu0 %v668, 127
          %v735 = vpop.permute.xlu0 %734
          %736 = vrot.lane.b32.xlu0 %v669, 127
          %v737 = vpop.permute.xlu0 %736
          %738 = vrot.lane.b32.xlu0 %v670, 127
          %v739 = vpop.permute.xlu0 %738
          %740 = vrot.lane.b32.xlu0 %v671, 127
          %v741 = vpop.permute.xlu0 %740
          %742 = vrot.lane.b32.xlu0 %v672, 127
          %v743 = vpop.permute.xlu0 %742
          %744 = vrot.lane.b32.xlu0 %v673, 127
          %v745 = vpop.permute.xlu0 %744
          %746 = vrot.lane.b32.xlu0 %v674, 127
          %v747 = vpop.permute.xlu0 %746
          %748 = vrot.lane.b32.xlu0 %v675, 127
          %v749 = vpop.permute.xlu0 %748
          %750 = vrot.lane.b32.xlu0 %v676, 127
          %v751 = vpop.permute.xlu0 %750
          %752 = vrot.lane.b32.xlu0 %v677, 127
          %v753 = vpop.permute.xlu0 %752
          %754 = vrot.lane.b32.xlu0 %v678, 127
          %v755 = vpop.permute.xlu0 %754
          %756 = vrot.lane.b32.xlu0 %v679, 127
          %v757 = vpop.permute.xlu0 %756
          %758 = vrot.lane.b32.xlu0 %v680, 127
          %v759 = vpop.permute.xlu0 %758
          %760 = vrot.lane.b32.xlu0 %v681, 127
          %v761 = vpop.permute.xlu0 %760
          %762 = vrot.lane.b32.xlu0 %v682, 127
          %v763 = vpop.permute.xlu0 %762
          %764 = vrot.lane.b32.xlu0 %v683, 127
          %v765 = vpop.permute.xlu0 %764
          %766 = vrot.lane.b32.xlu0 %v684, 127
          %v767 = vpop.permute.xlu0 %766
          %768 = vrot.lane.b32.xlu0 %v685, 127
          %v769 = vpop.permute.xlu0 %768
          %770 = vrot.lane.b32.xlu0 %v686, 127
          %v771 = vpop.permute.xlu0 %770
          %772 = vrot.lane.b32.xlu0 %v687, 127
          %v773 = vpop.permute.xlu0 %772
          %774 = vrot.lane.b32.xlu0 %v688, 127
          %v775 = vpop.permute.xlu0 %774
          %776 = vrot.lane.b32.xlu0 %v689, 127
          %v777 = vpop.permute.xlu0 %776
          %778 = vrot.lane.b32.xlu0 %v690, 127
          %v779 = vpop.permute.xlu0 %778
          %780 = vrot.lane.b32.xlu0 %v691, 127
          %v781 = vpop.permute.xlu0 %780
          %vm782 = vcmask 1039360
          %v783 = vsel %vm782, %v723, %v725
          %v784 = vsel %vm782, %v727, %v729
          %v785 = vsel %vm782, %v731, %v733
          %v786 = vsel %vm782, %v735, %v737
          %v787 = vsel %vm782, %v739, %v741
          %v788 = vsel %vm782, %v743, %v745
          %v789 = vsel %vm782, %v747, %v749
          %v790 = vsel %vm782, %v751, %v753
          %v791 = vsel %vm782, %v755, %v757
          %v792 = vsel %vm782, %v759, %v761
          %v793 = vsel %vm782, %v763, %v765
          %v794 = vsel %vm782, %v767, %v769
          %v795 = vsel %vm782, %v771, %v773
          %v796 = vsel %vm782, %v775, %v777
          %v797 = vsel %vm782, %v779, %v781
          %v828 = vadd.f32 %v629, %v783
          %v829 = vadd.f32 %v630, %v725
          %v830 = vadd.f32 %v631, %v784
          %v831 = vadd.f32 %v632, %v729
          %v832 = vadd.f32 %v633, %v785
          %v833 = vadd.f32 %v634, %v733
          %v834 = vadd.f32 %v635, %v786
          %v835 = vadd.f32 %v636, %v737
          %v836 = vadd.f32 %v637, %v787
          %v837 = vadd.f32 %v638, %v741
          %v838 = vadd.f32 %v639, %v788
          %v839 = vadd.f32 %v640, %v745
          %v840 = vadd.f32 %v641, %v789
          %v841 = vadd.f32 %v642, %v749
          %v842 = vadd.f32 %v643, %v790
          %v843 = vadd.f32 %v644, %v753
          %v844 = vadd.f32 %v645, %v791
          %v845 = vadd.f32 %v646, %v757
          %v846 = vadd.f32 %v647, %v792
          %v847 = vadd.f32 %v648, %v761
          %v848 = vadd.f32 %v649, %v793
          %v849 = vadd.f32 %v650, %v765
          %v850 = vadd.f32 %v651, %v794
          %v851 = vadd.f32 %v652, %v769
          %v852 = vadd.f32 %v653, %v795
          %v853 = vadd.f32 %v654, %v773
          %v854 = vadd.f32 %v655, %v796
          %v855 = vadd.f32 %v656, %v777
          %v856 = vadd.f32 %v657, %v797
          %v857 = vadd.f32 %v658, %v781
          %s858 = sadd.s32 %s566, 2
          %s859 = sld [smem:[#allocation3 + %s858]]
          %v860 = vstv %s859
          %v861 = vmul.f32 %v860, %v568
          %v862 = vmul.f32 %v860, %v569
          %v863 = vmul.f32 %v860, %v570
          %v864 = vmul.f32 %v860, %v571
          %v865 = vmul.f32 %v860, %v572
          %v866 = vmul.f32 %v860, %v573
          %v867 = vmul.f32 %v860, %v574
          %v868 = vmul.f32 %v860, %v575
          %v869 = vmul.f32 %v860, %v576
          %v870 = vmul.f32 %v860, %v577
          %v871 = vmul.f32 %v860, %v578
          %v872 = vmul.f32 %v860, %v579
          %v873 = vmul.f32 %v860, %v580
          %v874 = vmul.f32 %v860, %v581
          %v875 = vmul.f32 %v860, %v582
          %v876 = vmul.f32 %v860, %v583
          %v877 = vmul.f32 %v860, %v584
          %v878 = vmul.f32 %v860, %v585
          %v879 = vmul.f32 %v860, %v586
          %v880 = vmul.f32 %v860, %v587
          %v881 = vmul.f32 %v860, %v588
          %v882 = vmul.f32 %v860, %v589
          %v883 = vmul.f32 %v860, %v590
          %v884 = vmul.f32 %v860, %v591
          %v885 = vmul.f32 %v860, %v592
          %v886 = vmul.f32 %v860, %v593
          %v887 = vmul.f32 %v860, %v594
          %v888 = vmul.f32 %v860, %v595
          %v889 = vmul.f32 %v860, %v596
          %v890 = vmul.f32 %v860, %v597
          %921 = vrot.lane.b32.xlu0 %v861, 126
          %v922 = vpop.permute.xlu0 %921
          %923 = vrot.lane.b32.xlu0 %v862, 126
          %v924 = vpop.permute.xlu0 %923
          %925 = vrot.lane.b32.xlu0 %v863, 126
          %v926 = vpop.permute.xlu0 %925
          %927 = vrot.lane.b32.xlu0 %v864, 126
          %v928 = vpop.permute.xlu0 %927
          %929 = vrot.lane.b32.xlu0 %v865, 126
          %v930 = vpop.permute.xlu0 %929
          %931 = vrot.lane.b32.xlu0 %v866, 126
          %v932 = vpop.permute.xlu0 %931
          %933 = vrot.lane.b32.xlu0 %v867, 126
          %v934 = vpop.permute.xlu0 %933
          %935 = vrot.lane.b32.xlu0 %v868, 126
          %v936 = vpop.permute.xlu0 %935
          %937 = vrot.lane.b32.xlu0 %v869, 126
          %v938 = vpop.permute.xlu0 %937
          %939 = vrot.lane.b32.xlu0 %v870, 126
          %v940 = vpop.permute.xlu0 %939
          %941 = vrot.lane.b32.xlu0 %v871, 126
          %v942 = vpop.permute.xlu0 %941
          %943 = vrot.lane.b32.xlu0 %v872, 126
          %v944 = vpop.permute.xlu0 %943
          %945 = vrot.lane.b32.xlu0 %v873, 126
          %v946 = vpop.permute.xlu0 %945
          %947 = vrot.lane.b32.xlu0 %v874, 126
          %v948 = vpop.permute.xlu0 %947
          %949 = vrot.lane.b32.xlu0 %v875, 126
          %v950 = vpop.permute.xlu0 %949
          %951 = vrot.lane.b32.xlu0 %v876, 126
          %v952 = vpop.permute.xlu0 %951
          %953 = vrot.lane.b32.xlu0 %v877, 126
          %v954 = vpop.permute.xlu0 %953
          %955 = vrot.lane.b32.xlu0 %v878, 126
          %v956 = vpop.permute.xlu0 %955
          %957 = vrot.lane.b32.xlu0 %v879, 126
          %v958 = vpop.permute.xlu0 %957
          %959 = vrot.lane.b32.xlu0 %v880, 126
          %v960 = vpop.permute.xlu0 %959
          %961 = vrot.lane.b32.xlu0 %v881, 126
          %v962 = vpop.permute.xlu0 %961
          %963 = vrot.lane.b32.xlu0 %v882, 126
          %v964 = vpop.permute.xlu0 %963
          %965 = vrot.lane.b32.xlu0 %v883, 126
          %v966 = vpop.permute.xlu0 %965
          %967 = vrot.lane.b32.xlu0 %v884, 126
          %v968 = vpop.permute.xlu0 %967
          %969 = vrot.lane.b32.xlu0 %v885, 126
          %v970 = vpop.permute.xlu0 %969
          %971 = vrot.lane.b32.xlu0 %v886, 126
          %v972 = vpop.permute.xlu0 %971
          %973 = vrot.lane.b32.xlu0 %v887, 126
          %v974 = vpop.permute.xlu0 %973
          %975 = vrot.lane.b32.xlu0 %v888, 126
          %v976 = vpop.permute.xlu0 %975
          %977 = vrot.lane.b32.xlu0 %v889, 126
          %v978 = vpop.permute.xlu0 %977
          %979 = vrot.lane.b32.xlu0 %v890, 126
          %v980 = vpop.permute.xlu0 %979
          %vm981 = vcmask 1031168
          %v982 = vsel %vm981, %v922, %v924
          %v983 = vsel %vm981, %v926, %v928
          %v984 = vsel %vm981, %v930, %v932
          %v985 = vsel %vm981, %v934, %v936
          %v986 = vsel %vm981, %v938, %v940
          %v987 = vsel %vm981, %v942, %v944
          %v988 = vsel %vm981, %v946, %v948
          %v989 = vsel %vm981, %v950, %v952
          %v990 = vsel %vm981, %v954, %v956
          %v991 = vsel %vm981, %v958, %v960
          %v992 = vsel %vm981, %v962, %v964
          %v993 = vsel %vm981, %v966, %v968
          %v994 = vsel %vm981, %v970, %v972
          %v995 = vsel %vm981, %v974, %v976
          %v996 = vsel %vm981, %v978, %v980
          %v1027 = vadd.f32 %v828, %v982
          %v1028 = vadd.f32 %v829, %v924
          %v1029 = vadd.f32 %v830, %v983
          %v1030 = vadd.f32 %v831, %v928
          %v1031 = vadd.f32 %v832, %v984
          %v1032 = vadd.f32 %v833, %v932
          %v1033 = vadd.f32 %v834, %v985
          %v1034 = vadd.f32 %v835, %v936
          %v1035 = vadd.f32 %v836, %v986
          %v1036 = vadd.f32 %v837, %v940
          %v1037 = vadd.f32 %v838, %v987
          %v1038 = vadd.f32 %v839, %v944
          %v1039 = vadd.f32 %v840, %v988
          %v1040 = vadd.f32 %v841, %v948
          %v1041 = vadd.f32 %v842, %v989
          %v1042 = vadd.f32 %v843, %v952
          %v1043 = vadd.f32 %v844, %v990
          %v1044 = vadd.f32 %v845, %v956
          %v1045 = vadd.f32 %v846, %v991
          %v1046 = vadd.f32 %v847, %v960
          %v1047 = vadd.f32 %v848, %v992
          %v1048 = vadd.f32 %v849, %v964
          %v1049 = vadd.f32 %v850, %v993
          %v1050 = vadd.f32 %v851, %v968
          %v1051 = vadd.f32 %v852, %v994
          %v1052 = vadd.f32 %v853, %v972
          %v1053 = vadd.f32 %v854, %v995
          %v1054 = vadd.f32 %v855, %v976
          %v1055 = vadd.f32 %v856, %v996
          %v1056 = vadd.f32 %v857, %v980
          %s1057 = sadd.s32 %s566, 3
          %s1058 = sld [smem:[#allocation3 + %s1057]]
          %v1059 = vld [vmem:[%s268] sm:$0xfe]
          %v1060 = vld [vmem:[%s268 + $0x8] sm:$0xfe]
          %v1061 = vld [vmem:[%s268 + $0x10] sm:$0xff]
          %v1062 = vld [vmem:[%s268 + $0x18] sm:$0xff]
          %v1063 = vld [vmem:[%s268 + $0x20] sm:$0xff]
          %v1064 = vld [vmem:[%s268 + $0x28] sm:$0xff]
          %v1065 = vld [vmem:[%s268 + $0x30] sm:$0xff]
          %v1066 = vld [vmem:[%s268 + $0x38] sm:$0xff]
          %v1067 = vld [vmem:[%s268 + $0x40] sm:$0xff]
          %v1068 = vld [vmem:[%s268 + $0x48] sm:$0xff]
          %v1069 = vld [vmem:[%s268 + $0x50] sm:$0xff]
          %v1070 = vld [vmem:[%s268 + $0x58] sm:$0xff]
          %v1071 = vld [vmem:[%s268 + $0x60] sm:$0xff]
          %v1072 = vld [vmem:[%s268 + $0x68] sm:$0xff]
          %v1073 = vld [vmem:[%s268 + $0x70] sm:$0xff]
          %v1074 = vld [vmem:[%s268 + $0x78] sm:$0xff]
          %v1075 = vld [vmem:[%s268 + $0x80] sm:$0xff]
          %v1076 = vld [vmem:[%s268 + $0x88] sm:$0xff]
          %v1077 = vld [vmem:[%s268 + $0x90] sm:$0xff]
          %v1078 = vld [vmem:[%s268 + $0x98] sm:$0xff]
          %v1079 = vld [vmem:[%s268 + $0xa0] sm:$0xff]
          %v1080 = vld [vmem:[%s268 + $0xa8] sm:$0xff]
          %v1081 = vld [vmem:[%s268 + $0xb0] sm:$0xff]
          %v1082 = vld [vmem:[%s268 + $0xb8] sm:$0xff]
          %v1083 = vld [vmem:[%s268 + $0xc0] sm:$0xff]
          %v1084 = vld [vmem:[%s268 + $0xc8] sm:$0xff]
          %v1085 = vld [vmem:[%s268 + $0xd0] sm:$0xff]
          %v1086 = vld [vmem:[%s268 + $0xd8] sm:$0xff]
          %v1087 = vld [vmem:[%s268 + $0xe0] sm:$0xff]
          %v1088 = vld [vmem:[%s268 + $0xe8] sm:$0xff]
          %v1089 = vld [vmem:[%s268 + $0xf0] sm:$0x1]
          %v1090 = vld [vmem:[%s268 + $0xf8] sm:$0x1]
          %v1091 = vstv %s1058
          %v1092 = vmul.f32 %v1091, %v1059
          %v1093 = vmul.f32 %v1091, %v1060
          %v1094 = vmul.f32 %v1091, %v1061
          %v1095 = vmul.f32 %v1091, %v1062
          %v1096 = vmul.f32 %v1091, %v1063
          %v1097 = vmul.f32 %v1091, %v1064
          %v1098 = vmul.f32 %v1091, %v1065
          %v1099 = vmul.f32 %v1091, %v1066
          %v1100 = vmul.f32 %v1091, %v1067
          %v1101 = vmul.f32 %v1091, %v1068
          %v1102 = vmul.f32 %v1091, %v1069
          %v1103 = vmul.f32 %v1091, %v1070
          %v1104 = vmul.f32 %v1091, %v1071
          %v1105 = vmul.f32 %v1091, %v1072
          %v1106 = vmul.f32 %v1091, %v1073
          %v1107 = vmul.f32 %v1091, %v1074
          %v1108 = vmul.f32 %v1091, %v1075
          %v1109 = vmul.f32 %v1091, %v1076
          %v1110 = vmul.f32 %v1091, %v1077
          %v1111 = vmul.f32 %v1091, %v1078
          %v1112 = vmul.f32 %v1091, %v1079
          %v1113 = vmul.f32 %v1091, %v1080
          %v1114 = vmul.f32 %v1091, %v1081
          %v1115 = vmul.f32 %v1091, %v1082
          %v1116 = vmul.f32 %v1091, %v1083
          %v1117 = vmul.f32 %v1091, %v1084
          %v1118 = vmul.f32 %v1091, %v1085
          %v1119 = vmul.f32 %v1091, %v1086
          %v1120 = vmul.f32 %v1091, %v1087
          %v1121 = vmul.f32 %v1091, %v1088
          %v1122 = vmul.f32 %v1091, %v1089
          %v1123 = vmul.f32 %v1091, %v1090
          %vm1156 = vcmask 1046528
          %v1157 = vrot.slane %v1092, 1
          %v1158 = vrot.slane %v1094, 1
          %v1159 = vsel %vm1156, %v1157, %v1158
          %v1160 = vrot.slane %v1093, 1
          %v1161 = vrot.slane %v1095, 1
          %v1162 = vsel %vm1156, %v1160, %v1161
          %v1163 = vrot.slane %v1096, 1
          %v1164 = vsel %vm1156, %v1158, %v1163
          %v1165 = vrot.slane %v1097, 1
          %v1166 = vsel %vm1156, %v1161, %v1165
          %v1167 = vrot.slane %v1098, 1
          %v1168 = vsel %vm1156, %v1163, %v1167
          %v1169 = vrot.slane %v1099, 1
          %v1170 = vsel %vm1156, %v1165, %v1169
          %v1171 = vrot.slane %v1100, 1
          %v1172 = vsel %vm1156, %v1167, %v1171
          %v1173 = vrot.slane %v1101, 1
          %v1174 = vsel %vm1156, %v1169, %v1173
          %v1175 = vrot.slane %v1102, 1
          %v1176 = vsel %vm1156, %v1171, %v1175
          %v1177 = vrot.slane %v1103, 1
          %v1178 = vsel %vm1156, %v1173, %v1177
          %v1179 = vrot.slane %v1104, 1
          %v1180 = vsel %vm1156, %v1175, %v1179
          %v1181 = vrot.slane %v1105, 1
          %v1182 = vsel %vm1156, %v1177, %v1181
          %v1183 = vrot.slane %v1106, 1
          %v1184 = vsel %vm1156, %v1179, %v1183
          %v1185 = vrot.slane %v1107, 1
          %v1186 = vsel %vm1156, %v1181, %v1185
          %v1187 = vrot.slane %v1108, 1
          %v1188 = vsel %vm1156, %v1183, %v1187
          %v1189 = vrot.slane %v1109, 1
          %v1190 = vsel %vm1156, %v1185, %v1189
          %v1191 = vrot.slane %v1110, 1
          %v1192 = vsel %vm1156, %v1187, %v1191
          %v1193 = vrot.slane %v1111, 1
          %v1194 = vsel %vm1156, %v1189, %v1193
          %v1195 = vrot.slane %v1112, 1
          %v1196 = vsel %vm1156, %v1191, %v1195
          %v1197 = vrot.slane %v1113, 1
          %v1198 = vsel %vm1156, %v1193, %v1197
          %v1199 = vrot.slane %v1114, 1
          %v1200 = vsel %vm1156, %v1195, %v1199
          %v1201 = vrot.slane %v1115, 1
          %v1202 = vsel %vm1156, %v1197, %v1201
          %v1203 = vrot.slane %v1116, 1
          %v1204 = vsel %vm1156, %v1199, %v1203
          %v1205 = vrot.slane %v1117, 1
          %v1206 = vsel %vm1156, %v1201, %v1205
          %v1207 = vrot.slane %v1118, 1
          %v1208 = vsel %vm1156, %v1203, %v1207
          %v1209 = vrot.slane %v1119, 1
          %v1210 = vsel %vm1156, %v1205, %v1209
          %v1211 = vrot.slane %v1120, 1
          %v1212 = vsel %vm1156, %v1207, %v1211
          %v1213 = vrot.slane %v1121, 1
          %v1214 = vsel %vm1156, %v1209, %v1213
          %v1215 = vrot.slane %v1122, 1
          %v1216 = vsel %vm1156, %v1211, %v1215
          %v1217 = vrot.slane %v1123, 1
          %v1218 = vsel %vm1156, %v1213, %v1217
          %v1249 = vadd.f32 %v1027, %v1159
          %v1250 = vadd.f32 %v1028, %v1162
          %v1251 = vadd.f32 %v1029, %v1164
          %v1252 = vadd.f32 %v1030, %v1166
          %v1253 = vadd.f32 %v1031, %v1168
          %v1254 = vadd.f32 %v1032, %v1170
          %v1255 = vadd.f32 %v1033, %v1172
          %v1256 = vadd.f32 %v1034, %v1174
          %v1257 = vadd.f32 %v1035, %v1176
          %v1258 = vadd.f32 %v1036, %v1178
          %v1259 = vadd.f32 %v1037, %v1180
          %v1260 = vadd.f32 %v1038, %v1182
          %v1261 = vadd.f32 %v1039, %v1184
          %v1262 = vadd.f32 %v1040, %v1186
          %v1263 = vadd.f32 %v1041, %v1188
          %v1264 = vadd.f32 %v1042, %v1190
          %v1265 = vadd.f32 %v1043, %v1192
          %v1266 = vadd.f32 %v1044, %v1194
          %v1267 = vadd.f32 %v1045, %v1196
          %v1268 = vadd.f32 %v1046, %v1198
          %v1269 = vadd.f32 %v1047, %v1200
          %v1270 = vadd.f32 %v1048, %v1202
          %v1271 = vadd.f32 %v1049, %v1204
          %v1272 = vadd.f32 %v1050, %v1206
          %v1273 = vadd.f32 %v1051, %v1208
          %v1274 = vadd.f32 %v1052, %v1210
          %v1275 = vadd.f32 %v1053, %v1212
          %v1276 = vadd.f32 %v1054, %v1214
          %v1277 = vadd.f32 %v1055, %v1216
          %v1278 = vadd.f32 %v1056, %v1218
          %s1279 = sadd.s32 %s566, 4
          %s1280 = sld [smem:[#allocation3 + %s1279]]
          %v1281 = vstv %s1280
          %v1282 = vmul.f32 %v1281, %v1059
          %v1283 = vmul.f32 %v1281, %v1060
          %v1284 = vmul.f32 %v1281, %v1061
          %v1285 = vmul.f32 %v1281, %v1062
          %v1286 = vmul.f32 %v1281, %v1063
          %v1287 = vmul.f32 %v1281, %v1064
          %v1288 = vmul.f32 %v1281, %v1065
          %v1289 = vmul.f32 %v1281, %v1066
          %v1290 = vmul.f32 %v1281, %v1067
          %v1291 = vmul.f32 %v1281, %v1068
          %v1292 = vmul.f32 %v1281, %v1069
          %v1293 = vmul.f32 %v1281, %v1070
          %v1294 = vmul.f32 %v1281, %v1071
          %v1295 = vmul.f32 %v1281, %v1072
          %v1296 = vmul.f32 %v1281, %v1073
          %v1297 = vmul.f32 %v1281, %v1074
          %v1298 = vmul.f32 %v1281, %v1075
          %v1299 = vmul.f32 %v1281, %v1076
          %v1300 = vmul.f32 %v1281, %v1077
          %v1301 = vmul.f32 %v1281, %v1078
          %v1302 = vmul.f32 %v1281, %v1079
          %v1303 = vmul.f32 %v1281, %v1080
          %v1304 = vmul.f32 %v1281, %v1081
          %v1305 = vmul.f32 %v1281, %v1082
          %v1306 = vmul.f32 %v1281, %v1083
          %v1307 = vmul.f32 %v1281, %v1084
          %v1308 = vmul.f32 %v1281, %v1085
          %v1309 = vmul.f32 %v1281, %v1086
          %v1310 = vmul.f32 %v1281, %v1087
          %v1311 = vmul.f32 %v1281, %v1088
          %v1312 = vmul.f32 %v1281, %v1089
          %v1313 = vmul.f32 %v1281, %v1090
          %v1346 = vrot.slane %v1282, 1
          %v1347 = vrot.slane %v1284, 1
          %v1348 = vsel %vm1156, %v1346, %v1347
          %v1349 = vrot.slane %v1283, 1
          %v1350 = vrot.slane %v1285, 1
          %v1351 = vsel %vm1156, %v1349, %v1350
          %v1352 = vrot.slane %v1286, 1
          %v1353 = vsel %vm1156, %v1347, %v1352
          %v1354 = vrot.slane %v1287, 1
          %v1355 = vsel %vm1156, %v1350, %v1354
          %v1356 = vrot.slane %v1288, 1
          %v1357 = vsel %vm1156, %v1352, %v1356
          %v1358 = vrot.slane %v1289, 1
          %v1359 = vsel %vm1156, %v1354, %v1358
          %v1360 = vrot.slane %v1290, 1
          %v1361 = vsel %vm1156, %v1356, %v1360
          %v1362 = vrot.slane %v1291, 1
          %v1363 = vsel %vm1156, %v1358, %v1362
          %v1364 = vrot.slane %v1292, 1
          %v1365 = vsel %vm1156, %v1360, %v1364
          %v1366 = vrot.slane %v1293, 1
          %v1367 = vsel %vm1156, %v1362, %v1366
          %v1368 = vrot.slane %v1294, 1
          %v1369 = vsel %vm1156, %v1364, %v1368
          %v1370 = vrot.slane %v1295, 1
          %v1371 = vsel %vm1156, %v1366, %v1370
          %v1372 = vrot.slane %v1296, 1
          %v1373 = vsel %vm1156, %v1368, %v1372
          %v1374 = vrot.slane %v1297, 1
          %v1375 = vsel %vm1156, %v1370, %v1374
          %v1376 = vrot.slane %v1298, 1
          %v1377 = vsel %vm1156, %v1372, %v1376
          %v1378 = vrot.slane %v1299, 1
          %v1379 = vsel %vm1156, %v1374, %v1378
          %v1380 = vrot.slane %v1300, 1
          %v1381 = vsel %vm1156, %v1376, %v1380
          %v1382 = vrot.slane %v1301, 1
          %v1383 = vsel %vm1156, %v1378, %v1382
          %v1384 = vrot.slane %v1302, 1
          %v1385 = vsel %vm1156, %v1380, %v1384
          %v1386 = vrot.slane %v1303, 1
          %v1387 = vsel %vm1156, %v1382, %v1386
          %v1388 = vrot.slane %v1304, 1
          %v1389 = vsel %vm1156, %v1384, %v1388
          %v1390 = vrot.slane %v1305, 1
          %v1391 = vsel %vm1156, %v1386, %v1390
          %v1392 = vrot.slane %v1306, 1
          %v1393 = vsel %vm1156, %v1388, %v1392
          %v1394 = vrot.slane %v1307, 1
          %v1395 = vsel %vm1156, %v1390, %v1394
          %v1396 = vrot.slane %v1308, 1
          %v1397 = vsel %vm1156, %v1392, %v1396
          %v1398 = vrot.slane %v1309, 1
          %v1399 = vsel %vm1156, %v1394, %v1398
          %v1400 = vrot.slane %v1310, 1
          %v1401 = vsel %vm1156, %v1396, %v1400
          %v1402 = vrot.slane %v1311, 1
          %v1403 = vsel %vm1156, %v1398, %v1402
          %v1404 = vrot.slane %v1312, 1
          %v1405 = vsel %vm1156, %v1400, %v1404
          %v1406 = vrot.slane %v1313, 1
          %v1407 = vsel %vm1156, %v1402, %v1406
          %1408 = vrot.lane.b32.xlu0 %v1348, 127
          %v1409 = vpop.permute.xlu0 %1408
          %1410 = vrot.lane.b32.xlu0 %v1351, 127
          %v1411 = vpop.permute.xlu0 %1410
          %1412 = vrot.lane.b32.xlu0 %v1353, 127
          %v1413 = vpop.permute.xlu0 %1412
          %1414 = vrot.lane.b32.xlu0 %v1355, 127
          %v1415 = vpop.permute.xlu0 %1414
          %1416 = vrot.lane.b32.xlu0 %v1357, 127
          %v1417 = vpop.permute.xlu0 %1416
          %1418 = vrot.lane.b32.xlu0 %v1359, 127
          %v1419 = vpop.permute.xlu0 %1418
          %1420 = vrot.lane.b32.xlu0 %v1361, 127
          %v1421 = vpop.permute.xlu0 %1420
          %1422 = vrot.lane.b32.xlu0 %v1363, 127
          %v1423 = vpop.permute.xlu0 %1422
          %1424 = vrot.lane.b32.xlu0 %v1365, 127
          %v1425 = vpop.permute.xlu0 %1424
          %1426 = vrot.lane.b32.xlu0 %v1367, 127
          %v1427 = vpop.permute.xlu0 %1426
          %1428 = vrot.lane.b32.xlu0 %v1369, 127
          %v1429 = vpop.permute.xlu0 %1428
          %1430 = vrot.lane.b32.xlu0 %v1371, 127
          %v1431 = vpop.permute.xlu0 %1430
          %1432 = vrot.lane.b32.xlu0 %v1373, 127
          %v1433 = vpop.permute.xlu0 %1432
          %1434 = vrot.lane.b32.xlu0 %v1375, 127
          %v1435 = vpop.permute.xlu0 %1434
          %1436 = vrot.lane.b32.xlu0 %v1377, 127
          %v1437 = vpop.permute.xlu0 %1436
          %1438 = vrot.lane.b32.xlu0 %v1379, 127
          %v1439 = vpop.permute.xlu0 %1438
          %1440 = vrot.lane.b32.xlu0 %v1381, 127
          %v1441 = vpop.permute.xlu0 %1440
          %1442 = vrot.lane.b32.xlu0 %v1383, 127
          %v1443 = vpop.permute.xlu0 %1442
          %1444 = vrot.lane.b32.xlu0 %v1385, 127
          %v1445 = vpop.permute.xlu0 %1444
          %1446 = vrot.lane.b32.xlu0 %v1387, 127
          %v1447 = vpop.permute.xlu0 %1446
          %1448 = vrot.lane.b32.xlu0 %v1389, 127
          %v1449 = vpop.permute.xlu0 %1448
          %1450 = vrot.lane.b32.xlu0 %v1391, 127
          %v1451 = vpop.permute.xlu0 %1450
          %1452 = vrot.lane.b32.xlu0 %v1393, 127
          %v1453 = vpop.permute.xlu0 %1452
          %1454 = vrot.lane.b32.xlu0 %v1395, 127
          %v1455 = vpop.permute.xlu0 %1454
          %1456 = vrot.lane.b32.xlu0 %v1397, 127
          %v1457 = vpop.permute.xlu0 %1456
          %1458 = vrot.lane.b32.xlu0 %v1399, 127
          %v1459 = vpop.permute.xlu0 %1458
          %1460 = vrot.lane.b32.xlu0 %v1401, 127
          %v1461 = vpop.permute.xlu0 %1460
          %1462 = vrot.lane.b32.xlu0 %v1403, 127
          %v1463 = vpop.permute.xlu0 %1462
          %1464 = vrot.lane.b32.xlu0 %v1405, 127
          %v1465 = vpop.permute.xlu0 %1464
          %1466 = vrot.lane.b32.xlu0 %v1407, 127
          %v1467 = vpop.permute.xlu0 %1466
          %v1468 = vsel %vm782, %v1409, %v1411
          %v1469 = vsel %vm782, %v1413, %v1415
          %v1470 = vsel %vm782, %v1417, %v1419
          %v1471 = vsel %vm782, %v1421, %v1423
          %v1472 = vsel %vm782, %v1425, %v1427
          %v1473 = vsel %vm782, %v1429, %v1431
          %v1474 = vsel %vm782, %v1433, %v1435
          %v1475 = vsel %vm782, %v1437, %v1439
          %v1476 = vsel %vm782, %v1441, %v1443
          %v1477 = vsel %vm782, %v1445, %v1447
          %v1478 = vsel %vm782, %v1449, %v1451
          %v1479 = vsel %vm782, %v1453, %v1455
          %v1480 = vsel %vm782, %v1457, %v1459
          %v1481 = vsel %vm782, %v1461, %v1463
          %v1482 = vsel %vm782, %v1465, %v1467
          %v1513 = vadd.f32 %v1249, %v1468
          %v1514 = vadd.f32 %v1250, %v1411
          %v1515 = vadd.f32 %v1251, %v1469
          %v1516 = vadd.f32 %v1252, %v1415
          %v1517 = vadd.f32 %v1253, %v1470
          %v1518 = vadd.f32 %v1254, %v1419
          %v1519 = vadd.f32 %v1255, %v1471
          %v1520 = vadd.f32 %v1256, %v1423
          %v1521 = vadd.f32 %v1257, %v1472
          %v1522 = vadd.f32 %v1258, %v1427
          %v1523 = vadd.f32 %v1259, %v1473
          %v1524 = vadd.f32 %v1260, %v1431
          %v1525 = vadd.f32 %v1261, %v1474
          %v1526 = vadd.f32 %v1262, %v1435
          %v1527 = vadd.f32 %v1263, %v1475
          %v1528 = vadd.f32 %v1264, %v1439
          %v1529 = vadd.f32 %v1265, %v1476
          %v1530 = vadd.f32 %v1266, %v1443
          %v1531 = vadd.f32 %v1267, %v1477
          %v1532 = vadd.f32 %v1268, %v1447
          %v1533 = vadd.f32 %v1269, %v1478
          %v1534 = vadd.f32 %v1270, %v1451
          %v1535 = vadd.f32 %v1271, %v1479
          %v1536 = vadd.f32 %v1272, %v1455
          %v1537 = vadd.f32 %v1273, %v1480
          %v1538 = vadd.f32 %v1274, %v1459
          %v1539 = vadd.f32 %v1275, %v1481
          %v1540 = vadd.f32 %v1276, %v1463
          %v1541 = vadd.f32 %v1277, %v1482
          %v1542 = vadd.f32 %v1278, %v1467
          %s1543 = sadd.s32 %s566, 5
          %s1544 = sld [smem:[#allocation3 + %s1543]]
          %v1545 = vstv %s1544
          %v1546 = vmul.f32 %v1545, %v1059
          %v1547 = vmul.f32 %v1545, %v1060
          %v1548 = vmul.f32 %v1545, %v1061
          %v1549 = vmul.f32 %v1545, %v1062
          %v1550 = vmul.f32 %v1545, %v1063
          %v1551 = vmul.f32 %v1545, %v1064
          %v1552 = vmul.f32 %v1545, %v1065
          %v1553 = vmul.f32 %v1545, %v1066
          %v1554 = vmul.f32 %v1545, %v1067
          %v1555 = vmul.f32 %v1545, %v1068
          %v1556 = vmul.f32 %v1545, %v1069
          %v1557 = vmul.f32 %v1545, %v1070
          %v1558 = vmul.f32 %v1545, %v1071
          %v1559 = vmul.f32 %v1545, %v1072
          %v1560 = vmul.f32 %v1545, %v1073
          %v1561 = vmul.f32 %v1545, %v1074
          %v1562 = vmul.f32 %v1545, %v1075
          %v1563 = vmul.f32 %v1545, %v1076
          %v1564 = vmul.f32 %v1545, %v1077
          %v1565 = vmul.f32 %v1545, %v1078
          %v1566 = vmul.f32 %v1545, %v1079
          %v1567 = vmul.f32 %v1545, %v1080
          %v1568 = vmul.f32 %v1545, %v1081
          %v1569 = vmul.f32 %v1545, %v1082
          %v1570 = vmul.f32 %v1545, %v1083
          %v1571 = vmul.f32 %v1545, %v1084
          %v1572 = vmul.f32 %v1545, %v1085
          %v1573 = vmul.f32 %v1545, %v1086
          %v1574 = vmul.f32 %v1545, %v1087
          %v1575 = vmul.f32 %v1545, %v1088
          %v1576 = vmul.f32 %v1545, %v1089
          %v1577 = vmul.f32 %v1545, %v1090
          %v1610 = vrot.slane %v1546, 1
          %v1611 = vrot.slane %v1548, 1
          %v1612 = vsel %vm1156, %v1610, %v1611
          %v1613 = vrot.slane %v1547, 1
          %v1614 = vrot.slane %v1549, 1
          %v1615 = vsel %vm1156, %v1613, %v1614
          %v1616 = vrot.slane %v1550, 1
          %v1617 = vsel %vm1156, %v1611, %v1616
          %v1618 = vrot.slane %v1551, 1
          %v1619 = vsel %vm1156, %v1614, %v1618
          %v1620 = vrot.slane %v1552, 1
          %v1621 = vsel %vm1156, %v1616, %v1620
          %v1622 = vrot.slane %v1553, 1
          %v1623 = vsel %vm1156, %v1618, %v1622
          %v1624 = vrot.slane %v1554, 1
          %v1625 = vsel %vm1156, %v1620, %v1624
          %v1626 = vrot.slane %v1555, 1
          %v1627 = vsel %vm1156, %v1622, %v1626
          %v1628 = vrot.slane %v1556, 1
          %v1629 = vsel %vm1156, %v1624, %v1628
          %v1630 = vrot.slane %v1557, 1
          %v1631 = vsel %vm1156, %v1626, %v1630
          %v1632 = vrot.slane %v1558, 1
          %v1633 = vsel %vm1156, %v1628, %v1632
          %v1634 = vrot.slane %v1559, 1
          %v1635 = vsel %vm1156, %v1630, %v1634
          %v1636 = vrot.slane %v1560, 1
          %v1637 = vsel %vm1156, %v1632, %v1636
          %v1638 = vrot.slane %v1561, 1
          %v1639 = vsel %vm1156, %v1634, %v1638
          %v1640 = vrot.slane %v1562, 1
          %v1641 = vsel %vm1156, %v1636, %v1640
          %v1642 = vrot.slane %v1563, 1
          %v1643 = vsel %vm1156, %v1638, %v1642
          %v1644 = vrot.slane %v1564, 1
          %v1645 = vsel %vm1156, %v1640, %v1644
          %v1646 = vrot.slane %v1565, 1
          %v1647 = vsel %vm1156, %v1642, %v1646
          %v1648 = vrot.slane %v1566, 1
          %v1649 = vsel %vm1156, %v1644, %v1648
          %v1650 = vrot.slane %v1567, 1
          %v1651 = vsel %vm1156, %v1646, %v1650
          %v1652 = vrot.slane %v1568, 1
          %v1653 = vsel %vm1156, %v1648, %v1652
          %v1654 = vrot.slane %v1569, 1
          %v1655 = vsel %vm1156, %v1650, %v1654
          %v1656 = vrot.slane %v1570, 1
          %v1657 = vsel %vm1156, %v1652, %v1656
          %v1658 = vrot.slane %v1571, 1
          %v1659 = vsel %vm1156, %v1654, %v1658
          %v1660 = vrot.slane %v1572, 1
          %v1661 = vsel %vm1156, %v1656, %v1660
          %v1662 = vrot.slane %v1573, 1
          %v1663 = vsel %vm1156, %v1658, %v1662
          %v1664 = vrot.slane %v1574, 1
          %v1665 = vsel %vm1156, %v1660, %v1664
          %v1666 = vrot.slane %v1575, 1
          %v1667 = vsel %vm1156, %v1662, %v1666
          %v1668 = vrot.slane %v1576, 1
          %v1669 = vsel %vm1156, %v1664, %v1668
          %v1670 = vrot.slane %v1577, 1
          %v1671 = vsel %vm1156, %v1666, %v1670
          %1672 = vrot.lane.b32.xlu0 %v1612, 126
          %v1673 = vpop.permute.xlu0 %1672
          %1674 = vrot.lane.b32.xlu0 %v1615, 126
          %v1675 = vpop.permute.xlu0 %1674
          %1676 = vrot.lane.b32.xlu0 %v1617, 126
          %v1677 = vpop.permute.xlu0 %1676
          %1678 = vrot.lane.b32.xlu0 %v1619, 126
          %v1679 = vpop.permute.xlu0 %1678
          %1680 = vrot.lane.b32.xlu0 %v1621, 126
          %v1681 = vpop.permute.xlu0 %1680
          %1682 = vrot.lane.b32.xlu0 %v1623, 126
          %v1683 = vpop.permute.xlu0 %1682
          %1684 = vrot.lane.b32.xlu0 %v1625, 126
          %v1685 = vpop.permute.xlu0 %1684
          %1686 = vrot.lane.b32.xlu0 %v1627, 126
          %v1687 = vpop.permute.xlu0 %1686
          %1688 = vrot.lane.b32.xlu0 %v1629, 126
          %v1689 = vpop.permute.xlu0 %1688
          %1690 = vrot.lane.b32.xlu0 %v1631, 126
          %v1691 = vpop.permute.xlu0 %1690
          %1692 = vrot.lane.b32.xlu0 %v1633, 126
          %v1693 = vpop.permute.xlu0 %1692
          %1694 = vrot.lane.b32.xlu0 %v1635, 126
          %v1695 = vpop.permute.xlu0 %1694
          %1696 = vrot.lane.b32.xlu0 %v1637, 126
          %v1697 = vpop.permute.xlu0 %1696
          %1698 = vrot.lane.b32.xlu0 %v1639, 126
          %v1699 = vpop.permute.xlu0 %1698
          %1700 = vrot.lane.b32.xlu0 %v1641, 126
          %v1701 = vpop.permute.xlu0 %1700
          %1702 = vrot.lane.b32.xlu0 %v1643, 126
          %v1703 = vpop.permute.xlu0 %1702
          %1704 = vrot.lane.b32.xlu0 %v1645, 126
          %v1705 = vpop.permute.xlu0 %1704
          %1706 = vrot.lane.b32.xlu0 %v1647, 126
          %v1707 = vpop.permute.xlu0 %1706
          %1708 = vrot.lane.b32.xlu0 %v1649, 126
          %v1709 = vpop.permute.xlu0 %1708
          %1710 = vrot.lane.b32.xlu0 %v1651, 126
          %v1711 = vpop.permute.xlu0 %1710
          %1712 = vrot.lane.b32.xlu0 %v1653, 126
          %v1713 = vpop.permute.xlu0 %1712
          %1714 = vrot.lane.b32.xlu0 %v1655, 126
          %v1715 = vpop.permute.xlu0 %1714
          %1716 = vrot.lane.b32.xlu0 %v1657, 126
          %v1717 = vpop.permute.xlu0 %1716
          %1718 = vrot.lane.b32.xlu0 %v1659, 126
          %v1719 = vpop.permute.xlu0 %1718
          %1720 = vrot.lane.b32.xlu0 %v1661, 126
          %v1721 = vpop.permute.xlu0 %1720
          %1722 = vrot.lane.b32.xlu0 %v1663, 126
          %v1723 = vpop.permute.xlu0 %1722
          %1724 = vrot.lane.b32.xlu0 %v1665, 126
          %v1725 = vpop.permute.xlu0 %1724
          %1726 = vrot.lane.b32.xlu0 %v1667, 126
          %v1727 = vpop.permute.xlu0 %1726
          %1728 = vrot.lane.b32.xlu0 %v1669, 126
          %v1729 = vpop.permute.xlu0 %1728
          %1730 = vrot.lane.b32.xlu0 %v1671, 126
          %v1731 = vpop.permute.xlu0 %1730
          %v1732 = vsel %vm981, %v1673, %v1675
          %v1733 = vsel %vm981, %v1677, %v1679
          %v1734 = vsel %vm981, %v1681, %v1683
          %v1735 = vsel %vm981, %v1685, %v1687
          %v1736 = vsel %vm981, %v1689, %v1691
          %v1737 = vsel %vm981, %v1693, %v1695
          %v1738 = vsel %vm981, %v1697, %v1699
          %v1739 = vsel %vm981, %v1701, %v1703
          %v1740 = vsel %vm981, %v1705, %v1707
          %v1741 = vsel %vm981, %v1709, %v1711
          %v1742 = vsel %vm981, %v1713, %v1715
          %v1743 = vsel %vm981, %v1717, %v1719
          %v1744 = vsel %vm981, %v1721, %v1723
          %v1745 = vsel %vm981, %v1725, %v1727
          %v1746 = vsel %vm981, %v1729, %v1731
          %v1777 = vadd.f32 %v1513, %v1732
          %v1778 = vadd.f32 %v1514, %v1675
          %v1779 = vadd.f32 %v1515, %v1733
          %v1780 = vadd.f32 %v1516, %v1679
          %v1781 = vadd.f32 %v1517, %v1734
          %v1782 = vadd.f32 %v1518, %v1683
          %v1783 = vadd.f32 %v1519, %v1735
          %v1784 = vadd.f32 %v1520, %v1687
          %v1785 = vadd.f32 %v1521, %v1736
          %v1786 = vadd.f32 %v1522, %v1691
          %v1787 = vadd.f32 %v1523, %v1737
          %v1788 = vadd.f32 %v1524, %v1695
          %v1789 = vadd.f32 %v1525, %v1738
          %v1790 = vadd.f32 %v1526, %v1699
          %v1791 = vadd.f32 %v1527, %v1739
          %v1792 = vadd.f32 %v1528, %v1703
          %v1793 = vadd.f32 %v1529, %v1740
          %v1794 = vadd.f32 %v1530, %v1707
          %v1795 = vadd.f32 %v1531, %v1741
          %v1796 = vadd.f32 %v1532, %v1711
          %v1797 = vadd.f32 %v1533, %v1742
          %v1798 = vadd.f32 %v1534, %v1715
          %v1799 = vadd.f32 %v1535, %v1743
          %v1800 = vadd.f32 %v1536, %v1719
          %v1801 = vadd.f32 %v1537, %v1744
          %v1802 = vadd.f32 %v1538, %v1723
          %v1803 = vadd.f32 %v1539, %v1745
          %v1804 = vadd.f32 %v1540, %v1727
          %v1805 = vadd.f32 %v1541, %v1746
          %v1806 = vadd.f32 %v1542, %v1731
          %s1807 = sadd.s32 %s566, 6
          %s1808 = sld [smem:[#allocation3 + %s1807]]
          %v1809 = vld [vmem:[%s268] sm:$0xfc]
          %v1810 = vld [vmem:[%s268 + $0x8] sm:$0xfc]
          %v1811 = vld [vmem:[%s268 + $0xf0] sm:$0x3]
          %v1812 = vld [vmem:[%s268 + $0xf8] sm:$0x3]
          %v1813 = vstv %s1808
          %v1814 = vmul.f32 %v1813, %v1809
          %v1815 = vmul.f32 %v1813, %v1810
          %v1816 = vmul.f32 %v1813, %v1061
          %v1817 = vmul.f32 %v1813, %v1062
          %v1818 = vmul.f32 %v1813, %v1063
          %v1819 = vmul.f32 %v1813, %v1064
          %v1820 = vmul.f32 %v1813, %v1065
          %v1821 = vmul.f32 %v1813, %v1066
          %v1822 = vmul.f32 %v1813, %v1067
          %v1823 = vmul.f32 %v1813, %v1068
          %v1824 = vmul.f32 %v1813, %v1069
          %v1825 = vmul.f32 %v1813, %v1070
          %v1826 = vmul.f32 %v1813, %v1071
          %v1827 = vmul.f32 %v1813, %v1072
          %v1828 = vmul.f32 %v1813, %v1073
          %v1829 = vmul.f32 %v1813, %v1074
          %v1830 = vmul.f32 %v1813, %v1075
          %v1831 = vmul.f32 %v1813, %v1076
          %v1832 = vmul.f32 %v1813, %v1077
          %v1833 = vmul.f32 %v1813, %v1078
          %v1834 = vmul.f32 %v1813, %v1079
          %v1835 = vmul.f32 %v1813, %v1080
          %v1836 = vmul.f32 %v1813, %v1081
          %v1837 = vmul.f32 %v1813, %v1082
          %v1838 = vmul.f32 %v1813, %v1083
          %v1839 = vmul.f32 %v1813, %v1084
          %v1840 = vmul.f32 %v1813, %v1085
          %v1841 = vmul.f32 %v1813, %v1086
          %v1842 = vmul.f32 %v1813, %v1087
          %v1843 = vmul.f32 %v1813, %v1088
          %v1844 = vmul.f32 %v1813, %v1811
          %v1845 = vmul.f32 %v1813, %v1812
          %vm1878 = vcmask 1045504
          %v1879 = vrot.slane %v1814, 2
          %v1880 = vrot.slane %v1816, 2
          %v1881 = vsel %vm1878, %v1879, %v1880
          %v1882 = vrot.slane %v1815, 2
          %v1883 = vrot.slane %v1817, 2
          %v1884 = vsel %vm1878, %v1882, %v1883
          %v1885 = vrot.slane %v1818, 2
          %v1886 = vsel %vm1878, %v1880, %v1885
          %v1887 = vrot.slane %v1819, 2
          %v1888 = vsel %vm1878, %v1883, %v1887
          %v1889 = vrot.slane %v1820, 2
          %v1890 = vsel %vm1878, %v1885, %v1889
          %v1891 = vrot.slane %v1821, 2
          %v1892 = vsel %vm1878, %v1887, %v1891
          %v1893 = vrot.slane %v1822, 2
          %v1894 = vsel %vm1878, %v1889, %v1893
          %v1895 = vrot.slane %v1823, 2
          %v1896 = vsel %vm1878, %v1891, %v1895
          %v1897 = vrot.slane %v1824, 2
          %v1898 = vsel %vm1878, %v1893, %v1897
          %v1899 = vrot.slane %v1825, 2
          %v1900 = vsel %vm1878, %v1895, %v1899
          %v1901 = vrot.slane %v1826, 2
          %v1902 = vsel %vm1878, %v1897, %v1901
          %v1903 = vrot.slane %v1827, 2
          %v1904 = vsel %vm1878, %v1899, %v1903
          %v1905 = vrot.slane %v1828, 2
          %v1906 = vsel %vm1878, %v1901, %v1905
          %v1907 = vrot.slane %v1829, 2
          %v1908 = vsel %vm1878, %v1903, %v1907
          %v1909 = vrot.slane %v1830, 2
          %v1910 = vsel %vm1878, %v1905, %v1909
          %v1911 = vrot.slane %v1831, 2
          %v1912 = vsel %vm1878, %v1907, %v1911
          %v1913 = vrot.slane %v1832, 2
          %v1914 = vsel %vm1878, %v1909, %v1913
          %v1915 = vrot.slane %v1833, 2
          %v1916 = vsel %vm1878, %v1911, %v1915
          %v1917 = vrot.slane %v1834, 2
          %v1918 = vsel %vm1878, %v1913, %v1917
          %v1919 = vrot.slane %v1835, 2
          %v1920 = vsel %vm1878, %v1915, %v1919
          %v1921 = vrot.slane %v1836, 2
          %v1922 = vsel %vm1878, %v1917, %v1921
          %v1923 = vrot.slane %v1837, 2
          %v1924 = vsel %vm1878, %v1919, %v1923
          %v1925 = vrot.slane %v1838, 2
          %v1926 = vsel %vm1878, %v1921, %v1925
          %v1927 = vrot.slane %v1839, 2
          %v1928 = vsel %vm1878, %v1923, %v1927
          %v1929 = vrot.slane %v1840, 2
          %v1930 = vsel %vm1878, %v1925, %v1929
          %v1931 = vrot.slane %v1841, 2
          %v1932 = vsel %vm1878, %v1927, %v1931
          %v1933 = vrot.slane %v1842, 2
          %v1934 = vsel %vm1878, %v1929, %v1933
          %v1935 = vrot.slane %v1843, 2
          %v1936 = vsel %vm1878, %v1931, %v1935
          %v1937 = vrot.slane %v1844, 2
          %v1938 = vsel %vm1878, %v1933, %v1937
          %v1939 = vrot.slane %v1845, 2
          %v1940 = vsel %vm1878, %v1935, %v1939
          %v1971 = vadd.f32 %v1777, %v1881
          %v1972 = vadd.f32 %v1778, %v1884
          %v1973 = vadd.f32 %v1779, %v1886
          %v1974 = vadd.f32 %v1780, %v1888
          %v1975 = vadd.f32 %v1781, %v1890
          %v1976 = vadd.f32 %v1782, %v1892
          %v1977 = vadd.f32 %v1783, %v1894
          %v1978 = vadd.f32 %v1784, %v1896
          %v1979 = vadd.f32 %v1785, %v1898
          %v1980 = vadd.f32 %v1786, %v1900
          %v1981 = vadd.f32 %v1787, %v1902
          %v1982 = vadd.f32 %v1788, %v1904
          %v1983 = vadd.f32 %v1789, %v1906
          %v1984 = vadd.f32 %v1790, %v1908
          %v1985 = vadd.f32 %v1791, %v1910
          %v1986 = vadd.f32 %v1792, %v1912
          %v1987 = vadd.f32 %v1793, %v1914
          %v1988 = vadd.f32 %v1794, %v1916
          %v1989 = vadd.f32 %v1795, %v1918
          %v1990 = vadd.f32 %v1796, %v1920
          %v1991 = vadd.f32 %v1797, %v1922
          %v1992 = vadd.f32 %v1798, %v1924
          %v1993 = vadd.f32 %v1799, %v1926
          %v1994 = vadd.f32 %v1800, %v1928
          %v1995 = vadd.f32 %v1801, %v1930
          %v1996 = vadd.f32 %v1802, %v1932
          %v1997 = vadd.f32 %v1803, %v1934
          %v1998 = vadd.f32 %v1804, %v1936
          %v1999 = vadd.f32 %v1805, %v1938
          %v2000 = vadd.f32 %v1806, %v1940
          %s2001 = sadd.s32 %s566, 7
          %s2002 = sld [smem:[#allocation3 + %s2001]]
          %v2003 = vstv %s2002
          %v2004 = vmul.f32 %v2003, %v1809
          %v2005 = vmul.f32 %v2003, %v1810
          %v2006 = vmul.f32 %v2003, %v1061
          %v2007 = vmul.f32 %v2003, %v1062
          %v2008 = vmul.f32 %v2003, %v1063
          %v2009 = vmul.f32 %v2003, %v1064
          %v2010 = vmul.f32 %v2003, %v1065
          %v2011 = vmul.f32 %v2003, %v1066
          %v2012 = vmul.f32 %v2003, %v1067
          %v2013 = vmul.f32 %v2003, %v1068
          %v2014 = vmul.f32 %v2003, %v1069
          %v2015 = vmul.f32 %v2003, %v1070
          %v2016 = vmul.f32 %v2003, %v1071
          %v2017 = vmul.f32 %v2003, %v1072
          %v2018 = vmul.f32 %v2003, %v1073
          %v2019 = vmul.f32 %v2003, %v1074
          %v2020 = vmul.f32 %v2003, %v1075
          %v2021 = vmul.f32 %v2003, %v1076
          %v2022 = vmul.f32 %v2003, %v1077
          %v2023 = vmul.f32 %v2003, %v1078
          %v2024 = vmul.f32 %v2003, %v1079
          %v2025 = vmul.f32 %v2003, %v1080
          %v2026 = vmul.f32 %v2003, %v1081
          %v2027 = vmul.f32 %v2003, %v1082
          %v2028 = vmul.f32 %v2003, %v1083
          %v2029 = vmul.f32 %v2003, %v1084
          %v2030 = vmul.f32 %v2003, %v1085
          %v2031 = vmul.f32 %v2003, %v1086
          %v2032 = vmul.f32 %v2003, %v1087
          %v2033 = vmul.f32 %v2003, %v1088
          %v2034 = vmul.f32 %v2003, %v1811
          %v2035 = vmul.f32 %v2003, %v1812
          %v2068 = vrot.slane %v2004, 2
          %v2069 = vrot.slane %v2006, 2
          %v2070 = vsel %vm1878, %v2068, %v2069
          %v2071 = vrot.slane %v2005, 2
          %v2072 = vrot.slane %v2007, 2
          %v2073 = vsel %vm1878, %v2071, %v2072
          %v2074 = vrot.slane %v2008, 2
          %v2075 = vsel %vm1878, %v2069, %v2074
          %v2076 = vrot.slane %v2009, 2
          %v2077 = vsel %vm1878, %v2072, %v2076
          %v2078 = vrot.slane %v2010, 2
          %v2079 = vsel %vm1878, %v2074, %v2078
          %v2080 = vrot.slane %v2011, 2
          %v2081 = vsel %vm1878, %v2076, %v2080
          %v2082 = vrot.slane %v2012, 2
          %v2083 = vsel %vm1878, %v2078, %v2082
          %v2084 = vrot.slane %v2013, 2
          %v2085 = vsel %vm1878, %v2080, %v2084
          %v2086 = vrot.slane %v2014, 2
          %v2087 = vsel %vm1878, %v2082, %v2086
          %v2088 = vrot.slane %v2015, 2
          %v2089 = vsel %vm1878, %v2084, %v2088
          %v2090 = vrot.slane %v2016, 2
          %v2091 = vsel %vm1878, %v2086, %v2090
          %v2092 = vrot.slane %v2017, 2
          %v2093 = vsel %vm1878, %v2088, %v2092
          %v2094 = vrot.slane %v2018, 2
          %v2095 = vsel %vm1878, %v2090, %v2094
          %v2096 = vrot.slane %v2019, 2
          %v2097 = vsel %vm1878, %v2092, %v2096
          %v2098 = vrot.slane %v2020, 2
          %v2099 = vsel %vm1878, %v2094, %v2098
          %v2100 = vrot.slane %v2021, 2
          %v2101 = vsel %vm1878, %v2096, %v2100
          %v2102 = vrot.slane %v2022, 2
          %v2103 = vsel %vm1878, %v2098, %v2102
          %v2104 = vrot.slane %v2023, 2
          %v2105 = vsel %vm1878, %v2100, %v2104
          %v2106 = vrot.slane %v2024, 2
          %v2107 = vsel %vm1878, %v2102, %v2106
          %v2108 = vrot.slane %v2025, 2
          %v2109 = vsel %vm1878, %v2104, %v2108
          %v2110 = vrot.slane %v2026, 2
          %v2111 = vsel %vm1878, %v2106, %v2110
          %v2112 = vrot.slane %v2027, 2
          %v2113 = vsel %vm1878, %v2108, %v2112
          %v2114 = vrot.slane %v2028, 2
          %v2115 = vsel %vm1878, %v2110, %v2114
          %v2116 = vrot.slane %v2029, 2
          %v2117 = vsel %vm1878, %v2112, %v2116
          %v2118 = vrot.slane %v2030, 2
          %v2119 = vsel %vm1878, %v2114, %v2118
          %v2120 = vrot.slane %v2031, 2
          %v2121 = vsel %vm1878, %v2116, %v2120
          %v2122 = vrot.slane %v2032, 2
          %v2123 = vsel %vm1878, %v2118, %v2122
          %v2124 = vrot.slane %v2033, 2
          %v2125 = vsel %vm1878, %v2120, %v2124
          %v2126 = vrot.slane %v2034, 2
          %v2127 = vsel %vm1878, %v2122, %v2126
          %v2128 = vrot.slane %v2035, 2
          %v2129 = vsel %vm1878, %v2124, %v2128
          %2130 = vrot.lane.b32.xlu0 %v2070, 127
          %v2131 = vpop.permute.xlu0 %2130
          %2132 = vrot.lane.b32.xlu0 %v2073, 127
          %v2133 = vpop.permute.xlu0 %2132
          %2134 = vrot.lane.b32.xlu0 %v2075, 127
          %v2135 = vpop.permute.xlu0 %2134
          %2136 = vrot.lane.b32.xlu0 %v2077, 127
          %v2137 = vpop.permute.xlu0 %2136
          %2138 = vrot.lane.b32.xlu0 %v2079, 127
          %v2139 = vpop.permute.xlu0 %2138
          %2140 = vrot.lane.b32.xlu0 %v2081, 127
          %v2141 = vpop.permute.xlu0 %2140
          %2142 = vrot.lane.b32.xlu0 %v2083, 127
          %v2143 = vpop.permute.xlu0 %2142
          %2144 = vrot.lane.b32.xlu0 %v2085, 127
          %v2145 = vpop.permute.xlu0 %2144
          %2146 = vrot.lane.b32.xlu0 %v2087, 127
          %v2147 = vpop.permute.xlu0 %2146
          %2148 = vrot.lane.b32.xlu0 %v2089, 127
          %v2149 = vpop.permute.xlu0 %2148
          %2150 = vrot.lane.b32.xlu0 %v2091, 127
          %v2151 = vpop.permute.xlu0 %2150
          %2152 = vrot.lane.b32.xlu0 %v2093, 127
          %v2153 = vpop.permute.xlu0 %2152
          %2154 = vrot.lane.b32.xlu0 %v2095, 127
          %v2155 = vpop.permute.xlu0 %2154
          %2156 = vrot.lane.b32.xlu0 %v2097, 127
          %v2157 = vpop.permute.xlu0 %2156
          %2158 = vrot.lane.b32.xlu0 %v2099, 127
          %v2159 = vpop.permute.xlu0 %2158
          %2160 = vrot.lane.b32.xlu0 %v2101, 127
          %v2161 = vpop.permute.xlu0 %2160
          %2162 = vrot.lane.b32.xlu0 %v2103, 127
          %v2163 = vpop.permute.xlu0 %2162
          %2164 = vrot.lane.b32.xlu0 %v2105, 127
          %v2165 = vpop.permute.xlu0 %2164
          %2166 = vrot.lane.b32.xlu0 %v2107, 127
          %v2167 = vpop.permute.xlu0 %2166
          %2168 = vrot.lane.b32.xlu0 %v2109, 127
          %v2169 = vpop.permute.xlu0 %2168
          %2170 = vrot.lane.b32.xlu0 %v2111, 127
          %v2171 = vpop.permute.xlu0 %2170
          %2172 = vrot.lane.b32.xlu0 %v2113, 127
          %v2173 = vpop.permute.xlu0 %2172
          %2174 = vrot.lane.b32.xlu0 %v2115, 127
          %v2175 = vpop.permute.xlu0 %2174
          %2176 = vrot.lane.b32.xlu0 %v2117, 127
          %v2177 = vpop.permute.xlu0 %2176
          %2178 = vrot.lane.b32.xlu0 %v2119, 127
          %v2179 = vpop.permute.xlu0 %2178
          %2180 = vrot.lane.b32.xlu0 %v2121, 127
          %v2181 = vpop.permute.xlu0 %2180
          %2182 = vrot.lane.b32.xlu0 %v2123, 127
          %v2183 = vpop.permute.xlu0 %2182
          %2184 = vrot.lane.b32.xlu0 %v2125, 127
          %v2185 = vpop.permute.xlu0 %2184
          %2186 = vrot.lane.b32.xlu0 %v2127, 127
          %v2187 = vpop.permute.xlu0 %2186
          %2188 = vrot.lane.b32.xlu0 %v2129, 127
          %v2189 = vpop.permute.xlu0 %2188
          %v2190 = vsel %vm782, %v2131, %v2133
          %v2191 = vsel %vm782, %v2135, %v2137
          %v2192 = vsel %vm782, %v2139, %v2141
          %v2193 = vsel %vm782, %v2143, %v2145
          %v2194 = vsel %vm782, %v2147, %v2149
          %v2195 = vsel %vm782, %v2151, %v2153
          %v2196 = vsel %vm782, %v2155, %v2157
          %v2197 = vsel %vm782, %v2159, %v2161
          %v2198 = vsel %vm782, %v2163, %v2165
          %v2199 = vsel %vm782, %v2167, %v2169
          %v2200 = vsel %vm782, %v2171, %v2173
          %v2201 = vsel %vm782, %v2175, %v2177
          %v2202 = vsel %vm782, %v2179, %v2181
          %v2203 = vsel %vm782, %v2183, %v2185
          %v2204 = vsel %vm782, %v2187, %v2189
          %v2235 = vadd.f32 %v1971, %v2190
          %v2236 = vadd.f32 %v1972, %v2133
          %v2237 = vadd.f32 %v1973, %v2191
          %v2238 = vadd.f32 %v1974, %v2137
          %v2239 = vadd.f32 %v1975, %v2192
          %v2240 = vadd.f32 %v1976, %v2141
          %v2241 = vadd.f32 %v1977, %v2193
          %v2242 = vadd.f32 %v1978, %v2145
          %v2243 = vadd.f32 %v1979, %v2194
          %v2244 = vadd.f32 %v1980, %v2149
          %v2245 = vadd.f32 %v1981, %v2195
          %v2246 = vadd.f32 %v1982, %v2153
          %v2247 = vadd.f32 %v1983, %v2196
          %v2248 = vadd.f32 %v1984, %v2157
          %v2249 = vadd.f32 %v1985, %v2197
          %v2250 = vadd.f32 %v1986, %v2161
          %v2251 = vadd.f32 %v1987, %v2198
          %v2252 = vadd.f32 %v1988, %v2165
          %v2253 = vadd.f32 %v1989, %v2199
          %v2254 = vadd.f32 %v1990, %v2169
          %v2255 = vadd.f32 %v1991, %v2200
          %v2256 = vadd.f32 %v1992, %v2173
          %v2257 = vadd.f32 %v1993, %v2201
          %v2258 = vadd.f32 %v1994, %v2177
          %v2259 = vadd.f32 %v1995, %v2202
          %v2260 = vadd.f32 %v1996, %v2181
          %v2261 = vadd.f32 %v1997, %v2203
          %v2262 = vadd.f32 %v1998, %v2185
          %v2263 = vadd.f32 %v1999, %v2204
          %v2264 = vadd.f32 %v2000, %v2189
          %s2265 = sadd.s32 %s566, 8
          %s2266 = sld [smem:[#allocation3 + %s2265]]
          %v2267 = vstv %s2266
          %v2268 = vmul.f32 %v2267, %v1809
          %v2269 = vmul.f32 %v2267, %v1810
          %v2270 = vmul.f32 %v2267, %v1061
          %v2271 = vmul.f32 %v2267, %v1062
          %v2272 = vmul.f32 %v2267, %v1063
          %v2273 = vmul.f32 %v2267, %v1064
          %v2274 = vmul.f32 %v2267, %v1065
          %v2275 = vmul.f32 %v2267, %v1066
          %v2276 = vmul.f32 %v2267, %v1067
          %v2277 = vmul.f32 %v2267, %v1068
          %v2278 = vmul.f32 %v2267, %v1069
          %v2279 = vmul.f32 %v2267, %v1070
          %v2280 = vmul.f32 %v2267, %v1071
          %v2281 = vmul.f32 %v2267, %v1072
          %v2282 = vmul.f32 %v2267, %v1073
          %v2283 = vmul.f32 %v2267, %v1074
          %v2284 = vmul.f32 %v2267, %v1075
          %v2285 = vmul.f32 %v2267, %v1076
          %v2286 = vmul.f32 %v2267, %v1077
          %v2287 = vmul.f32 %v2267, %v1078
          %v2288 = vmul.f32 %v2267, %v1079
          %v2289 = vmul.f32 %v2267, %v1080
          %v2290 = vmul.f32 %v2267, %v1081
          %v2291 = vmul.f32 %v2267, %v1082
          %v2292 = vmul.f32 %v2267, %v1083
          %v2293 = vmul.f32 %v2267, %v1084
          %v2294 = vmul.f32 %v2267, %v1085
          %v2295 = vmul.f32 %v2267, %v1086
          %v2296 = vmul.f32 %v2267, %v1087
          %v2297 = vmul.f32 %v2267, %v1088
          %v2298 = vmul.f32 %v2267, %v1811
          %v2299 = vmul.f32 %v2267, %v1812
          %v2332 = vrot.slane %v2268, 2
          %v2333 = vrot.slane %v2270, 2
          %v2334 = vsel %vm1878, %v2332, %v2333
          %v2335 = vrot.slane %v2269, 2
          %v2336 = vrot.slane %v2271, 2
          %v2337 = vsel %vm1878, %v2335, %v2336
          %v2338 = vrot.slane %v2272, 2
          %v2339 = vsel %vm1878, %v2333, %v2338
          %v2340 = vrot.slane %v2273, 2
          %v2341 = vsel %vm1878, %v2336, %v2340
          %v2342 = vrot.slane %v2274, 2
          %v2343 = vsel %vm1878, %v2338, %v2342
          %v2344 = vrot.slane %v2275, 2
          %v2345 = vsel %vm1878, %v2340, %v2344
          %v2346 = vrot.slane %v2276, 2
          %v2347 = vsel %vm1878, %v2342, %v2346
          %v2348 = vrot.slane %v2277, 2
          %v2349 = vsel %vm1878, %v2344, %v2348
          %v2350 = vrot.slane %v2278, 2
          %v2351 = vsel %vm1878, %v2346, %v2350
          %v2352 = vrot.slane %v2279, 2
          %v2353 = vsel %vm1878, %v2348, %v2352
          %v2354 = vrot.slane %v2280, 2
          %v2355 = vsel %vm1878, %v2350, %v2354
          %v2356 = vrot.slane %v2281, 2
          %v2357 = vsel %vm1878, %v2352, %v2356
          %v2358 = vrot.slane %v2282, 2
          %v2359 = vsel %vm1878, %v2354, %v2358
          %v2360 = vrot.slane %v2283, 2
          %v2361 = vsel %vm1878, %v2356, %v2360
          %v2362 = vrot.slane %v2284, 2
          %v2363 = vsel %vm1878, %v2358, %v2362
          %v2364 = vrot.slane %v2285, 2
          %v2365 = vsel %vm1878, %v2360, %v2364
          %v2366 = vrot.slane %v2286, 2
          %v2367 = vsel %vm1878, %v2362, %v2366
          %v2368 = vrot.slane %v2287, 2
          %v2369 = vsel %vm1878, %v2364, %v2368
          %v2370 = vrot.slane %v2288, 2
          %v2371 = vsel %vm1878, %v2366, %v2370
          %v2372 = vrot.slane %v2289, 2
          %v2373 = vsel %vm1878, %v2368, %v2372
          %v2374 = vrot.slane %v2290, 2
          %v2375 = vsel %vm1878, %v2370, %v2374
          %v2376 = vrot.slane %v2291, 2
          %v2377 = vsel %vm1878, %v2372, %v2376
          %v2378 = vrot.slane %v2292, 2
          %v2379 = vsel %vm1878, %v2374, %v2378
          %v2380 = vrot.slane %v2293, 2
          %v2381 = vsel %vm1878, %v2376, %v2380
          %v2382 = vrot.slane %v2294, 2
          %v2383 = vsel %vm1878, %v2378, %v2382
          %v2384 = vrot.slane %v2295, 2
          %v2385 = vsel %vm1878, %v2380, %v2384
          %v2386 = vrot.slane %v2296, 2
          %v2387 = vsel %vm1878, %v2382, %v2386
          %v2388 = vrot.slane %v2297, 2
          %v2389 = vsel %vm1878, %v2384, %v2388
          %v2390 = vrot.slane %v2298, 2
          %v2391 = vsel %vm1878, %v2386, %v2390
          %v2392 = vrot.slane %v2299, 2
          %v2393 = vsel %vm1878, %v2388, %v2392
          %2394 = vrot.lane.b32.xlu0 %v2334, 126
          %v2395 = vpop.permute.xlu0 %2394
          %2396 = vrot.lane.b32.xlu0 %v2337, 126
          %v2397 = vpop.permute.xlu0 %2396
          %2398 = vrot.lane.b32.xlu0 %v2339, 126
          %v2399 = vpop.permute.xlu0 %2398
          %2400 = vrot.lane.b32.xlu0 %v2341, 126
          %v2401 = vpop.permute.xlu0 %2400
          %2402 = vrot.lane.b32.xlu0 %v2343, 126
          %v2403 = vpop.permute.xlu0 %2402
          %2404 = vrot.lane.b32.xlu0 %v2345, 126
          %v2405 = vpop.permute.xlu0 %2404
          %2406 = vrot.lane.b32.xlu0 %v2347, 126
          %v2407 = vpop.permute.xlu0 %2406
          %2408 = vrot.lane.b32.xlu0 %v2349, 126
          %v2409 = vpop.permute.xlu0 %2408
          %2410 = vrot.lane.b32.xlu0 %v2351, 126
          %v2411 = vpop.permute.xlu0 %2410
          %2412 = vrot.lane.b32.xlu0 %v2353, 126
          %v2413 = vpop.permute.xlu0 %2412
          %2414 = vrot.lane.b32.xlu0 %v2355, 126
          %v2415 = vpop.permute.xlu0 %2414
          %2416 = vrot.lane.b32.xlu0 %v2357, 126
          %v2417 = vpop.permute.xlu0 %2416
          %2418 = vrot.lane.b32.xlu0 %v2359, 126
          %v2419 = vpop.permute.xlu0 %2418
          %2420 = vrot.lane.b32.xlu0 %v2361, 126
          %v2421 = vpop.permute.xlu0 %2420
          %2422 = vrot.lane.b32.xlu0 %v2363, 126
          %v2423 = vpop.permute.xlu0 %2422
          %2424 = vrot.lane.b32.xlu0 %v2365, 126
          %v2425 = vpop.permute.xlu0 %2424
          %2426 = vrot.lane.b32.xlu0 %v2367, 126
          %v2427 = vpop.permute.xlu0 %2426
          %2428 = vrot.lane.b32.xlu0 %v2369, 126
          %v2429 = vpop.permute.xlu0 %2428
          %2430 = vrot.lane.b32.xlu0 %v2371, 126
          %v2431 = vpop.permute.xlu0 %2430
          %2432 = vrot.lane.b32.xlu0 %v2373, 126
          %v2433 = vpop.permute.xlu0 %2432
          %2434 = vrot.lane.b32.xlu0 %v2375, 126
          %v2435 = vpop.permute.xlu0 %2434
          %2436 = vrot.lane.b32.xlu0 %v2377, 126
          %v2437 = vpop.permute.xlu0 %2436
          %2438 = vrot.lane.b32.xlu0 %v2379, 126
          %v2439 = vpop.permute.xlu0 %2438
          %2440 = vrot.lane.b32.xlu0 %v2381, 126
          %v2441 = vpop.permute.xlu0 %2440
          %2442 = vrot.lane.b32.xlu0 %v2383, 126
          %v2443 = vpop.permute.xlu0 %2442
          %2444 = vrot.lane.b32.xlu0 %v2385, 126
          %v2445 = vpop.permute.xlu0 %2444
          %2446 = vrot.lane.b32.xlu0 %v2387, 126
          %v2447 = vpop.permute.xlu0 %2446
          %2448 = vrot.lane.b32.xlu0 %v2389, 126
          %v2449 = vpop.permute.xlu0 %2448
          %2450 = vrot.lane.b32.xlu0 %v2391, 126
          %v2451 = vpop.permute.xlu0 %2450
          %2452 = vrot.lane.b32.xlu0 %v2393, 126
          %v2453 = vpop.permute.xlu0 %2452
          %v2454 = vsel %vm981, %v2395, %v2397
          %v2455 = vsel %vm981, %v2399, %v2401
          %v2456 = vsel %vm981, %v2403, %v2405
          %v2457 = vsel %vm981, %v2407, %v2409
          %v2458 = vsel %vm981, %v2411, %v2413
          %v2459 = vsel %vm981, %v2415, %v2417
          %v2460 = vsel %vm981, %v2419, %v2421
          %v2461 = vsel %vm981, %v2423, %v2425
          %v2462 = vsel %vm981, %v2427, %v2429
          %v2463 = vsel %vm981, %v2431, %v2433
          %v2464 = vsel %vm981, %v2435, %v2437
          %v2465 = vsel %vm981, %v2439, %v2441
          %v2466 = vsel %vm981, %v2443, %v2445
          %v2467 = vsel %vm981, %v2447, %v2449
          %v2468 = vsel %vm981, %v2451, %v2453
          %v2499 = vadd.f32 %v2235, %v2454
          %v2500 = vadd.f32 %v2236, %v2397
          %v2501 = vadd.f32 %v2237, %v2455
          %v2502 = vadd.f32 %v2238, %v2401
          %v2503 = vadd.f32 %v2239, %v2456
          %v2504 = vadd.f32 %v2240, %v2405
          %v2505 = vadd.f32 %v2241, %v2457
          %v2506 = vadd.f32 %v2242, %v2409
          %v2507 = vadd.f32 %v2243, %v2458
          %v2508 = vadd.f32 %v2244, %v2413
          %v2509 = vadd.f32 %v2245, %v2459
          %v2510 = vadd.f32 %v2246, %v2417
          %v2511 = vadd.f32 %v2247, %v2460
          %v2512 = vadd.f32 %v2248, %v2421
          %v2513 = vadd.f32 %v2249, %v2461
          %v2514 = vadd.f32 %v2250, %v2425
          %v2515 = vadd.f32 %v2251, %v2462
          %v2516 = vadd.f32 %v2252, %v2429
          %v2517 = vadd.f32 %v2253, %v2463
          %v2518 = vadd.f32 %v2254, %v2433
          %v2519 = vadd.f32 %v2255, %v2464
          %v2520 = vadd.f32 %v2256, %v2437
          %v2521 = vadd.f32 %v2257, %v2465
          %v2522 = vadd.f32 %v2258, %v2441
          %v2523 = vadd.f32 %v2259, %v2466
          %v2524 = vadd.f32 %v2260, %v2445
          %v2525 = vadd.f32 %v2261, %v2467
          %v2526 = vadd.f32 %v2262, %v2449
          %v2527 = vadd.f32 %v2263, %v2468
          %v2528 = vadd.f32 %v2264, %v2453
          %s2529 = sld [smem:[#allocation6 + %s561]]
          %v2530 = vstv %s2529
          %v2531 = vadd.f32 %v2499, %v2530
          %v2532 = vadd.f32 %v2500, %v2530
          %v2533 = vadd.f32 %v2501, %v2530
          %v2534 = vadd.f32 %v2502, %v2530
          %v2535 = vadd.f32 %v2503, %v2530
          %v2536 = vadd.f32 %v2504, %v2530
          %v2537 = vadd.f32 %v2505, %v2530
          %v2538 = vadd.f32 %v2506, %v2530
          %v2539 = vadd.f32 %v2507, %v2530
          %v2540 = vadd.f32 %v2508, %v2530
          %v2541 = vadd.f32 %v2509, %v2530
          %v2542 = vadd.f32 %v2510, %v2530
          %v2543 = vadd.f32 %v2511, %v2530
          %v2544 = vadd.f32 %v2512, %v2530
          %v2545 = vadd.f32 %v2513, %v2530
          %v2546 = vadd.f32 %v2514, %v2530
          %v2547 = vadd.f32 %v2515, %v2530
          %v2548 = vadd.f32 %v2516, %v2530
          %v2549 = vadd.f32 %v2517, %v2530
          %v2550 = vadd.f32 %v2518, %v2530
          %v2551 = vadd.f32 %v2519, %v2530
          %v2552 = vadd.f32 %v2520, %v2530
          %v2553 = vadd.f32 %v2521, %v2530
          %v2554 = vadd.f32 %v2522, %v2530
          %v2555 = vadd.f32 %v2523, %v2530
          %v2556 = vadd.f32 %v2524, %v2530
          %v2557 = vadd.f32 %v2525, %v2530
          %v2558 = vadd.f32 %v2526, %v2530
          %v2559 = vadd.f32 %v2527, %v2530
          %v2560 = vadd.f32 %v2528, %v2530
          %v2561 = vmax.f32 %v2531, 0.0
          %v2562 = vmax.f32 %v2532, 0.0
          %v2563 = vmax.f32 %v2533, 0.0
          %v2564 = vmax.f32 %v2534, 0.0
          %v2565 = vmax.f32 %v2535, 0.0
          %v2566 = vmax.f32 %v2536, 0.0
          %v2567 = vmax.f32 %v2537, 0.0
          %v2568 = vmax.f32 %v2538, 0.0
          %v2569 = vmax.f32 %v2539, 0.0
          %v2570 = vmax.f32 %v2540, 0.0
          %v2571 = vmax.f32 %v2541, 0.0
          %v2572 = vmax.f32 %v2542, 0.0
          %v2573 = vmax.f32 %v2543, 0.0
          %v2574 = vmax.f32 %v2544, 0.0
          %v2575 = vmax.f32 %v2545, 0.0
          %v2576 = vmax.f32 %v2546, 0.0
          %v2577 = vmax.f32 %v2547, 0.0
          %v2578 = vmax.f32 %v2548, 0.0
          %v2579 = vmax.f32 %v2549, 0.0
          %v2580 = vmax.f32 %v2550, 0.0
          %v2581 = vmax.f32 %v2551, 0.0
          %v2582 = vmax.f32 %v2552, 0.0
          %v2583 = vmax.f32 %v2553, 0.0
          %v2584 = vmax.f32 %v2554, 0.0
          %v2585 = vmax.f32 %v2555, 0.0
          %v2586 = vmax.f32 %v2556, 0.0
          %v2587 = vmax.f32 %v2557, 0.0
          %v2588 = vmax.f32 %v2558, 0.0
          %v2589 = vmax.f32 %v2559, 0.0
          %v2590 = vmax.f32 %v2560, 0.0
          %vm2591 = vcmask 982016
          %v2593 = vsel %vm2591, %v309, 0
          %v2596 = vsel %vm2591, %v310, 0
          %v2599 = vsel %vm2591, %v311, 0
          %v2602 = vsel %vm2591, %v312, 0
          %v2605 = vsel %vm2591, %v313, 0
          %v2608 = vsel %vm2591, %v314, 0
          %v2611 = vsel %vm2591, %v315, 0
          %v2614 = vsel %vm2591, %v316, 0
          %2616 = vmatprep.subr.mxu0 %v2562
          %2617 = vmatpush1.msra.mxu0 %v2561
          %2618 = vmatprep.subr.mxu0 %v2564
          %2619 = vmatpush1.msra.mxu0 %v2563
          %2620 = vmatprep.subr.mxu0 %v2566
          %2621 = vmatpush1.msra.mxu0 %v2565
          %2622 = vmatprep.subr.mxu0 %v2568
          %2623 = vmatpush1.msra.mxu0 %v2567
          %2624 = vmatprep.subr.mxu0 %v2570
          %2625 = vmatpush1.msra.mxu0 %v2569
          %2626 = vmatprep.subr.mxu0 %v2572
          %2627 = vmatpush1.msra.mxu0 %v2571
          %2628 = vmatprep.subr.mxu0 %v2574
          %2629 = vmatpush1.msra.mxu0 %v2573
          %2630 = vmatprep.subr.mxu0 %v2576
          %2631 = vmatpush1.msra.mxu0 %v2575
          %2632 = vmatprep.subr.mxu0 %v2578
          %2633 = vmatpush1.msra.mxu0 %v2577
          %2634 = vmatprep.subr.mxu0 %v2580
          %2635 = vmatpush1.msra.mxu0 %v2579
          %2636 = vmatprep.subr.mxu0 %v2582
          %2637 = vmatpush1.msra.mxu0 %v2581
          %2638 = vmatprep.subr.mxu0 %v2584
          %2639 = vmatpush1.msra.mxu0 %v2583
          %2640 = vmatprep.subr.mxu0 %v2586
          %2641 = vmatpush1.msra.mxu0 %v2585
          %2642 = vmatprep.subr.mxu0 %v2588
          %2643 = vmatpush1.msra.mxu0 %v2587
          %2644 = vmatprep.subr.mxu0 %v2590
          %2645 = vmatpush1.msra.mxu0 %v2589
          %2646 = vmatprep.subr.mxu0 0.0
          %2647 = vmatpush1.msra.mxu0 0.0
          %2648 = vmatprep.subr.mxu0 0.0
          %2649 = vmatpush1.msra.mxu0 0.0
          %2650 = vmatprep.subr.mxu0 0.0
          %2651 = vmatpush1.msra.mxu0 0.0
          %2652 = vmatprep.subr.mxu0 0.0
          %2653 = vmatpush1.msra.mxu0 0.0
          %2654 = vmatprep.subr.mxu0 0.0
          %2655 = vmatpush1.msra.mxu0 0.0
          %2656 = vmatprep.subr.mxu0 0.0
          %2657 = vmatpush1.msra.mxu0 0.0
          %2658 = vmatprep.subr.mxu0 0.0
          %2659 = vmatpush1.msra.mxu0 0.0
          %2660 = vmatprep.subr.mxu0 0.0
          %2661 = vmatpush1.msra.mxu0 0.0
          %2662 = vmatprep.subr.mxu0 0.0
          %2663 = vmatpush1.msra.mxu0 0.0
          %2664 = vmatprep.subr.mxu0 0.0
          %2665 = vmatpush1.msra.mxu0 0.0
          %2666 = vmatprep.subr.mxu0 0.0
          %2667 = vmatpush1.msra.mxu0 0.0
          %2668 = vmatprep.subr.mxu0 0.0
          %2669 = vmatpush1.msra.mxu0 0.0
          %2670 = vmatprep.subr.mxu0 0.0
          %2671 = vmatpush1.msra.mxu0 0.0
          %2672 = vmatprep.subr.mxu0 0.0
          %2673 = vmatpush1.msra.mxu0 0.0
          %2674 = vmatprep.subr.mxu0 0.0
          %2675 = vmatpush1.msra.mxu0 0.0
          %2676 = vmatprep.subr.mxu0 0.0
          %2677 = vmatpush1.msra.mxu0 0.0
          %2678 = vmatprep.subr.mxu0 0.0
          %2679 = vmatpush1.msra.mxu0 0.0
          %2680 = vmatprep.mubr.f32.mxu0 0.0
          %2681 = vmatmul.mubr.f32.gmra.mrb[0].mxu0 %v2593
          %v2682 = vpop.f32.mrb[0].mxu0
          %v2683 = vadd.f32 0.0, %v2682
          %v2684 = vpop.f32.mrb[0].mxu0
          %v2685 = vadd.f32 0.0, %v2684
          %2686 = vmatprep.mubr.f32.mxu0 0.0
          %2687 = vmatmul.mubr.f32.gmra.mrb[0].mxu0 %v2596
          %v2688 = vpop.f32.mrb[0].mxu0
          %v2689 = vadd.f32 0.0, %v2688
          %v2690 = vpop.f32.mrb[0].mxu0
          %v2691 = vadd.f32 0.0, %v2690
          %2692 = vmatprep.mubr.f32.mxu0 0.0
          %2693 = vmatmul.mubr.f32.gmra.mrb[0].mxu0 %v2599
          %v2694 = vpop.f32.mrb[0].mxu0
          %v2695 = vadd.f32 0.0, %v2694
          %v2696 = vpop.f32.mrb[0].mxu0
          %v2697 = vadd.f32 0.0, %v2696
          %2698 = vmatprep.mubr.f32.mxu0 0.0
          %2699 = vmatmul.mubr.f32.gmra.mrb[0].mxu0 %v2602
          %v2700 = vpop.f32.mrb[0].mxu0
          %v2701 = vadd.f32 0.0, %v2700
          %v2702 = vpop.f32.mrb[0].mxu0
          %v2703 = vadd.f32 0.0, %v2702
          %2704 = vmatprep.mubr.f32.mxu0 0.0
          %2705 = vmatmul.mubr.f32.gmra.mrb[0].mxu0 %v2605
          %v2706 = vpop.f32.mrb[0].mxu0
          %v2707 = vadd.f32 0.0, %v2706
          %v2708 = vpop.f32.mrb[0].mxu0
          %v2709 = vadd.f32 0.0, %v2708
          %2710 = vmatprep.mubr.f32.mxu0 0.0
          %2711 = vmatmul.mubr.f32.gmra.mrb[0].mxu0 %v2608
          %v2712 = vpop.f32.mrb[0].mxu0
          %v2713 = vadd.f32 0.0, %v2712
          %v2714 = vpop.f32.mrb[0].mxu0
          %v2715 = vadd.f32 0.0, %v2714
          %2716 = vmatprep.mubr.f32.mxu0 0.0
          %2717 = vmatmul.mubr.f32.gmra.mrb[0].mxu0 %v2611
          %v2718 = vpop.f32.mrb[0].mxu0
          %v2719 = vadd.f32 0.0, %v2718
          %v2720 = vpop.f32.mrb[0].mxu0
          %v2721 = vadd.f32 0.0, %v2720
          %2722 = vmatprep.mubr.f32.mxu0 0.0
          %2723 = vmatmul.mubr.f32.gmra.mrb[0].mxu0 %v2614
          %v2724 = vpop.f32.mrb[0].mxu0
          %v2725 = vadd.f32 0.0, %v2724
          %v2726 = vpop.f32.mrb[0].mxu0
          %v2727 = vadd.f32 0.0, %v2726
          %2728 = vdwg.mxu0
          %v2730 = vsel %vm2591, %v341, 0
          %v2733 = vsel %vm2591, %v342, 0
          %v2736 = vsel %vm2591, %v343, 0
          %v2739 = vsel %vm2591, %v344, 0
          %v2742 = vsel %vm2591, %v345, 0
          %v2745 = vsel %vm2591, %v346, 0
          %v2748 = vsel %vm2591, %v347, 0
          %v2751 = vsel %vm2591, %v348, 0
          %2753 = vmatprep.subr.mxu0 %v2562
          %2754 = vmatpush1.msra.mxu0 %v2561
          %2755 = vmatprep.subr.mxu0 %v2564
          %2756 = vmatpush1.msra.mxu0 %v2563
          %2757 = vmatprep.subr.mxu0 %v2566
          %2758 = vmatpush1.msra.mxu0 %v2565
          %2759 = vmatprep.subr.mxu0 %v2568
          %2760 = vmatpush1.msra.mxu0 %v2567
          %2761 = vmatprep.subr.mxu0 %v2570
          %2762 = vmatpush1.msra.mxu0 %v2569
          %2763 = vmatprep.subr.mxu0 %v2572
          %2764 = vmatpush1.msra.mxu0 %v2571
          %2765 = vmatprep.subr.mxu0 %v2574
          %2766 = vmatpush1.msra.mxu0 %v2573
          %2767 = vmatprep.subr.mxu0 %v2576
          %2768 = vmatpush1.msra.mxu0 %v2575
          %2769 = vmatprep.subr.mxu0 %v2578
          %2770 = vmatpush1.msra.mxu0 %v2577
          %2771 = vmatprep.subr.mxu0 %v2580
          %2772 = vmatpush1.msra.mxu0 %v2579
          %2773 = vmatprep.subr.mxu0 %v2582
          %2774 = vmatpush1.msra.mxu0 %v2581
          %2775 = vmatprep.subr.mxu0 %v2584
          %2776 = vmatpush1.msra.mxu0 %v2583
          %2777 = vmatprep.subr.mxu0 %v2586
          %2778 = vmatpush1.msra.mxu0 %v2585
          %2779 = vmatprep.subr.mxu0 %v2588
          %2780 = vmatpush1.msra.mxu0 %v2587
          %2781 = vmatprep.subr.mxu0 %v2590
          %2782 = vmatpush1.msra.mxu0 %v2589
          %2783 = vmatprep.subr.mxu0 0.0
          %2784 = vmatpush1.msra.mxu0 0.0
          %2785 = vmatprep.subr.mxu0 0.0
          %2786 = vmatpush1.msra.mxu0 0.0
          %2787 = vmatprep.subr.mxu0 0.0
          %2788 = vmatpush1.msra.mxu0 0.0
          %2789 = vmatprep.subr.mxu0 0.0
          %2790 = vmatpush1.msra.mxu0 0.0
          %2791 = vmatprep.subr.mxu0 0.0
          %2792 = vmatpush1.msra.mxu0 0.0
          %2793 = vmatprep.subr.mxu0 0.0
          %2794 = vmatpush1.msra.mxu0 0.0
          %2795 = vmatprep.subr.mxu0 0.0
          %2796 = vmatpush1.msra.mxu0 0.0
          %2797 = vmatprep.subr.mxu0 0.0
          %2798 = vmatpush1.msra.mxu0 0.0
          %2799 = vmatprep.subr.mxu0 0.0
          %2800 = vmatpush1.msra.mxu0 0.0
          %2801 = vmatprep.subr.mxu0 0.0
          %2802 = vmatpush1.msra.mxu0 0.0
          %2803 = vmatprep.subr.mxu0 0.0
          %2804 = vmatpush1.msra.mxu0 0.0
          %2805 = vmatprep.subr.mxu0 0.0
          %2806 = vmatpush1.msra.mxu0 0.0
          %2807 = vmatprep.subr.mxu0 0.0
          %2808 = vmatpush1.msra.mxu0 0.0
          %2809 = vmatprep.subr.mxu0 0.0
          %2810 = vmatpush1.msra.mxu0 0.0
          %2811 = vmatprep.subr.mxu0 0.0
          %2812 = vmatpush1.msra.mxu0 0.0
          %2813 = vmatprep.subr.mxu0 0.0
          %2814 = vmatpush1.msra.mxu0 0.0
          %2815 = vmatprep.subr.mxu0 0.0
          %2816 = vmatpush1.msra.mxu0 0.0
          %2817 = vmatprep.mubr.f32.mxu0 0.0
          %2818 = vmatmul.mubr.f32.gmra.mrb[0].mxu0 %v2730
          %v2819 = vpop.f32.mrb[0].mxu0
          %v2820 = vadd.f32 0.0, %v2819
          %v2821 = vpop.f32.mrb[0].mxu0
          %v2822 = vadd.f32 0.0, %v2821
          %2823 = vmatprep.mubr.f32.mxu0 0.0
          %2824 = vmatmul.mubr.f32.gmra.mrb[0].mxu0 %v2733
          %v2825 = vpop.f32.mrb[0].mxu0
          %v2826 = vadd.f32 0.0, %v2825
          %v2827 = vpop.f32.mrb[0].mxu0
          %v2828 = vadd.f32 0.0, %v2827
          %2829 = vmatprep.mubr.f32.mxu0 0.0
          %2830 = vmatmul.mubr.f32.gmra.mrb[0].mxu0 %v2736
          %v2831 = vpop.f32.mrb[0].mxu0
          %v2832 = vadd.f32 0.0, %v2831
          %v2833 = vpop.f32.mrb[0].mxu0
          %v2834 = vadd.f32 0.0, %v2833
          %2835 = vmatprep.mubr.f32.mxu0 0.0
          %2836 = vmatmul.mubr.f32.gmra.mrb[0].mxu0 %v2739
          %v2837 = vpop.f32.mrb[0].mxu0
          %v2838 = vadd.f32 0.0, %v2837
          %v2839 = vpop.f32.mrb[0].mxu0
          %v2840 = vadd.f32 0.0, %v2839
          %2841 = vmatprep.mubr.f32.mxu0 0.0
          %2842 = vmatmul.mubr.f32.gmra.mrb[0].mxu0 %v2742
          %v2843 = vpop.f32.mrb[0].mxu0
          %v2844 = vadd.f32 0.0, %v2843
          %v2845 = vpop.f32.mrb[0].mxu0
          %v2846 = vadd.f32 0.0, %v2845
          %2847 = vmatprep.mubr.f32.mxu0 0.0
          %2848 = vmatmul.mubr.f32.gmra.mrb[0].mxu0 %v2745
          %v2849 = vpop.f32.mrb[0].mxu0
          %v2850 = vadd.f32 0.0, %v2849
          %v2851 = vpop.f32.mrb[0].mxu0
          %v2852 = vadd.f32 0.0, %v2851
          %2853 = vmatprep.mubr.f32.mxu0 0.0
          %2854 = vmatmul.mubr.f32.gmra.mrb[0].mxu0 %v2748
          %v2855 = vpop.f32.mrb[0].mxu0
          %v2856 = vadd.f32 0.0, %v2855
          %v2857 = vpop.f32.mrb[0].mxu0
          %v2858 = vadd.f32 0.0, %v2857
          %2859 = vmatprep.mubr.f32.mxu0 0.0
          %2860 = vmatmul.mubr.f32.gmra.mrb[0].mxu0 %v2751
          %v2861 = vpop.f32.mrb[0].mxu0
          %v2862 = vadd.f32 0.0, %v2861
          %v2863 = vpop.f32.mrb[0].mxu0
          %v2864 = vadd.f32 0.0, %v2863
          %2865 = vdwg.mxu0
          %v2866 = vmax.f32 %v2683, %v2820
          %v2867 = vmax.f32 %v2685, %v2822
          %v2868 = vmax.f32 %v2689, %v2826
          %v2869 = vmax.f32 %v2691, %v2828
          %v2870 = vmax.f32 %v2695, %v2832
          %v2871 = vmax.f32 %v2697, %v2834
          %v2872 = vmax.f32 %v2701, %v2838
          %v2873 = vmax.f32 %v2703, %v2840
          %v2874 = vmax.f32 %v2707, %v2844
          %v2875 = vmax.f32 %v2709, %v2846
          %v2876 = vmax.f32 %v2713, %v2850
          %v2877 = vmax.f32 %v2715, %v2852
          %v2878 = vmax.f32 %v2719, %v2856
          %v2879 = vmax.f32 %v2721, %v2858
          %v2880 = vmax.f32 %v2725, %v2862
          %v2881 = vmax.f32 %v2727, %v2864
          %v2883 = vsel %vm2591, %v2867, 0
          %v2886 = vsel %vm2591, %v2869, 0
          %v2889 = vsel %vm2591, %v2871, 0
          %v2892 = vsel %vm2591, %v2873, 0
          %v2895 = vsel %vm2591, %v2875, 0
          %v2898 = vsel %vm2591, %v2877, 0
          %v2901 = vsel %vm2591, %v2879, 0
          %v2904 = vsel %vm2591, %v2881, 0
          %2906 = vmatprep.subr.mxu0 0.0
          %2907 = vmatpush1.msra.mxu0 %v435
          %2908 = vmatprep.subr.mxu0 0.0
          %2909 = vmatpush1.msra.mxu0 %v436
          %2910 = vmatprep.subr.mxu0 0.0
          %2911 = vmatpush1.msra.mxu0 %v437
          %2912 = vmatprep.subr.mxu0 0.0
          %2913 = vmatpush1.msra.mxu0 %v438
          %2914 = vmatprep.subr.mxu0 0.0
          %2915 = vmatpush1.msra.mxu0 %v439
          %2916 = vmatprep.subr.mxu0 0.0
          %2917 = vmatpush1.msra.mxu0 %v440
          %2918 = vmatprep.subr.mxu0 0.0
          %2919 = vmatpush1.msra.mxu0 %v441
          %2920 = vmatprep.subr.mxu0 0.0
          %2921 = vmatpush1.msra.mxu0 %v442
          %2922 = vmatprep.subr.mxu0 0.0
          %2923 = vmatpush1.msra.mxu0 %v443
          %2924 = vmatprep.subr.mxu0 0.0
          %2925 = vmatpush1.msra.mxu0 %v444
          %2926 = vmatprep.subr.mxu0 0.0
          %2927 = vmatpush1.msra.mxu0 %v445
          %2928 = vmatprep.subr.mxu0 0.0
          %2929 = vmatpush1.msra.mxu0 %v446
          %2930 = vmatprep.subr.mxu0 0.0
          %2931 = vmatpush1.msra.mxu0 %v447
          %2932 = vmatprep.subr.mxu0 0.0
          %2933 = vmatpush1.msra.mxu0 %v448
          %2934 = vmatprep.subr.mxu0 0.0
          %2935 = vmatpush1.msra.mxu0 %v449
          %2936 = vmatprep.subr.mxu0 0.0
          %2937 = vmatpush1.msra.mxu0 %v450
          %2938 = vmatprep.subr.mxu0 0.0
          %2939 = vmatpush1.msra.mxu0 %v451
          %2940 = vmatprep.subr.mxu0 0.0
          %2941 = vmatpush1.msra.mxu0 %v452
          %2942 = vmatprep.subr.mxu0 0.0
          %2943 = vmatpush1.msra.mxu0 %v453
          %2944 = vmatprep.subr.mxu0 0.0
          %2945 = vmatpush1.msra.mxu0 %v454
          %2946 = vmatprep.subr.mxu0 0.0
          %2947 = vmatpush1.msra.mxu0 %v455
          %2948 = vmatprep.subr.mxu0 0.0
          %2949 = vmatpush1.msra.mxu0 %v456
          %2950 = vmatprep.subr.mxu0 0.0
          %2951 = vmatpush1.msra.mxu0 %v457
          %2952 = vmatprep.subr.mxu0 0.0
          %2953 = vmatpush1.msra.mxu0 %v458
          %2954 = vmatprep.subr.mxu0 0.0
          %2955 = vmatpush1.msra.mxu0 %v459
          %2956 = vmatprep.subr.mxu0 0.0
          %2957 = vmatpush1.msra.mxu0 %v460
          %2958 = vmatprep.subr.mxu0 0.0
          %2959 = vmatpush1.msra.mxu0 %v461
          %2960 = vmatprep.subr.mxu0 0.0
          %2961 = vmatpush1.msra.mxu0 %v462
          %2962 = vmatprep.subr.mxu0 0.0
          %2963 = vmatpush1.msra.mxu0 %v463
          %2964 = vmatprep.subr.mxu0 0.0
          %2965 = vmatpush1.msra.mxu0 %v464
          %2966 = vmatprep.subr.mxu0 0.0
          %2967 = vmatpush1.msra.mxu0 %v465
          %2968 = vmatprep.subr.mxu0 0.0
          %2969 = vmatpush1.msra.mxu0 0.0
          %2970 = vmatprep.mubr.f32.mxu0 %v2883
          %2971 = vmatmul.mubr.f32.gmra.mrb[0].mxu0 %v2866
          %v2972 = vpop.f32.mrb[0].mxu0
          %v2973 = vadd.f32 0.0, %v2972
          %v2974 = vpop.f32.mrb[0].mxu0
          %2975 = vmatprep.mubr.f32.mxu0 %v2886
          %2976 = vmatmul.mubr.f32.gmra.mrb[0].mxu0 %v2868
          %v2977 = vpop.f32.mrb[0].mxu0
          %v2978 = vadd.f32 0.0, %v2977
          %v2979 = vpop.f32.mrb[0].mxu0
          %2980 = vmatprep.mubr.f32.mxu0 %v2889
          %2981 = vmatmul.mubr.f32.gmra.mrb[0].mxu0 %v2870
          %v2982 = vpop.f32.mrb[0].mxu0
          %v2983 = vadd.f32 0.0, %v2982
          %v2984 = vpop.f32.mrb[0].mxu0
          %2985 = vmatprep.mubr.f32.mxu0 %v2892
          %2986 = vmatmul.mubr.f32.gmra.mrb[0].mxu0 %v2872
          %v2987 = vpop.f32.mrb[0].mxu0
          %v2988 = vadd.f32 0.0, %v2987
          %v2989 = vpop.f32.mrb[0].mxu0
          %2990 = vmatprep.mubr.f32.mxu0 %v2895
          %2991 = vmatmul.mubr.f32.gmra.mrb[0].mxu0 %v2874
          %v2992 = vpop.f32.mrb[0].mxu0
          %v2993 = vadd.f32 0.0, %v2992
          %v2994 = vpop.f32.mrb[0].mxu0
          %2995 = vmatprep.mubr.f32.mxu0 %v2898
          %2996 = vmatmul.mubr.f32.gmra.mrb[0].mxu0 %v2876
          %v2997 = vpop.f32.mrb[0].mxu0
          %v2998 = vadd.f32 0.0, %v2997
          %v2999 = vpop.f32.mrb[0].mxu0
          %3000 = vmatprep.mubr.f32.mxu0 %v2901
          %3001 = vmatmul.mubr.f32.gmra.mrb[0].mxu0 %v2878
          %v3002 = vpop.f32.mrb[0].mxu0
          %v3003 = vadd.f32 0.0, %v3002
          %v3004 = vpop.f32.mrb[0].mxu0
          %3005 = vmatprep.mubr.f32.mxu0 %v2904
          %3006 = vmatmul.mubr.f32.gmra.mrb[0].mxu0 %v2880
          %v3007 = vpop.f32.mrb[0].mxu0
          %v3008 = vadd.f32 0.0, %v3007
          %v3009 = vpop.f32.mrb[0].mxu0
          %3010 = vdwg.mxu0
          %3011 = vmatprep.subr.mxu0 0.0
          %3012 = vmatpush1.msra.mxu0 %v529
          %3013 = vmatprep.subr.mxu0 0.0
          %3014 = vmatpush1.msra.mxu0 %v530
          %3015 = vmatprep.subr.mxu0 0.0
          %3016 = vmatpush1.msra.mxu0 %v531
          %3017 = vmatprep.subr.mxu0 0.0
          %3018 = vmatpush1.msra.mxu0 %v532
          %3019 = vmatprep.subr.mxu0 0.0
          %3020 = vmatpush1.msra.mxu0 %v533
          %3021 = vmatprep.subr.mxu0 0.0
          %3022 = vmatpush1.msra.mxu0 %v534
          %3023 = vmatprep.subr.mxu0 0.0
          %3024 = vmatpush1.msra.mxu0 %v535
          %3025 = vmatprep.subr.mxu0 0.0
          %3026 = vmatpush1.msra.mxu0 %v536
          %3027 = vmatprep.subr.mxu0 0.0
          %3028 = vmatpush1.msra.mxu0 %v537
          %3029 = vmatprep.subr.mxu0 0.0
          %3030 = vmatpush1.msra.mxu0 %v538
          %3031 = vmatprep.subr.mxu0 0.0
          %3032 = vmatpush1.msra.mxu0 %v539
          %3033 = vmatprep.subr.mxu0 0.0
          %3034 = vmatpush1.msra.mxu0 %v540
          %3035 = vmatprep.subr.mxu0 0.0
          %3036 = vmatpush1.msra.mxu0 %v541
          %3037 = vmatprep.subr.mxu0 0.0
          %3038 = vmatpush1.msra.mxu0 %v542
          %3039 = vmatprep.subr.mxu0 0.0
          %3040 = vmatpush1.msra.mxu0 %v543
          %3041 = vmatprep.subr.mxu0 0.0
          %3042 = vmatpush1.msra.mxu0 %v544
          %3043 = vmatprep.subr.mxu0 0.0
          %3044 = vmatpush1.msra.mxu0 %v545
          %3045 = vmatprep.subr.mxu0 0.0
          %3046 = vmatpush1.msra.mxu0 %v546
          %3047 = vmatprep.subr.mxu0 0.0
          %3048 = vmatpush1.msra.mxu0 %v547
          %3049 = vmatprep.subr.mxu0 0.0
          %3050 = vmatpush1.msra.mxu0 %v548
          %3051 = vmatprep.subr.mxu0 0.0
          %3052 = vmatpush1.msra.mxu0 %v549
          %3053 = vmatprep.subr.mxu0 0.0
          %3054 = vmatpush1.msra.mxu0 %v550
          %3055 = vmatprep.subr.mxu0 0.0
          %3056 = vmatpush1.msra.mxu0 %v551
          %3057 = vmatprep.subr.mxu0 0.0
          %3058 = vmatpush1.msra.mxu0 %v552
          %3059 = vmatprep.subr.mxu0 0.0
          %3060 = vmatpush1.msra.mxu0 %v553
          %3061 = vmatprep.subr.mxu0 0.0
          %3062 = vmatpush1.msra.mxu0 %v554
          %3063 = vmatprep.subr.mxu0 0.0
          %3064 = vmatpush1.msra.mxu0 %v555
          %3065 = vmatprep.subr.mxu0 0.0
          %3066 = vmatpush1.msra.mxu0 %v556
          %3067 = vmatprep.subr.mxu0 0.0
          %3068 = vmatpush1.msra.mxu0 %v557
          %3069 = vmatprep.subr.mxu0 0.0
          %3070 = vmatpush1.msra.mxu0 %v558
          %3071 = vmatprep.subr.mxu0 0.0
          %3072 = vmatpush1.msra.mxu0 %v559
          %3073 = vmatprep.subr.mxu0 0.0
          %3074 = vmatpush1.msra.mxu0 0.0
          %3075 = vmatprep.mubr.f32.mxu0 %v2883
          %3076 = vmatmul.mubr.f32.gmra.mrb[0].mxu0 %v2866
          %v3077 = vpop.f32.mrb[0].mxu0
          %v3078 = vadd.f32 0.0, %v3077
          %v3079 = vpop.f32.mrb[0].mxu0
          %3080 = vmatprep.mubr.f32.mxu0 %v2886
          %3081 = vmatmul.mubr.f32.gmra.mrb[0].mxu0 %v2868
          %v3082 = vpop.f32.mrb[0].mxu0
          %v3083 = vadd.f32 0.0, %v3082
          %v3084 = vpop.f32.mrb[0].mxu0
          %3085 = vmatprep.mubr.f32.mxu0 %v2889
          %3086 = vmatmul.mubr.f32.gmra.mrb[0].mxu0 %v2870
          %v3087 = vpop.f32.mrb[0].mxu0
          %v3088 = vadd.f32 0.0, %v3087
          %v3089 = vpop.f32.mrb[0].mxu0
          %3090 = vmatprep.mubr.f32.mxu0 %v2892
          %3091 = vmatmul.mubr.f32.gmra.mrb[0].mxu0 %v2872
          %v3092 = vpop.f32.mrb[0].mxu0
          %v3093 = vadd.f32 0.0, %v3092
          %v3094 = vpop.f32.mrb[0].mxu0
          %3095 = vmatprep.mubr.f32.mxu0 %v2895
          %3096 = vmatmul.mubr.f32.gmra.mrb[0].mxu0 %v2874
          %v3097 = vpop.f32.mrb[0].mxu0
          %v3098 = vadd.f32 0.0, %v3097
          %v3099 = vpop.f32.mrb[0].mxu0
          %3100 = vmatprep.mubr.f32.mxu0 %v2898
          %3101 = vmatmul.mubr.f32.gmra.mrb[0].mxu0 %v2876
          %v3102 = vpop.f32.mrb[0].mxu0
          %v3103 = vadd.f32 0.0, %v3102
          %v3104 = vpop.f32.mrb[0].mxu0
          %3105 = vmatprep.mubr.f32.mxu0 %v2901
          %3106 = vmatmul.mubr.f32.gmra.mrb[0].mxu0 %v2878
          %v3107 = vpop.f32.mrb[0].mxu0
          %v3108 = vadd.f32 0.0, %v3107
          %v3109 = vpop.f32.mrb[0].mxu0
          %3110 = vmatprep.mubr.f32.mxu0 %v2904
          %3111 = vmatmul.mubr.f32.gmra.mrb[0].mxu0 %v2880
          %v3112 = vpop.f32.mrb[0].mxu0
          %v3113 = vadd.f32 0.0, %v3112
          %v3114 = vpop.f32.mrb[0].mxu0
          %3115 = vdwg.mxu0
          %v3116 = vmax.f32 %v2973, %v3078
          %v3117 = vmax.f32 %v2978, %v3083
          %v3118 = vmax.f32 %v2983, %v3088
          %v3119 = vmax.f32 %v2988, %v3093
          %v3120 = vmax.f32 %v2993, %v3098
          %v3121 = vmax.f32 %v2998, %v3103
          %v3122 = vmax.f32 %v3003, %v3108
          %v3123 = vmax.f32 %v3008, %v3113
          %s3124 = smul.u32 %s561, 64
          %s3125 = scalar_lea.vmem [#allocation2], %s3124
          %vm3126 = vcmask 1014784
          %3127 = vst.msk [vmem:[%s3125] sm:$0xff] %vm3126, %v3116
          %3128 = vst.msk [vmem:[%s3125 + $0x8] sm:$0xff] %vm3126, %v3117
          %3129 = vst.msk [vmem:[%s3125 + $0x10] sm:$0xff] %vm3126, %v3118
          %3130 = vst.msk [vmem:[%s3125 + $0x18] sm:$0xff] %vm3126, %v3119
          %3131 = vst.msk [vmem:[%s3125 + $0x20] sm:$0xff] %vm3126, %v3120
          %3132 = vst.msk [vmem:[%s3125 + $0x28] sm:$0xff] %vm3126, %v3121
          %3133 = vst.msk [vmem:[%s3125 + $0x30] sm:$0xff] %vm3126, %v3122
          %vm3134 = vcmask 1010688
          %3135 = vst.msk [vmem:[%s3125 + $0x38] sm:$0xf] %vm3134, %v3123
        $region61: #{accent_cnn_forward.2} parent=39 // loop_footer
          %s565 = sadd.s32 1, %s561
        $region62: #{accent_cnn_forward.2} parent=39 // loop_footer_branch
          %560 = sbr.rel target = $region58
        $region63: #{accent_cnn_forward.2} parent=39 // loop_exit
          _
        loop: start=0, step=1, limit=16
        $region64: #{accent_cnn_forward.2} parent=39 // loop_pre_header
          _
        $region65: #{accent_cnn_forward.2} parent=39 // loop_header
          %s3137 = sphi 0, %s3141
          %p3138 = scmp.ge.s32.totalorder %s3137, 16
        $region66: #{accent_cnn_forward.2} parent=39 // loop_header_branch
          %3140 = sbr.rel (%p3138) target = $region70
        $region67: #{accent_cnn_forward.2} parent=39 // loop_body
          %s3142 = smul.u32 %s3137, 72
          %s3143 = sld [smem:[#allocation7 + %s3142]]
          %v3144 = vld [vmem:[#allocation2] sm:$0xff]
          %v3145 = vld [vmem:[#allocation2 + $0x8] sm:$0xff]
          %v3146 = vld [vmem:[#allocation2 + $0x10] sm:$0xff]
          %v3147 = vld [vmem:[#allocation2 + $0x18] sm:$0xff]
          %v3148 = vld [vmem:[#allocation2 + $0x20] sm:$0xff]
          %v3149 = vld [vmem:[#allocation2 + $0x28] sm:$0xff]
          %v3150 = vld [vmem:[#allocation2 + $0x30] sm:$0xff]
          %v3151 = vld [vmem:[#allocation2 + $0x38] sm:$0x3]
          %v3152 = vstv %s3143
          %v3153 = vmul.f32 %v3152, %v3144
          %v3154 = vmul.f32 %v3152, %v3145
          %v3155 = vmul.f32 %v3152, %v3146
          %v3156 = vmul.f32 %v3152, %v3147
          %v3157 = vmul.f32 %v3152, %v3148
          %v3158 = vmul.f32 %v3152, %v3149
          %v3159 = vmul.f32 %v3152, %v3150
          %v3160 = vmul.f32 %v3152, %v3151
          %v3161 = vadd.f32 %v3153, 0.0
          %v3162 = vadd.f32 %v3154, 0.0
          %v3163 = vadd.f32 %v3155, 0.0
          %v3164 = vadd.f32 %v3156, 0.0
          %v3165 = vadd.f32 %v3157, 0.0
          %v3166 = vadd.f32 %v3158, 0.0
          %v3167 = vadd.f32 %v3159, 0.0
          %v3168 = vadd.f32 %v3160, 0.0
          %s3169 = sadd.s32 %s3142, 1
          %s3170 = sld [smem:[#allocation7 + %s3169]]
          %v3171 = vstv %s3170
          %v3172 = vmul.f32 %v3171, %v3144
          %v3173 = vmul.f32 %v3171, %v3145
          %v3174 = vmul.f32 %v3171, %v3146
          %v3175 = vmul.f32 %v3171, %v3147
          %v3176 = vmul.f32 %v3171, %v3148
          %v3177 = vmul.f32 %v3171, %v3149
          %v3178 = vmul.f32 %v3171, %v3150
          %v3179 = vmul.f32 %v3171, %v3151
          %3188 = vrot.lane.b32.xlu0 %v3172, 127
          %v3189 = vpop.permute.xlu0 %3188
          %3190 = vrot.lane.b32.xlu0 %v3173, 127
          %v3191 = vpop.permute.xlu0 %3190
          %3192 = vrot.lane.b32.xlu0 %v3174, 127
          %v3193 = vpop.permute.xlu0 %3192
          %3194 = vrot.lane.b32.xlu0 %v3175, 127
          %v3195 = vpop.permute.xlu0 %3194
          %3196 = vrot.lane.b32.xlu0 %v3176, 127
          %v3197 = vpop.permute.xlu0 %3196
          %3198 = vrot.lane.b32.xlu0 %v3177, 127
          %v3199 = vpop.permute.xlu0 %3198
          %3200 = vrot.lane.b32.xlu0 %v3178, 127
          %v3201 = vpop.permute.xlu0 %3200
          %3202 = vrot.lane.b32.xlu0 %v3179, 127
          %v3203 = vpop.permute.xlu0 %3202
          %v3212 = vadd.f32 %v3161, %v3189
          %v3213 = vadd.f32 %v3162, %v3191
          %v3214 = vadd.f32 %v3163, %v3193
          %v3215 = vadd.f32 %v3164, %v3195
          %v3216 = vadd.f32 %v3165, %v3197
          %v3217 = vadd.f32 %v3166, %v3199
          %v3218 = vadd.f32 %v3167, %v3201
          %v3219 = vadd.f32 %v3168, %v3203
          %s3220 = sadd.s32 %s3142, 2
          %s3221 = sld [smem:[#allocation7 + %s3220]]
          %v3222 = vstv %s3221
          %v3223 = vmul.f32 %v3222, %v3144
          %v3224 = vmul.f32 %v3222, %v3145
          %v3225 = vmul.f32 %v3222, %v3146
          %v3226 = vmul.f32 %v3222, %v3147
          %v3227 = vmul.f32 %v3222, %v3148
          %v3228 = vmul.f32 %v3222, %v3149
          %v3229 = vmul.f32 %v3222, %v3150
          %v3230 = vmul.f32 %v3222, %v3151
          %3239 = vrot.lane.b32.xlu0 %v3223, 126
          %v3240 = vpop.permute.xlu0 %3239
          %3241 = vrot.lane.b32.xlu0 %v3224, 126
          %v3242 = vpop.permute.xlu0 %3241
          %3243 = vrot.lane.b32.xlu0 %v3225, 126
          %v3244 = vpop.permute.xlu0 %3243
          %3245 = vrot.lane.b32.xlu0 %v3226, 126
          %v3246 = vpop.permute.xlu0 %3245
          %3247 = vrot.lane.b32.xlu0 %v3227, 126
          %v3248 = vpop.permute.xlu0 %3247
          %3249 = vrot.lane.b32.xlu0 %v3228, 126
          %v3250 = vpop.permute.xlu0 %3249
          %3251 = vrot.lane.b32.xlu0 %v3229, 126
          %v3252 = vpop.permute.xlu0 %3251
          %3253 = vrot.lane.b32.xlu0 %v3230, 126
          %v3254 = vpop.permute.xlu0 %3253
          %v3263 = vadd.f32 %v3212, %v3240
          %v3264 = vadd.f32 %v3213, %v3242
          %v3265 = vadd.f32 %v3214, %v3244
          %v3266 = vadd.f32 %v3215, %v3246
          %v3267 = vadd.f32 %v3216, %v3248
          %v3268 = vadd.f32 %v3217, %v3250
          %v3269 = vadd.f32 %v3218, %v3252
          %v3270 = vadd.f32 %v3219, %v3254
          %s3271 = sadd.s32 %s3142, 3
          %s3272 = sld [smem:[#allocation7 + %s3271]]
          %v3273 = vld [vmem:[#allocation2 + $0x1] sm:$0xff]
          %v3274 = vld [vmem:[#allocation2 + $0x9] sm:$0xff]
          %v3275 = vld [vmem:[#allocation2 + $0x11] sm:$0xff]
          %v3276 = vld [vmem:[#allocation2 + $0x19] sm:$0xff]
          %v3277 = vld [vmem:[#allocation2 + $0x21] sm:$0xff]
          %v3278 = vld [vmem:[#allocation2 + $0x29] sm:$0xff]
          %v3279 = vld [vmem:[#allocation2 + $0x31] sm:$0xff]
          %v3280 = vld [vmem:[#allocation2 + $0x39] sm:$0x3]
          %v3281 = vstv %s3272
          %v3282 = vmul.f32 %v3281, %v3273
          %v3283 = vmul.f32 %v3281, %v3274
          %v3284 = vmul.f32 %v3281, %v3275
          %v3285 = vmul.f32 %v3281, %v3276
          %v3286 = vmul.f32 %v3281, %v3277
          %v3287 = vmul.f32 %v3281, %v3278
          %v3288 = vmul.f32 %v3281, %v3279
          %v3289 = vmul.f32 %v3281, %v3280
          %v3290 = vadd.f32 %v3263, %v3282
          %v3291 = vadd.f32 %v3264, %v3283
          %v3292 = vadd.f32 %v3265, %v3284
          %v3293 = vadd.f32 %v3266, %v3285
          %v3294 = vadd.f32 %v3267, %v3286
          %v3295 = vadd.f32 %v3268, %v3287
          %v3296 = vadd.f32 %v3269, %v3288
          %v3297 = vadd.f32 %v3270, %v3289
          %s3298 = sadd.s32 %s3142, 4
          %s3299 = sld [smem:[#allocation7 + %s3298]]
          %v3300 = vstv %s3299
          %v3301 = vmul.f32 %v3300, %v3273
          %v3302 = vmul.f32 %v3300, %v3274
          %v3303 = vmul.f32 %v3300, %v3275
          %v3304 = vmul.f32 %v3300, %v3276
          %v3305 = vmul.f32 %v3300, %v3277
          %v3306 = vmul.f32 %v3300, %v3278
          %v3307 = vmul.f32 %v3300, %v3279
          %v3308 = vmul.f32 %v3300, %v3280
          %3317 = vrot.lane.b32.xlu0 %v3301, 127
          %v3318 = vpop.permute.xlu0 %3317
          %3319 = vrot.lane.b32.xlu0 %v3302, 127
          %v3320 = vpop.permute.xlu0 %3319
          %3321 = vrot.lane.b32.xlu0 %v3303, 127
          %v3322 = vpop.permute.xlu0 %3321
          %3323 = vrot.lane.b32.xlu0 %v3304, 127
          %v3324 = vpop.permute.xlu0 %3323
          %3325 = vrot.lane.b32.xlu0 %v3305, 127
          %v3326 = vpop.permute.xlu0 %3325
          %3327 = vrot.lane.b32.xlu0 %v3306, 127
          %v3328 = vpop.permute.xlu0 %3327
          %3329 = vrot.lane.b32.xlu0 %v3307, 127
          %v3330 = vpop.permute.xlu0 %3329
          %3331 = vrot.lane.b32.xlu0 %v3308, 127
          %v3332 = vpop.permute.xlu0 %3331
          %v3341 = vadd.f32 %v3290, %v3318
          %v3342 = vadd.f32 %v3291, %v3320
          %v3343 = vadd.f32 %v3292, %v3322
          %v3344 = vadd.f32 %v3293, %v3324
          %v3345 = vadd.f32 %v3294, %v3326
          %v3346 = vadd.f32 %v3295, %v3328
          %v3347 = vadd.f32 %v3296, %v3330
          %v3348 = vadd.f32 %v3297, %v3332
          %s3349 = sadd.s32 %s3142, 5
          %s3350 = sld [smem:[#allocation7 + %s3349]]
          %v3351 = vstv %s3350
          %v3352 = vmul.f32 %v3351, %v3273
          %v3353 = vmul.f32 %v3351, %v3274
          %v3354 = vmul.f32 %v3351, %v3275
          %v3355 = vmul.f32 %v3351, %v3276
          %v3356 = vmul.f32 %v3351, %v3277
          %v3357 = vmul.f32 %v3351, %v3278
          %v3358 = vmul.f32 %v3351, %v3279
          %v3359 = vmul.f32 %v3351, %v3280
          %3368 = vrot.lane.b32.xlu0 %v3352, 126
          %v3369 = vpop.permute.xlu0 %3368
          %3370 = vrot.lane.b32.xlu0 %v3353, 126
          %v3371 = vpop.permute.xlu0 %3370
          %3372 = vrot.lane.b32.xlu0 %v3354, 126
          %v3373 = vpop.permute.xlu0 %3372
          %3374 = vrot.lane.b32.xlu0 %v3355, 126
          %v3375 = vpop.permute.xlu0 %3374
          %3376 = vrot.lane.b32.xlu0 %v3356, 126
          %v3377 = vpop.permute.xlu0 %3376
          %3378 = vrot.lane.b32.xlu0 %v3357, 126
          %v3379 = vpop.permute.xlu0 %3378
          %3380 = vrot.lane.b32.xlu0 %v3358, 126
          %v3381 = vpop.permute.xlu0 %3380
          %3382 = vrot.lane.b32.xlu0 %v3359, 126
          %v3383 = vpop.permute.xlu0 %3382
          %v3392 = vadd.f32 %v3341, %v3369
          %v3393 = vadd.f32 %v3342, %v3371
          %v3394 = vadd.f32 %v3343, %v3373
          %v3395 = vadd.f32 %v3344, %v3375
          %v3396 = vadd.f32 %v3345, %v3377
          %v3397 = vadd.f32 %v3346, %v3379
          %v3398 = vadd.f32 %v3347, %v3381
          %v3399 = vadd.f32 %v3348, %v3383
          %s3400 = sadd.s32 %s3142, 6
          %s3401 = sld [smem:[#allocation7 + %s3400]]
          %v3402 = vld [vmem:[#allocation2 + $0x2] sm:$0xff]
          %v3403 = vld [vmem:[#allocation2 + $0xa] sm:$0xff]
          %v3404 = vld [vmem:[#allocation2 + $0x12] sm:$0xff]
          %v3405 = vld [vmem:[#allocation2 + $0x1a] sm:$0xff]
          %v3406 = vld [vmem:[#allocation2 + $0x22] sm:$0xff]
          %v3407 = vld [vmem:[#allocation2 + $0x2a] sm:$0xff]
          %v3408 = vld [vmem:[#allocation2 + $0x32] sm:$0xff]
          %v3409 = vld [vmem:[#allocation2 + $0x3a] sm:$0x3]
          %v3410 = vstv %s3401
          %v3411 = vmul.f32 %v3410, %v3402
          %v3412 = vmul.f32 %v3410, %v3403
          %v3413 = vmul.f32 %v3410, %v3404
          %v3414 = vmul.f32 %v3410, %v3405
          %v3415 = vmul.f32 %v3410, %v3406
          %v3416 = vmul.f32 %v3410, %v3407
          %v3417 = vmul.f32 %v3410, %v3408
          %v3418 = vmul.f32 %v3410, %v3409
          %v3419 = vadd.f32 %v3392, %v3411
          %v3420 = vadd.f32 %v3393, %v3412
          %v3421 = vadd.f32 %v3394, %v3413
          %v3422 = vadd.f32 %v3395, %v3414
          %v3423 = vadd.f32 %v3396, %v3415
          %v3424 = vadd.f32 %v3397, %v3416
          %v3425 = vadd.f32 %v3398, %v3417
          %v3426 = vadd.f32 %v3399, %v3418
          %s3427 = sadd.s32 %s3142, 7
          %s3428 = sld [smem:[#allocation7 + %s3427]]
          %v3429 = vstv %s3428
          %v3430 = vmul.f32 %v3429, %v3402
          %v3431 = vmul.f32 %v3429, %v3403
          %v3432 = vmul.f32 %v3429, %v3404
          %v3433 = vmul.f32 %v3429, %v3405
          %v3434 = vmul.f32 %v3429, %v3406
          %v3435 = vmul.f32 %v3429, %v3407
          %v3436 = vmul.f32 %v3429, %v3408
          %v3437 = vmul.f32 %v3429, %v3409
          %3446 = vrot.lane.b32.xlu0 %v3430, 127
          %v3447 = vpop.permute.xlu0 %3446
          %3448 = vrot.lane.b32.xlu0 %v3431, 127
          %v3449 = vpop.permute.xlu0 %3448
          %3450 = vrot.lane.b32.xlu0 %v3432, 127
          %v3451 = vpop.permute.xlu0 %3450
          %3452 = vrot.lane.b32.xlu0 %v3433, 127
          %v3453 = vpop.permute.xlu0 %3452
          %3454 = vrot.lane.b32.xlu0 %v3434, 127
          %v3455 = vpop.permute.xlu0 %3454
          %3456 = vrot.lane.b32.xlu0 %v3435, 127
          %v3457 = vpop.permute.xlu0 %3456
          %3458 = vrot.lane.b32.xlu0 %v3436, 127
          %v3459 = vpop.permute.xlu0 %3458
          %3460 = vrot.lane.b32.xlu0 %v3437, 127
          %v3461 = vpop.permute.xlu0 %3460
          %v3470 = vadd.f32 %v3419, %v3447
          %v3471 = vadd.f32 %v3420, %v3449
          %v3472 = vadd.f32 %v3421, %v3451
          %v3473 = vadd.f32 %v3422, %v3453
          %v3474 = vadd.f32 %v3423, %v3455
          %v3475 = vadd.f32 %v3424, %v3457
          %v3476 = vadd.f32 %v3425, %v3459
          %v3477 = vadd.f32 %v3426, %v3461
          %s3478 = sadd.s32 %s3142, 8
          %s3479 = sld [smem:[#allocation7 + %s3478]]
          %v3480 = vstv %s3479
          %v3481 = vmul.f32 %v3480, %v3402
          %v3482 = vmul.f32 %v3480, %v3403
          %v3483 = vmul.f32 %v3480, %v3404
          %v3484 = vmul.f32 %v3480, %v3405
          %v3485 = vmul.f32 %v3480, %v3406
          %v3486 = vmul.f32 %v3480, %v3407
          %v3487 = vmul.f32 %v3480, %v3408
          %v3488 = vmul.f32 %v3480, %v3409
          %3497 = vrot.lane.b32.xlu0 %v3481, 126
          %v3498 = vpop.permute.xlu0 %3497
          %3499 = vrot.lane.b32.xlu0 %v3482, 126
          %v3500 = vpop.permute.xlu0 %3499
          %3501 = vrot.lane.b32.xlu0 %v3483, 126
          %v3502 = vpop.permute.xlu0 %3501
          %3503 = vrot.lane.b32.xlu0 %v3484, 126
          %v3504 = vpop.permute.xlu0 %3503
          %3505 = vrot.lane.b32.xlu0 %v3485, 126
          %v3506 = vpop.permute.xlu0 %3505
          %3507 = vrot.lane.b32.xlu0 %v3486, 126
          %v3508 = vpop.permute.xlu0 %3507
          %3509 = vrot.lane.b32.xlu0 %v3487, 126
          %v3510 = vpop.permute.xlu0 %3509
          %3511 = vrot.lane.b32.xlu0 %v3488, 126
          %v3512 = vpop.permute.xlu0 %3511
          %v3521 = vadd.f32 %v3470, %v3498
          %v3522 = vadd.f32 %v3471, %v3500
          %v3523 = vadd.f32 %v3472, %v3502
          %v3524 = vadd.f32 %v3473, %v3504
          %v3525 = vadd.f32 %v3474, %v3506
          %v3526 = vadd.f32 %v3475, %v3508
          %v3527 = vadd.f32 %v3476, %v3510
          %v3528 = vadd.f32 %v3477, %v3512
          %s3529 = sadd.s32 %s3142, 9
          %s3530 = sld [smem:[#allocation7 + %s3529]]
          %s3531 = scalar_lea.vmem [#allocation2], 64
          %v3532 = vld [vmem:[%s3531] sm:$0xff]
          %v3533 = vld [vmem:[%s3531 + $0x8] sm:$0xff]
          %v3534 = vld [vmem:[%s3531 + $0x10] sm:$0xff]
          %v3535 = vld [vmem:[%s3531 + $0x18] sm:$0xff]
          %v3536 = vld [vmem:[%s3531 + $0x20] sm:$0xff]
          %v3537 = vld [vmem:[%s3531 + $0x28] sm:$0xff]
          %v3538 = vld [vmem:[%s3531 + $0x30] sm:$0xff]
          %v3539 = vld [vmem:[%s3531 + $0x38] sm:$0x3]
          %v3540 = vstv %s3530
          %v3541 = vmul.f32 %v3540, %v3532
          %v3542 = vmul.f32 %v3540, %v3533
          %v3543 = vmul.f32 %v3540, %v3534
          %v3544 = vmul.f32 %v3540, %v3535
          %v3545 = vmul.f32 %v3540, %v3536
          %v3546 = vmul.f32 %v3540, %v3537
          %v3547 = vmul.f32 %v3540, %v3538
          %v3548 = vmul.f32 %v3540, %v3539
          %v3549 = vadd.f32 %v3521, %v3541
          %v3550 = vadd.f32 %v3522, %v3542
          %v3551 = vadd.f32 %v3523, %v3543
          %v3552 = vadd.f32 %v3524, %v3544
          %v3553 = vadd.f32 %v3525, %v3545
          %v3554 = vadd.f32 %v3526, %v3546
          %v3555 = vadd.f32 %v3527, %v3547
          %v3556 = vadd.f32 %v3528, %v3548
          %s3557 = sadd.s32 %s3142, 10
          %s3558 = sld [smem:[#allocation7 + %s3557]]
          %v3559 = vstv %s3558
          %v3560 = vmul.f32 %v3559, %v3532
          %v3561 = vmul.f32 %v3559, %v3533
          %v3562 = vmul.f32 %v3559, %v3534
          %v3563 = vmul.f32 %v3559, %v3535
          %v3564 = vmul.f32 %v3559, %v3536
          %v3565 = vmul.f32 %v3559, %v3537
          %v3566 = vmul.f32 %v3559, %v3538
          %v3567 = vmul.f32 %v3559, %v3539
          %3576 = vrot.lane.b32.xlu0 %v3560, 127
          %v3577 = vpop.permute.xlu0 %3576
          %3578 = vrot.lane.b32.xlu0 %v3561, 127
          %v3579 = vpop.permute.xlu0 %3578
          %3580 = vrot.lane.b32.xlu0 %v3562, 127
          %v3581 = vpop.permute.xlu0 %3580
          %3582 = vrot.lane.b32.xlu0 %v3563, 127
          %v3583 = vpop.permute.xlu0 %3582
          %3584 = vrot.lane.b32.xlu0 %v3564, 127
          %v3585 = vpop.permute.xlu0 %3584
          %3586 = vrot.lane.b32.xlu0 %v3565, 127
          %v3587 = vpop.permute.xlu0 %3586
          %3588 = vrot.lane.b32.xlu0 %v3566, 127
          %v3589 = vpop.permute.xlu0 %3588
          %3590 = vrot.lane.b32.xlu0 %v3567, 127
          %v3591 = vpop.permute.xlu0 %3590
          %v3600 = vadd.f32 %v3549, %v3577
          %v3601 = vadd.f32 %v3550, %v3579
          %v3602 = vadd.f32 %v3551, %v3581
          %v3603 = vadd.f32 %v3552, %v3583
          %v3604 = vadd.f32 %v3553, %v3585
          %v3605 = vadd.f32 %v3554, %v3587
          %v3606 = vadd.f32 %v3555, %v3589
          %v3607 = vadd.f32 %v3556, %v3591
          %s3608 = sadd.s32 %s3142, 11
          %s3609 = sld [smem:[#allocation7 + %s3608]]
          %v3610 = vstv %s3609
          %v3611 = vmul.f32 %v3610, %v3532
          %v3612 = vmul.f32 %v3610, %v3533
          %v3613 = vmul.f32 %v3610, %v3534
          %v3614 = vmul.f32 %v3610, %v3535
          %v3615 = vmul.f32 %v3610, %v3536
          %v3616 = vmul.f32 %v3610, %v3537
          %v3617 = vmul.f32 %v3610, %v3538
          %v3618 = vmul.f32 %v3610, %v3539
          %3627 = vrot.lane.b32.xlu0 %v3611, 126
          %v3628 = vpop.permute.xlu0 %3627
          %3629 = vrot.lane.b32.xlu0 %v3612, 126
          %v3630 = vpop.permute.xlu0 %3629
          %3631 = vrot.lane.b32.xlu0 %v3613, 126
          %v3632 = vpop.permute.xlu0 %3631
          %3633 = vrot.lane.b32.xlu0 %v3614, 126
          %v3634 = vpop.permute.xlu0 %3633
          %3635 = vrot.lane.b32.xlu0 %v3615, 126
          %v3636 = vpop.permute.xlu0 %3635
          %3637 = vrot.lane.b32.xlu0 %v3616, 126
          %v3638 = vpop.permute.xlu0 %3637
          %3639 = vrot.lane.b32.xlu0 %v3617, 126
          %v3640 = vpop.permute.xlu0 %3639
          %3641 = vrot.lane.b32.xlu0 %v3618, 126
          %v3642 = vpop.permute.xlu0 %3641
          %v3651 = vadd.f32 %v3600, %v3628
          %v3652 = vadd.f32 %v3601, %v3630
          %v3653 = vadd.f32 %v3602, %v3632
          %v3654 = vadd.f32 %v3603, %v3634
          %v3655 = vadd.f32 %v3604, %v3636
          %v3656 = vadd.f32 %v3605, %v3638
          %v3657 = vadd.f32 %v3606, %v3640
          %v3658 = vadd.f32 %v3607, %v3642
          %s3659 = sadd.s32 %s3142, 12
          %s3660 = sld [smem:[#allocation7 + %s3659]]
          %v3661 = vld [vmem:[%s3531 + $0x1] sm:$0xff]
          %v3662 = vld [vmem:[%s3531 + $0x9] sm:$0xff]
          %v3663 = vld [vmem:[%s3531 + $0x11] sm:$0xff]
          %v3664 = vld [vmem:[%s3531 + $0x19] sm:$0xff]
          %v3665 = vld [vmem:[%s3531 + $0x21] sm:$0xff]
          %v3666 = vld [vmem:[%s3531 + $0x29] sm:$0xff]
          %v3667 = vld [vmem:[%s3531 + $0x31] sm:$0xff]
          %v3668 = vld [vmem:[%s3531 + $0x39] sm:$0x3]
          %v3669 = vstv %s3660
          %v3670 = vmul.f32 %v3669, %v3661
          %v3671 = vmul.f32 %v3669, %v3662
          %v3672 = vmul.f32 %v3669, %v3663
          %v3673 = vmul.f32 %v3669, %v3664
          %v3674 = vmul.f32 %v3669, %v3665
          %v3675 = vmul.f32 %v3669, %v3666
          %v3676 = vmul.f32 %v3669, %v3667
          %v3677 = vmul.f32 %v3669, %v3668
          %v3678 = vadd.f32 %v3651, %v3670
          %v3679 = vadd.f32 %v3652, %v3671
          %v3680 = vadd.f32 %v3653, %v3672
          %v3681 = vadd.f32 %v3654, %v3673
          %v3682 = vadd.f32 %v3655, %v3674
          %v3683 = vadd.f32 %v3656, %v3675
          %v3684 = vadd.f32 %v3657, %v3676
          %v3685 = vadd.f32 %v3658, %v3677
          %s3686 = sadd.s32 %s3142, 13
          %s3687 = sld [smem:[#allocation7 + %s3686]]
          %v3688 = vstv %s3687
          %v3689 = vmul.f32 %v3688, %v3661
          %v3690 = vmul.f32 %v3688, %v3662
          %v3691 = vmul.f32 %v3688, %v3663
          %v3692 = vmul.f32 %v3688, %v3664
          %v3693 = vmul.f32 %v3688, %v3665
          %v3694 = vmul.f32 %v3688, %v3666
          %v3695 = vmul.f32 %v3688, %v3667
          %v3696 = vmul.f32 %v3688, %v3668
          %3705 = vrot.lane.b32.xlu0 %v3689, 127
          %v3706 = vpop.permute.xlu0 %3705
          %3707 = vrot.lane.b32.xlu0 %v3690, 127
          %v3708 = vpop.permute.xlu0 %3707
          %3709 = vrot.lane.b32.xlu0 %v3691, 127
          %v3710 = vpop.permute.xlu0 %3709
          %3711 = vrot.lane.b32.xlu0 %v3692, 127
          %v3712 = vpop.permute.xlu0 %3711
          %3713 = vrot.lane.b32.xlu0 %v3693, 127
          %v3714 = vpop.permute.xlu0 %3713
          %3715 = vrot.lane.b32.xlu0 %v3694, 127
          %v3716 = vpop.permute.xlu0 %3715
          %3717 = vrot.lane.b32.xlu0 %v3695, 127
          %v3718 = vpop.permute.xlu0 %3717
          %3719 = vrot.lane.b32.xlu0 %v3696, 127
          %v3720 = vpop.permute.xlu0 %3719
          %v3729 = vadd.f32 %v3678, %v3706
          %v3730 = vadd.f32 %v3679, %v3708
          %v3731 = vadd.f32 %v3680, %v3710
          %v3732 = vadd.f32 %v3681, %v3712
          %v3733 = vadd.f32 %v3682, %v3714
          %v3734 = vadd.f32 %v3683, %v3716
          %v3735 = vadd.f32 %v3684, %v3718
          %v3736 = vadd.f32 %v3685, %v3720
          %s3737 = sadd.s32 %s3142, 14
          %s3738 = sld [smem:[#allocation7 + %s3737]]
          %v3739 = vstv %s3738
          %v3740 = vmul.f32 %v3739, %v3661
          %v3741 = vmul.f32 %v3739, %v3662
          %v3742 = vmul.f32 %v3739, %v3663
          %v3743 = vmul.f32 %v3739, %v3664
          %v3744 = vmul.f32 %v3739, %v3665
          %v3745 = vmul.f32 %v3739, %v3666
          %v3746 = vmul.f32 %v3739, %v3667
          %v3747 = vmul.f32 %v3739, %v3668
          %3756 = vrot.lane.b32.xlu0 %v3740, 126
          %v3757 = vpop.permute.xlu0 %3756
          %3758 = vrot.lane.b32.xlu0 %v3741, 126
          %v3759 = vpop.permute.xlu0 %3758
          %3760 = vrot.lane.b32.xlu0 %v3742, 126
          %v3761 = vpop.permute.xlu0 %3760
          %3762 = vrot.lane.b32.xlu0 %v3743, 126
          %v3763 = vpop.permute.xlu0 %3762
          %3764 = vrot.lane.b32.xlu0 %v3744, 126
          %v3765 = vpop.permute.xlu0 %3764
          %3766 = vrot.lane.b32.xlu0 %v3745, 126
          %v3767 = vpop.permute.xlu0 %3766
          %3768 = vrot.lane.b32.xlu0 %v3746, 126
          %v3769 = vpop.permute.xlu0 %3768
          %3770 = vrot.lane.b32.xlu0 %v3747, 126
          %v3771 = vpop.permute.xlu0 %3770
          %v3780 = vadd.f32 %v3729, %v3757
          %v3781 = vadd.f32 %v3730, %v3759
          %v3782 = vadd.f32 %v3731, %v3761
          %v3783 = vadd.f32 %v3732, %v3763
          %v3784 = vadd.f32 %v3733, %v3765
          %v3785 = vadd.f32 %v3734, %v3767
          %v3786 = vadd.f32 %v3735, %v3769
          %v3787 = vadd.f32 %v3736, %v3771
          %s3788 = sadd.s32 %s3142, 15
          %s3789 = sld [smem:[#allocation7 + %s3788]]
          %v3790 = vld [vmem:[%s3531 + $0x2] sm:$0xff]
          %v3791 = vld [vmem:[%s3531 + $0xa] sm:$0xff]
          %v3792 = vld [vmem:[%s3531 + $0x12] sm:$0xff]
          %v3793 = vld [vmem:[%s3531 + $0x1a] sm:$0xff]
          %v3794 = vld [vmem:[%s3531 + $0x22] sm:$0xff]
          %v3795 = vld [vmem:[%s3531 + $0x2a] sm:$0xff]
          %v3796 = vld [vmem:[%s3531 + $0x32] sm:$0xff]
          %v3797 = vld [vmem:[%s3531 + $0x3a] sm:$0x3]
          %v3798 = vstv %s3789
          %v3799 = vmul.f32 %v3798, %v3790
          %v3800 = vmul.f32 %v3798, %v3791
          %v3801 = vmul.f32 %v3798, %v3792
          %v3802 = vmul.f32 %v3798, %v3793
          %v3803 = vmul.f32 %v3798, %v3794
          %v3804 = vmul.f32 %v3798, %v3795
          %v3805 = vmul.f32 %v3798, %v3796
          %v3806 = vmul.f32 %v3798, %v3797
          %v3807 = vadd.f32 %v3780, %v3799
          %v3808 = vadd.f32 %v3781, %v3800
          %v3809 = vadd.f32 %v3782, %v3801
          %v3810 = vadd.f32 %v3783, %v3802
          %v3811 = vadd.f32 %v3784, %v3803
          %v3812 = vadd.f32 %v3785, %v3804
          %v3813 = vadd.f32 %v3786, %v3805
          %v3814 = vadd.f32 %v3787, %v3806
          %s3815 = sadd.s32 %s3142, 16
          %s3816 = sld [smem:[#allocation7 + %s3815]]
          %v3817 = vstv %s3816
          %v3818 = vmul.f32 %v3817, %v3790
          %v3819 = vmul.f32 %v3817, %v3791
          %v3820 = vmul.f32 %v3817, %v3792
          %v3821 = vmul.f32 %v3817, %v3793
          %v3822 = vmul.f32 %v3817, %v3794
          %v3823 = vmul.f32 %v3817, %v3795
          %v3824 = vmul.f32 %v3817, %v3796
          %v3825 = vmul.f32 %v3817, %v3797
          %3834 = vrot.lane.b32.xlu0 %v3818, 127
          %v3835 = vpop.permute.xlu0 %3834
          %3836 = vrot.lane.b32.xlu0 %v3819, 127
          %v3837 = vpop.permute.xlu0 %3836
          %3838 = vrot.lane.b32.xlu0 %v3820, 127
          %v3839 = vpop.permute.xlu0 %3838
          %3840 = vrot.lane.b32.xlu0 %v3821, 127
          %v3841 = vpop.permute.xlu0 %3840
          %3842 = vrot.lane.b32.xlu0 %v3822, 127
          %v3843 = vpop.permute.xlu0 %3842
          %3844 = vrot.lane.b32.xlu0 %v3823, 127
          %v3845 = vpop.permute.xlu0 %3844
          %3846 = vrot.lane.b32.xlu0 %v3824, 127
          %v3847 = vpop.permute.xlu0 %3846
          %3848 = vrot.lane.b32.xlu0 %v3825, 127
          %v3849 = vpop.permute.xlu0 %3848
          %v3858 = vadd.f32 %v3807, %v3835
          %v3859 = vadd.f32 %v3808, %v3837
          %v3860 = vadd.f32 %v3809, %v3839
          %v3861 = vadd.f32 %v3810, %v3841
          %v3862 = vadd.f32 %v3811, %v3843
          %v3863 = vadd.f32 %v3812, %v3845
          %v3864 = vadd.f32 %v3813, %v3847
          %v3865 = vadd.f32 %v3814, %v3849
          %s3866 = sadd.s32 %s3142, 17
          %s3867 = sld [smem:[#allocation7 + %s3866]]
          %v3868 = vstv %s3867
          %v3869 = vmul.f32 %v3868, %v3790
          %v3870 = vmul.f32 %v3868, %v3791
          %v3871 = vmul.f32 %v3868, %v3792
          %v3872 = vmul.f32 %v3868, %v3793
          %v3873 = vmul.f32 %v3868, %v3794
          %v3874 = vmul.f32 %v3868, %v3795
          %v3875 = vmul.f32 %v3868, %v3796
          %v3876 = vmul.f32 %v3868, %v3797
          %3885 = vrot.lane.b32.xlu0 %v3869, 126
          %v3886 = vpop.permute.xlu0 %3885
          %3887 = vrot.lane.b32.xlu0 %v3870, 126
          %v3888 = vpop.permute.xlu0 %3887
          %3889 = vrot.lane.b32.xlu0 %v3871, 126
          %v3890 = vpop.permute.xlu0 %3889
          %3891 = vrot.lane.b32.xlu0 %v3872, 126
          %v3892 = vpop.permute.xlu0 %3891
          %3893 = vrot.lane.b32.xlu0 %v3873, 126
          %v3894 = vpop.permute.xlu0 %3893
          %3895 = vrot.lane.b32.xlu0 %v3874, 126
          %v3896 = vpop.permute.xlu0 %3895
          %3897 = vrot.lane.b32.xlu0 %v3875, 126
          %v3898 = vpop.permute.xlu0 %3897
          %3899 = vrot.lane.b32.xlu0 %v3876, 126
          %v3900 = vpop.permute.xlu0 %3899
          %v3909 = vadd.f32 %v3858, %v3886
          %v3910 = vadd.f32 %v3859, %v3888
          %v3911 = vadd.f32 %v3860, %v3890
          %v3912 = vadd.f32 %v3861, %v3892
          %v3913 = vadd.f32 %v3862, %v3894
          %v3914 = vadd.f32 %v3863, %v3896
          %v3915 = vadd.f32 %v3864, %v3898
          %v3916 = vadd.f32 %v3865, %v3900
          %s3917 = sadd.s32 %s3142, 18
          %s3918 = sld [smem:[#allocation7 + %s3917]]
          %s3919 = scalar_lea.vmem [#allocation2], 128
          %v3920 = vld [vmem:[%s3919] sm:$0xff]
          %v3921 = vld [vmem:[%s3919 + $0x8] sm:$0xff]
          %v3922 = vld [vmem:[%s3919 + $0x10] sm:$0xff]
          %v3923 = vld [vmem:[%s3919 + $0x18] sm:$0xff]
          %v3924 = vld [vmem:[%s3919 + $0x20] sm:$0xff]
          %v3925 = vld [vmem:[%s3919 + $0x28] sm:$0xff]
          %v3926 = vld [vmem:[%s3919 + $0x30] sm:$0xff]
          %v3927 = vld [vmem:[%s3919 + $0x38] sm:$0x3]
          %v3928 = vstv %s3918
          %v3929 = vmul.f32 %v3928, %v3920
          %v3930 = vmul.f32 %v3928, %v3921
          %v3931 = vmul.f32 %v3928, %v3922
          %v3932 = vmul.f32 %v3928, %v3923
          %v3933 = vmul.f32 %v3928, %v3924
          %v3934 = vmul.f32 %v3928, %v3925
          %v3935 = vmul.f32 %v3928, %v3926
          %v3936 = vmul.f32 %v3928, %v3927
          %v3937 = vadd.f32 %v3909, %v3929
          %v3938 = vadd.f32 %v3910, %v3930
          %v3939 = vadd.f32 %v3911, %v3931
          %v3940 = vadd.f32 %v3912, %v3932
          %v3941 = vadd.f32 %v3913, %v3933
          %v3942 = vadd.f32 %v3914, %v3934
          %v3943 = vadd.f32 %v3915, %v3935
          %v3944 = vadd.f32 %v3916, %v3936
          %s3945 = sadd.s32 %s3142, 19
          %s3946 = sld [smem:[#allocation7 + %s3945]]
          %v3947 = vstv %s3946
          %v3948 = vmul.f32 %v3947, %v3920
          %v3949 = vmul.f32 %v3947, %v3921
          %v3950 = vmul.f32 %v3947, %v3922
          %v3951 = vmul.f32 %v3947, %v3923
          %v3952 = vmul.f32 %v3947, %v3924
          %v3953 = vmul.f32 %v3947, %v3925
          %v3954 = vmul.f32 %v3947, %v3926
          %v3955 = vmul.f32 %v3947, %v3927
          %3964 = vrot.lane.b32.xlu0 %v3948, 127
          %v3965 = vpop.permute.xlu0 %3964
          %3966 = vrot.lane.b32.xlu0 %v3949, 127
          %v3967 = vpop.permute.xlu0 %3966
          %3968 = vrot.lane.b32.xlu0 %v3950, 127
          %v3969 = vpop.permute.xlu0 %3968
          %3970 = vrot.lane.b32.xlu0 %v3951, 127
          %v3971 = vpop.permute.xlu0 %3970
          %3972 = vrot.lane.b32.xlu0 %v3952, 127
          %v3973 = vpop.permute.xlu0 %3972
          %3974 = vrot.lane.b32.xlu0 %v3953, 127
          %v3975 = vpop.permute.xlu0 %3974
          %3976 = vrot.lane.b32.xlu0 %v3954, 127
          %v3977 = vpop.permute.xlu0 %3976
          %3978 = vrot.lane.b32.xlu0 %v3955, 127
          %v3979 = vpop.permute.xlu0 %3978
          %v3988 = vadd.f32 %v3937, %v3965
          %v3989 = vadd.f32 %v3938, %v3967
          %v3990 = vadd.f32 %v3939, %v3969
          %v3991 = vadd.f32 %v3940, %v3971
          %v3992 = vadd.f32 %v3941, %v3973
          %v3993 = vadd.f32 %v3942, %v3975
          %v3994 = vadd.f32 %v3943, %v3977
          %v3995 = vadd.f32 %v3944, %v3979
          %s3996 = sadd.s32 %s3142, 20
          %s3997 = sld [smem:[#allocation7 + %s3996]]
          %v3998 = vstv %s3997
          %v3999 = vmul.f32 %v3998, %v3920
          %v4000 = vmul.f32 %v3998, %v3921
          %v4001 = vmul.f32 %v3998, %v3922
          %v4002 = vmul.f32 %v3998, %v3923
          %v4003 = vmul.f32 %v3998, %v3924
          %v4004 = vmul.f32 %v3998, %v3925
          %v4005 = vmul.f32 %v3998, %v3926
          %v4006 = vmul.f32 %v3998, %v3927
          %4015 = vrot.lane.b32.xlu0 %v3999, 126
          %v4016 = vpop.permute.xlu0 %4015
          %4017 = vrot.lane.b32.xlu0 %v4000, 126
          %v4018 = vpop.permute.xlu0 %4017
          %4019 = vrot.lane.b32.xlu0 %v4001, 126
          %v4020 = vpop.permute.xlu0 %4019
          %4021 = vrot.lane.b32.xlu0 %v4002, 126
          %v4022 = vpop.permute.xlu0 %4021
          %4023 = vrot.lane.b32.xlu0 %v4003, 126
          %v4024 = vpop.permute.xlu0 %4023
          %4025 = vrot.lane.b32.xlu0 %v4004, 126
          %v4026 = vpop.permute.xlu0 %4025
          %4027 = vrot.lane.b32.xlu0 %v4005, 126
          %v4028 = vpop.permute.xlu0 %4027
          %4029 = vrot.lane.b32.xlu0 %v4006, 126
          %v4030 = vpop.permute.xlu0 %4029
          %v4039 = vadd.f32 %v3988, %v4016
          %v4040 = vadd.f32 %v3989, %v4018
          %v4041 = vadd.f32 %v3990, %v4020
          %v4042 = vadd.f32 %v3991, %v4022
          %v4043 = vadd.f32 %v3992, %v4024
          %v4044 = vadd.f32 %v3993, %v4026
          %v4045 = vadd.f32 %v3994, %v4028
          %v4046 = vadd.f32 %v3995, %v4030
          %s4047 = sadd.s32 %s3142, 21
          %s4048 = sld [smem:[#allocation7 + %s4047]]
          %v4049 = vld [vmem:[%s3919 + $0x1] sm:$0xff]
          %v4050 = vld [vmem:[%s3919 + $0x9] sm:$0xff]
          %v4051 = vld [vmem:[%s3919 + $0x11] sm:$0xff]
          %v4052 = vld [vmem:[%s3919 + $0x19] sm:$0xff]
          %v4053 = vld [vmem:[%s3919 + $0x21] sm:$0xff]
          %v4054 = vld [vmem:[%s3919 + $0x29] sm:$0xff]
          %v4055 = vld [vmem:[%s3919 + $0x31] sm:$0xff]
          %v4056 = vld [vmem:[%s3919 + $0x39] sm:$0x3]
          %v4057 = vstv %s4048
          %v4058 = vmul.f32 %v4057, %v4049
          %v4059 = vmul.f32 %v4057, %v4050
          %v4060 = vmul.f32 %v4057, %v4051
          %v4061 = vmul.f32 %v4057, %v4052
          %v4062 = vmul.f32 %v4057, %v4053
          %v4063 = vmul.f32 %v4057, %v4054
          %v4064 = vmul.f32 %v4057, %v4055
          %v4065 = vmul.f32 %v4057, %v4056
          %v4066 = vadd.f32 %v4039, %v4058
          %v4067 = vadd.f32 %v4040, %v4059
          %v4068 = vadd.f32 %v4041, %v4060
          %v4069 = vadd.f32 %v4042, %v4061
          %v4070 = vadd.f32 %v4043, %v4062
          %v4071 = vadd.f32 %v4044, %v4063
          %v4072 = vadd.f32 %v4045, %v4064
          %v4073 = vadd.f32 %v4046, %v4065
          %s4074 = sadd.s32 %s3142, 22
          %s4075 = sld [smem:[#allocation7 + %s4074]]
          %v4076 = vstv %s4075
          %v4077 = vmul.f32 %v4076, %v4049
          %v4078 = vmul.f32 %v4076, %v4050
          %v4079 = vmul.f32 %v4076, %v4051
          %v4080 = vmul.f32 %v4076, %v4052
          %v4081 = vmul.f32 %v4076, %v4053
          %v4082 = vmul.f32 %v4076, %v4054
          %v4083 = vmul.f32 %v4076, %v4055
          %v4084 = vmul.f32 %v4076, %v4056
          %4093 = vrot.lane.b32.xlu0 %v4077, 127
          %v4094 = vpop.permute.xlu0 %4093
          %4095 = vrot.lane.b32.xlu0 %v4078, 127
          %v4096 = vpop.permute.xlu0 %4095
          %4097 = vrot.lane.b32.xlu0 %v4079, 127
          %v4098 = vpop.permute.xlu0 %4097
          %4099 = vrot.lane.b32.xlu0 %v4080, 127
          %v4100 = vpop.permute.xlu0 %4099
          %4101 = vrot.lane.b32.xlu0 %v4081, 127
          %v4102 = vpop.permute.xlu0 %4101
          %4103 = vrot.lane.b32.xlu0 %v4082, 127
          %v4104 = vpop.permute.xlu0 %4103
          %4105 = vrot.lane.b32.xlu0 %v4083, 127
          %v4106 = vpop.permute.xlu0 %4105
          %4107 = vrot.lane.b32.xlu0 %v4084, 127
          %v4108 = vpop.permute.xlu0 %4107
          %v4117 = vadd.f32 %v4066, %v4094
          %v4118 = vadd.f32 %v4067, %v4096
          %v4119 = vadd.f32 %v4068, %v4098
          %v4120 = vadd.f32 %v4069, %v4100
          %v4121 = vadd.f32 %v4070, %v4102
          %v4122 = vadd.f32 %v4071, %v4104
          %v4123 = vadd.f32 %v4072, %v4106
          %v4124 = vadd.f32 %v4073, %v4108
          %s4125 = sadd.s32 %s3142, 23
          %s4126 = sld [smem:[#allocation7 + %s4125]]
          %v4127 = vstv %s4126
          %v4128 = vmul.f32 %v4127, %v4049
          %v4129 = vmul.f32 %v4127, %v4050
          %v4130 = vmul.f32 %v4127, %v4051
          %v4131 = vmul.f32 %v4127, %v4052
          %v4132 = vmul.f32 %v4127, %v4053
          %v4133 = vmul.f32 %v4127, %v4054
          %v4134 = vmul.f32 %v4127, %v4055
          %v4135 = vmul.f32 %v4127, %v4056
          %4144 = vrot.lane.b32.xlu0 %v4128, 126
          %v4145 = vpop.permute.xlu0 %4144
          %4146 = vrot.lane.b32.xlu0 %v4129, 126
          %v4147 = vpop.permute.xlu0 %4146
          %4148 = vrot.lane.b32.xlu0 %v4130, 126
          %v4149 = vpop.permute.xlu0 %4148
          %4150 = vrot.lane.b32.xlu0 %v4131, 126
          %v4151 = vpop.permute.xlu0 %4150
          %4152 = vrot.lane.b32.xlu0 %v4132, 126
          %v4153 = vpop.permute.xlu0 %4152
          %4154 = vrot.lane.b32.xlu0 %v4133, 126
          %v4155 = vpop.permute.xlu0 %4154
          %4156 = vrot.lane.b32.xlu0 %v4134, 126
          %v4157 = vpop.permute.xlu0 %4156
          %4158 = vrot.lane.b32.xlu0 %v4135, 126
          %v4159 = vpop.permute.xlu0 %4158
          %v4168 = vadd.f32 %v4117, %v4145
          %v4169 = vadd.f32 %v4118, %v4147
          %v4170 = vadd.f32 %v4119, %v4149
          %v4171 = vadd.f32 %v4120, %v4151
          %v4172 = vadd.f32 %v4121, %v4153
          %v4173 = vadd.f32 %v4122, %v4155
          %v4174 = vadd.f32 %v4123, %v4157
          %v4175 = vadd.f32 %v4124, %v4159
          %s4176 = sadd.s32 %s3142, 24
          %s4177 = sld [smem:[#allocation7 + %s4176]]
          %v4178 = vld [vmem:[%s3919 + $0x2] sm:$0xff]
          %v4179 = vld [vmem:[%s3919 + $0xa] sm:$0xff]
          %v4180 = vld [vmem:[%s3919 + $0x12] sm:$0xff]
          %v4181 = vld [vmem:[%s3919 + $0x1a] sm:$0xff]
          %v4182 = vld [vmem:[%s3919 + $0x22] sm:$0xff]
          %v4183 = vld [vmem:[%s3919 + $0x2a] sm:$0xff]
          %v4184 = vld [vmem:[%s3919 + $0x32] sm:$0xff]
          %v4185 = vld [vmem:[%s3919 + $0x3a] sm:$0x3]
          %v4186 = vstv %s4177
          %v4187 = vmul.f32 %v4186, %v4178
          %v4188 = vmul.f32 %v4186, %v4179
          %v4189 = vmul.f32 %v4186, %v4180
          %v4190 = vmul.f32 %v4186, %v4181
          %v4191 = vmul.f32 %v4186, %v4182
          %v4192 = vmul.f32 %v4186, %v4183
          %v4193 = vmul.f32 %v4186, %v4184
          %v4194 = vmul.f32 %v4186, %v4185
          %v4195 = vadd.f32 %v4168, %v4187
          %v4196 = vadd.f32 %v4169, %v4188
          %v4197 = vadd.f32 %v4170, %v4189
          %v4198 = vadd.f32 %v4171, %v4190
          %v4199 = vadd.f32 %v4172, %v4191
          %v4200 = vadd.f32 %v4173, %v4192
          %v4201 = vadd.f32 %v4174, %v4193
          %v4202 = vadd.f32 %v4175, %v4194
          %s4203 = sadd.s32 %s3142, 25
          %s4204 = sld [smem:[#allocation7 + %s4203]]
          %v4205 = vstv %s4204
          %v4206 = vmul.f32 %v4205, %v4178
          %v4207 = vmul.f32 %v4205, %v4179
          %v4208 = vmul.f32 %v4205, %v4180
          %v4209 = vmul.f32 %v4205, %v4181
          %v4210 = vmul.f32 %v4205, %v4182
          %v4211 = vmul.f32 %v4205, %v4183
          %v4212 = vmul.f32 %v4205, %v4184
          %v4213 = vmul.f32 %v4205, %v4185
          %4222 = vrot.lane.b32.xlu0 %v4206, 127
          %v4223 = vpop.permute.xlu0 %4222
          %4224 = vrot.lane.b32.xlu0 %v4207, 127
          %v4225 = vpop.permute.xlu0 %4224
          %4226 = vrot.lane.b32.xlu0 %v4208, 127
          %v4227 = vpop.permute.xlu0 %4226
          %4228 = vrot.lane.b32.xlu0 %v4209, 127
          %v4229 = vpop.permute.xlu0 %4228
          %4230 = vrot.lane.b32.xlu0 %v4210, 127
          %v4231 = vpop.permute.xlu0 %4230
          %4232 = vrot.lane.b32.xlu0 %v4211, 127
          %v4233 = vpop.permute.xlu0 %4232
          %4234 = vrot.lane.b32.xlu0 %v4212, 127
          %v4235 = vpop.permute.xlu0 %4234
          %4236 = vrot.lane.b32.xlu0 %v4213, 127
          %v4237 = vpop.permute.xlu0 %4236
          %v4246 = vadd.f32 %v4195, %v4223
          %v4247 = vadd.f32 %v4196, %v4225
          %v4248 = vadd.f32 %v4197, %v4227
          %v4249 = vadd.f32 %v4198, %v4229
          %v4250 = vadd.f32 %v4199, %v4231
          %v4251 = vadd.f32 %v4200, %v4233
          %v4252 = vadd.f32 %v4201, %v4235
          %v4253 = vadd.f32 %v4202, %v4237
          %s4254 = sadd.s32 %s3142, 26
          %s4255 = sld [smem:[#allocation7 + %s4254]]
          %v4256 = vstv %s4255
          %v4257 = vmul.f32 %v4256, %v4178
          %v4258 = vmul.f32 %v4256, %v4179
          %v4259 = vmul.f32 %v4256, %v4180
          %v4260 = vmul.f32 %v4256, %v4181
          %v4261 = vmul.f32 %v4256, %v4182
          %v4262 = vmul.f32 %v4256, %v4183
          %v4263 = vmul.f32 %v4256, %v4184
          %v4264 = vmul.f32 %v4256, %v4185
          %4273 = vrot.lane.b32.xlu0 %v4257, 126
          %v4274 = vpop.permute.xlu0 %4273
          %4275 = vrot.lane.b32.xlu0 %v4258, 126
          %v4276 = vpop.permute.xlu0 %4275
          %4277 = vrot.lane.b32.xlu0 %v4259, 126
          %v4278 = vpop.permute.xlu0 %4277
          %4279 = vrot.lane.b32.xlu0 %v4260, 126
          %v4280 = vpop.permute.xlu0 %4279
          %4281 = vrot.lane.b32.xlu0 %v4261, 126
          %v4282 = vpop.permute.xlu0 %4281
          %4283 = vrot.lane.b32.xlu0 %v4262, 126
          %v4284 = vpop.permute.xlu0 %4283
          %4285 = vrot.lane.b32.xlu0 %v4263, 126
          %v4286 = vpop.permute.xlu0 %4285
          %4287 = vrot.lane.b32.xlu0 %v4264, 126
          %v4288 = vpop.permute.xlu0 %4287
          %v4297 = vadd.f32 %v4246, %v4274
          %v4298 = vadd.f32 %v4247, %v4276
          %v4299 = vadd.f32 %v4248, %v4278
          %v4300 = vadd.f32 %v4249, %v4280
          %v4301 = vadd.f32 %v4250, %v4282
          %v4302 = vadd.f32 %v4251, %v4284
          %v4303 = vadd.f32 %v4252, %v4286
          %v4304 = vadd.f32 %v4253, %v4288
          %s4305 = sadd.s32 %s3142, 27
          %s4306 = sld [smem:[#allocation7 + %s4305]]
          %s4307 = scalar_lea.vmem [#allocation2], 192
          %v4308 = vld [vmem:[%s4307] sm:$0xff]
          %v4309 = vld [vmem:[%s4307 + $0x8] sm:$0xff]
          %v4310 = vld [vmem:[%s4307 + $0x10] sm:$0xff]
          %v4311 = vld [vmem:[%s4307 + $0x18] sm:$0xff]
          %v4312 = vld [vmem:[%s4307 + $0x20] sm:$0xff]
          %v4313 = vld [vmem:[%s4307 + $0x28] sm:$0xff]
          %v4314 = vld [vmem:[%s4307 + $0x30] sm:$0xff]
          %v4315 = vld [vmem:[%s4307 + $0x38] sm:$0x3]
          %v4316 = vstv %s4306
          %v4317 = vmul.f32 %v4316, %v4308
          %v4318 = vmul.f32 %v4316, %v4309
          %v4319 = vmul.f32 %v4316, %v4310
          %v4320 = vmul.f32 %v4316, %v4311
          %v4321 = vmul.f32 %v4316, %v4312
          %v4322 = vmul.f32 %v4316, %v4313
          %v4323 = vmul.f32 %v4316, %v4314
          %v4324 = vmul.f32 %v4316, %v4315
          %v4325 = vadd.f32 %v4297, %v4317
          %v4326 = vadd.f32 %v4298, %v4318
          %v4327 = vadd.f32 %v4299, %v4319
          %v4328 = vadd.f32 %v4300, %v4320
          %v4329 = vadd.f32 %v4301, %v4321
          %v4330 = vadd.f32 %v4302, %v4322
          %v4331 = vadd.f32 %v4303, %v4323
          %v4332 = vadd.f32 %v4304, %v4324
          %s4333 = sadd.s32 %s3142, 28
          %s4334 = sld [smem:[#allocation7 + %s4333]]
          %v4335 = vstv %s4334
          %v4336 = vmul.f32 %v4335, %v4308
          %v4337 = vmul.f32 %v4335, %v4309
          %v4338 = vmul.f32 %v4335, %v4310
          %v4339 = vmul.f32 %v4335, %v4311
          %v4340 = vmul.f32 %v4335, %v4312
          %v4341 = vmul.f32 %v4335, %v4313
          %v4342 = vmul.f32 %v4335, %v4314
          %v4343 = vmul.f32 %v4335, %v4315
          %4352 = vrot.lane.b32.xlu0 %v4336, 127
          %v4353 = vpop.permute.xlu0 %4352
          %4354 = vrot.lane.b32.xlu0 %v4337, 127
          %v4355 = vpop.permute.xlu0 %4354
          %4356 = vrot.lane.b32.xlu0 %v4338, 127
          %v4357 = vpop.permute.xlu0 %4356
          %4358 = vrot.lane.b32.xlu0 %v4339, 127
          %v4359 = vpop.permute.xlu0 %4358
          %4360 = vrot.lane.b32.xlu0 %v4340, 127
          %v4361 = vpop.permute.xlu0 %4360
          %4362 = vrot.lane.b32.xlu0 %v4341, 127
          %v4363 = vpop.permute.xlu0 %4362
          %4364 = vrot.lane.b32.xlu0 %v4342, 127
          %v4365 = vpop.permute.xlu0 %4364
          %4366 = vrot.lane.b32.xlu0 %v4343, 127
          %v4367 = vpop.permute.xlu0 %4366
          %v4376 = vadd.f32 %v4325, %v4353
          %v4377 = vadd.f32 %v4326, %v4355
          %v4378 = vadd.f32 %v4327, %v4357
          %v4379 = vadd.f32 %v4328, %v4359
          %v4380 = vadd.f32 %v4329, %v4361
          %v4381 = vadd.f32 %v4330, %v4363
          %v4382 = vadd.f32 %v4331, %v4365
          %v4383 = vadd.f32 %v4332, %v4367
          %s4384 = sadd.s32 %s3142, 29
          %s4385 = sld [smem:[#allocation7 + %s4384]]
          %v4386 = vstv %s4385
          %v4387 = vmul.f32 %v4386, %v4308
          %v4388 = vmul.f32 %v4386, %v4309
          %v4389 = vmul.f32 %v4386, %v4310
          %v4390 = vmul.f32 %v4386, %v4311
          %v4391 = vmul.f32 %v4386, %v4312
          %v4392 = vmul.f32 %v4386, %v4313
          %v4393 = vmul.f32 %v4386, %v4314
          %v4394 = vmul.f32 %v4386, %v4315
          %4403 = vrot.lane.b32.xlu0 %v4387, 126
          %v4404 = vpop.permute.xlu0 %4403
          %4405 = vrot.lane.b32.xlu0 %v4388, 126
          %v4406 = vpop.permute.xlu0 %4405
          %4407 = vrot.lane.b32.xlu0 %v4389, 126
          %v4408 = vpop.permute.xlu0 %4407
          %4409 = vrot.lane.b32.xlu0 %v4390, 126
          %v4410 = vpop.permute.xlu0 %4409
          %4411 = vrot.lane.b32.xlu0 %v4391, 126
          %v4412 = vpop.permute.xlu0 %4411
          %4413 = vrot.lane.b32.xlu0 %v4392, 126
          %v4414 = vpop.permute.xlu0 %4413
          %4415 = vrot.lane.b32.xlu0 %v4393, 126
          %v4416 = vpop.permute.xlu0 %4415
          %4417 = vrot.lane.b32.xlu0 %v4394, 126
          %v4418 = vpop.permute.xlu0 %4417
          %v4427 = vadd.f32 %v4376, %v4404
          %v4428 = vadd.f32 %v4377, %v4406
          %v4429 = vadd.f32 %v4378, %v4408
          %v4430 = vadd.f32 %v4379, %v4410
          %v4431 = vadd.f32 %v4380, %v4412
          %v4432 = vadd.f32 %v4381, %v4414
          %v4433 = vadd.f32 %v4382, %v4416
          %v4434 = vadd.f32 %v4383, %v4418
          %s4435 = sadd.s32 %s3142, 30
          %s4436 = sld [smem:[#allocation7 + %s4435]]
          %v4437 = vld [vmem:[%s4307 + $0x1] sm:$0xff]
          %v4438 = vld [vmem:[%s4307 + $0x9] sm:$0xff]
          %v4439 = vld [vmem:[%s4307 + $0x11] sm:$0xff]
          %v4440 = vld [vmem:[%s4307 + $0x19] sm:$0xff]
          %v4441 = vld [vmem:[%s4307 + $0x21] sm:$0xff]
          %v4442 = vld [vmem:[%s4307 + $0x29] sm:$0xff]
          %v4443 = vld [vmem:[%s4307 + $0x31] sm:$0xff]
          %v4444 = vld [vmem:[%s4307 + $0x39] sm:$0x3]
          %v4445 = vstv %s4436
          %v4446 = vmul.f32 %v4445, %v4437
          %v4447 = vmul.f32 %v4445, %v4438
          %v4448 = vmul.f32 %v4445, %v4439
          %v4449 = vmul.f32 %v4445, %v4440
          %v4450 = vmul.f32 %v4445, %v4441
          %v4451 = vmul.f32 %v4445, %v4442
          %v4452 = vmul.f32 %v4445, %v4443
          %v4453 = vmul.f32 %v4445, %v4444
          %v4454 = vadd.f32 %v4427, %v4446
          %v4455 = vadd.f32 %v4428, %v4447
          %v4456 = vadd.f32 %v4429, %v4448
          %v4457 = vadd.f32 %v4430, %v4449
          %v4458 = vadd.f32 %v4431, %v4450
          %v4459 = vadd.f32 %v4432, %v4451
          %v4460 = vadd.f32 %v4433, %v4452
          %v4461 = vadd.f32 %v4434, %v4453
          %s4462 = sadd.s32 %s3142, 31
          %s4463 = sld [smem:[#allocation7 + %s4462]]
          %v4464 = vstv %s4463
          %v4465 = vmul.f32 %v4464, %v4437
          %v4466 = vmul.f32 %v4464, %v4438
          %v4467 = vmul.f32 %v4464, %v4439
          %v4468 = vmul.f32 %v4464, %v4440
          %v4469 = vmul.f32 %v4464, %v4441
          %v4470 = vmul.f32 %v4464, %v4442
          %v4471 = vmul.f32 %v4464, %v4443
          %v4472 = vmul.f32 %v4464, %v4444
          %4481 = vrot.lane.b32.xlu0 %v4465, 127
          %v4482 = vpop.permute.xlu0 %4481
          %4483 = vrot.lane.b32.xlu0 %v4466, 127
          %v4484 = vpop.permute.xlu0 %4483
          %4485 = vrot.lane.b32.xlu0 %v4467, 127
          %v4486 = vpop.permute.xlu0 %4485
          %4487 = vrot.lane.b32.xlu0 %v4468, 127
          %v4488 = vpop.permute.xlu0 %4487
          %4489 = vrot.lane.b32.xlu0 %v4469, 127
          %v4490 = vpop.permute.xlu0 %4489
          %4491 = vrot.lane.b32.xlu0 %v4470, 127
          %v4492 = vpop.permute.xlu0 %4491
          %4493 = vrot.lane.b32.xlu0 %v4471, 127
          %v4494 = vpop.permute.xlu0 %4493
          %4495 = vrot.lane.b32.xlu0 %v4472, 127
          %v4496 = vpop.permute.xlu0 %4495
          %v4505 = vadd.f32 %v4454, %v4482
          %v4506 = vadd.f32 %v4455, %v4484
          %v4507 = vadd.f32 %v4456, %v4486
          %v4508 = vadd.f32 %v4457, %v4488
          %v4509 = vadd.f32 %v4458, %v4490
          %v4510 = vadd.f32 %v4459, %v4492
          %v4511 = vadd.f32 %v4460, %v4494
          %v4512 = vadd.f32 %v4461, %v4496
          %s4513 = sadd.s32 %s3142, 32
          %s4514 = sld [smem:[#allocation7 + %s4513]]
          %v4515 = vstv %s4514
          %v4516 = vmul.f32 %v4515, %v4437
          %v4517 = vmul.f32 %v4515, %v4438
          %v4518 = vmul.f32 %v4515, %v4439
          %v4519 = vmul.f32 %v4515, %v4440
          %v4520 = vmul.f32 %v4515, %v4441
          %v4521 = vmul.f32 %v4515, %v4442
          %v4522 = vmul.f32 %v4515, %v4443
          %v4523 = vmul.f32 %v4515, %v4444
          %4532 = vrot.lane.b32.xlu0 %v4516, 126
          %v4533 = vpop.permute.xlu0 %4532
          %4534 = vrot.lane.b32.xlu0 %v4517, 126
          %v4535 = vpop.permute.xlu0 %4534
          %4536 = vrot.lane.b32.xlu0 %v4518, 126
          %v4537 = vpop.permute.xlu0 %4536
          %4538 = vrot.lane.b32.xlu0 %v4519, 126
          %v4539 = vpop.permute.xlu0 %4538
          %4540 = vrot.lane.b32.xlu0 %v4520, 126
          %v4541 = vpop.permute.xlu0 %4540
          %4542 = vrot.lane.b32.xlu0 %v4521, 126
          %v4543 = vpop.permute.xlu0 %4542
          %4544 = vrot.lane.b32.xlu0 %v4522, 126
          %v4545 = vpop.permute.xlu0 %4544
          %4546 = vrot.lane.b32.xlu0 %v4523, 126
          %v4547 = vpop.permute.xlu0 %4546
          %v4556 = vadd.f32 %v4505, %v4533
          %v4557 = vadd.f32 %v4506, %v4535
          %v4558 = vadd.f32 %v4507, %v4537
          %v4559 = vadd.f32 %v4508, %v4539
          %v4560 = vadd.f32 %v4509, %v4541
          %v4561 = vadd.f32 %v4510, %v4543
          %v4562 = vadd.f32 %v4511, %v4545
          %v4563 = vadd.f32 %v4512, %v4547
          %s4564 = sadd.s32 %s3142, 33
          %s4565 = sld [smem:[#allocation7 + %s4564]]
          %v4566 = vld [vmem:[%s4307 + $0x2] sm:$0xff]
          %v4567 = vld [vmem:[%s4307 + $0xa] sm:$0xff]
          %v4568 = vld [vmem:[%s4307 + $0x12] sm:$0xff]
          %v4569 = vld [vmem:[%s4307 + $0x1a] sm:$0xff]
          %v4570 = vld [vmem:[%s4307 + $0x22] sm:$0xff]
          %v4571 = vld [vmem:[%s4307 + $0x2a] sm:$0xff]
          %v4572 = vld [vmem:[%s4307 + $0x32] sm:$0xff]
          %v4573 = vld [vmem:[%s4307 + $0x3a] sm:$0x3]
          %v4574 = vstv %s4565
          %v4575 = vmul.f32 %v4574, %v4566
          %v4576 = vmul.f32 %v4574, %v4567
          %v4577 = vmul.f32 %v4574, %v4568
          %v4578 = vmul.f32 %v4574, %v4569
          %v4579 = vmul.f32 %v4574, %v4570
          %v4580 = vmul.f32 %v4574, %v4571
          %v4581 = vmul.f32 %v4574, %v4572
          %v4582 = vmul.f32 %v4574, %v4573
          %v4583 = vadd.f32 %v4556, %v4575
          %v4584 = vadd.f32 %v4557, %v4576
          %v4585 = vadd.f32 %v4558, %v4577
          %v4586 = vadd.f32 %v4559, %v4578
          %v4587 = vadd.f32 %v4560, %v4579
          %v4588 = vadd.f32 %v4561, %v4580
          %v4589 = vadd.f32 %v4562, %v4581
          %v4590 = vadd.f32 %v4563, %v4582
          %s4591 = sadd.s32 %s3142, 34
          %s4592 = sld [smem:[#allocation7 + %s4591]]
          %v4593 = vstv %s4592
          %v4594 = vmul.f32 %v4593, %v4566
          %v4595 = vmul.f32 %v4593, %v4567
          %v4596 = vmul.f32 %v4593, %v4568
          %v4597 = vmul.f32 %v4593, %v4569
          %v4598 = vmul.f32 %v4593, %v4570
          %v4599 = vmul.f32 %v4593, %v4571
          %v4600 = vmul.f32 %v4593, %v4572
          %v4601 = vmul.f32 %v4593, %v4573
          %4610 = vrot.lane.b32.xlu0 %v4594, 127
          %v4611 = vpop.permute.xlu0 %4610
          %4612 = vrot.lane.b32.xlu0 %v4595, 127
          %v4613 = vpop.permute.xlu0 %4612
          %4614 = vrot.lane.b32.xlu0 %v4596, 127
          %v4615 = vpop.permute.xlu0 %4614
          %4616 = vrot.lane.b32.xlu0 %v4597, 127
          %v4617 = vpop.permute.xlu0 %4616
          %4618 = vrot.lane.b32.xlu0 %v4598, 127
          %v4619 = vpop.permute.xlu0 %4618
          %4620 = vrot.lane.b32.xlu0 %v4599, 127
          %v4621 = vpop.permute.xlu0 %4620
          %4622 = vrot.lane.b32.xlu0 %v4600, 127
          %v4623 = vpop.permute.xlu0 %4622
          %4624 = vrot.lane.b32.xlu0 %v4601, 127
          %v4625 = vpop.permute.xlu0 %4624
          %v4634 = vadd.f32 %v4583, %v4611
          %v4635 = vadd.f32 %v4584, %v4613
          %v4636 = vadd.f32 %v4585, %v4615
          %v4637 = vadd.f32 %v4586, %v4617
          %v4638 = vadd.f32 %v4587, %v4619
          %v4639 = vadd.f32 %v4588, %v4621
          %v4640 = vadd.f32 %v4589, %v4623
          %v4641 = vadd.f32 %v4590, %v4625
          %s4642 = sadd.s32 %s3142, 35
          %s4643 = sld [smem:[#allocation7 + %s4642]]
          %v4644 = vstv %s4643
          %v4645 = vmul.f32 %v4644, %v4566
          %v4646 = vmul.f32 %v4644, %v4567
          %v4647 = vmul.f32 %v4644, %v4568
          %v4648 = vmul.f32 %v4644, %v4569
          %v4649 = vmul.f32 %v4644, %v4570
          %v4650 = vmul.f32 %v4644, %v4571
          %v4651 = vmul.f32 %v4644, %v4572
          %v4652 = vmul.f32 %v4644, %v4573
          %4661 = vrot.lane.b32.xlu0 %v4645, 126
          %v4662 = vpop.permute.xlu0 %4661
          %4663 = vrot.lane.b32.xlu0 %v4646, 126
          %v4664 = vpop.permute.xlu0 %4663
          %4665 = vrot.lane.b32.xlu0 %v4647, 126
          %v4666 = vpop.permute.xlu0 %4665
          %4667 = vrot.lane.b32.xlu0 %v4648, 126
          %v4668 = vpop.permute.xlu0 %4667
          %4669 = vrot.lane.b32.xlu0 %v4649, 126
          %v4670 = vpop.permute.xlu0 %4669
          %4671 = vrot.lane.b32.xlu0 %v4650, 126
          %v4672 = vpop.permute.xlu0 %4671
          %4673 = vrot.lane.b32.xlu0 %v4651, 126
          %v4674 = vpop.permute.xlu0 %4673
          %4675 = vrot.lane.b32.xlu0 %v4652, 126
          %v4676 = vpop.permute.xlu0 %4675
          %v4685 = vadd.f32 %v4634, %v4662
          %v4686 = vadd.f32 %v4635, %v4664
          %v4687 = vadd.f32 %v4636, %v4666
          %v4688 = vadd.f32 %v4637, %v4668
          %v4689 = vadd.f32 %v4638, %v4670
          %v4690 = vadd.f32 %v4639, %v4672
          %v4691 = vadd.f32 %v4640, %v4674
          %v4692 = vadd.f32 %v4641, %v4676
          %s4693 = sadd.s32 %s3142, 36
          %s4694 = sld [smem:[#allocation7 + %s4693]]
          %s4695 = scalar_lea.vmem [#allocation2], 256
          %v4696 = vld [vmem:[%s4695] sm:$0xff]
          %v4697 = vld [vmem:[%s4695 + $0x8] sm:$0xff]
          %v4698 = vld [vmem:[%s4695 + $0x10] sm:$0xff]
          %v4699 = vld [vmem:[%s4695 + $0x18] sm:$0xff]
          %v4700 = vld [vmem:[%s4695 + $0x20] sm:$0xff]
          %v4701 = vld [vmem:[%s4695 + $0x28] sm:$0xff]
          %v4702 = vld [vmem:[%s4695 + $0x30] sm:$0xff]
          %v4703 = vld [vmem:[%s4695 + $0x38] sm:$0x3]
          %v4704 = vstv %s4694
          %v4705 = vmul.f32 %v4704, %v4696
          %v4706 = vmul.f32 %v4704, %v4697
          %v4707 = vmul.f32 %v4704, %v4698
          %v4708 = vmul.f32 %v4704, %v4699
          %v4709 = vmul.f32 %v4704, %v4700
          %v4710 = vmul.f32 %v4704, %v4701
          %v4711 = vmul.f32 %v4704, %v4702
          %v4712 = vmul.f32 %v4704, %v4703
          %v4713 = vadd.f32 %v4685, %v4705
          %v4714 = vadd.f32 %v4686, %v4706
          %v4715 = vadd.f32 %v4687, %v4707
          %v4716 = vadd.f32 %v4688, %v4708
          %v4717 = vadd.f32 %v4689, %v4709
          %v4718 = vadd.f32 %v4690, %v4710
          %v4719 = vadd.f32 %v4691, %v4711
          %v4720 = vadd.f32 %v4692, %v4712
          %s4721 = sadd.s32 %s3142, 37
          %s4722 = sld [smem:[#allocation7 + %s4721]]
          %v4723 = vstv %s4722
          %v4724 = vmul.f32 %v4723, %v4696
          %v4725 = vmul.f32 %v4723, %v4697
          %v4726 = vmul.f32 %v4723, %v4698
          %v4727 = vmul.f32 %v4723, %v4699
          %v4728 = vmul.f32 %v4723, %v4700
          %v4729 = vmul.f32 %v4723, %v4701
          %v4730 = vmul.f32 %v4723, %v4702
          %v4731 = vmul.f32 %v4723, %v4703
          %4740 = vrot.lane.b32.xlu0 %v4724, 127
          %v4741 = vpop.permute.xlu0 %4740
          %4742 = vrot.lane.b32.xlu0 %v4725, 127
          %v4743 = vpop.permute.xlu0 %4742
          %4744 = vrot.lane.b32.xlu0 %v4726, 127
          %v4745 = vpop.permute.xlu0 %4744
          %4746 = vrot.lane.b32.xlu0 %v4727, 127
          %v4747 = vpop.permute.xlu0 %4746
          %4748 = vrot.lane.b32.xlu0 %v4728, 127
          %v4749 = vpop.permute.xlu0 %4748
          %4750 = vrot.lane.b32.xlu0 %v4729, 127
          %v4751 = vpop.permute.xlu0 %4750
          %4752 = vrot.lane.b32.xlu0 %v4730, 127
          %v4753 = vpop.permute.xlu0 %4752
          %4754 = vrot.lane.b32.xlu0 %v4731, 127
          %v4755 = vpop.permute.xlu0 %4754
          %v4764 = vadd.f32 %v4713, %v4741
          %v4765 = vadd.f32 %v4714, %v4743
          %v4766 = vadd.f32 %v4715, %v4745
          %v4767 = vadd.f32 %v4716, %v4747
          %v4768 = vadd.f32 %v4717, %v4749
          %v4769 = vadd.f32 %v4718, %v4751
          %v4770 = vadd.f32 %v4719, %v4753
          %v4771 = vadd.f32 %v4720, %v4755
          %s4772 = sadd.s32 %s3142, 38
          %s4773 = sld [smem:[#allocation7 + %s4772]]
          %v4774 = vstv %s4773
          %v4775 = vmul.f32 %v4774, %v4696
          %v4776 = vmul.f32 %v4774, %v4697
          %v4777 = vmul.f32 %v4774, %v4698
          %v4778 = vmul.f32 %v4774, %v4699
          %v4779 = vmul.f32 %v4774, %v4700
          %v4780 = vmul.f32 %v4774, %v4701
          %v4781 = vmul.f32 %v4774, %v4702
          %v4782 = vmul.f32 %v4774, %v4703
          %4791 = vrot.lane.b32.xlu0 %v4775, 126
          %v4792 = vpop.permute.xlu0 %4791
          %4793 = vrot.lane.b32.xlu0 %v4776, 126
          %v4794 = vpop.permute.xlu0 %4793
          %4795 = vrot.lane.b32.xlu0 %v4777, 126
          %v4796 = vpop.permute.xlu0 %4795
          %4797 = vrot.lane.b32.xlu0 %v4778, 126
          %v4798 = vpop.permute.xlu0 %4797
          %4799 = vrot.lane.b32.xlu0 %v4779, 126
          %v4800 = vpop.permute.xlu0 %4799
          %4801 = vrot.lane.b32.xlu0 %v4780, 126
          %v4802 = vpop.permute.xlu0 %4801
          %4803 = vrot.lane.b32.xlu0 %v4781, 126
          %v4804 = vpop.permute.xlu0 %4803
          %4805 = vrot.lane.b32.xlu0 %v4782, 126
          %v4806 = vpop.permute.xlu0 %4805
          %v4815 = vadd.f32 %v4764, %v4792
          %v4816 = vadd.f32 %v4765, %v4794
          %v4817 = vadd.f32 %v4766, %v4796
          %v4818 = vadd.f32 %v4767, %v4798
          %v4819 = vadd.f32 %v4768, %v4800
          %v4820 = vadd.f32 %v4769, %v4802
          %v4821 = vadd.f32 %v4770, %v4804
          %v4822 = vadd.f32 %v4771, %v4806
          %s4823 = sadd.s32 %s3142, 39
          %s4824 = sld [smem:[#allocation7 + %s4823]]
          %v4825 = vld [vmem:[%s4695 + $0x1] sm:$0xff]
          %v4826 = vld [vmem:[%s4695 + $0x9] sm:$0xff]
          %v4827 = vld [vmem:[%s4695 + $0x11] sm:$0xff]
          %v4828 = vld [vmem:[%s4695 + $0x19] sm:$0xff]
          %v4829 = vld [vmem:[%s4695 + $0x21] sm:$0xff]
          %v4830 = vld [vmem:[%s4695 + $0x29] sm:$0xff]
          %v4831 = vld [vmem:[%s4695 + $0x31] sm:$0xff]
          %v4832 = vld [vmem:[%s4695 + $0x39] sm:$0x3]
          %v4833 = vstv %s4824
          %v4834 = vmul.f32 %v4833, %v4825
          %v4835 = vmul.f32 %v4833, %v4826
          %v4836 = vmul.f32 %v4833, %v4827
          %v4837 = vmul.f32 %v4833, %v4828
          %v4838 = vmul.f32 %v4833, %v4829
          %v4839 = vmul.f32 %v4833, %v4830
          %v4840 = vmul.f32 %v4833, %v4831
          %v4841 = vmul.f32 %v4833, %v4832
          %v4842 = vadd.f32 %v4815, %v4834
          %v4843 = vadd.f32 %v4816, %v4835
          %v4844 = vadd.f32 %v4817, %v4836
          %v4845 = vadd.f32 %v4818, %v4837
          %v4846 = vadd.f32 %v4819, %v4838
          %v4847 = vadd.f32 %v4820, %v4839
          %v4848 = vadd.f32 %v4821, %v4840
          %v4849 = vadd.f32 %v4822, %v4841
          %s4850 = sadd.s32 %s3142, 40
          %s4851 = sld [smem:[#allocation7 + %s4850]]
          %v4852 = vstv %s4851
          %v4853 = vmul.f32 %v4852, %v4825
          %v4854 = vmul.f32 %v4852, %v4826
          %v4855 = vmul.f32 %v4852, %v4827
          %v4856 = vmul.f32 %v4852, %v4828
          %v4857 = vmul.f32 %v4852, %v4829
          %v4858 = vmul.f32 %v4852, %v4830
          %v4859 = vmul.f32 %v4852, %v4831
          %v4860 = vmul.f32 %v4852, %v4832
          %4869 = vrot.lane.b32.xlu0 %v4853, 127
          %v4870 = vpop.permute.xlu0 %4869
          %4871 = vrot.lane.b32.xlu0 %v4854, 127
          %v4872 = vpop.permute.xlu0 %4871
          %4873 = vrot.lane.b32.xlu0 %v4855, 127
          %v4874 = vpop.permute.xlu0 %4873
          %4875 = vrot.lane.b32.xlu0 %v4856, 127
          %v4876 = vpop.permute.xlu0 %4875
          %4877 = vrot.lane.b32.xlu0 %v4857, 127
          %v4878 = vpop.permute.xlu0 %4877
          %4879 = vrot.lane.b32.xlu0 %v4858, 127
          %v4880 = vpop.permute.xlu0 %4879
          %4881 = vrot.lane.b32.xlu0 %v4859, 127
          %v4882 = vpop.permute.xlu0 %4881
          %4883 = vrot.lane.b32.xlu0 %v4860, 127
          %v4884 = vpop.permute.xlu0 %4883
          %v4893 = vadd.f32 %v4842, %v4870
          %v4894 = vadd.f32 %v4843, %v4872
          %v4895 = vadd.f32 %v4844, %v4874
          %v4896 = vadd.f32 %v4845, %v4876
          %v4897 = vadd.f32 %v4846, %v4878
          %v4898 = vadd.f32 %v4847, %v4880
          %v4899 = vadd.f32 %v4848, %v4882
          %v4900 = vadd.f32 %v4849, %v4884
          %s4901 = sadd.s32 %s3142, 41
          %s4902 = sld [smem:[#allocation7 + %s4901]]
          %v4903 = vstv %s4902
          %v4904 = vmul.f32 %v4903, %v4825
          %v4905 = vmul.f32 %v4903, %v4826
          %v4906 = vmul.f32 %v4903, %v4827
          %v4907 = vmul.f32 %v4903, %v4828
          %v4908 = vmul.f32 %v4903, %v4829
          %v4909 = vmul.f32 %v4903, %v4830
          %v4910 = vmul.f32 %v4903, %v4831
          %v4911 = vmul.f32 %v4903, %v4832
          %4920 = vrot.lane.b32.xlu0 %v4904, 126
          %v4921 = vpop.permute.xlu0 %4920
          %4922 = vrot.lane.b32.xlu0 %v4905, 126
          %v4923 = vpop.permute.xlu0 %4922
          %4924 = vrot.lane.b32.xlu0 %v4906, 126
          %v4925 = vpop.permute.xlu0 %4924
          %4926 = vrot.lane.b32.xlu0 %v4907, 126
          %v4927 = vpop.permute.xlu0 %4926
          %4928 = vrot.lane.b32.xlu0 %v4908, 126
          %v4929 = vpop.permute.xlu0 %4928
          %4930 = vrot.lane.b32.xlu0 %v4909, 126
          %v4931 = vpop.permute.xlu0 %4930
          %4932 = vrot.lane.b32.xlu0 %v4910, 126
          %v4933 = vpop.permute.xlu0 %4932
          %4934 = vrot.lane.b32.xlu0 %v4911, 126
          %v4935 = vpop.permute.xlu0 %4934
          %v4944 = vadd.f32 %v4893, %v4921
          %v4945 = vadd.f32 %v4894, %v4923
          %v4946 = vadd.f32 %v4895, %v4925
          %v4947 = vadd.f32 %v4896, %v4927
          %v4948 = vadd.f32 %v4897, %v4929
          %v4949 = vadd.f32 %v4898, %v4931
          %v4950 = vadd.f32 %v4899, %v4933
          %v4951 = vadd.f32 %v4900, %v4935
          %s4952 = sadd.s32 %s3142, 42
          %s4953 = sld [smem:[#allocation7 + %s4952]]
          %v4954 = vld [vmem:[%s4695 + $0x2] sm:$0xff]
          %v4955 = vld [vmem:[%s4695 + $0xa] sm:$0xff]
          %v4956 = vld [vmem:[%s4695 + $0x12] sm:$0xff]
          %v4957 = vld [vmem:[%s4695 + $0x1a] sm:$0xff]
          %v4958 = vld [vmem:[%s4695 + $0x22] sm:$0xff]
          %v4959 = vld [vmem:[%s4695 + $0x2a] sm:$0xff]
          %v4960 = vld [vmem:[%s4695 + $0x32] sm:$0xff]
          %v4961 = vld [vmem:[%s4695 + $0x3a] sm:$0x3]
          %v4962 = vstv %s4953
          %v4963 = vmul.f32 %v4962, %v4954
          %v4964 = vmul.f32 %v4962, %v4955
          %v4965 = vmul.f32 %v4962, %v4956
          %v4966 = vmul.f32 %v4962, %v4957
          %v4967 = vmul.f32 %v4962, %v4958
          %v4968 = vmul.f32 %v4962, %v4959
          %v4969 = vmul.f32 %v4962, %v4960
          %v4970 = vmul.f32 %v4962, %v4961
          %v4971 = vadd.f32 %v4944, %v4963
          %v4972 = vadd.f32 %v4945, %v4964
          %v4973 = vadd.f32 %v4946, %v4965
          %v4974 = vadd.f32 %v4947, %v4966
          %v4975 = vadd.f32 %v4948, %v4967
          %v4976 = vadd.f32 %v4949, %v4968
          %v4977 = vadd.f32 %v4950, %v4969
          %v4978 = vadd.f32 %v4951, %v4970
          %s4979 = sadd.s32 %s3142, 43
          %s4980 = sld [smem:[#allocation7 + %s4979]]
          %v4981 = vstv %s4980
          %v4982 = vmul.f32 %v4981, %v4954
          %v4983 = vmul.f32 %v4981, %v4955
          %v4984 = vmul.f32 %v4981, %v4956
          %v4985 = vmul.f32 %v4981, %v4957
          %v4986 = vmul.f32 %v4981, %v4958
          %v4987 = vmul.f32 %v4981, %v4959
          %v4988 = vmul.f32 %v4981, %v4960
          %v4989 = vmul.f32 %v4981, %v4961
          %4998 = vrot.lane.b32.xlu0 %v4982, 127
          %v4999 = vpop.permute.xlu0 %4998
          %5000 = vrot.lane.b32.xlu0 %v4983, 127
          %v5001 = vpop.permute.xlu0 %5000
          %5002 = vrot.lane.b32.xlu0 %v4984, 127
          %v5003 = vpop.permute.xlu0 %5002
          %5004 = vrot.lane.b32.xlu0 %v4985, 127
          %v5005 = vpop.permute.xlu0 %5004
          %5006 = vrot.lane.b32.xlu0 %v4986, 127
          %v5007 = vpop.permute.xlu0 %5006
          %5008 = vrot.lane.b32.xlu0 %v4987, 127
          %v5009 = vpop.permute.xlu0 %5008
          %5010 = vrot.lane.b32.xlu0 %v4988, 127
          %v5011 = vpop.permute.xlu0 %5010
          %5012 = vrot.lane.b32.xlu0 %v4989, 127
          %v5013 = vpop.permute.xlu0 %5012
          %v5022 = vadd.f32 %v4971, %v4999
          %v5023 = vadd.f32 %v4972, %v5001
          %v5024 = vadd.f32 %v4973, %v5003
          %v5025 = vadd.f32 %v4974, %v5005
          %v5026 = vadd.f32 %v4975, %v5007
          %v5027 = vadd.f32 %v4976, %v5009
          %v5028 = vadd.f32 %v4977, %v5011
          %v5029 = vadd.f32 %v4978, %v5013
          %s5030 = sadd.s32 %s3142, 44
          %s5031 = sld [smem:[#allocation7 + %s5030]]
          %v5032 = vstv %s5031
          %v5033 = vmul.f32 %v5032, %v4954
          %v5034 = vmul.f32 %v5032, %v4955
          %v5035 = vmul.f32 %v5032, %v4956
          %v5036 = vmul.f32 %v5032, %v4957
          %v5037 = vmul.f32 %v5032, %v4958
          %v5038 = vmul.f32 %v5032, %v4959
          %v5039 = vmul.f32 %v5032, %v4960
          %v5040 = vmul.f32 %v5032, %v4961
          %5049 = vrot.lane.b32.xlu0 %v5033, 126
          %v5050 = vpop.permute.xlu0 %5049
          %5051 = vrot.lane.b32.xlu0 %v5034, 126
          %v5052 = vpop.permute.xlu0 %5051
          %5053 = vrot.lane.b32.xlu0 %v5035, 126
          %v5054 = vpop.permute.xlu0 %5053
          %5055 = vrot.lane.b32.xlu0 %v5036, 126
          %v5056 = vpop.permute.xlu0 %5055
          %5057 = vrot.lane.b32.xlu0 %v5037, 126
          %v5058 = vpop.permute.xlu0 %5057
          %5059 = vrot.lane.b32.xlu0 %v5038, 126
          %v5060 = vpop.permute.xlu0 %5059
          %5061 = vrot.lane.b32.xlu0 %v5039, 126
          %v5062 = vpop.permute.xlu0 %5061
          %5063 = vrot.lane.b32.xlu0 %v5040, 126
          %v5064 = vpop.permute.xlu0 %5063
          %v5073 = vadd.f32 %v5022, %v5050
          %v5074 = vadd.f32 %v5023, %v5052
          %v5075 = vadd.f32 %v5024, %v5054
          %v5076 = vadd.f32 %v5025, %v5056
          %v5077 = vadd.f32 %v5026, %v5058
          %v5078 = vadd.f32 %v5027, %v5060
          %v5079 = vadd.f32 %v5028, %v5062
          %v5080 = vadd.f32 %v5029, %v5064
          %s5081 = sadd.s32 %s3142, 45
          %s5082 = sld [smem:[#allocation7 + %s5081]]
          %s5083 = scalar_lea.vmem [#allocation2], 320
          %v5084 = vld [vmem:[%s5083] sm:$0xff]
          %v5085 = vld [vmem:[%s5083 + $0x8] sm:$0xff]
          %v5086 = vld [vmem:[%s5083 + $0x10] sm:$0xff]
          %v5087 = vld [vmem:[%s5083 + $0x18] sm:$0xff]
          %v5088 = vld [vmem:[%s5083 + $0x20] sm:$0xff]
          %v5089 = vld [vmem:[%s5083 + $0x28] sm:$0xff]
          %v5090 = vld [vmem:[%s5083 + $0x30] sm:$0xff]
          %v5091 = vld [vmem:[%s5083 + $0x38] sm:$0x3]
          %v5092 = vstv %s5082
          %v5093 = vmul.f32 %v5092, %v5084
          %v5094 = vmul.f32 %v5092, %v5085
          %v5095 = vmul.f32 %v5092, %v5086
          %v5096 = vmul.f32 %v5092, %v5087
          %v5097 = vmul.f32 %v5092, %v5088
          %v5098 = vmul.f32 %v5092, %v5089
          %v5099 = vmul.f32 %v5092, %v5090
          %v5100 = vmul.f32 %v5092, %v5091
          %v5101 = vadd.f32 %v5073, %v5093
          %v5102 = vadd.f32 %v5074, %v5094
          %v5103 = vadd.f32 %v5075, %v5095
          %v5104 = vadd.f32 %v5076, %v5096
          %v5105 = vadd.f32 %v5077, %v5097
          %v5106 = vadd.f32 %v5078, %v5098
          %v5107 = vadd.f32 %v5079, %v5099
          %v5108 = vadd.f32 %v5080, %v5100
          %s5109 = sadd.s32 %s3142, 46
          %s5110 = sld [smem:[#allocation7 + %s5109]]
          %v5111 = vstv %s5110
          %v5112 = vmul.f32 %v5111, %v5084
          %v5113 = vmul.f32 %v5111, %v5085
          %v5114 = vmul.f32 %v5111, %v5086
          %v5115 = vmul.f32 %v5111, %v5087
          %v5116 = vmul.f32 %v5111, %v5088
          %v5117 = vmul.f32 %v5111, %v5089
          %v5118 = vmul.f32 %v5111, %v5090
          %v5119 = vmul.f32 %v5111, %v5091
          %5128 = vrot.lane.b32.xlu0 %v5112, 127
          %v5129 = vpop.permute.xlu0 %5128
          %5130 = vrot.lane.b32.xlu0 %v5113, 127
          %v5131 = vpop.permute.xlu0 %5130
          %5132 = vrot.lane.b32.xlu0 %v5114, 127
          %v5133 = vpop.permute.xlu0 %5132
          %5134 = vrot.lane.b32.xlu0 %v5115, 127
          %v5135 = vpop.permute.xlu0 %5134
          %5136 = vrot.lane.b32.xlu0 %v5116, 127
          %v5137 = vpop.permute.xlu0 %5136
          %5138 = vrot.lane.b32.xlu0 %v5117, 127
          %v5139 = vpop.permute.xlu0 %5138
          %5140 = vrot.lane.b32.xlu0 %v5118, 127
          %v5141 = vpop.permute.xlu0 %5140
          %5142 = vrot.lane.b32.xlu0 %v5119, 127
          %v5143 = vpop.permute.xlu0 %5142
          %v5152 = vadd.f32 %v5101, %v5129
          %v5153 = vadd.f32 %v5102, %v5131
          %v5154 = vadd.f32 %v5103, %v5133
          %v5155 = vadd.f32 %v5104, %v5135
          %v5156 = vadd.f32 %v5105, %v5137
          %v5157 = vadd.f32 %v5106, %v5139
          %v5158 = vadd.f32 %v5107, %v5141
          %v5159 = vadd.f32 %v5108, %v5143
          %s5160 = sadd.s32 %s3142, 47
          %s5161 = sld [smem:[#allocation7 + %s5160]]
          %v5162 = vstv %s5161
          %v5163 = vmul.f32 %v5162, %v5084
          %v5164 = vmul.f32 %v5162, %v5085
          %v5165 = vmul.f32 %v5162, %v5086
          %v5166 = vmul.f32 %v5162, %v5087
          %v5167 = vmul.f32 %v5162, %v5088
          %v5168 = vmul.f32 %v5162, %v5089
          %v5169 = vmul.f32 %v5162, %v5090
          %v5170 = vmul.f32 %v5162, %v5091
          %5179 = vrot.lane.b32.xlu0 %v5163, 126
          %v5180 = vpop.permute.xlu0 %5179
          %5181 = vrot.lane.b32.xlu0 %v5164, 126
          %v5182 = vpop.permute.xlu0 %5181
          %5183 = vrot.lane.b32.xlu0 %v5165, 126
          %v5184 = vpop.permute.xlu0 %5183
          %5185 = vrot.lane.b32.xlu0 %v5166, 126
          %v5186 = vpop.permute.xlu0 %5185
          %5187 = vrot.lane.b32.xlu0 %v5167, 126
          %v5188 = vpop.permute.xlu0 %5187
          %5189 = vrot.lane.b32.xlu0 %v5168, 126
          %v5190 = vpop.permute.xlu0 %5189
          %5191 = vrot.lane.b32.xlu0 %v5169, 126
          %v5192 = vpop.permute.xlu0 %5191
          %5193 = vrot.lane.b32.xlu0 %v5170, 126
          %v5194 = vpop.permute.xlu0 %5193
          %v5203 = vadd.f32 %v5152, %v5180
          %v5204 = vadd.f32 %v5153, %v5182
          %v5205 = vadd.f32 %v5154, %v5184
          %v5206 = vadd.f32 %v5155, %v5186
          %v5207 = vadd.f32 %v5156, %v5188
          %v5208 = vadd.f32 %v5157, %v5190
          %v5209 = vadd.f32 %v5158, %v5192
          %v5210 = vadd.f32 %v5159, %v5194
          %s5211 = sadd.s32 %s3142, 48
          %s5212 = sld [smem:[#allocation7 + %s5211]]
          %v5213 = vld [vmem:[%s5083 + $0x1] sm:$0xff]
          %v5214 = vld [vmem:[%s5083 + $0x9] sm:$0xff]
          %v5215 = vld [vmem:[%s5083 + $0x11] sm:$0xff]
          %v5216 = vld [vmem:[%s5083 + $0x19] sm:$0xff]
          %v5217 = vld [vmem:[%s5083 + $0x21] sm:$0xff]
          %v5218 = vld [vmem:[%s5083 + $0x29] sm:$0xff]
          %v5219 = vld [vmem:[%s5083 + $0x31] sm:$0xff]
          %v5220 = vld [vmem:[%s5083 + $0x39] sm:$0x3]
          %v5221 = vstv %s5212
          %v5222 = vmul.f32 %v5221, %v5213
          %v5223 = vmul.f32 %v5221, %v5214
          %v5224 = vmul.f32 %v5221, %v5215
          %v5225 = vmul.f32 %v5221, %v5216
          %v5226 = vmul.f32 %v5221, %v5217
          %v5227 = vmul.f32 %v5221, %v5218
          %v5228 = vmul.f32 %v5221, %v5219
          %v5229 = vmul.f32 %v5221, %v5220
          %v5230 = vadd.f32 %v5203, %v5222
          %v5231 = vadd.f32 %v5204, %v5223
          %v5232 = vadd.f32 %v5205, %v5224
          %v5233 = vadd.f32 %v5206, %v5225
          %v5234 = vadd.f32 %v5207, %v5226
          %v5235 = vadd.f32 %v5208, %v5227
          %v5236 = vadd.f32 %v5209, %v5228
          %v5237 = vadd.f32 %v5210, %v5229
          %s5238 = sadd.s32 %s3142, 49
          %s5239 = sld [smem:[#allocation7 + %s5238]]
          %v5240 = vstv %s5239
          %v5241 = vmul.f32 %v5240, %v5213
          %v5242 = vmul.f32 %v5240, %v5214
          %v5243 = vmul.f32 %v5240, %v5215
          %v5244 = vmul.f32 %v5240, %v5216
          %v5245 = vmul.f32 %v5240, %v5217
          %v5246 = vmul.f32 %v5240, %v5218
          %v5247 = vmul.f32 %v5240, %v5219
          %v5248 = vmul.f32 %v5240, %v5220
          %5257 = vrot.lane.b32.xlu0 %v5241, 127
          %v5258 = vpop.permute.xlu0 %5257
          %5259 = vrot.lane.b32.xlu0 %v5242, 127
          %v5260 = vpop.permute.xlu0 %5259
          %5261 = vrot.lane.b32.xlu0 %v5243, 127
          %v5262 = vpop.permute.xlu0 %5261
          %5263 = vrot.lane.b32.xlu0 %v5244, 127
          %v5264 = vpop.permute.xlu0 %5263
          %5265 = vrot.lane.b32.xlu0 %v5245, 127
          %v5266 = vpop.permute.xlu0 %5265
          %5267 = vrot.lane.b32.xlu0 %v5246, 127
          %v5268 = vpop.permute.xlu0 %5267
          %5269 = vrot.lane.b32.xlu0 %v5247, 127
          %v5270 = vpop.permute.xlu0 %5269
          %5271 = vrot.lane.b32.xlu0 %v5248, 127
          %v5272 = vpop.permute.xlu0 %5271
          %v5281 = vadd.f32 %v5230, %v5258
          %v5282 = vadd.f32 %v5231, %v5260
          %v5283 = vadd.f32 %v5232, %v5262
          %v5284 = vadd.f32 %v5233, %v5264
          %v5285 = vadd.f32 %v5234, %v5266
          %v5286 = vadd.f32 %v5235, %v5268
          %v5287 = vadd.f32 %v5236, %v5270
          %v5288 = vadd.f32 %v5237, %v5272
          %s5289 = sadd.s32 %s3142, 50
          %s5290 = sld [smem:[#allocation7 + %s5289]]
          %v5291 = vstv %s5290
          %v5292 = vmul.f32 %v5291, %v5213
          %v5293 = vmul.f32 %v5291, %v5214
          %v5294 = vmul.f32 %v5291, %v5215
          %v5295 = vmul.f32 %v5291, %v5216
          %v5296 = vmul.f32 %v5291, %v5217
          %v5297 = vmul.f32 %v5291, %v5218
          %v5298 = vmul.f32 %v5291, %v5219
          %v5299 = vmul.f32 %v5291, %v5220
          %5308 = vrot.lane.b32.xlu0 %v5292, 126
          %v5309 = vpop.permute.xlu0 %5308
          %5310 = vrot.lane.b32.xlu0 %v5293, 126
          %v5311 = vpop.permute.xlu0 %5310
          %5312 = vrot.lane.b32.xlu0 %v5294, 126
          %v5313 = vpop.permute.xlu0 %5312
          %5314 = vrot.lane.b32.xlu0 %v5295, 126
          %v5315 = vpop.permute.xlu0 %5314
          %5316 = vrot.lane.b32.xlu0 %v5296, 126
          %v5317 = vpop.permute.xlu0 %5316
          %5318 = vrot.lane.b32.xlu0 %v5297, 126
          %v5319 = vpop.permute.xlu0 %5318
          %5320 = vrot.lane.b32.xlu0 %v5298, 126
          %v5321 = vpop.permute.xlu0 %5320
          %5322 = vrot.lane.b32.xlu0 %v5299, 126
          %v5323 = vpop.permute.xlu0 %5322
          %v5332 = vadd.f32 %v5281, %v5309
          %v5333 = vadd.f32 %v5282, %v5311
          %v5334 = vadd.f32 %v5283, %v5313
          %v5335 = vadd.f32 %v5284, %v5315
          %v5336 = vadd.f32 %v5285, %v5317
          %v5337 = vadd.f32 %v5286, %v5319
          %v5338 = vadd.f32 %v5287, %v5321
          %v5339 = vadd.f32 %v5288, %v5323
          %s5340 = sadd.s32 %s3142, 51
          %s5341 = sld [smem:[#allocation7 + %s5340]]
          %v5342 = vld [vmem:[%s5083 + $0x2] sm:$0xff]
          %v5343 = vld [vmem:[%s5083 + $0xa] sm:$0xff]
          %v5344 = vld [vmem:[%s5083 + $0x12] sm:$0xff]
          %v5345 = vld [vmem:[%s5083 + $0x1a] sm:$0xff]
          %v5346 = vld [vmem:[%s5083 + $0x22] sm:$0xff]
          %v5347 = vld [vmem:[%s5083 + $0x2a] sm:$0xff]
          %v5348 = vld [vmem:[%s5083 + $0x32] sm:$0xff]
          %v5349 = vld [vmem:[%s5083 + $0x3a] sm:$0x3]
          %v5350 = vstv %s5341
          %v5351 = vmul.f32 %v5350, %v5342
          %v5352 = vmul.f32 %v5350, %v5343
          %v5353 = vmul.f32 %v5350, %v5344
          %v5354 = vmul.f32 %v5350, %v5345
          %v5355 = vmul.f32 %v5350, %v5346
          %v5356 = vmul.f32 %v5350, %v5347
          %v5357 = vmul.f32 %v5350, %v5348
          %v5358 = vmul.f32 %v5350, %v5349
          %v5359 = vadd.f32 %v5332, %v5351
          %v5360 = vadd.f32 %v5333, %v5352
          %v5361 = vadd.f32 %v5334, %v5353
          %v5362 = vadd.f32 %v5335, %v5354
          %v5363 = vadd.f32 %v5336, %v5355
          %v5364 = vadd.f32 %v5337, %v5356
          %v5365 = vadd.f32 %v5338, %v5357
          %v5366 = vadd.f32 %v5339, %v5358
          %s5367 = sadd.s32 %s3142, 52
          %s5368 = sld [smem:[#allocation7 + %s5367]]
          %v5369 = vstv %s5368
          %v5370 = vmul.f32 %v5369, %v5342
          %v5371 = vmul.f32 %v5369, %v5343
          %v5372 = vmul.f32 %v5369, %v5344
          %v5373 = vmul.f32 %v5369, %v5345
          %v5374 = vmul.f32 %v5369, %v5346
          %v5375 = vmul.f32 %v5369, %v5347
          %v5376 = vmul.f32 %v5369, %v5348
          %v5377 = vmul.f32 %v5369, %v5349
          %5386 = vrot.lane.b32.xlu0 %v5370, 127
          %v5387 = vpop.permute.xlu0 %5386
          %5388 = vrot.lane.b32.xlu0 %v5371, 127
          %v5389 = vpop.permute.xlu0 %5388
          %5390 = vrot.lane.b32.xlu0 %v5372, 127
          %v5391 = vpop.permute.xlu0 %5390
          %5392 = vrot.lane.b32.xlu0 %v5373, 127
          %v5393 = vpop.permute.xlu0 %5392
          %5394 = vrot.lane.b32.xlu0 %v5374, 127
          %v5395 = vpop.permute.xlu0 %5394
          %5396 = vrot.lane.b32.xlu0 %v5375, 127
          %v5397 = vpop.permute.xlu0 %5396
          %5398 = vrot.lane.b32.xlu0 %v5376, 127
          %v5399 = vpop.permute.xlu0 %5398
          %5400 = vrot.lane.b32.xlu0 %v5377, 127
          %v5401 = vpop.permute.xlu0 %5400
          %v5410 = vadd.f32 %v5359, %v5387
          %v5411 = vadd.f32 %v5360, %v5389
          %v5412 = vadd.f32 %v5361, %v5391
          %v5413 = vadd.f32 %v5362, %v5393
          %v5414 = vadd.f32 %v5363, %v5395
          %v5415 = vadd.f32 %v5364, %v5397
          %v5416 = vadd.f32 %v5365, %v5399
          %v5417 = vadd.f32 %v5366, %v5401
          %s5418 = sadd.s32 %s3142, 53
          %s5419 = sld [smem:[#allocation7 + %s5418]]
          %v5420 = vstv %s5419
          %v5421 = vmul.f32 %v5420, %v5342
          %v5422 = vmul.f32 %v5420, %v5343
          %v5423 = vmul.f32 %v5420, %v5344
          %v5424 = vmul.f32 %v5420, %v5345
          %v5425 = vmul.f32 %v5420, %v5346
          %v5426 = vmul.f32 %v5420, %v5347
          %v5427 = vmul.f32 %v5420, %v5348
          %v5428 = vmul.f32 %v5420, %v5349
          %5437 = vrot.lane.b32.xlu0 %v5421, 126
          %v5438 = vpop.permute.xlu0 %5437
          %5439 = vrot.lane.b32.xlu0 %v5422, 126
          %v5440 = vpop.permute.xlu0 %5439
          %5441 = vrot.lane.b32.xlu0 %v5423, 126
          %v5442 = vpop.permute.xlu0 %5441
          %5443 = vrot.lane.b32.xlu0 %v5424, 126
          %v5444 = vpop.permute.xlu0 %5443
          %5445 = vrot.lane.b32.xlu0 %v5425, 126
          %v5446 = vpop.permute.xlu0 %5445
          %5447 = vrot.lane.b32.xlu0 %v5426, 126
          %v5448 = vpop.permute.xlu0 %5447
          %5449 = vrot.lane.b32.xlu0 %v5427, 126
          %v5450 = vpop.permute.xlu0 %5449
          %5451 = vrot.lane.b32.xlu0 %v5428, 126
          %v5452 = vpop.permute.xlu0 %5451
          %v5461 = vadd.f32 %v5410, %v5438
          %v5462 = vadd.f32 %v5411, %v5440
          %v5463 = vadd.f32 %v5412, %v5442
          %v5464 = vadd.f32 %v5413, %v5444
          %v5465 = vadd.f32 %v5414, %v5446
          %v5466 = vadd.f32 %v5415, %v5448
          %v5467 = vadd.f32 %v5416, %v5450
          %v5468 = vadd.f32 %v5417, %v5452
          %s5469 = sadd.s32 %s3142, 54
          %s5470 = sld [smem:[#allocation7 + %s5469]]
          %s5471 = scalar_lea.vmem [#allocation2], 384
          %v5472 = vld [vmem:[%s5471] sm:$0xff]
          %v5473 = vld [vmem:[%s5471 + $0x8] sm:$0xff]
          %v5474 = vld [vmem:[%s5471 + $0x10] sm:$0xff]
          %v5475 = vld [vmem:[%s5471 + $0x18] sm:$0xff]
          %v5476 = vld [vmem:[%s5471 + $0x20] sm:$0xff]
          %v5477 = vld [vmem:[%s5471 + $0x28] sm:$0xff]
          %v5478 = vld [vmem:[%s5471 + $0x30] sm:$0xff]
          %v5479 = vld [vmem:[%s5471 + $0x38] sm:$0x3]
          %v5480 = vstv %s5470
          %v5481 = vmul.f32 %v5480, %v5472
          %v5482 = vmul.f32 %v5480, %v5473
          %v5483 = vmul.f32 %v5480, %v5474
          %v5484 = vmul.f32 %v5480, %v5475
          %v5485 = vmul.f32 %v5480, %v5476
          %v5486 = vmul.f32 %v5480, %v5477
          %v5487 = vmul.f32 %v5480, %v5478
          %v5488 = vmul.f32 %v5480, %v5479
          %v5489 = vadd.f32 %v5461, %v5481
          %v5490 = vadd.f32 %v5462, %v5482
          %v5491 = vadd.f32 %v5463, %v5483
          %v5492 = vadd.f32 %v5464, %v5484
          %v5493 = vadd.f32 %v5465, %v5485
          %v5494 = vadd.f32 %v5466, %v5486
          %v5495 = vadd.f32 %v5467, %v5487
          %v5496 = vadd.f32 %v5468, %v5488
          %s5497 = sadd.s32 %s3142, 55
          %s5498 = sld [smem:[#allocation7 + %s5497]]
          %v5499 = vstv %s5498
          %v5500 = vmul.f32 %v5499, %v5472
          %v5501 = vmul.f32 %v5499, %v5473
          %v5502 = vmul.f32 %v5499, %v5474
          %v5503 = vmul.f32 %v5499, %v5475
          %v5504 = vmul.f32 %v5499, %v5476
          %v5505 = vmul.f32 %v5499, %v5477
          %v5506 = vmul.f32 %v5499, %v5478
          %v5507 = vmul.f32 %v5499, %v5479
          %5516 = vrot.lane.b32.xlu0 %v5500, 127
          %v5517 = vpop.permute.xlu0 %5516
          %5518 = vrot.lane.b32.xlu0 %v5501, 127
          %v5519 = vpop.permute.xlu0 %5518
          %5520 = vrot.lane.b32.xlu0 %v5502, 127
          %v5521 = vpop.permute.xlu0 %5520
          %5522 = vrot.lane.b32.xlu0 %v5503, 127
          %v5523 = vpop.permute.xlu0 %5522
          %5524 = vrot.lane.b32.xlu0 %v5504, 127
          %v5525 = vpop.permute.xlu0 %5524
          %5526 = vrot.lane.b32.xlu0 %v5505, 127
          %v5527 = vpop.permute.xlu0 %5526
          %5528 = vrot.lane.b32.xlu0 %v5506, 127
          %v5529 = vpop.permute.xlu0 %5528
          %5530 = vrot.lane.b32.xlu0 %v5507, 127
          %v5531 = vpop.permute.xlu0 %5530
          %v5540 = vadd.f32 %v5489, %v5517
          %v5541 = vadd.f32 %v5490, %v5519
          %v5542 = vadd.f32 %v5491, %v5521
          %v5543 = vadd.f32 %v5492, %v5523
          %v5544 = vadd.f32 %v5493, %v5525
          %v5545 = vadd.f32 %v5494, %v5527
          %v5546 = vadd.f32 %v5495, %v5529
          %v5547 = vadd.f32 %v5496, %v5531
          %s5548 = sadd.s32 %s3142, 56
          %s5549 = sld [smem:[#allocation7 + %s5548]]
          %v5550 = vstv %s5549
          %v5551 = vmul.f32 %v5550, %v5472
          %v5552 = vmul.f32 %v5550, %v5473
          %v5553 = vmul.f32 %v5550, %v5474
          %v5554 = vmul.f32 %v5550, %v5475
          %v5555 = vmul.f32 %v5550, %v5476
          %v5556 = vmul.f32 %v5550, %v5477
          %v5557 = vmul.f32 %v5550, %v5478
          %v5558 = vmul.f32 %v5550, %v5479
          %5567 = vrot.lane.b32.xlu0 %v5551, 126
          %v5568 = vpop.permute.xlu0 %5567
          %5569 = vrot.lane.b32.xlu0 %v5552, 126
          %v5570 = vpop.permute.xlu0 %5569
          %5571 = vrot.lane.b32.xlu0 %v5553, 126
          %v5572 = vpop.permute.xlu0 %5571
          %5573 = vrot.lane.b32.xlu0 %v5554, 126
          %v5574 = vpop.permute.xlu0 %5573
          %5575 = vrot.lane.b32.xlu0 %v5555, 126
          %v5576 = vpop.permute.xlu0 %5575
          %5577 = vrot.lane.b32.xlu0 %v5556, 126
          %v5578 = vpop.permute.xlu0 %5577
          %5579 = vrot.lane.b32.xlu0 %v5557, 126
          %v5580 = vpop.permute.xlu0 %5579
          %5581 = vrot.lane.b32.xlu0 %v5558, 126
          %v5582 = vpop.permute.xlu0 %5581
          %v5591 = vadd.f32 %v5540, %v5568
          %v5592 = vadd.f32 %v5541, %v5570
          %v5593 = vadd.f32 %v5542, %v5572
          %v5594 = vadd.f32 %v5543, %v5574
          %v5595 = vadd.f32 %v5544, %v5576
          %v5596 = vadd.f32 %v5545, %v5578
          %v5597 = vadd.f32 %v5546, %v5580
          %v5598 = vadd.f32 %v5547, %v5582
          %s5599 = sadd.s32 %s3142, 57
          %s5600 = sld [smem:[#allocation7 + %s5599]]
          %v5601 = vld [vmem:[%s5471 + $0x1] sm:$0xff]
          %v5602 = vld [vmem:[%s5471 + $0x9] sm:$0xff]
          %v5603 = vld [vmem:[%s5471 + $0x11] sm:$0xff]
          %v5604 = vld [vmem:[%s5471 + $0x19] sm:$0xff]
          %v5605 = vld [vmem:[%s5471 + $0x21] sm:$0xff]
          %v5606 = vld [vmem:[%s5471 + $0x29] sm:$0xff]
          %v5607 = vld [vmem:[%s5471 + $0x31] sm:$0xff]
          %v5608 = vld [vmem:[%s5471 + $0x39] sm:$0x3]
          %v5609 = vstv %s5600
          %v5610 = vmul.f32 %v5609, %v5601
          %v5611 = vmul.f32 %v5609, %v5602
          %v5612 = vmul.f32 %v5609, %v5603
          %v5613 = vmul.f32 %v5609, %v5604
          %v5614 = vmul.f32 %v5609, %v5605
          %v5615 = vmul.f32 %v5609, %v5606
          %v5616 = vmul.f32 %v5609, %v5607
          %v5617 = vmul.f32 %v5609, %v5608
          %v5618 = vadd.f32 %v5591, %v5610
          %v5619 = vadd.f32 %v5592, %v5611
          %v5620 = vadd.f32 %v5593, %v5612
          %v5621 = vadd.f32 %v5594, %v5613
          %v5622 = vadd.f32 %v5595, %v5614
          %v5623 = vadd.f32 %v5596, %v5615
          %v5624 = vadd.f32 %v5597, %v5616
          %v5625 = vadd.f32 %v5598, %v5617
          %s5626 = sadd.s32 %s3142, 58
          %s5627 = sld [smem:[#allocation7 + %s5626]]
          %v5628 = vstv %s5627
          %v5629 = vmul.f32 %v5628, %v5601
          %v5630 = vmul.f32 %v5628, %v5602
          %v5631 = vmul.f32 %v5628, %v5603
          %v5632 = vmul.f32 %v5628, %v5604
          %v5633 = vmul.f32 %v5628, %v5605
          %v5634 = vmul.f32 %v5628, %v5606
          %v5635 = vmul.f32 %v5628, %v5607
          %v5636 = vmul.f32 %v5628, %v5608
          %5645 = vrot.lane.b32.xlu0 %v5629, 127
          %v5646 = vpop.permute.xlu0 %5645
          %5647 = vrot.lane.b32.xlu0 %v5630, 127
          %v5648 = vpop.permute.xlu0 %5647
          %5649 = vrot.lane.b32.xlu0 %v5631, 127
          %v5650 = vpop.permute.xlu0 %5649
          %5651 = vrot.lane.b32.xlu0 %v5632, 127
          %v5652 = vpop.permute.xlu0 %5651
          %5653 = vrot.lane.b32.xlu0 %v5633, 127
          %v5654 = vpop.permute.xlu0 %5653
          %5655 = vrot.lane.b32.xlu0 %v5634, 127
          %v5656 = vpop.permute.xlu0 %5655
          %5657 = vrot.lane.b32.xlu0 %v5635, 127
          %v5658 = vpop.permute.xlu0 %5657
          %5659 = vrot.lane.b32.xlu0 %v5636, 127
          %v5660 = vpop.permute.xlu0 %5659
          %v5669 = vadd.f32 %v5618, %v5646
          %v5670 = vadd.f32 %v5619, %v5648
          %v5671 = vadd.f32 %v5620, %v5650
          %v5672 = vadd.f32 %v5621, %v5652
          %v5673 = vadd.f32 %v5622, %v5654
          %v5674 = vadd.f32 %v5623, %v5656
          %v5675 = vadd.f32 %v5624, %v5658
          %v5676 = vadd.f32 %v5625, %v5660
          %s5677 = sadd.s32 %s3142, 59
          %s5678 = sld [smem:[#allocation7 + %s5677]]
          %v5679 = vstv %s5678
          %v5680 = vmul.f32 %v5679, %v5601
          %v5681 = vmul.f32 %v5679, %v5602
          %v5682 = vmul.f32 %v5679, %v5603
          %v5683 = vmul.f32 %v5679, %v5604
          %v5684 = vmul.f32 %v5679, %v5605
          %v5685 = vmul.f32 %v5679, %v5606
          %v5686 = vmul.f32 %v5679, %v5607
          %v5687 = vmul.f32 %v5679, %v5608
          %5696 = vrot.lane.b32.xlu0 %v5680, 126
          %v5697 = vpop.permute.xlu0 %5696
          %5698 = vrot.lane.b32.xlu0 %v5681, 126
          %v5699 = vpop.permute.xlu0 %5698
          %5700 = vrot.lane.b32.xlu0 %v5682, 126
          %v5701 = vpop.permute.xlu0 %5700
          %5702 = vrot.lane.b32.xlu0 %v5683, 126
          %v5703 = vpop.permute.xlu0 %5702
          %5704 = vrot.lane.b32.xlu0 %v5684, 126
          %v5705 = vpop.permute.xlu0 %5704
          %5706 = vrot.lane.b32.xlu0 %v5685, 126
          %v5707 = vpop.permute.xlu0 %5706
          %5708 = vrot.lane.b32.xlu0 %v5686, 126
          %v5709 = vpop.permute.xlu0 %5708
          %5710 = vrot.lane.b32.xlu0 %v5687, 126
          %v5711 = vpop.permute.xlu0 %5710
          %v5720 = vadd.f32 %v5669, %v5697
          %v5721 = vadd.f32 %v5670, %v5699
          %v5722 = vadd.f32 %v5671, %v5701
          %v5723 = vadd.f32 %v5672, %v5703
          %v5724 = vadd.f32 %v5673, %v5705
          %v5725 = vadd.f32 %v5674, %v5707
          %v5726 = vadd.f32 %v5675, %v5709
          %v5727 = vadd.f32 %v5676, %v5711
          %s5728 = sadd.s32 %s3142, 60
          %s5729 = sld [smem:[#allocation7 + %s5728]]
          %v5730 = vld [vmem:[%s5471 + $0x2] sm:$0xff]
          %v5731 = vld [vmem:[%s5471 + $0xa] sm:$0xff]
          %v5732 = vld [vmem:[%s5471 + $0x12] sm:$0xff]
          %v5733 = vld [vmem:[%s5471 + $0x1a] sm:$0xff]
          %v5734 = vld [vmem:[%s5471 + $0x22] sm:$0xff]
          %v5735 = vld [vmem:[%s5471 + $0x2a] sm:$0xff]
          %v5736 = vld [vmem:[%s5471 + $0x32] sm:$0xff]
          %v5737 = vld [vmem:[%s5471 + $0x3a] sm:$0x3]
          %v5738 = vstv %s5729
          %v5739 = vmul.f32 %v5738, %v5730
          %v5740 = vmul.f32 %v5738, %v5731
          %v5741 = vmul.f32 %v5738, %v5732
          %v5742 = vmul.f32 %v5738, %v5733
          %v5743 = vmul.f32 %v5738, %v5734
          %v5744 = vmul.f32 %v5738, %v5735
          %v5745 = vmul.f32 %v5738, %v5736
          %v5746 = vmul.f32 %v5738, %v5737
          %v5747 = vadd.f32 %v5720, %v5739
          %v5748 = vadd.f32 %v5721, %v5740
          %v5749 = vadd.f32 %v5722, %v5741
          %v5750 = vadd.f32 %v5723, %v5742
          %v5751 = vadd.f32 %v5724, %v5743
          %v5752 = vadd.f32 %v5725, %v5744
          %v5753 = vadd.f32 %v5726, %v5745
          %v5754 = vadd.f32 %v5727, %v5746
          %s5755 = sadd.s32 %s3142, 61
          %s5756 = sld [smem:[#allocation7 + %s5755]]
          %v5757 = vstv %s5756
          %v5758 = vmul.f32 %v5757, %v5730
          %v5759 = vmul.f32 %v5757, %v5731
          %v5760 = vmul.f32 %v5757, %v5732
          %v5761 = vmul.f32 %v5757, %v5733
          %v5762 = vmul.f32 %v5757, %v5734
          %v5763 = vmul.f32 %v5757, %v5735
          %v5764 = vmul.f32 %v5757, %v5736
          %v5765 = vmul.f32 %v5757, %v5737
          %5774 = vrot.lane.b32.xlu0 %v5758, 127
          %v5775 = vpop.permute.xlu0 %5774
          %5776 = vrot.lane.b32.xlu0 %v5759, 127
          %v5777 = vpop.permute.xlu0 %5776
          %5778 = vrot.lane.b32.xlu0 %v5760, 127
          %v5779 = vpop.permute.xlu0 %5778
          %5780 = vrot.lane.b32.xlu0 %v5761, 127
          %v5781 = vpop.permute.xlu0 %5780
          %5782 = vrot.lane.b32.xlu0 %v5762, 127
          %v5783 = vpop.permute.xlu0 %5782
          %5784 = vrot.lane.b32.xlu0 %v5763, 127
          %v5785 = vpop.permute.xlu0 %5784
          %5786 = vrot.lane.b32.xlu0 %v5764, 127
          %v5787 = vpop.permute.xlu0 %5786
          %5788 = vrot.lane.b32.xlu0 %v5765, 127
          %v5789 = vpop.permute.xlu0 %5788
          %v5798 = vadd.f32 %v5747, %v5775
          %v5799 = vadd.f32 %v5748, %v5777
          %v5800 = vadd.f32 %v5749, %v5779
          %v5801 = vadd.f32 %v5750, %v5781
          %v5802 = vadd.f32 %v5751, %v5783
          %v5803 = vadd.f32 %v5752, %v5785
          %v5804 = vadd.f32 %v5753, %v5787
          %v5805 = vadd.f32 %v5754, %v5789
          %s5806 = sadd.s32 %s3142, 62
          %s5807 = sld [smem:[#allocation7 + %s5806]]
          %v5808 = vstv %s5807
          %v5809 = vmul.f32 %v5808, %v5730
          %v5810 = vmul.f32 %v5808, %v5731
          %v5811 = vmul.f32 %v5808, %v5732
          %v5812 = vmul.f32 %v5808, %v5733
          %v5813 = vmul.f32 %v5808, %v5734
          %v5814 = vmul.f32 %v5808, %v5735
          %v5815 = vmul.f32 %v5808, %v5736
          %v5816 = vmul.f32 %v5808, %v5737
          %5825 = vrot.lane.b32.xlu0 %v5809, 126
          %v5826 = vpop.permute.xlu0 %5825
          %5827 = vrot.lane.b32.xlu0 %v5810, 126
          %v5828 = vpop.permute.xlu0 %5827
          %5829 = vrot.lane.b32.xlu0 %v5811, 126
          %v5830 = vpop.permute.xlu0 %5829
          %5831 = vrot.lane.b32.xlu0 %v5812, 126
          %v5832 = vpop.permute.xlu0 %5831
          %5833 = vrot.lane.b32.xlu0 %v5813, 126
          %v5834 = vpop.permute.xlu0 %5833
          %5835 = vrot.lane.b32.xlu0 %v5814, 126
          %v5836 = vpop.permute.xlu0 %5835
          %5837 = vrot.lane.b32.xlu0 %v5815, 126
          %v5838 = vpop.permute.xlu0 %5837
          %5839 = vrot.lane.b32.xlu0 %v5816, 126
          %v5840 = vpop.permute.xlu0 %5839
          %v5849 = vadd.f32 %v5798, %v5826
          %v5850 = vadd.f32 %v5799, %v5828
          %v5851 = vadd.f32 %v5800, %v5830
          %v5852 = vadd.f32 %v5801, %v5832
          %v5853 = vadd.f32 %v5802, %v5834
          %v5854 = vadd.f32 %v5803, %v5836
          %v5855 = vadd.f32 %v5804, %v5838
          %v5856 = vadd.f32 %v5805, %v5840
          %s5857 = sadd.s32 %s3142, 63
          %s5858 = sld [smem:[#allocation7 + %s5857]]
          %s5859 = scalar_lea.vmem [#allocation2], 448
          %v5860 = vld [vmem:[%s5859] sm:$0xff]
          %v5861 = vld [vmem:[%s5859 + $0x8] sm:$0xff]
          %v5862 = vld [vmem:[%s5859 + $0x10] sm:$0xff]
          %v5863 = vld [vmem:[%s5859 + $0x18] sm:$0xff]
          %v5864 = vld [vmem:[%s5859 + $0x20] sm:$0xff]
          %v5865 = vld [vmem:[%s5859 + $0x28] sm:$0xff]
          %v5866 = vld [vmem:[%s5859 + $0x30] sm:$0xff]
          %v5867 = vld [vmem:[%s5859 + $0x38] sm:$0x3]
          %v5868 = vstv %s5858
          %v5869 = vmul.f32 %v5868, %v5860
          %v5870 = vmul.f32 %v5868, %v5861
          %v5871 = vmul.f32 %v5868, %v5862
          %v5872 = vmul.f32 %v5868, %v5863
          %v5873 = vmul.f32 %v5868, %v5864
          %v5874 = vmul.f32 %v5868, %v5865
          %v5875 = vmul.f32 %v5868, %v5866
          %v5876 = vmul.f32 %v5868, %v5867
          %v5877 = vadd.f32 %v5849, %v5869
          %v5878 = vadd.f32 %v5850, %v5870
          %v5879 = vadd.f32 %v5851, %v5871
          %v5880 = vadd.f32 %v5852, %v5872
          %v5881 = vadd.f32 %v5853, %v5873
          %v5882 = vadd.f32 %v5854, %v5874
          %v5883 = vadd.f32 %v5855, %v5875
          %v5884 = vadd.f32 %v5856, %v5876
          %s5885 = sadd.s32 %s3142, 64
          %s5886 = sld [smem:[#allocation7 + %s5885]]
          %v5887 = vstv %s5886
          %v5888 = vmul.f32 %v5887, %v5860
          %v5889 = vmul.f32 %v5887, %v5861
          %v5890 = vmul.f32 %v5887, %v5862
          %v5891 = vmul.f32 %v5887, %v5863
          %v5892 = vmul.f32 %v5887, %v5864
          %v5893 = vmul.f32 %v5887, %v5865
          %v5894 = vmul.f32 %v5887, %v5866
          %v5895 = vmul.f32 %v5887, %v5867
          %5904 = vrot.lane.b32.xlu0 %v5888, 127
          %v5905 = vpop.permute.xlu0 %5904
          %5906 = vrot.lane.b32.xlu0 %v5889, 127
          %v5907 = vpop.permute.xlu0 %5906
          %5908 = vrot.lane.b32.xlu0 %v5890, 127
          %v5909 = vpop.permute.xlu0 %5908
          %5910 = vrot.lane.b32.xlu0 %v5891, 127
          %v5911 = vpop.permute.xlu0 %5910
          %5912 = vrot.lane.b32.xlu0 %v5892, 127
          %v5913 = vpop.permute.xlu0 %5912
          %5914 = vrot.lane.b32.xlu0 %v5893, 127
          %v5915 = vpop.permute.xlu0 %5914
          %5916 = vrot.lane.b32.xlu0 %v5894, 127
          %v5917 = vpop.permute.xlu0 %5916
          %5918 = vrot.lane.b32.xlu0 %v5895, 127
          %v5919 = vpop.permute.xlu0 %5918
          %v5928 = vadd.f32 %v5877, %v5905
          %v5929 = vadd.f32 %v5878, %v5907
          %v5930 = vadd.f32 %v5879, %v5909
          %v5931 = vadd.f32 %v5880, %v5911
          %v5932 = vadd.f32 %v5881, %v5913
          %v5933 = vadd.f32 %v5882, %v5915
          %v5934 = vadd.f32 %v5883, %v5917
          %v5935 = vadd.f32 %v5884, %v5919
          %s5936 = sadd.s32 %s3142, 65
          %s5937 = sld [smem:[#allocation7 + %s5936]]
          %v5938 = vstv %s5937
          %v5939 = vmul.f32 %v5938, %v5860
          %v5940 = vmul.f32 %v5938, %v5861
          %v5941 = vmul.f32 %v5938, %v5862
          %v5942 = vmul.f32 %v5938, %v5863
          %v5943 = vmul.f32 %v5938, %v5864
          %v5944 = vmul.f32 %v5938, %v5865
          %v5945 = vmul.f32 %v5938, %v5866
          %v5946 = vmul.f32 %v5938, %v5867
          %5955 = vrot.lane.b32.xlu0 %v5939, 126
          %v5956 = vpop.permute.xlu0 %5955
          %5957 = vrot.lane.b32.xlu0 %v5940, 126
          %v5958 = vpop.permute.xlu0 %5957
          %5959 = vrot.lane.b32.xlu0 %v5941, 126
          %v5960 = vpop.permute.xlu0 %5959
          %5961 = vrot.lane.b32.xlu0 %v5942, 126
          %v5962 = vpop.permute.xlu0 %5961
          %5963 = vrot.lane.b32.xlu0 %v5943, 126
          %v5964 = vpop.permute.xlu0 %5963
          %5965 = vrot.lane.b32.xlu0 %v5944, 126
          %v5966 = vpop.permute.xlu0 %5965
          %5967 = vrot.lane.b32.xlu0 %v5945, 126
          %v5968 = vpop.permute.xlu0 %5967
          %5969 = vrot.lane.b32.xlu0 %v5946, 126
          %v5970 = vpop.permute.xlu0 %5969
          %v5979 = vadd.f32 %v5928, %v5956
          %v5980 = vadd.f32 %v5929, %v5958
          %v5981 = vadd.f32 %v5930, %v5960
          %v5982 = vadd.f32 %v5931, %v5962
          %v5983 = vadd.f32 %v5932, %v5964
          %v5984 = vadd.f32 %v5933, %v5966
          %v5985 = vadd.f32 %v5934, %v5968
          %v5986 = vadd.f32 %v5935, %v5970
          %s5987 = sadd.s32 %s3142, 66
          %s5988 = sld [smem:[#allocation7 + %s5987]]
          %v5989 = vld [vmem:[%s5859 + $0x1] sm:$0xff]
          %v5990 = vld [vmem:[%s5859 + $0x9] sm:$0xff]
          %v5991 = vld [vmem:[%s5859 + $0x11] sm:$0xff]
          %v5992 = vld [vmem:[%s5859 + $0x19] sm:$0xff]
          %v5993 = vld [vmem:[%s5859 + $0x21] sm:$0xff]
          %v5994 = vld [vmem:[%s5859 + $0x29] sm:$0xff]
          %v5995 = vld [vmem:[%s5859 + $0x31] sm:$0xff]
          %v5996 = vld [vmem:[%s5859 + $0x39] sm:$0x3]
          %v5997 = vstv %s5988
          %v5998 = vmul.f32 %v5997, %v5989
          %v5999 = vmul.f32 %v5997, %v5990
          %v6000 = vmul.f32 %v5997, %v5991
          %v6001 = vmul.f32 %v5997, %v5992
          %v6002 = vmul.f32 %v5997, %v5993
          %v6003 = vmul.f32 %v5997, %v5994
          %v6004 = vmul.f32 %v5997, %v5995
          %v6005 = vmul.f32 %v5997, %v5996
          %v6006 = vadd.f32 %v5979, %v5998
          %v6007 = vadd.f32 %v5980, %v5999
          %v6008 = vadd.f32 %v5981, %v6000
          %v6009 = vadd.f32 %v5982, %v6001
          %v6010 = vadd.f32 %v5983, %v6002
          %v6011 = vadd.f32 %v5984, %v6003
          %v6012 = vadd.f32 %v5985, %v6004
          %v6013 = vadd.f32 %v5986, %v6005
          %s6014 = sadd.s32 %s3142, 67
          %s6015 = sld [smem:[#allocation7 + %s6014]]
          %v6016 = vstv %s6015
          %v6017 = vmul.f32 %v6016, %v5989
          %v6018 = vmul.f32 %v6016, %v5990
          %v6019 = vmul.f32 %v6016, %v5991
          %v6020 = vmul.f32 %v6016, %v5992
          %v6021 = vmul.f32 %v6016, %v5993
          %v6022 = vmul.f32 %v6016, %v5994
          %v6023 = vmul.f32 %v6016, %v5995
          %v6024 = vmul.f32 %v6016, %v5996
          %6033 = vrot.lane.b32.xlu0 %v6017, 127
          %v6034 = vpop.permute.xlu0 %6033
          %6035 = vrot.lane.b32.xlu0 %v6018, 127
          %v6036 = vpop.permute.xlu0 %6035
          %6037 = vrot.lane.b32.xlu0 %v6019, 127
          %v6038 = vpop.permute.xlu0 %6037
          %6039 = vrot.lane.b32.xlu0 %v6020, 127
          %v6040 = vpop.permute.xlu0 %6039
          %6041 = vrot.lane.b32.xlu0 %v6021, 127
          %v6042 = vpop.permute.xlu0 %6041
          %6043 = vrot.lane.b32.xlu0 %v6022, 127
          %v6044 = vpop.permute.xlu0 %6043
          %6045 = vrot.lane.b32.xlu0 %v6023, 127
          %v6046 = vpop.permute.xlu0 %6045
          %6047 = vrot.lane.b32.xlu0 %v6024, 127
          %v6048 = vpop.permute.xlu0 %6047
          %v6057 = vadd.f32 %v6006, %v6034
          %v6058 = vadd.f32 %v6007, %v6036
          %v6059 = vadd.f32 %v6008, %v6038
          %v6060 = vadd.f32 %v6009, %v6040
          %v6061 = vadd.f32 %v6010, %v6042
          %v6062 = vadd.f32 %v6011, %v6044
          %v6063 = vadd.f32 %v6012, %v6046
          %v6064 = vadd.f32 %v6013, %v6048
          %s6065 = sadd.s32 %s3142, 68
          %s6066 = sld [smem:[#allocation7 + %s6065]]
          %v6067 = vstv %s6066
          %v6068 = vmul.f32 %v6067, %v5989
          %v6069 = vmul.f32 %v6067, %v5990
          %v6070 = vmul.f32 %v6067, %v5991
          %v6071 = vmul.f32 %v6067, %v5992
          %v6072 = vmul.f32 %v6067, %v5993
          %v6073 = vmul.f32 %v6067, %v5994
          %v6074 = vmul.f32 %v6067, %v5995
          %v6075 = vmul.f32 %v6067, %v5996
          %6084 = vrot.lane.b32.xlu0 %v6068, 126
          %v6085 = vpop.permute.xlu0 %6084
          %6086 = vrot.lane.b32.xlu0 %v6069, 126
          %v6087 = vpop.permute.xlu0 %6086
          %6088 = vrot.lane.b32.xlu0 %v6070, 126
          %v6089 = vpop.permute.xlu0 %6088
          %6090 = vrot.lane.b32.xlu0 %v6071, 126
          %v6091 = vpop.permute.xlu0 %6090
          %6092 = vrot.lane.b32.xlu0 %v6072, 126
          %v6093 = vpop.permute.xlu0 %6092
          %6094 = vrot.lane.b32.xlu0 %v6073, 126
          %v6095 = vpop.permute.xlu0 %6094
          %6096 = vrot.lane.b32.xlu0 %v6074, 126
          %v6097 = vpop.permute.xlu0 %6096
          %6098 = vrot.lane.b32.xlu0 %v6075, 126
          %v6099 = vpop.permute.xlu0 %6098
          %v6108 = vadd.f32 %v6057, %v6085
          %v6109 = vadd.f32 %v6058, %v6087
          %v6110 = vadd.f32 %v6059, %v6089
          %v6111 = vadd.f32 %v6060, %v6091
          %v6112 = vadd.f32 %v6061, %v6093
          %v6113 = vadd.f32 %v6062, %v6095
          %v6114 = vadd.f32 %v6063, %v6097
          %v6115 = vadd.f32 %v6064, %v6099
          %s6116 = sadd.s32 %s3142, 69
          %s6117 = sld [smem:[#allocation7 + %s6116]]
          %v6118 = vld [vmem:[%s5859 + $0x2] sm:$0xff]
          %v6119 = vld [vmem:[%s5859 + $0xa] sm:$0xff]
          %v6120 = vld [vmem:[%s5859 + $0x12] sm:$0xff]
          %v6121 = vld [vmem:[%s5859 + $0x1a] sm:$0xff]
          %v6122 = vld [vmem:[%s5859 + $0x22] sm:$0xff]
          %v6123 = vld [vmem:[%s5859 + $0x2a] sm:$0xff]
          %v6124 = vld [vmem:[%s5859 + $0x32] sm:$0xff]
          %v6125 = vld [vmem:[%s5859 + $0x3a] sm:$0x3]
          %v6126 = vstv %s6117
          %v6127 = vmul.f32 %v6126, %v6118
          %v6128 = vmul.f32 %v6126, %v6119
          %v6129 = vmul.f32 %v6126, %v6120
          %v6130 = vmul.f32 %v6126, %v6121
          %v6131 = vmul.f32 %v6126, %v6122
          %v6132 = vmul.f32 %v6126, %v6123
          %v6133 = vmul.f32 %v6126, %v6124
          %v6134 = vmul.f32 %v6126, %v6125
          %v6135 = vadd.f32 %v6108, %v6127
          %v6136 = vadd.f32 %v6109, %v6128
          %v6137 = vadd.f32 %v6110, %v6129
          %v6138 = vadd.f32 %v6111, %v6130
          %v6139 = vadd.f32 %v6112, %v6131
          %v6140 = vadd.f32 %v6113, %v6132
          %v6141 = vadd.f32 %v6114, %v6133
          %v6142 = vadd.f32 %v6115, %v6134
          %s6143 = sadd.s32 %s3142, 70
          %s6144 = sld [smem:[#allocation7 + %s6143]]
          %v6145 = vstv %s6144
          %v6146 = vmul.f32 %v6145, %v6118
          %v6147 = vmul.f32 %v6145, %v6119
          %v6148 = vmul.f32 %v6145, %v6120
          %v6149 = vmul.f32 %v6145, %v6121
          %v6150 = vmul.f32 %v6145, %v6122
          %v6151 = vmul.f32 %v6145, %v6123
          %v6152 = vmul.f32 %v6145, %v6124
          %v6153 = vmul.f32 %v6145, %v6125
          %6162 = vrot.lane.b32.xlu0 %v6146, 127
          %v6163 = vpop.permute.xlu0 %6162
          %6164 = vrot.lane.b32.xlu0 %v6147, 127
          %v6165 = vpop.permute.xlu0 %6164
          %6166 = vrot.lane.b32.xlu0 %v6148, 127
          %v6167 = vpop.permute.xlu0 %6166
          %6168 = vrot.lane.b32.xlu0 %v6149, 127
          %v6169 = vpop.permute.xlu0 %6168
          %6170 = vrot.lane.b32.xlu0 %v6150, 127
          %v6171 = vpop.permute.xlu0 %6170
          %6172 = vrot.lane.b32.xlu0 %v6151, 127
          %v6173 = vpop.permute.xlu0 %6172
          %6174 = vrot.lane.b32.xlu0 %v6152, 127
          %v6175 = vpop.permute.xlu0 %6174
          %6176 = vrot.lane.b32.xlu0 %v6153, 127
          %v6177 = vpop.permute.xlu0 %6176
          %v6186 = vadd.f32 %v6135, %v6163
          %v6187 = vadd.f32 %v6136, %v6165
          %v6188 = vadd.f32 %v6137, %v6167
          %v6189 = vadd.f32 %v6138, %v6169
          %v6190 = vadd.f32 %v6139, %v6171
          %v6191 = vadd.f32 %v6140, %v6173
          %v6192 = vadd.f32 %v6141, %v6175
          %v6193 = vadd.f32 %v6142, %v6177
          %s6194 = sadd.s32 %s3142, 71
          %s6195 = sld [smem:[#allocation7 + %s6194]]
          %v6196 = vstv %s6195
          %v6197 = vmul.f32 %v6196, %v6118
          %v6198 = vmul.f32 %v6196, %v6119
          %v6199 = vmul.f32 %v6196, %v6120
          %v6200 = vmul.f32 %v6196, %v6121
          %v6201 = vmul.f32 %v6196, %v6122
          %v6202 = vmul.f32 %v6196, %v6123
          %v6203 = vmul.f32 %v6196, %v6124
          %v6204 = vmul.f32 %v6196, %v6125
          %6213 = vrot.lane.b32.xlu0 %v6197, 126
          %v6214 = vpop.permute.xlu0 %6213
          %6215 = vrot.lane.b32.xlu0 %v6198, 126
          %v6216 = vpop.permute.xlu0 %6215
          %6217 = vrot.lane.b32.xlu0 %v6199, 126
          %v6218 = vpop.permute.xlu0 %6217
          %6219 = vrot.lane.b32.xlu0 %v6200, 126
          %v6220 = vpop.permute.xlu0 %6219
          %6221 = vrot.lane.b32.xlu0 %v6201, 126
          %v6222 = vpop.permute.xlu0 %6221
          %6223 = vrot.lane.b32.xlu0 %v6202, 126
          %v6224 = vpop.permute.xlu0 %6223
          %6225 = vrot.lane.b32.xlu0 %v6203, 126
          %v6226 = vpop.permute.xlu0 %6225
          %6227 = vrot.lane.b32.xlu0 %v6204, 126
          %v6228 = vpop.permute.xlu0 %6227
          %v6237 = vadd.f32 %v6186, %v6214
          %v6238 = vadd.f32 %v6187, %v6216
          %v6239 = vadd.f32 %v6188, %v6218
          %v6240 = vadd.f32 %v6189, %v6220
          %v6241 = vadd.f32 %v6190, %v6222
          %v6242 = vadd.f32 %v6191, %v6224
          %v6243 = vadd.f32 %v6192, %v6226
          %v6244 = vadd.f32 %v6193, %v6228
          %s6245 = sld [smem:[#allocation9 + %s3137]]
          %v6246 = vstv %s6245
          %v6247 = vadd.f32 %v6237, %v6246
          %v6248 = vadd.f32 %v6238, %v6246
          %v6249 = vadd.f32 %v6239, %v6246
          %v6250 = vadd.f32 %v6240, %v6246
          %v6251 = vadd.f32 %v6241, %v6246
          %v6252 = vadd.f32 %v6242, %v6246
          %v6253 = vadd.f32 %v6243, %v6246
          %v6254 = vadd.f32 %v6244, %v6246
          %v6255 = vmax.f32 %v6247, 0.0
          %v6256 = vmax.f32 %v6248, 0.0
          %v6257 = vmax.f32 %v6249, 0.0
          %v6258 = vmax.f32 %v6250, 0.0
          %v6259 = vmax.f32 %v6251, 0.0
          %v6260 = vmax.f32 %v6252, 0.0
          %v6261 = vmax.f32 %v6253, 0.0
          %v6262 = vmax.f32 %v6254, 0.0
          %vm6263 = vcmask 474112
          %v6265 = vsel %vm6263, %v309, 0
          %v6268 = vsel %vm6263, %v310, 0
          %v6271 = vsel %vm6263, %v311, 0
          %v6274 = vsel %vm6263, %v312, 0
          %vm6276 = vcmask 1041408
          %v6278 = vsel %vm6276, %v6262, 0
          %6280 = vmatprep.subr.mxu0 0.0
          %6281 = vmatpush1.msra.mxu0 %v6255
          %6282 = vmatprep.subr.mxu0 0.0
          %6283 = vmatpush1.msra.mxu0 %v6256
          %6284 = vmatprep.subr.mxu0 0.0
          %6285 = vmatpush1.msra.mxu0 %v6257
          %6286 = vmatprep.subr.mxu0 0.0
          %6287 = vmatpush1.msra.mxu0 %v6258
          %6288 = vmatprep.subr.mxu0 0.0
          %6289 = vmatpush1.msra.mxu0 %v6259
          %6290 = vmatprep.subr.mxu0 0.0
          %6291 = vmatpush1.msra.mxu0 %v6260
          %6292 = vmatprep.subr.mxu0 0.0
          %6293 = vmatpush1.msra.mxu0 %v6261
          %6294 = vmatprep.subr.mxu0 0.0
          %6295 = vmatpush1.msra.mxu0 %v6278
          %6296 = vmatprep.subr.mxu0 0.0
          %6297 = vmatpush1.msra.mxu0 0.0
          %6298 = vmatprep.subr.mxu0 0.0
          %6299 = vmatpush1.msra.mxu0 0.0
          %6300 = vmatprep.subr.mxu0 0.0
          %6301 = vmatpush1.msra.mxu0 0.0
          %6302 = vmatprep.subr.mxu0 0.0
          %6303 = vmatpush1.msra.mxu0 0.0
          %6304 = vmatprep.subr.mxu0 0.0
          %6305 = vmatpush1.msra.mxu0 0.0
          %6306 = vmatprep.subr.mxu0 0.0
          %6307 = vmatpush1.msra.mxu0 0.0
          %6308 = vmatprep.subr.mxu0 0.0
          %6309 = vmatpush1.msra.mxu0 0.0
          %6310 = vmatprep.subr.mxu0 0.0
          %6311 = vmatpush1.msra.mxu0 0.0
          %6312 = vmatprep.subr.mxu0 0.0
          %6313 = vmatpush1.msra.mxu0 0.0
          %6314 = vmatprep.subr.mxu0 0.0
          %6315 = vmatpush1.msra.mxu0 0.0
          %6316 = vmatprep.subr.mxu0 0.0
          %6317 = vmatpush1.msra.mxu0 0.0
          %6318 = vmatprep.subr.mxu0 0.0
          %6319 = vmatpush1.msra.mxu0 0.0
          %6320 = vmatprep.subr.mxu0 0.0
          %6321 = vmatpush1.msra.mxu0 0.0
          %6322 = vmatprep.subr.mxu0 0.0
          %6323 = vmatpush1.msra.mxu0 0.0
          %6324 = vmatprep.subr.mxu0 0.0
          %6325 = vmatpush1.msra.mxu0 0.0
          %6326 = vmatprep.subr.mxu0 0.0
          %6327 = vmatpush1.msra.mxu0 0.0
          %6328 = vmatprep.subr.mxu0 0.0
          %6329 = vmatpush1.msra.mxu0 0.0
          %6330 = vmatprep.subr.mxu0 0.0
          %6331 = vmatpush1.msra.mxu0 0.0
          %6332 = vmatprep.subr.mxu0 0.0
          %6333 = vmatpush1.msra.mxu0 0.0
          %6334 = vmatprep.subr.mxu0 0.0
          %6335 = vmatpush1.msra.mxu0 0.0
          %6336 = vmatprep.subr.mxu0 0.0
          %6337 = vmatpush1.msra.mxu0 0.0
          %6338 = vmatprep.subr.mxu0 0.0
          %6339 = vmatpush1.msra.mxu0 0.0
          %6340 = vmatprep.subr.mxu0 0.0
          %6341 = vmatpush1.msra.mxu0 0.0
          %6342 = vmatprep.subr.mxu0 0.0
          %6343 = vmatpush1.msra.mxu0 0.0
          %6344 = vmatprep.mubr.f32.mxu0 0.0
          %6345 = vmatmul.mubr.f32.gmra.mrb[0].mxu0 %v6265
          %v6346 = vpop.f32.mrb[0].mxu0
          %v6347 = vadd.f32 0.0, %v6346
          %v6348 = vpop.f32.mrb[0].mxu0
          %6349 = vmatprep.mubr.f32.mxu0 0.0
          %6350 = vmatmul.mubr.f32.gmra.mrb[0].mxu0 %v6268
          %v6351 = vpop.f32.mrb[0].mxu0
          %v6352 = vadd.f32 0.0, %v6351
          %v6353 = vpop.f32.mrb[0].mxu0
          %6354 = vmatprep.mubr.f32.mxu0 0.0
          %6355 = vmatmul.mubr.f32.gmra.mrb[0].mxu0 %v6271
          %v6356 = vpop.f32.mrb[0].mxu0
          %v6357 = vadd.f32 0.0, %v6356
          %v6358 = vpop.f32.mrb[0].mxu0
          %6359 = vmatprep.mubr.f32.mxu0 0.0
          %6360 = vmatmul.mubr.f32.gmra.mrb[0].mxu0 %v6274
          %v6361 = vpop.f32.mrb[0].mxu0
          %v6362 = vadd.f32 0.0, %v6361
          %v6363 = vpop.f32.mrb[0].mxu0
          %6364 = vdwg.mxu0
          %v6366 = vsel %vm6263, %v341, 0
          %v6369 = vsel %vm6263, %v342, 0
          %v6372 = vsel %vm6263, %v343, 0
          %v6375 = vsel %vm6263, %v344, 0
          %6377 = vmatprep.subr.mxu0 0.0
          %6378 = vmatpush1.msra.mxu0 %v6255
          %6379 = vmatprep.subr.mxu0 0.0
          %6380 = vmatpush1.msra.mxu0 %v6256
          %6381 = vmatprep.subr.mxu0 0.0
          %6382 = vmatpush1.msra.mxu0 %v6257
          %6383 = vmatprep.subr.mxu0 0.0
          %6384 = vmatpush1.msra.mxu0 %v6258
          %6385 = vmatprep.subr.mxu0 0.0
          %6386 = vmatpush1.msra.mxu0 %v6259
          %6387 = vmatprep.subr.mxu0 0.0
          %6388 = vmatpush1.msra.mxu0 %v6260
          %6389 = vmatprep.subr.mxu0 0.0
          %6390 = vmatpush1.msra.mxu0 %v6261
          %6391 = vmatprep.subr.mxu0 0.0
          %6392 = vmatpush1.msra.mxu0 %v6278
          %6393 = vmatprep.subr.mxu0 0.0
          %6394 = vmatpush1.msra.mxu0 0.0
          %6395 = vmatprep.subr.mxu0 0.0
          %6396 = vmatpush1.msra.mxu0 0.0
          %6397 = vmatprep.subr.mxu0 0.0
          %6398 = vmatpush1.msra.mxu0 0.0
          %6399 = vmatprep.subr.mxu0 0.0
          %6400 = vmatpush1.msra.mxu0 0.0
          %6401 = vmatprep.subr.mxu0 0.0
          %6402 = vmatpush1.msra.mxu0 0.0
          %6403 = vmatprep.subr.mxu0 0.0
          %6404 = vmatpush1.msra.mxu0 0.0
          %6405 = vmatprep.subr.mxu0 0.0
          %6406 = vmatpush1.msra.mxu0 0.0
          %6407 = vmatprep.subr.mxu0 0.0
          %6408 = vmatpush1.msra.mxu0 0.0
          %6409 = vmatprep.subr.mxu0 0.0
          %6410 = vmatpush1.msra.mxu0 0.0
          %6411 = vmatprep.subr.mxu0 0.0
          %6412 = vmatpush1.msra.mxu0 0.0
          %6413 = vmatprep.subr.mxu0 0.0
          %6414 = vmatpush1.msra.mxu0 0.0
          %6415 = vmatprep.subr.mxu0 0.0
          %6416 = vmatpush1.msra.mxu0 0.0
          %6417 = vmatprep.subr.mxu0 0.0
          %6418 = vmatpush1.msra.mxu0 0.0
          %6419 = vmatprep.subr.mxu0 0.0
          %6420 = vmatpush1.msra.mxu0 0.0
          %6421 = vmatprep.subr.mxu0 0.0
          %6422 = vmatpush1.msra.mxu0 0.0
          %6423 = vmatprep.subr.mxu0 0.0
          %6424 = vmatpush1.msra.mxu0 0.0
          %6425 = vmatprep.subr.mxu0 0.0
          %6426 = vmatpush1.msra.mxu0 0.0
          %6427 = vmatprep.subr.mxu0 0.0
          %6428 = vmatpush1.msra.mxu0 0.0
          %6429 = vmatprep.subr.mxu0 0.0
          %6430 = vmatpush1.msra.mxu0 0.0
          %6431 = vmatprep.subr.mxu0 0.0
          %6432 = vmatpush1.msra.mxu0 0.0
          %6433 = vmatprep.subr.mxu0 0.0
          %6434 = vmatpush1.msra.mxu0 0.0
          %6435 = vmatprep.subr.mxu0 0.0
          %6436 = vmatpush1.msra.mxu0 0.0
          %6437 = vmatprep.subr.mxu0 0.0
          %6438 = vmatpush1.msra.mxu0 0.0
          %6439 = vmatprep.subr.mxu0 0.0
          %6440 = vmatpush1.msra.mxu0 0.0
          %6441 = vmatprep.mubr.f32.mxu0 0.0
          %6442 = vmatmul.mubr.f32.gmra.mrb[0].mxu0 %v6366
          %v6443 = vpop.f32.mrb[0].mxu0
          %v6444 = vadd.f32 0.0, %v6443
          %v6445 = vpop.f32.mrb[0].mxu0
          %6446 = vmatprep.mubr.f32.mxu0 0.0
          %6447 = vmatmul.mubr.f32.gmra.mrb[0].mxu0 %v6369
          %v6448 = vpop.f32.mrb[0].mxu0
          %v6449 = vadd.f32 0.0, %v6448
          %v6450 = vpop.f32.mrb[0].mxu0
          %6451 = vmatprep.mubr.f32.mxu0 0.0
          %6452 = vmatmul.mubr.f32.gmra.mrb[0].mxu0 %v6372
          %v6453 = vpop.f32.mrb[0].mxu0
          %v6454 = vadd.f32 0.0, %v6453
          %v6455 = vpop.f32.mrb[0].mxu0
          %6456 = vmatprep.mubr.f32.mxu0 0.0
          %6457 = vmatmul.mubr.f32.gmra.mrb[0].mxu0 %v6375
          %v6458 = vpop.f32.mrb[0].mxu0
          %v6459 = vadd.f32 0.0, %v6458
          %v6460 = vpop.f32.mrb[0].mxu0
          %6461 = vdwg.mxu0
          %v6462 = vmax.f32 %v6347, %v6444
          %v6463 = vmax.f32 %v6352, %v6449
          %v6464 = vmax.f32 %v6357, %v6454
          %v6465 = vmax.f32 %v6362, %v6459
          %vm6466 = vcmask 998400
          %v6468 = vsel %vm6466, %v6462, 0
          %v6471 = vsel %vm6466, %v6463, 0
          %v6474 = vsel %vm6466, %v6464, 0
          %v6477 = vsel %vm6466, %v6465, 0
          %v6480 = vsel %vm6276, %v450, 0
          %6482 = vmatprep.subr.mxu0 0.0
          %6483 = vmatpush1.msra.mxu0 %v435
          %6484 = vmatprep.subr.mxu0 0.0
          %6485 = vmatpush1.msra.mxu0 %v436
          %6486 = vmatprep.subr.mxu0 0.0
          %6487 = vmatpush1.msra.mxu0 %v437
          %6488 = vmatprep.subr.mxu0 0.0
          %6489 = vmatpush1.msra.mxu0 %v438
          %6490 = vmatprep.subr.mxu0 0.0
          %6491 = vmatpush1.msra.mxu0 %v439
          %6492 = vmatprep.subr.mxu0 0.0
          %6493 = vmatpush1.msra.mxu0 %v440
          %6494 = vmatprep.subr.mxu0 0.0
          %6495 = vmatpush1.msra.mxu0 %v441
          %6496 = vmatprep.subr.mxu0 0.0
          %6497 = vmatpush1.msra.mxu0 %v442
          %6498 = vmatprep.subr.mxu0 0.0
          %6499 = vmatpush1.msra.mxu0 %v443
          %6500 = vmatprep.subr.mxu0 0.0
          %6501 = vmatpush1.msra.mxu0 %v444
          %6502 = vmatprep.subr.mxu0 0.0
          %6503 = vmatpush1.msra.mxu0 %v445
          %6504 = vmatprep.subr.mxu0 0.0
          %6505 = vmatpush1.msra.mxu0 %v446
          %6506 = vmatprep.subr.mxu0 0.0
          %6507 = vmatpush1.msra.mxu0 %v447
          %6508 = vmatprep.subr.mxu0 0.0
          %6509 = vmatpush1.msra.mxu0 %v448
          %6510 = vmatprep.subr.mxu0 0.0
          %6511 = vmatpush1.msra.mxu0 %v449
          %6512 = vmatprep.subr.mxu0 0.0
          %6513 = vmatpush1.msra.mxu0 %v6480
          %6514 = vmatprep.subr.mxu0 0.0
          %6515 = vmatpush1.msra.mxu0 0.0
          %6516 = vmatprep.subr.mxu0 0.0
          %6517 = vmatpush1.msra.mxu0 0.0
          %6518 = vmatprep.subr.mxu0 0.0
          %6519 = vmatpush1.msra.mxu0 0.0
          %6520 = vmatprep.subr.mxu0 0.0
          %6521 = vmatpush1.msra.mxu0 0.0
          %6522 = vmatprep.subr.mxu0 0.0
          %6523 = vmatpush1.msra.mxu0 0.0
          %6524 = vmatprep.subr.mxu0 0.0
          %6525 = vmatpush1.msra.mxu0 0.0
          %6526 = vmatprep.subr.mxu0 0.0
          %6527 = vmatpush1.msra.mxu0 0.0
          %6528 = vmatprep.subr.mxu0 0.0
          %6529 = vmatpush1.msra.mxu0 0.0
          %6530 = vmatprep.subr.mxu0 0.0
          %6531 = vmatpush1.msra.mxu0 0.0
          %6532 = vmatprep.subr.mxu0 0.0
          %6533 = vmatpush1.msra.mxu0 0.0
          %6534 = vmatprep.subr.mxu0 0.0
          %6535 = vmatpush1.msra.mxu0 0.0
          %6536 = vmatprep.subr.mxu0 0.0
          %6537 = vmatpush1.msra.mxu0 0.0
          %6538 = vmatprep.subr.mxu0 0.0
          %6539 = vmatpush1.msra.mxu0 0.0
          %6540 = vmatprep.subr.mxu0 0.0
          %6541 = vmatpush1.msra.mxu0 0.0
          %6542 = vmatprep.subr.mxu0 0.0
          %6543 = vmatpush1.msra.mxu0 0.0
          %6544 = vmatprep.subr.mxu0 0.0
          %6545 = vmatpush1.msra.mxu0 0.0
          %6546 = vmatprep.mubr.f32.mxu0 0.0
          %6547 = vmatmul.mubr.f32.gmra.mrb[0].mxu0 %v6468
          %v6548 = vpop.f32.mrb[0].mxu0
          %v6549 = vadd.f32 0.0, %v6548
          %v6550 = vpop.f32.mrb[0].mxu0
          %6551 = vmatprep.mubr.f32.mxu0 0.0
          %6552 = vmatmul.mubr.f32.gmra.mrb[0].mxu0 %v6471
          %v6553 = vpop.f32.mrb[0].mxu0
          %v6554 = vadd.f32 0.0, %v6553
          %v6555 = vpop.f32.mrb[0].mxu0
          %6556 = vmatprep.mubr.f32.mxu0 0.0
          %6557 = vmatmul.mubr.f32.gmra.mrb[0].mxu0 %v6474
          %v6558 = vpop.f32.mrb[0].mxu0
          %v6559 = vadd.f32 0.0, %v6558
          %v6560 = vpop.f32.mrb[0].mxu0
          %6561 = vmatprep.mubr.f32.mxu0 0.0
          %6562 = vmatmul.mubr.f32.gmra.mrb[0].mxu0 %v6477
          %v6563 = vpop.f32.mrb[0].mxu0
          %v6564 = vadd.f32 0.0, %v6563
          %v6565 = vpop.f32.mrb[0].mxu0
          %6566 = vdwg.mxu0
          %v6568 = vsel %vm6276, %v544, 0
          %6570 = vmatprep.subr.mxu0 0.0
          %6571 = vmatpush1.msra.mxu0 %v529
          %6572 = vmatprep.subr.mxu0 0.0
          %6573 = vmatpush1.msra.mxu0 %v530
          %6574 = vmatprep.subr.mxu0 0.0
          %6575 = vmatpush1.msra.mxu0 %v531
          %6576 = vmatprep.subr.mxu0 0.0
          %6577 = vmatpush1.msra.mxu0 %v532
          %6578 = vmatprep.subr.mxu0 0.0
          %6579 = vmatpush1.msra.mxu0 %v533
          %6580 = vmatprep.subr.mxu0 0.0
          %6581 = vmatpush1.msra.mxu0 %v534
          %6582 = vmatprep.subr.mxu0 0.0
          %6583 = vmatpush1.msra.mxu0 %v535
          %6584 = vmatprep.subr.mxu0 0.0
          %6585 = vmatpush1.msra.mxu0 %v536
          %6586 = vmatprep.subr.mxu0 0.0
          %6587 = vmatpush1.msra.mxu0 %v537
          %6588 = vmatprep.subr.mxu0 0.0
          %6589 = vmatpush1.msra.mxu0 %v538
          %6590 = vmatprep.subr.mxu0 0.0
          %6591 = vmatpush1.msra.mxu0 %v539
          %6592 = vmatprep.subr.mxu0 0.0
          %6593 = vmatpush1.msra.mxu0 %v540
          %6594 = vmatprep.subr.mxu0 0.0
          %6595 = vmatpush1.msra.mxu0 %v541
          %6596 = vmatprep.subr.mxu0 0.0
          %6597 = vmatpush1.msra.mxu0 %v542
          %6598 = vmatprep.subr.mxu0 0.0
          %6599 = vmatpush1.msra.mxu0 %v543
          %6600 = vmatprep.subr.mxu0 0.0
          %6601 = vmatpush1.msra.mxu0 %v6568
          %6602 = vmatprep.subr.mxu0 0.0
          %6603 = vmatpush1.msra.mxu0 0.0
          %6604 = vmatprep.subr.mxu0 0.0
          %6605 = vmatpush1.msra.mxu0 0.0
          %6606 = vmatprep.subr.mxu0 0.0
          %6607 = vmatpush1.msra.mxu0 0.0
          %6608 = vmatprep.subr.mxu0 0.0
          %6609 = vmatpush1.msra.mxu0 0.0
          %6610 = vmatprep.subr.mxu0 0.0
          %6611 = vmatpush1.msra.mxu0 0.0
          %6612 = vmatprep.subr.mxu0 0.0
          %6613 = vmatpush1.msra.mxu0 0.0
          %6614 = vmatprep.subr.mxu0 0.0
          %6615 = vmatpush1.msra.mxu0 0.0
          %6616 = vmatprep.subr.mxu0 0.0
          %6617 = vmatpush1.msra.mxu0 0.0
          %6618 = vmatprep.subr.mxu0 0.0
          %6619 = vmatpush1.msra.mxu0 0.0
          %6620 = vmatprep.subr.mxu0 0.0
          %6621 = vmatpush1.msra.mxu0 0.0
          %6622 = vmatprep.subr.mxu0 0.0
          %6623 = vmatpush1.msra.mxu0 0.0
          %6624 = vmatprep.subr.mxu0 0.0
          %6625 = vmatpush1.msra.mxu0 0.0
          %6626 = vmatprep.subr.mxu0 0.0
          %6627 = vmatpush1.msra.mxu0 0.0
          %6628 = vmatprep.subr.mxu0 0.0
          %6629 = vmatpush1.msra.mxu0 0.0
          %6630 = vmatprep.subr.mxu0 0.0
          %6631 = vmatpush1.msra.mxu0 0.0
          %6632 = vmatprep.subr.mxu0 0.0
          %6633 = vmatpush1.msra.mxu0 0.0
          %6634 = vmatprep.mubr.f32.mxu0 0.0
          %6635 = vmatmul.mubr.f32.gmra.mrb[0].mxu0 %v6468
          %v6636 = vpop.f32.mrb[0].mxu0
          %v6637 = vadd.f32 0.0, %v6636
          %v6638 = vpop.f32.mrb[0].mxu0
          %6639 = vmatprep.mubr.f32.mxu0 0.0
          %6640 = vmatmul.mubr.f32.gmra.mrb[0].mxu0 %v6471
          %v6641 = vpop.f32.mrb[0].mxu0
          %v6642 = vadd.f32 0.0, %v6641
          %v6643 = vpop.f32.mrb[0].mxu0
          %6644 = vmatprep.mubr.f32.mxu0 0.0
          %6645 = vmatmul.mubr.f32.gmra.mrb[0].mxu0 %v6474
          %v6646 = vpop.f32.mrb[0].mxu0
          %v6647 = vadd.f32 0.0, %v6646
          %v6648 = vpop.f32.mrb[0].mxu0
          %6649 = vmatprep.mubr.f32.mxu0 0.0
          %6650 = vmatmul.mubr.f32.gmra.mrb[0].mxu0 %v6477
          %v6651 = vpop.f32.mrb[0].mxu0
          %v6652 = vadd.f32 0.0, %v6651
          %v6653 = vpop.f32.mrb[0].mxu0
          %6654 = vdwg.mxu0
          %v6655 = vmax.f32 %v6549, %v6637
          %v6656 = vmax.f32 %v6554, %v6642
          %v6657 = vmax.f32 %v6559, %v6647
          %v6658 = vmax.f32 %v6564, %v6652
          %s6659 = smul.u32 %s3137, 32
          %s6660 = scalar_lea.vmem %s273, %s6659
          %vm6661 = vcmask 498688
          %6662 = vst.msk [vmem:[%s6660] sm:$0xff] %vm6661, %v6655
          %6663 = vst.msk [vmem:[%s6660 + $0x8] sm:$0xff] %vm6661, %v6656
          %6664 = vst.msk [vmem:[%s6660 + $0x10] sm:$0xff] %vm6661, %v6657
          %vm6665 = vcmask 495616
          %6666 = vst.msk [vmem:[%s6660 + $0x18] sm:$0x1f] %vm6665, %v6658
        $region68: #{accent_cnn_forward.2} parent=39 // loop_footer
          %s3141 = sadd.s32 1, %s3137
        $region69: #{accent_cnn_forward.2} parent=39 // loop_footer_branch
          %3136 = sbr.rel target = $region65
        $region70: #{accent_cnn_forward.2} parent=39 // loop_exit
          _
        %p6667 = scmp.lt.s32.totalorder %s20, 1
        %s6668 = scalar_select %p6667, %s20, 1
        %s6669 = smul.addr %s6668, 64
        %s6670 = smul.addr %s6669, 8
        %s6671 = scalar_lea.vmem %s5, %s6670
        // Predicated region
        $region71: #{accent_cnn_forward.2} parent=39 // pred_check
          %p6672 = pneg %p148
        $region72: #{accent_cnn_forward.2} parent=39 // pred_check_branch
          %6674 = sbr.rel (%p6672) target = $region74
        $region73: #{accent_cnn_forward.2} parent=39 // pred_region
          _
        $region74: #{accent_cnn_forward.2} parent=39 // pred_fallthru
          _
      $region40: #{accent_cnn_forward.2} parent=5 // pred_fallthru
        _
      %p6675 = scmp.le.s32.totalorder 2, %s15
      // Predicated region
      $region75: #{accent_cnn_forward.2} parent=5 // pred_check
        %p6676 = pneg %p6675
      $region76: #{accent_cnn_forward.2} parent=5 // pred_check_branch
        %6678 = sbr.rel (%p6676) target = $region78
      $region77: #{accent_cnn_forward.2} parent=5 // pred_region
        %s6679 = ssub.s32 %s15, 2
        // Predicated region
        $region79: #{accent_cnn_forward.2} parent=77 // pred_check
          %p6680 = pneg %p154
        $region80: #{accent_cnn_forward.2} parent=77 // pred_check_branch
          %6682 = sbr.rel (%p6680) target = $region82
        $region81: #{accent_cnn_forward.2} parent=77 // pred_region
          %p6683 = scmp.lt.s32.totalorder %s21, 1
          %s6684 = scalar_select %p6683, %s21, 1
          %s6685 = smul.addr %s6684, 64
          %s6686 = smul.addr %s6685, 8
          %s6687 = scalar_lea.vmem %s5, %s6686
        $region82: #{accent_cnn_forward.2} parent=77 // pred_fallthru
          _
      $region78: #{accent_cnn_forward.2} parent=5 // pred_fallthru
        _
    $region6: #{accent_cnn_forward.2} parent=1 // loop_footer
      %s19 = sadd.s32 1, %s15
    $region7: #{accent_cnn_forward.2} parent=1 // loop_footer_branch
      %14 = sbr.rel target = $region3
    $region8: #{accent_cnn_forward.2} parent=1 // loop_exit
      _
    %6688 = vsyncpa [#allocation4], 1
    %s6689 = scalar_lea.sflag [#allocation4], 1
    %6690 = vsyncpa %s6689, 1
    %6691 = vsyncpa [#allocation10], 1
    %6692 = vsyncpa [#allocation5], 1
    %s6693 = scalar_lea.sflag [#allocation5], 1
    %6694 = vsyncpa %s6693, 1
    %6695 = vsyncpa [#allocation8], 1

</llo_original>
